<compile_context>
chip_gen: v7x
topology: tpu7x:2x2x1
jax: 0.10.0
libtpu: 0.0.40
codegen_flags: <defaults>
</compile_context>

<pallas_src>
import functools

import jax
import jax.numpy as jnp
from jax import lax
from jax.experimental import pallas as pl
from jax.experimental.pallas import tpu as pltpu

EPS = 1e-5
LANE = 128          # TPU lane width: channel axis is padded to a multiple of this


def _round_up(v, m):
    return ((v + m - 1) // m) * m


# ------------------------------ fused BBlock kernel ------------------------------ #

def _bblock_kernel(xl_ref, xc_ref, xr_ref,
                   dw0_ref, pw0_ref, pb0_ref,
                   dws_ref, pws_ref, pbs_ref,
                   wsk_ref, bsk_ref,
                   o_ref, win_ref,
                   *, K, tile_t, halo_r, t_total, n_cells):
    """One whole BBlock for one (batch, time-tile) grid step; all intermediates in VMEM."""
    pad = K // 2
    rows = tile_t + 2 * halo_r                  # fixed window length for every cell
    cin_p = xl_ref.shape[2]
    cout_p = o_ref.shape[2]

    g0 = pl.program_id(1) * tile_t              # global start row of this output tile
    win_start = g0 - halo_r                     # global row of window row 0
    # Does any window row fall outside the real sequence [0, t_total)?  Only then must
    # Conv1d's zero padding be re-imposed between cells; interior tiles skip it all.
    needs_mask = jnp.logical_or(win_start < 0, win_start + rows > t_total)

    # (rows, 1) validity mask, built once per grid step (a few ops on `rows` elements).
    g = win_start + lax.broadcasted_iota(jnp.int32, (rows, 1), 0)
    mask = jnp.logical_and(g >= 0, g < t_total).astype(jnp.float32)

    # Assemble the haloed f32 window in VMEM scratch (all stores 8/128-aligned).
    win_ref[:halo_r, :cin_p] = xl_ref[0].astype(jnp.float32)
    win_ref[halo_r:halo_r + tile_t, :cin_p] = xc_ref[0].astype(jnp.float32)
    win_ref[halo_r + tile_t:, :cin_p] = xr_ref[0].astype(jnp.float32)

    def dw_mac(h, dw):
        # 'same'-length depthwise conv: out[r] = sum_k dw[k] * h[r + k - pad].
        # Time shifts are XLU rotations of the fixed (rows, C) window; the wraparound
        # corrupts at most `pad` rows per cell at each window edge, which stays inside
        # the halo_r guard band over all n_cells cells.
        acc = h * dw[pad:pad + 1, :]
        for k in range(K):                      # static unroll over the taps
            if k == pad:
                continue
            acc = acc + pltpu.roll(h, shift=(pad - k) % rows, axis=0) * dw[k:k + 1, :]
        return acc

    y = None
    c = cin_p                                   # channel width of the current cell input
    for i in range(n_cells):
        @pl.when(needs_mask)
        def _(c=c):
            # Re-impose Conv1d zero padding for this cell (boundary tiles only).
            win_ref[:, :c] = win_ref[:, :c] * mask

        h = win_ref[:, :c]
        if i == 0:
            dw, pw, pb = dw0_ref[...], pw0_ref[...], pb0_ref[...]
        else:
            dw, pw, pb = dws_ref[i - 1], pws_ref[i - 1], pbs_ref[i - 1]
        acc = dw_mac(h, dw)                     # f32 on VPU/XLU
        # 1x1 conv on the MXU; BatchNorm and the depthwise bias are folded into pw/pb.
        y = jnp.dot(acc.astype(jnp.bfloat16), pw,
                    preferred_element_type=jnp.float32) + pb
        if i != n_cells - 1:                    # last cell has no activation
            y = jnp.maximum(y, 0.0)
            win_ref[:, :cout_p] = y
            c = cout_p

    # Skip path (1x1 conv + folded BN) + residual add + ReLU, fused in the epilogue.
    skip = jnp.dot(xc_ref[0], wsk_ref[...], preferred_element_type=jnp.float32)
    skip = skip + bsk_ref[...]
    # f32 epilogue, single lane-dense bf16 store of the centre tile_t rows.
    o_ref[0] = jnp.maximum(y[halo_r:halo_r + tile_t, :] + skip, 0.0).astype(o_ref.dtype)


# --------------------------------- wrappers --------------------------------------- #

def _bblock_forward(x, bp, *, K, t_true, tile_t, halo_r,
                    single_buffer_weights=False, vmem_limit_bytes=None):
    """x: (N, T_pad, Cin_pad) bf16 -> (N, T_pad, Cout_pad) bf16 in ONE pallas_call."""
    n, t_pad, cin_p = x.shape
    cout_p = bp["pw0"].shape[1]
    n_cells = bp["pw_s"].shape[0] + 1
    rows = tile_t + 2 * halo_r
    cmax = max(cin_p, cout_p)
    assert halo_r % 8 == 0 and tile_t % halo_r == 0 and t_pad % tile_t == 0
    assert n_cells * (K // 2) <= halo_r
    nt = t_pad // tile_t
    tpb = tile_t // halo_r                      # halo blocks per time tile
    n_hb = t_pad // halo_r                      # halo blocks along padded time

    def const_spec(arr):
        nd = arr.ndim
        if single_buffer_weights:
            # Grid-invariant weights: single-buffer so wide configs (cout_p=512..1024)
            # do not double their VMEM footprint (matters on v7x's 64 MiB VMEM).
            return pl.BlockSpec(arr.shape, lambda i, j: (0,) * nd,
                                pipeline_mode=pl.Buffered(1))
        return pl.BlockSpec(arr.shape, lambda i, j: (0,) * nd)

    kernel = functools.partial(_bblock_kernel, K=K, tile_t=tile_t, halo_r=halo_r,
                               t_total=t_true, n_cells=n_cells)
    return pl.pallas_call(
        kernel,
        out_shape=jax.ShapeDtypeStruct((n, t_pad, cout_p), x.dtype),
        grid=(n, nt),
        in_specs=[
            # left halo / centre tile / right halo of x along time (clamped at ends;
            # the clamped duplicates are zeroed by the in-kernel boundary mask)
            pl.BlockSpec((1, halo_r, cin_p),
                         lambda i, j: (i, jnp.maximum(j * tpb - 1, 0), 0)),
            pl.BlockSpec((1, tile_t, cin_p), lambda i, j: (i, j, 0)),
            pl.BlockSpec((1, halo_r, cin_p),
                         lambda i, j: (i, jnp.minimum((j + 1) * tpb, n_hb - 1), 0)),
            # cell 0 (block-input channels), cells 1..n-1 stacked, skip 1x1 (+BN)
            const_spec(bp["dw0"]), const_spec(bp["pw0"]), const_spec(bp["pb0"]),
            const_spec(bp["dw_s"]), const_spec(bp["pw_s"]), const_spec(bp["pb_s"]),
            const_spec(bp["w_sk"]), const_spec(bp["b_sk"]),
        ],
        out_specs=pl.BlockSpec((1, tile_t, cout_p), lambda i, j: (i, j, 0)),
        scratch_shapes=[pltpu.VMEM((rows, cmax), jnp.float32)],
        compiler_params=pltpu.CompilerParams(
            dimension_semantics=("parallel", "parallel"),
            vmem_limit_bytes=vmem_limit_bytes),
    )(x, x, x,
      bp["dw0"], bp["pw0"], bp["pb0"],
      bp["dw_s"], bp["pw_s"], bp["pb_s"],
      bp["w_sk"], bp["b_sk"])


def _vmem_limit_bytes(bp, tile_t, halo_r, single_buffer_weights):
    """Rough per-step VMEM need; None when the default scoped limit already covers it."""
    cin_p, cout_p = bp["pw0"].shape
    rows = tile_t + 2 * halo_r
    wbuf = 1 if single_buffer_weights else 2
    weights = wbuf * sum(int(v.size) * v.dtype.itemsize for v in bp.values())
    acts = 2 * 2 * (rows * cin_p + tile_t * cout_p)      # bf16 in/out, double-buffered
    scratch = 4 * rows * max(cin_p, cout_p)
    need = weights + acts + scratch + (4 << 20)          # compiler slack
    if need <= (30 << 20):
        return None                                      # default scoped VMEM suffices
    # TODO(synk): configs needing > 64 MiB will not fit v7x's physical VMEM.
    return int(min(_round_up(need, 1 << 20), 96 << 20))


def bgroup_forward(x, params, *, tile_t_hint=512, single_buffer_weights=False):
    """x: (N, T, Cin) channels-last -> (N, T, Cout).  One fused kernel per BBlock."""
    n, t, cin = x.shape
    blocks = params["blocks"]
    K = params["kernel_size"]
    cout = params["cout"]
    cin_p = blocks[0]["pw0"].shape[0]
    n_cells = blocks[0]["pw_s"].shape[0] + 1

    # Halo guard band first (multiple of 8 sublanes), then a time tile that is a
    # multiple of it: big tiles amortise the ~0.35us/step overhead and keep matmul M
    # large, while small-T inputs are not over-padded.
    halo_r = _round_up(max(n_cells * (K // 2), 8), 8)
    tile_t = _round_up(min(max(tile_t_hint, halo_r), _round_up(t, halo_r)), halo_r)
    t_pad = _round_up(t, tile_t)
    # NOTE: keep n * (t_pad // tile_t) >= 2 so both v7x TensorCores get grid steps.

    # Single pad for the whole group: time rounded up to the tile, channels to the
    # lane width; activations travel through HBM in bf16 (f32 math inside kernels).
    h = jnp.pad(x, ((0, 0), (0, t_pad - t), (0, cin_p - cin))).astype(jnp.bfloat16)
    for bp in blocks:
        h = _bblock_forward(
            h, bp, K=K, t_true=t, tile_t=tile_t, halo_r=halo_r,
            single_buffer_weights=single_buffer_weights,
            vmem_limit_bytes=_vmem_limit_bytes(bp, tile_t, halo_r, single_buffer_weights))
    return h[:, :t, :cout].astype(x.dtype)


# ----------------------- deterministic params (eval-mode BN) ----------------------- #

def _bn_stats(key, c):
    kg, kb, km, kv = jax.random.split(key, 4)
    gamma = 1.0 + 0.1 * jax.random.normal(kg, (c,), jnp.float32)
    beta = 0.05 * jax.random.normal(kb, (c,), jnp.float32)
    mean = 0.05 * jax.random.normal(km, (c,), jnp.float32)
    var = 1.0 + 0.1 * jax.random.uniform(kv, (c,), jnp.float32)
    return gamma, beta, mean, var


def _fold_bn(gamma, beta, mean, var):
    scale = gamma / jnp.sqrt(var + EPS)
    shift = beta - mean * scale
    return scale, shift


def _pad2(a, rows, cols):
    return jnp.zeros((rows, cols), a.dtype).at[:a.shape[0], :a.shape[1]].set(a)


def _init_cell(key, cin, cout, k):
    k1, k2, k3, k4, k5 = jax.random.split(key, 5)
    g, b, m, v = _bn_stats(k5, cout)
    return {"dw": 0.3 * jax.random.normal(k1, (k, cin), jnp.float32),
            "dwb": 0.05 * jax.random.normal(k2, (cin,), jnp.float32),
            "pw": jax.random.normal(k3, (cin, cout), jnp.float32) / jnp.sqrt(cin),
            "pwb": 0.05 * jax.random.normal(k4, (cout,), jnp.float32),
            "gamma": g, "beta": b, "mean": m, "var": v}


def _init_skip(key, cin, cout):
    k1, k2, k3 = jax.random.split(key, 3)
    g, b, m, v = _bn_stats(k3, cout)
    return {"w": jax.random.normal(k1, (cin, cout), jnp.float32) / jnp.sqrt(cin),
            "b": 0.05 * jax.random.normal(k2, (cout,), jnp.float32),
            "gamma": g, "beta": b, "mean": m, "var": v}


def _prepare_cell(c, cin_p, cout_p):
    # Fold eval-mode BatchNorm AND the depthwise bias into the 1x1 conv, zero-pad
    # channels to the lane width and the depthwise taps to a multiple of 8 sublanes,
    # pre-cast matmul weights to bf16 (depthwise weights and biases stay f32).
    scale, shift = _fold_bn(c["gamma"], c["beta"], c["mean"], c["var"])
    pw = c["pw"] * scale[None, :]                       # (cin, cout), BN folded
    pb = c["pwb"] * scale + shift + c["dwb"] @ pw       # depthwise bias folded through 1x1
    k_pad = _round_up(c["dw"].shape[0], 8)
    dw = _pad2(c["dw"], k_pad, cin_p)                   # f32, tap-padded, lane-padded
    pw_p = _pad2(pw, cin_p, cout_p).astype(jnp.bfloat16)
    pb_p = _pad2(pb[None, :], 1, cout_p)
    return dw, pw_p, pb_p


def _prepare_block(raw, cin_p, cout_p):
    cells = raw["cells"]
    dw0, pw0, pb0 = _prepare_cell(cells[0], cin_p, cout_p)
    rest = [_prepare_cell(c, cout_p, cout_p) for c in cells[1:]]
    sk = raw["skip"]
    scale, shift = _fold_bn(sk["gamma"], sk["beta"], sk["mean"], sk["var"])
    w_sk = _pad2(sk["w"] * scale[None, :], cin_p, cout_p).astype(jnp.bfloat16)
    b_sk = _pad2((sk["b"] * scale + shift)[None, :], 1, cout_p)
    return {"dw0": dw0, "pw0": pw0, "pb0": pb0,
            "dw_s": jnp.stack([r[0] for r in rest]),
            "pw_s": jnp.stack([r[1] for r in rest]),
            "pb_s": jnp.stack([r[2] for r in rest]),
            "w_sk": w_sk, "b_sk": b_sk}


def init_bgroup(key, input_channels, output_channels, kernel_size,
                group_size=3, block_size=5):
    assert kernel_size % 2 == 1, "only odd kernel_size (what QuartzNet uses)"
    assert block_size >= 2
    cin_p = _round_up(input_channels, LANE)
    cout_p = _round_up(output_channels, LANE)
    blocks = []
    cin, cp = input_channels, cin_p
    for _ in range(group_size):
        key, kskip = jax.random.split(key)
        cells = []
        cc = cin
        for _ in range(block_size):
            key, kc = jax.random.split(key)
            cells.append(_init_cell(kc, cc, output_channels, kernel_size))
            cc = output_channels
        raw = {"cells": cells, "skip": _init_skip(kskip, cin, output_channels)}
        blocks.append(_prepare_block(raw, cp, cout_p))
        cin, cp = output_channels, cout_p
    return {"blocks": blocks, "cout": output_channels, "kernel_size": kernel_size}


# ------------------------------------- main ---------------------------------------- #

if __name__ == "__main__":
    # Small but TPU-shaped: channels pad to one 128-lane tile, time tiles to 512-row
    # matmul M blocks -> per-block grid (N, T_pad // tile_t) = (2, 3) "parallel" steps,
    # covering boundary-masked tiles, one interior (mask-free) tile and time padding.
    N, T = 2, 1280
    CIN, COUT, K = 64, 128, 3

    key = jax.random.PRNGKey(0)
    kx, kp = jax.random.split(key)
    # layout: (N, T, C) channels-last (PyTorch would be (N, C, T)).
    x = jax.random.normal(kx, (N, T, CIN), jnp.float32)

    params = init_bgroup(kp, CIN, COUT, K, group_size=3, block_size=5)

    out = jax.block_until_ready(bgroup_forward(x, params, tile_t_hint=512))
    assert out.shape == (N, T, COUT), out.shape
    assert bool(jnp.all(jnp.isfinite(out)))
    print("KERNEL_OK")
</pallas_src>

<mosaic_0001>
module attributes {stable_mosaic.version = 11 : i64} {
  func.func @_bblock_kernel(%arg0: i32, %arg1: i32, %arg2: memref<1x8x128xbf16, #tpu.memory_space<vmem>>, %arg3: memref<1x512x128xbf16, #tpu.memory_space<vmem>>, %arg4: memref<1x8x128xbf16, #tpu.memory_space<vmem>>, %arg5: memref<8x128xf32, #tpu.memory_space<vmem>>, %arg6: memref<128x128xbf16, #tpu.memory_space<vmem>>, %arg7: memref<1x128xf32, #tpu.memory_space<vmem>>, %arg8: memref<4x8x128xf32, #tpu.memory_space<vmem>>, %arg9: memref<4x128x128xbf16, #tpu.memory_space<vmem>>, %arg10: memref<4x1x128xf32, #tpu.memory_space<vmem>>, %arg11: memref<128x128xbf16, #tpu.memory_space<vmem>>, %arg12: memref<1x128xf32, #tpu.memory_space<vmem>>, %arg13: memref<1x512x128xbf16, #tpu.memory_space<vmem>>, %arg14: memref<528x128xf32, #tpu.memory_space<vmem>>) attributes {dimension_semantics = [#tpu.dimension_semantics<parallel>, #tpu.dimension_semantics<parallel>], iteration_bounds = array<i64: 2, 3>, scalar_prefetch = 0 : i64, scratch_operands = 1 : i64, tpu.core_type = #tpu.core_type<tc>, window_params = [{transform_indices = @transform_0, window_bounds = array<i64: 1, 8, 128>}, {transform_indices = @transform_1, window_bounds = array<i64: 1, 512, 128>}, {transform_indices = @transform_2, window_bounds = array<i64: 1, 8, 128>}, {pipeline_mode = #tpu.pipeline_mode<synchronous>, transform_indices = @transform_3, window_bounds = array<i64: 8, 128>}, {pipeline_mode = #tpu.pipeline_mode<synchronous>, transform_indices = @transform_4, window_bounds = array<i64: 128, 128>}, {pipeline_mode = #tpu.pipeline_mode<synchronous>, transform_indices = @transform_5, window_bounds = array<i64: 1, 128>}, {pipeline_mode = #tpu.pipeline_mode<synchronous>, transform_indices = @transform_6, window_bounds = array<i64: 4, 8, 128>}, {pipeline_mode = #tpu.pipeline_mode<synchronous>, transform_indices = @transform_7, window_bounds = array<i64: 4, 128, 128>}, {pipeline_mode = #tpu.pipeline_mode<synchronous>, transform_indices = @transform_8, window_bounds = array<i64: 4, 1, 128>}, {pipeline_mode = #tpu.pipeline_mode<synchronous>, transform_indices = @transform_9, window_bounds = array<i64: 128, 128>}, {pipeline_mode = #tpu.pipeline_mode<synchronous>, transform_indices = @transform_10, window_bounds = array<i64: 1, 128>}, {transform_indices = @transform_11, window_bounds = array<i64: 1, 512, 128>}]} {
    %c512_i32 = arith.constant 512 : i32
    %0 = arith.muli %arg1, %c512_i32 : i32
    %c8_i32 = arith.constant 8 : i32
    %1 = arith.subi %0, %c8_i32 : i32
    %c0_i32 = arith.constant 0 : i32
    %2 = arith.cmpi slt, %1, %c0_i32 : i32
    %c528_i32 = arith.constant 528 : i32
    %3 = arith.addi %1, %c528_i32 : i32
    %c1280_i32 = arith.constant 1280 : i32
    %4 = arith.cmpi sgt, %3, %c1280_i32 : i32
    %5 = arith.ori %2, %4 : i1
    %6 = tpu.iota {dimensions = array<i32: 0>} : vector<528x1xi32>
    %7 = vector.broadcast %1 : i32 to vector<528x1xi32>
    %8 = arith.addi %7, %6 : vector<528x1xi32>
    %c0_i32_0 = arith.constant 0 : i32
    %9 = vector.broadcast %c0_i32_0 : i32 to vector<528x1xi32>
    %10 = arith.cmpi sge, %8, %9 : vector<528x1xi32>
    %c1280_i32_1 = arith.constant 1280 : i32
    %11 = vector.broadcast %c1280_i32_1 : i32 to vector<528x1xi32>
    %12 = arith.cmpi slt, %8, %11 : vector<528x1xi32>
    %13 = arith.andi %10, %12 : vector<528x1xi1>
    %14 = arith.extui %13 : vector<528x1xi1> to vector<528x1xi32>
    %15 = arith.sitofp %14 : vector<528x1xi32> to vector<528x1xf32>
    %c0 = arith.constant 0 : index
    %c0_2 = arith.constant 0 : index
    %c0_3 = arith.constant 0 : index
    %16 = vector.load %arg2[%c0, %c0_2, %c0_3] : memref<1x8x128xbf16, #tpu.memory_space<vmem>>, vector<1x8x128xbf16>
    %17 = vector.shape_cast %16 : vector<1x8x128xbf16> to vector<8x128xbf16>
    %18 = arith.extf %17 : vector<8x128xbf16> to vector<8x128xf32>
    %c0_4 = arith.constant 0 : index
    %c0_5 = arith.constant 0 : index
    %19 = vector.load %arg14[%c0_4, %c0_5] : memref<528x128xf32, #tpu.memory_space<vmem>>, vector<8x128xf32>
    tpu.vector_store %arg14[%c0_4, %c0_5], %18 {strides = array<i32>} : memref<528x128xf32, #tpu.memory_space<vmem>>, vector<8x128xf32>,
    %c0_6 = arith.constant 0 : index
    %c0_7 = arith.constant 0 : index
    %c0_8 = arith.constant 0 : index
    %20 = vector.load %arg3[%c0_6, %c0_7, %c0_8] : memref<1x512x128xbf16, #tpu.memory_space<vmem>>, vector<1x512x128xbf16>
    %21 = vector.shape_cast %20 : vector<1x512x128xbf16> to vector<512x128xbf16>
    %22 = arith.extf %21 : vector<512x128xbf16> to vector<512x128xf32>
    %c8 = arith.constant 8 : index
    %c0_9 = arith.constant 0 : index
    %23 = vector.load %arg14[%c8, %c0_9] : memref<528x128xf32, #tpu.memory_space<vmem>>, vector<512x128xf32>
    tpu.vector_store %arg14[%c8, %c0_9], %22 {strides = array<i32>} : memref<528x128xf32, #tpu.memory_space<vmem>>, vector<512x128xf32>,
    %c0_10 = arith.constant 0 : index
    %c0_11 = arith.constant 0 : index
    %c0_12 = arith.constant 0 : index
    %24 = vector.load %arg4[%c0_10, %c0_11, %c0_12] : memref<1x8x128xbf16, #tpu.memory_space<vmem>>, vector<1x8x128xbf16>
    %25 = vector.shape_cast %24 : vector<1x8x128xbf16> to vector<8x128xbf16>
    %26 = arith.extf %25 : vector<8x128xbf16> to vector<8x128xf32>
    %c520 = arith.constant 520 : index
    %c0_13 = arith.constant 0 : index
    %27 = vector.load %arg14[%c520, %c0_13] : memref<528x128xf32, #tpu.memory_space<vmem>>, vector<8x128xf32>
    tpu.vector_store %arg14[%c520, %c0_13], %26 {strides = array<i32>} : memref<528x128xf32, #tpu.memory_space<vmem>>, vector<8x128xf32>,
    %28 = arith.extui %5 : i1 to i32
    %c0_i32_14 = arith.constant 0 : i32
    %29 = arith.cmpi ne, %28, %c0_i32_14 : i32
    scf.if %29 {
      %c0_104 = arith.constant 0 : index
      %c0_105 = arith.constant 0 : index
      %182 = vector.load %arg14[%c0_104, %c0_105] : memref<528x128xf32, #tpu.memory_space<vmem>>, vector<528x128xf32>
      %183 = vector.broadcast %15 : vector<528x1xf32> to vector<528x128xf32>
      %184 = arith.mulf %182, %183 : vector<528x128xf32>
      %c0_106 = arith.constant 0 : index
      %c0_107 = arith.constant 0 : index
      %185 = vector.load %arg14[%c0_106, %c0_107] : memref<528x128xf32, #tpu.memory_space<vmem>>, vector<528x128xf32>
      tpu.vector_store %arg14[%c0_106, %c0_107], %184 {strides = array<i32>} : memref<528x128xf32, #tpu.memory_space<vmem>>, vector<528x128xf32>,
    } else {
    }
    %c0_15 = arith.constant 0 : index
    %c0_16 = arith.constant 0 : index
    %30 = vector.load %arg14[%c0_15, %c0_16] : memref<528x128xf32, #tpu.memory_space<vmem>>, vector<528x128xf32>
    %c0_17 = arith.constant 0 : index
    %c0_18 = arith.constant 0 : index
    %31 = vector.load %arg5[%c0_17, %c0_18] : memref<8x128xf32, #tpu.memory_space<vmem>>, vector<8x128xf32>
    %c0_19 = arith.constant 0 : index
    %c0_20 = arith.constant 0 : index
    %32 = vector.load %arg6[%c0_19, %c0_20] : memref<128x128xbf16, #tpu.memory_space<vmem>>, vector<128x128xbf16>
    %c0_21 = arith.constant 0 : index
    %c0_22 = arith.constant 0 : index
    %33 = vector.load %arg7[%c0_21, %c0_22] : memref<1x128xf32, #tpu.memory_space<vmem>>, vector<1x128xf32>
    %34 = vector.extract_strided_slice %31 {offsets = [1, 0], sizes = [1, 128], strides = [1, 1]} : vector<8x128xf32> to vector<1x128xf32>
    %35 = vector.broadcast %34 : vector<1x128xf32> to vector<528x128xf32>
    %36 = arith.mulf %30, %35 : vector<528x128xf32>
    %c1_i32 = arith.constant 1 : i32
    %37 = tpu.dynamic_rotate %30 by %c1_i32 dim 0 : vector<528x128xf32>, i32 -> vector<528x128xf32>
    %38 = vector.extract_strided_slice %31 {offsets = [0, 0], sizes = [1, 128], strides = [1, 1]} : vector<8x128xf32> to vector<1x128xf32>
    %39 = vector.broadcast %38 : vector<1x128xf32> to vector<528x128xf32>
    %40 = arith.mulf %37, %39 : vector<528x128xf32>
    %41 = arith.addf %36, %40 : vector<528x128xf32>
    %c527_i32 = arith.constant 527 : i32
    %42 = tpu.dynamic_rotate %30 by %c527_i32 dim 0 : vector<528x128xf32>, i32 -> vector<528x128xf32>
    %43 = vector.extract_strided_slice %31 {offsets = [2, 0], sizes = [1, 128], strides = [1, 1]} : vector<8x128xf32> to vector<1x128xf32>
    %44 = vector.broadcast %43 : vector<1x128xf32> to vector<528x128xf32>
    %45 = arith.mulf %42, %44 : vector<528x128xf32>
    %46 = arith.addf %41, %45 : vector<528x128xf32>
    %47 = arith.truncf %46 : vector<528x128xf32> to vector<528x128xbf16>
    %cst = arith.constant dense<0.000000e+00> : vector<528x128xf32>
    %48 = tpu.matmul %47, %32, %cst {dimension_numbers = #tpu.dot_dimension_numbers<[1], [0], [0], [1], [0, 0, 1, 1], [], []>} : vector<528x128xbf16>, vector<128x128xbf16>, vector<528x128xf32> -> vector<528x128xf32>
    %49 = vector.broadcast %33 : vector<1x128xf32> to vector<528x128xf32>
    %50 = arith.addf %48, %49 : vector<528x128xf32>
    %cst_23 = arith.constant 0.000000e+00 : f32
    %51 = vector.broadcast %cst_23 : f32 to vector<528x128xf32>
    %52 = arith.maximumf %50, %51 : vector<528x128xf32>
    %c0_24 = arith.constant 0 : index
    %c0_25 = arith.constant 0 : index
    %53 = vector.load %arg14[%c0_24, %c0_25] : memref<528x128xf32, #tpu.memory_space<vmem>>, vector<528x128xf32>
    tpu.vector_store %arg14[%c0_24, %c0_25], %52 {strides = array<i32>} : memref<528x128xf32, #tpu.memory_space<vmem>>, vector<528x128xf32>,
    %54 = arith.extui %5 : i1 to i32
    %c0_i32_26 = arith.constant 0 : i32
    %55 = arith.cmpi ne, %54, %c0_i32_26 : i32
    scf.if %55 {
      %c0_104 = arith.constant 0 : index
      %c0_105 = arith.constant 0 : index
      %182 = vector.load %arg14[%c0_104, %c0_105] : memref<528x128xf32, #tpu.memory_space<vmem>>, vector<528x128xf32>
      %183 = vector.broadcast %15 : vector<528x1xf32> to vector<528x128xf32>
      %184 = arith.mulf %182, %183 : vector<528x128xf32>
      %c0_106 = arith.constant 0 : index
      %c0_107 = arith.constant 0 : index
      %185 = vector.load %arg14[%c0_106, %c0_107] : memref<528x128xf32, #tpu.memory_space<vmem>>, vector<528x128xf32>
      tpu.vector_store %arg14[%c0_106, %c0_107], %184 {strides = array<i32>} : memref<528x128xf32, #tpu.memory_space<vmem>>, vector<528x128xf32>,
    } else {
    }
    %c0_27 = arith.constant 0 : index
    %c0_28 = arith.constant 0 : index
    %56 = vector.load %arg14[%c0_27, %c0_28] : memref<528x128xf32, #tpu.memory_space<vmem>>, vector<528x128xf32>
    %c0_29 = arith.constant 0 : index
    %c0_30 = arith.constant 0 : index
    %c0_31 = arith.constant 0 : index
    %57 = vector.load %arg8[%c0_29, %c0_30, %c0_31] : memref<4x8x128xf32, #tpu.memory_space<vmem>>, vector<1x8x128xf32>
    %58 = vector.shape_cast %57 : vector<1x8x128xf32> to vector<8x128xf32>
    %c0_32 = arith.constant 0 : index
    %c0_33 = arith.constant 0 : index
    %c0_34 = arith.constant 0 : index
    %59 = vector.load %arg9[%c0_32, %c0_33, %c0_34] : memref<4x128x128xbf16, #tpu.memory_space<vmem>>, vector<1x128x128xbf16>
    %60 = vector.shape_cast %59 : vector<1x128x128xbf16> to vector<128x128xbf16>
    %c0_35 = arith.constant 0 : index
    %c0_36 = arith.constant 0 : index
    %c0_37 = arith.constant 0 : index
    %61 = vector.load %arg10[%c0_35, %c0_36, %c0_37] : memref<4x1x128xf32, #tpu.memory_space<vmem>>, vector<1x1x128xf32>
    %62 = vector.shape_cast %61 : vector<1x1x128xf32> to vector<1x128xf32>
    %63 = vector.extract_strided_slice %58 {offsets = [1, 0], sizes = [1, 128], strides = [1, 1]} : vector<8x128xf32> to vector<1x128xf32>
    %64 = vector.broadcast %63 : vector<1x128xf32> to vector<528x128xf32>
    %65 = arith.mulf %56, %64 : vector<528x128xf32>
    %c1_i32_38 = arith.constant 1 : i32
    %66 = tpu.dynamic_rotate %56 by %c1_i32_38 dim 0 : vector<528x128xf32>, i32 -> vector<528x128xf32>
    %67 = vector.extract_strided_slice %58 {offsets = [0, 0], sizes = [1, 128], strides = [1, 1]} : vector<8x128xf32> to vector<1x128xf32>
    %68 = vector.broadcast %67 : vector<1x128xf32> to vector<528x128xf32>
    %69 = arith.mulf %66, %68 : vector<528x128xf32>
    %70 = arith.addf %65, %69 : vector<528x128xf32>
    %c527_i32_39 = arith.constant 527 : i32
    %71 = tpu.dynamic_rotate %56 by %c527_i32_39 dim 0 : vector<528x128xf32>, i32 -> vector<528x128xf32>
    %72 = vector.extract_strided_slice %58 {offsets = [2, 0], sizes = [1, 128], strides = [1, 1]} : vector<8x128xf32> to vector<1x128xf32>
    %73 = vector.broadcast %72 : vector<1x128xf32> to vector<528x128xf32>
    %74 = arith.mulf %71, %73 : vector<528x128xf32>
    %75 = arith.addf %70, %74 : vector<528x128xf32>
    %76 = arith.truncf %75 : vector<528x128xf32> to vector<528x128xbf16>
    %cst_40 = arith.constant dense<0.000000e+00> : vector<528x128xf32>
    %77 = tpu.matmul %76, %60, %cst_40 {dimension_numbers = #tpu.dot_dimension_numbers<[1], [0], [0], [1], [0, 0, 1, 1], [], []>} : vector<528x128xbf16>, vector<128x128xbf16>, vector<528x128xf32> -> vector<528x128xf32>
    %78 = vector.broadcast %62 : vector<1x128xf32> to vector<528x128xf32>
    %79 = arith.addf %77, %78 : vector<528x128xf32>
    %cst_41 = arith.constant 0.000000e+00 : f32
    %80 = vector.broadcast %cst_41 : f32 to vector<528x128xf32>
    %81 = arith.maximumf %79, %80 : vector<528x128xf32>
    %c0_42 = arith.constant 0 : index
    %c0_43 = arith.constant 0 : index
    %82 = vector.load %arg14[%c0_42, %c0_43] : memref<528x128xf32, #tpu.memory_space<vmem>>, vector<528x128xf32>
    tpu.vector_store %arg14[%c0_42, %c0_43], %81 {strides = array<i32>} : memref<528x128xf32, #tpu.memory_space<vmem>>, vector<528x128xf32>,
    %83 = arith.extui %5 : i1 to i32
    %c0_i32_44 = arith.constant 0 : i32
    %84 = arith.cmpi ne, %83, %c0_i32_44 : i32
    scf.if %84 {
      %c0_104 = arith.constant 0 : index
      %c0_105 = arith.constant 0 : index
      %182 = vector.load %arg14[%c0_104, %c0_105] : memref<528x128xf32, #tpu.memory_space<vmem>>, vector<528x128xf32>
      %183 = vector.broadcast %15 : vector<528x1xf32> to vector<528x128xf32>
      %184 = arith.mulf %182, %183 : vector<528x128xf32>
      %c0_106 = arith.constant 0 : index
      %c0_107 = arith.constant 0 : index
      %185 = vector.load %arg14[%c0_106, %c0_107] : memref<528x128xf32, #tpu.memory_space<vmem>>, vector<528x128xf32>
      tpu.vector_store %arg14[%c0_106, %c0_107], %184 {strides = array<i32>} : memref<528x128xf32, #tpu.memory_space<vmem>>, vector<528x128xf32>,
    } else {
    }
    %c0_45 = arith.constant 0 : index
    %c0_46 = arith.constant 0 : index
    %85 = vector.load %arg14[%c0_45, %c0_46] : memref<528x128xf32, #tpu.memory_space<vmem>>, vector<528x128xf32>
    %c1 = arith.constant 1 : index
    %c0_47 = arith.constant 0 : index
    %c0_48 = arith.constant 0 : index
    %86 = vector.load %arg8[%c1, %c0_47, %c0_48] : memref<4x8x128xf32, #tpu.memory_space<vmem>>, vector<1x8x128xf32>
    %87 = vector.shape_cast %86 : vector<1x8x128xf32> to vector<8x128xf32>
    %c1_49 = arith.constant 1 : index
    %c0_50 = arith.constant 0 : index
    %c0_51 = arith.constant 0 : index
    %88 = vector.load %arg9[%c1_49, %c0_50, %c0_51] : memref<4x128x128xbf16, #tpu.memory_space<vmem>>, vector<1x128x128xbf16>
    %89 = vector.shape_cast %88 : vector<1x128x128xbf16> to vector<128x128xbf16>
    %c1_52 = arith.constant 1 : index
    %c0_53 = arith.constant 0 : index
    %c0_54 = arith.constant 0 : index
    %90 = vector.load %arg10[%c1_52, %c0_53, %c0_54] : memref<4x1x128xf32, #tpu.memory_space<vmem>>, vector<1x1x128xf32>
    %91 = vector.shape_cast %90 : vector<1x1x128xf32> to vector<1x128xf32>
    %92 = vector.extract_strided_slice %87 {offsets = [1, 0], sizes = [1, 128], strides = [1, 1]} : vector<8x128xf32> to vector<1x128xf32>
    %93 = vector.broadcast %92 : vector<1x128xf32> to vector<528x128xf32>
    %94 = arith.mulf %85, %93 : vector<528x128xf32>
    %c1_i32_55 = arith.constant 1 : i32
    %95 = tpu.dynamic_rotate %85 by %c1_i32_55 dim 0 : vector<528x128xf32>, i32 -> vector<528x128xf32>
    %96 = vector.extract_strided_slice %87 {offsets = [0, 0], sizes = [1, 128], strides = [1, 1]} : vector<8x128xf32> to vector<1x128xf32>
    %97 = vector.broadcast %96 : vector<1x128xf32> to vector<528x128xf32>
    %98 = arith.mulf %95, %97 : vector<528x128xf32>
    %99 = arith.addf %94, %98 : vector<528x128xf32>
    %c527_i32_56 = arith.constant 527 : i32
    %100 = tpu.dynamic_rotate %85 by %c527_i32_56 dim 0 : vector<528x128xf32>, i32 -> vector<528x128xf32>
    %101 = vector.extract_strided_slice %87 {offsets = [2, 0], sizes = [1, 128], strides = [1, 1]} : vector<8x128xf32> to vector<1x128xf32>
    %102 = vector.broadcast %101 : vector<1x128xf32> to vector<528x128xf32>
    %103 = arith.mulf %100, %102 : vector<528x128xf32>
    %104 = arith.addf %99, %103 : vector<528x128xf32>
    %105 = arith.truncf %104 : vector<528x128xf32> to vector<528x128xbf16>
    %cst_57 = arith.constant dense<0.000000e+00> : vector<528x128xf32>
    %106 = tpu.matmul %105, %89, %cst_57 {dimension_numbers = #tpu.dot_dimension_numbers<[1], [0], [0], [1], [0, 0, 1, 1], [], []>} : vector<528x128xbf16>, vector<128x128xbf16>, vector<528x128xf32> -> vector<528x128xf32>
    %107 = vector.broadcast %91 : vector<1x128xf32> to vector<528x128xf32>
    %108 = arith.addf %106, %107 : vector<528x128xf32>
    %cst_58 = arith.constant 0.000000e+00 : f32
    %109 = vector.broadcast %cst_58 : f32 to vector<528x128xf32>
    %110 = arith.maximumf %108, %109 : vector<528x128xf32>
    %c0_59 = arith.constant 0 : index
    %c0_60 = arith.constant 0 : index
    %111 = vector.load %arg14[%c0_59, %c0_60] : memref<528x128xf32, #tpu.memory_space<vmem>>, vector<528x128xf32>
    tpu.vector_store %arg14[%c0_59, %c0_60], %110 {strides = array<i32>} : memref<528x128xf32, #tpu.memory_space<vmem>>, vector<528x128xf32>,
    %112 = arith.extui %5 : i1 to i32
    %c0_i32_61 = arith.constant 0 : i32
    %113 = arith.cmpi ne, %112, %c0_i32_61 : i32
    scf.if %113 {
      %c0_104 = arith.constant 0 : index
      %c0_105 = arith.constant 0 : index
      %182 = vector.load %arg14[%c0_104, %c0_105] : memref<528x128xf32, #tpu.memory_space<vmem>>, vector<528x128xf32>
      %183 = vector.broadcast %15 : vector<528x1xf32> to vector<528x128xf32>
      %184 = arith.mulf %182, %183 : vector<528x128xf32>
      %c0_106 = arith.constant 0 : index
      %c0_107 = arith.constant 0 : index
      %185 = vector.load %arg14[%c0_106, %c0_107] : memref<528x128xf32, #tpu.memory_space<vmem>>, vector<528x128xf32>
      tpu.vector_store %arg14[%c0_106, %c0_107], %184 {strides = array<i32>} : memref<528x128xf32, #tpu.memory_space<vmem>>, vector<528x128xf32>,
    } else {
    }
    %c0_62 = arith.constant 0 : index
    %c0_63 = arith.constant 0 : index
    %114 = vector.load %arg14[%c0_62, %c0_63] : memref<528x128xf32, #tpu.memory_space<vmem>>, vector<528x128xf32>
    %c2 = arith.constant 2 : index
    %c0_64 = arith.constant 0 : index
    %c0_65 = arith.constant 0 : index
    %115 = vector.load %arg8[%c2, %c0_64, %c0_65] : memref<4x8x128xf32, #tpu.memory_space<vmem>>, vector<1x8x128xf32>
    %116 = vector.shape_cast %115 : vector<1x8x128xf32> to vector<8x128xf32>
    %c2_66 = arith.constant 2 : index
    %c0_67 = arith.constant 0 : index
    %c0_68 = arith.constant 0 : index
    %117 = vector.load %arg9[%c2_66, %c0_67, %c0_68] : memref<4x128x128xbf16, #tpu.memory_space<vmem>>, vector<1x128x128xbf16>
    %118 = vector.shape_cast %117 : vector<1x128x128xbf16> to vector<128x128xbf16>
    %c2_69 = arith.constant 2 : index
    %c0_70 = arith.constant 0 : index
    %c0_71 = arith.constant 0 : index
    %119 = vector.load %arg10[%c2_69, %c0_70, %c0_71] : memref<4x1x128xf32, #tpu.memory_space<vmem>>, vector<1x1x128xf32>
    %120 = vector.shape_cast %119 : vector<1x1x128xf32> to vector<1x128xf32>
    %121 = vector.extract_strided_slice %116 {offsets = [1, 0], sizes = [1, 128], strides = [1, 1]} : vector<8x128xf32> to vector<1x128xf32>
    %122 = vector.broadcast %121 : vector<1x128xf32> to vector<528x128xf32>
    %123 = arith.mulf %114, %122 : vector<528x128xf32>
    %c1_i32_72 = arith.constant 1 : i32
    %124 = tpu.dynamic_rotate %114 by %c1_i32_72 dim 0 : vector<528x128xf32>, i32 -> vector<528x128xf32>
    %125 = vector.extract_strided_slice %116 {offsets = [0, 0], sizes = [1, 128], strides = [1, 1]} : vector<8x128xf32> to vector<1x128xf32>
    %126 = vector.broadcast %125 : vector<1x128xf32> to vector<528x128xf32>
    %127 = arith.mulf %124, %126 : vector<528x128xf32>
    %128 = arith.addf %123, %127 : vector<528x128xf32>
    %c527_i32_73 = arith.constant 527 : i32
    %129 = tpu.dynamic_rotate %114 by %c527_i32_73 dim 0 : vector<528x128xf32>, i32 -> vector<528x128xf32>
    %130 = vector.extract_strided_slice %116 {offsets = [2, 0], sizes = [1, 128], strides = [1, 1]} : vector<8x128xf32> to vector<1x128xf32>
    %131 = vector.broadcast %130 : vector<1x128xf32> to vector<528x128xf32>
    %132 = arith.mulf %129, %131 : vector<528x128xf32>
    %133 = arith.addf %128, %132 : vector<528x128xf32>
    %134 = arith.truncf %133 : vector<528x128xf32> to vector<528x128xbf16>
    %cst_74 = arith.constant dense<0.000000e+00> : vector<528x128xf32>
    %135 = tpu.matmul %134, %118, %cst_74 {dimension_numbers = #tpu.dot_dimension_numbers<[1], [0], [0], [1], [0, 0, 1, 1], [], []>} : vector<528x128xbf16>, vector<128x128xbf16>, vector<528x128xf32> -> vector<528x128xf32>
    %136 = vector.broadcast %120 : vector<1x128xf32> to vector<528x128xf32>
    %137 = arith.addf %135, %136 : vector<528x128xf32>
    %cst_75 = arith.constant 0.000000e+00 : f32
    %138 = vector.broadcast %cst_75 : f32 to vector<528x128xf32>
    %139 = arith.maximumf %137, %138 : vector<528x128xf32>
    %c0_76 = arith.constant 0 : index
    %c0_77 = arith.constant 0 : index
    %140 = vector.load %arg14[%c0_76, %c0_77] : memref<528x128xf32, #tpu.memory_space<vmem>>, vector<528x128xf32>
    tpu.vector_store %arg14[%c0_76, %c0_77], %139 {strides = array<i32>} : memref<528x128xf32, #tpu.memory_space<vmem>>, vector<528x128xf32>,
    %141 = arith.extui %5 : i1 to i32
    %c0_i32_78 = arith.constant 0 : i32
    %142 = arith.cmpi ne, %141, %c0_i32_78 : i32
    scf.if %142 {
      %c0_104 = arith.constant 0 : index
      %c0_105 = arith.constant 0 : index
      %182 = vector.load %arg14[%c0_104, %c0_105] : memref<528x128xf32, #tpu.memory_space<vmem>>, vector<528x128xf32>
      %183 = vector.broadcast %15 : vector<528x1xf32> to vector<528x128xf32>
      %184 = arith.mulf %182, %183 : vector<528x128xf32>
      %c0_106 = arith.constant 0 : index
      %c0_107 = arith.constant 0 : index
      %185 = vector.load %arg14[%c0_106, %c0_107] : memref<528x128xf32, #tpu.memory_space<vmem>>, vector<528x128xf32>
      tpu.vector_store %arg14[%c0_106, %c0_107], %184 {strides = array<i32>} : memref<528x128xf32, #tpu.memory_space<vmem>>, vector<528x128xf32>,
    } else {
    }
    %c0_79 = arith.constant 0 : index
    %c0_80 = arith.constant 0 : index
    %143 = vector.load %arg14[%c0_79, %c0_80] : memref<528x128xf32, #tpu.memory_space<vmem>>, vector<528x128xf32>
    %c3 = arith.constant 3 : index
    %c0_81 = arith.constant 0 : index
    %c0_82 = arith.constant 0 : index
    %144 = vector.load %arg8[%c3, %c0_81, %c0_82] : memref<4x8x128xf32, #tpu.memory_space<vmem>>, vector<1x8x128xf32>
    %145 = vector.shape_cast %144 : vector<1x8x128xf32> to vector<8x128xf32>
    %c3_83 = arith.constant 3 : index
    %c0_84 = arith.constant 0 : index
    %c0_85 = arith.constant 0 : index
    %146 = vector.load %arg9[%c3_83, %c0_84, %c0_85] : memref<4x128x128xbf16, #tpu.memory_space<vmem>>, vector<1x128x128xbf16>
    %147 = vector.shape_cast %146 : vector<1x128x128xbf16> to vector<128x128xbf16>
    %c3_86 = arith.constant 3 : index
    %c0_87 = arith.constant 0 : index
    %c0_88 = arith.constant 0 : index
    %148 = vector.load %arg10[%c3_86, %c0_87, %c0_88] : memref<4x1x128xf32, #tpu.memory_space<vmem>>, vector<1x1x128xf32>
    %149 = vector.shape_cast %148 : vector<1x1x128xf32> to vector<1x128xf32>
    %150 = vector.extract_strided_slice %145 {offsets = [1, 0], sizes = [1, 128], strides = [1, 1]} : vector<8x128xf32> to vector<1x128xf32>
    %151 = vector.broadcast %150 : vector<1x128xf32> to vector<528x128xf32>
    %152 = arith.mulf %143, %151 : vector<528x128xf32>
    %c1_i32_89 = arith.constant 1 : i32
    %153 = tpu.dynamic_rotate %143 by %c1_i32_89 dim 0 : vector<528x128xf32>, i32 -> vector<528x128xf32>
    %154 = vector.extract_strided_slice %145 {offsets = [0, 0], sizes = [1, 128], strides = [1, 1]} : vector<8x128xf32> to vector<1x128xf32>
    %155 = vector.broadcast %154 : vector<1x128xf32> to vector<528x128xf32>
    %156 = arith.mulf %153, %155 : vector<528x128xf32>
    %157 = arith.addf %152, %156 : vector<528x128xf32>
    %c527_i32_90 = arith.constant 527 : i32
    %158 = tpu.dynamic_rotate %143 by %c527_i32_90 dim 0 : vector<528x128xf32>, i32 -> vector<528x128xf32>
    %159 = vector.extract_strided_slice %145 {offsets = [2, 0], sizes = [1, 128], strides = [1, 1]} : vector<8x128xf32> to vector<1x128xf32>
    %160 = vector.broadcast %159 : vector<1x128xf32> to vector<528x128xf32>
    %161 = arith.mulf %158, %160 : vector<528x128xf32>
    %162 = arith.addf %157, %161 : vector<528x128xf32>
    %163 = arith.truncf %162 : vector<528x128xf32> to vector<528x128xbf16>
    %cst_91 = arith.constant dense<0.000000e+00> : vector<528x128xf32>
    %164 = tpu.matmul %163, %147, %cst_91 {dimension_numbers = #tpu.dot_dimension_numbers<[1], [0], [0], [1], [0, 0, 1, 1], [], []>} : vector<528x128xbf16>, vector<128x128xbf16>, vector<528x128xf32> -> vector<528x128xf32>
    %165 = vector.broadcast %149 : vector<1x128xf32> to vector<528x128xf32>
    %166 = arith.addf %164, %165 : vector<528x128xf32>
    %c0_92 = arith.constant 0 : index
    %c0_93 = arith.constant 0 : index
    %c0_94 = arith.constant 0 : index
    %167 = vector.load %arg3[%c0_92, %c0_93, %c0_94] : memref<1x512x128xbf16, #tpu.memory_space<vmem>>, vector<1x512x128xbf16>
    %168 = vector.shape_cast %167 : vector<1x512x128xbf16> to vector<512x128xbf16>
    %c0_95 = arith.constant 0 : index
    %c0_96 = arith.constant 0 : index
    %169 = vector.load %arg11[%c0_95, %c0_96] : memref<128x128xbf16, #tpu.memory_space<vmem>>, vector<128x128xbf16>
    %cst_97 = arith.constant dense<0.000000e+00> : vector<512x128xf32>
    %170 = tpu.matmul %168, %169, %cst_97 {dimension_numbers = #tpu.dot_dimension_numbers<[1], [0], [0], [1], [0, 0, 1, 1], [], []>} : vector<512x128xbf16>, vector<128x128xbf16>, vector<512x128xf32> -> vector<512x128xf32>
    %c0_98 = arith.constant 0 : index
    %c0_99 = arith.constant 0 : index
    %171 = vector.load %arg12[%c0_98, %c0_99] : memref<1x128xf32, #tpu.memory_space<vmem>>, vector<1x128xf32>
    %172 = vector.broadcast %171 : vector<1x128xf32> to vector<512x128xf32>
    %173 = arith.addf %170, %172 : vector<512x128xf32>
    %174 = vector.extract_strided_slice %166 {offsets = [8, 0], sizes = [512, 128], strides = [1, 1]} : vector<528x128xf32> to vector<512x128xf32>
    %175 = arith.addf %174, %173 : vector<512x128xf32>
    %cst_100 = arith.constant 0.000000e+00 : f32
    %176 = vector.broadcast %cst_100 : f32 to vector<512x128xf32>
    %177 = arith.maximumf %175, %176 : vector<512x128xf32>
    %178 = arith.truncf %177 : vector<512x128xf32> to vector<512x128xbf16>
    %c0_101 = arith.constant 0 : index
    %c0_102 = arith.constant 0 : index
    %c0_103 = arith.constant 0 : index
    %179 = vector.load %arg13[%c0_101, %c0_102, %c0_103] : memref<1x512x128xbf16, #tpu.memory_space<vmem>>, vector<1x512x128xbf16>
    %180 = vector.shape_cast %179 : vector<1x512x128xbf16> to vector<512x128xbf16>
    %181 = vector.shape_cast %178 : vector<512x128xbf16> to vector<1x512x128xbf16>
    tpu.vector_store %arg13[%c0_101, %c0_102, %c0_103], %181 {strides = array<i32>} : memref<1x512x128xbf16, #tpu.memory_space<vmem>>, vector<1x512x128xbf16>,
    return
  }
  func.func @transform_0(%arg0: i32, %arg1: i32) -> (i32, i32, i32) {
    %c64_i32 = arith.constant 64 : i32
    %0 = arith.muli %arg1, %c64_i32 : i32
    %c1_i32 = arith.constant 1 : i32
    %1 = arith.subi %0, %c1_i32 : i32
    %c0_i32 = arith.constant 0 : i32
    %2 = arith.maxsi %1, %c0_i32 : i32
    %c0_i32_0 = arith.constant 0 : i32
    %c0_i32_1 = arith.constant 0 : i32
    return %arg0, %2, %c0_i32_0 : i32, i32, i32
  }
  func.func @transform_1(%arg0: i32, %arg1: i32) -> (i32, i32, i32) {
    %c0_i32 = arith.constant 0 : i32
    %c0_i32_0 = arith.constant 0 : i32
    return %arg0, %arg1, %c0_i32 : i32, i32, i32
  }
  func.func @transform_2(%arg0: i32, %arg1: i32) -> (i32, i32, i32) {
    %c1_i32 = arith.constant 1 : i32
    %0 = arith.addi %arg1, %c1_i32 : i32
    %c64_i32 = arith.constant 64 : i32
    %1 = arith.muli %0, %c64_i32 : i32
    %c191_i32 = arith.constant 191 : i32
    %2 = arith.minsi %1, %c191_i32 : i32
    %c0_i32 = arith.constant 0 : i32
    %c0_i32_0 = arith.constant 0 : i32
    return %arg0, %2, %c0_i32 : i32, i32, i32
  }
  func.func @transform_3(%arg0: i32, %arg1: i32) -> (i32, i32) {
    %c0_i32 = arith.constant 0 : i32
    %c0_i32_0 = arith.constant 0 : i32
    %c0_i32_1 = arith.constant 0 : i32
    return %c0_i32, %c0_i32_0 : i32, i32
  }
  func.func @transform_4(%arg0: i32, %arg1: i32) -> (i32, i32) {
    %c0_i32 = arith.constant 0 : i32
    %c0_i32_0 = arith.constant 0 : i32
    %c0_i32_1 = arith.constant 0 : i32
    return %c0_i32, %c0_i32_0 : i32, i32
  }
  func.func @transform_5(%arg0: i32, %arg1: i32) -> (i32, i32) {
    %c0_i32 = arith.constant 0 : i32
    %c0_i32_0 = arith.constant 0 : i32
    %c0_i32_1 = arith.constant 0 : i32
    return %c0_i32, %c0_i32_0 : i32, i32
  }
  func.func @transform_6(%arg0: i32, %arg1: i32) -> (i32, i32, i32) {
    %c0_i32 = arith.constant 0 : i32
    %c0_i32_0 = arith.constant 0 : i32
    %c0_i32_1 = arith.constant 0 : i32
    %c0_i32_2 = arith.constant 0 : i32
    return %c0_i32, %c0_i32_0, %c0_i32_1 : i32, i32, i32
  }
  func.func @transform_7(%arg0: i32, %arg1: i32) -> (i32, i32, i32) {
    %c0_i32 = arith.constant 0 : i32
    %c0_i32_0 = arith.constant 0 : i32
    %c0_i32_1 = arith.constant 0 : i32
    %c0_i32_2 = arith.constant 0 : i32
    return %c0_i32, %c0_i32_0, %c0_i32_1 : i32, i32, i32
  }
  func.func @transform_8(%arg0: i32, %arg1: i32) -> (i32, i32, i32) {
    %c0_i32 = arith.constant 0 : i32
    %c0_i32_0 = arith.constant 0 : i32
    %c0_i32_1 = arith.constant 0 : i32
    %c0_i32_2 = arith.constant 0 : i32
    return %c0_i32, %c0_i32_0, %c0_i32_1 : i32, i32, i32
  }
  func.func @transform_9(%arg0: i32, %arg1: i32) -> (i32, i32) {
    %c0_i32 = arith.constant 0 : i32
    %c0_i32_0 = arith.constant 0 : i32
    %c0_i32_1 = arith.constant 0 : i32
    return %c0_i32, %c0_i32_0 : i32, i32
  }
  func.func @transform_10(%arg0: i32, %arg1: i32) -> (i32, i32) {
    %c0_i32 = arith.constant 0 : i32
    %c0_i32_0 = arith.constant 0 : i32
    %c0_i32_1 = arith.constant 0 : i32
    return %c0_i32, %c0_i32_0 : i32, i32
  }
  func.func @transform_11(%arg0: i32, %arg1: i32) -> (i32, i32, i32) {
    %c0_i32 = arith.constant 0 : i32
    %c0_i32_0 = arith.constant 0 : i32
    return %arg0, %arg1, %c0_i32 : i32, i32, i32
  }
}

</mosaic_0001>

<llo_original>
// kernel: tpu_custom_call.1
$region0: #{tpu_custom_call.1}
  #allocation0 [shape = 'u32[]', space=smem, size = 0x4, offset = 0x4, fixed_abs, tag = 'smem constant byte address 0x4 - core index']
  #allocation1 [shape = 'u32[144,128]{1,0:T(1,128)}', space=vmem, size = 0x12000, scoped, tag = 'internal scratch']
  #allocation2 [shape = 'f32[528,128]{1,0:T(8,128)}', space=vmem, size = 0x42000, scoped, tag = 'scratch operand']
  %s0 = inlined_call_operand.hbm [shape: bf16[2,1536,128], index: 0, kind: input, shape index: {}]
  %s1 = inlined_call_operand.hbm [shape: bf16[2,1536,128], index: 1, kind: input, shape index: {}]
  %s2 = inlined_call_operand.hbm [shape: bf16[2,1536,128], index: 2, kind: input, shape index: {}]
  %s3 = inlined_call_operand.vmem [shape: f32[8,128], index: 3, kind: input, shape index: {}]
  %s4 = inlined_call_operand.hbm [shape: bf16[128,128], index: 4, kind: input, shape index: {}]
  %s5 = inlined_call_operand.vmem [shape: f32[1,128], index: 5, kind: input, shape index: {}]
  %s6 = inlined_call_operand.hbm [shape: f32[4,8,128], index: 6, kind: input, shape index: {}]
  %s7 = inlined_call_operand.hbm [shape: bf16[4,128,128], index: 7, kind: input, shape index: {}]
  %s8 = inlined_call_operand.vmem [shape: f32[4,1,128], index: 8, kind: input, shape index: {}]
  %s9 = inlined_call_operand.hbm [shape: bf16[128,128], index: 9, kind: input, shape index: {}]
  %s10 = inlined_call_operand.vmem [shape: f32[1,128], index: 10, kind: input, shape index: {}]
  %s11 = inlined_call_operand.hbm [shape: bf16[2,1536,128], index: 11, kind: output, shape index: {}]
  %s12 = sld [smem:[#allocation0]]
  $region125: #{tpu_custom_call.1} parent=0
    _
  %s14 = ssub.s32 1, %s12
  %s15 = scalar_select 0, %s14, %s12
  $region1: #{tpu_custom_call.1} parent=0
    #allocation3 [shape = 'u8[4096]{0}', space=vmem, size = 0x1000, scoped, tag = 'input window, operand 0']
    #allocation4 [shape = 's32[2]{0}', space=sflag, size = 0x8, scoped, tag = 'scoped memory for tpu_custom_call.1']
    #allocation5 [shape = 's32[2]{0}', space=sflag, size = 0x8, scoped, tag = 'scoped memory for tpu_custom_call.1']
    #allocation6 [shape = 'u8[262144]{0}', space=vmem, size = 0x40000, scoped, tag = 'input window, operand 1']
    #allocation7 [shape = 's32[2]{0}', space=sflag, size = 0x8, scoped, tag = 'scoped memory for tpu_custom_call.1']
    #allocation8 [shape = 'u8[4096]{0}', space=vmem, size = 0x1000, scoped, tag = 'input window, operand 2']
    #allocation9 [shape = 'u8[32768]{0}', space=vmem, size = 0x8000, scoped, tag = 'input window, operand 4, single buffered']
    #allocation10 [shape = 's32[1]{0}', space=sflag, size = 0x4, scoped, tag = 'scoped memory for tpu_custom_call.1']
    #allocation11 [shape = 'u8[16384]{0}', space=vmem, size = 0x4000, scoped, tag = 'input window, operand 6, single buffered']
    #allocation12 [shape = 'u8[131072]{0}', space=vmem, size = 0x20000, scoped, tag = 'input window, operand 7, single buffered']
    #allocation13 [shape = 's32[1]{0}', space=sflag, size = 0x4, scoped, tag = 'scoped memory for tpu_custom_call.1']
    #allocation14 [shape = 'u8[32768]{0}', space=vmem, size = 0x8000, scoped, tag = 'input window, operand 9, single buffered']
    #allocation15 [shape = 'u8[262144]{0}', space=vmem, size = 0x40000, scoped, tag = 'output window, operand 0']
    %16 = vsyncpa [#allocation4], 0
    %s17 = scalar_lea.sflag [#allocation4], 1
    %18 = vsyncpa %s17, 0
    %19 = vsyncpa [#allocation7], 0
    %s20 = scalar_lea.sflag [#allocation7], 1
    %21 = vsyncpa %s20, 0
    %22 = vsyncpa [#allocation10], 0
    %23 = vsyncpa [#allocation13], 0
    %24 = vsyncpa [#allocation5], 0
    %s25 = scalar_lea.sflag [#allocation5], 1
    %26 = vsyncpa %s25, 0
    loop: start=0, step=1, limit=8
    $region2: #{tpu_custom_call.1} parent=1 // loop_pre_header
      _
    $region3: #{tpu_custom_call.1} parent=1 // loop_header
      %s28 = sphi 0, %s32
      %p29 = scmp.ge.s32.totalorder %s28, 8
      %s35 = sphi 0, %s47
      %s36 = sphi 0, %s43
      %s37 = sphi 0, %s35
      %s38 = sphi 0, %s36
      %s39 = sphi 0, %s37
      %s40 = sphi 0, %s38
      %s60 = sphi 0, %s62
      %s63 = sphi 0, %s60
      %s64 = sphi 0, %s63
      %s80 = sphi 0, %s64
      %s88 = sphi 0, %s90
      %s91 = sphi 0, %s88
      %s92 = sphi 0, %s91
      %s108 = sphi 0, %s92
      %s124 = sphi 0, %s126
      %s127 = sphi 0, %s124
      %s128 = sphi 0, %s127
      %s144 = sphi 0, %s128
      %s148 = sphi 0, %s148
      %s150 = sphi 0, %s148
      %s151 = sphi 0, %s150
      %s165 = sphi 0, %s151
      %s169 = sphi 0, %s169
      %s171 = sphi 0, %s169
      %s172 = sphi 0, %s171
      %s186 = sphi 0, %s172
      %s190 = sphi 0, %s190
      %s192 = sphi 0, %s190
      %s193 = sphi 0, %s192
      %s207 = sphi 0, %s193
      %s211 = sphi 0, %s211
      %s213 = sphi 0, %s211
      %s214 = sphi 0, %s213
      %s228 = sphi 0, %s214
      %s232 = sphi 0, %s232
      %s234 = sphi 0, %s232
      %s235 = sphi 0, %s234
      %s249 = sphi 0, %s235
      %s253 = sphi 0, %s253
      %s255 = sphi 0, %s253
      %s256 = sphi 0, %s255
      %s270 = sphi 0, %s256
      %s274 = sphi 0, %s274
      %s276 = sphi 0, %s274
      %s277 = sphi 0, %s276
      %s291 = sphi 0, %s277
      %s295 = sphi 0, %s295
      %s297 = sphi 0, %s295
      %s298 = sphi 0, %s297
      %s312 = sphi 0, %s298
      %s320 = sphi 0, %s322
      %s323 = sphi 0, %s320
      %s324 = sphi 0, %s323
      %s340 = sphi 0, %s324
    $region4: #{tpu_custom_call.1} parent=1 // loop_header_branch
      %31 = sbr.rel (%p29) target = $region8
    $region5: #{tpu_custom_call.1} parent=1 // loop_body
      %s33 = ssub.s32 %s28, 1
      %s34 = ssub.s32 %s28, 2
      %s41 = sadd.s32 1, %s36
      %p42 = scmp.ge.s32.totalorder %s41, 3
      %s43 = scalar_select %p42, 0, %s41
      %s44 = sadd.s32 1, %s35
      %s45 = scalar_select %p42, %s44, %s35
      %p46 = scmp.ge.s32.totalorder %s45, 2
      %s47 = scalar_select %p46, 0, %s45
      %s48 = smul.u32 %s36, 64
      %s49 = ssub.s32 %s48, 1
      %p50 = scmp.gt.s32.totalorder %s49, 0
      %s51 = scalar_select %p50, %s49, 0
      %s52 = smul.u32 %s43, 64
      %s53 = ssub.s32 %s52, 1
      %p54 = scmp.gt.s32.totalorder %s53, 0
      %s55 = scalar_select %p54, %s53, 0
      %s56 = ssub.s32 %s35, %s47
      %s57 = ssub.s32 %s51, %s55
      %s58 = sor.u32 %s56, %s57
      %p59 = scmp.eq.s32.totalorder %s58, 0
      %s61 = sadd.s32 %s60, 1
      %s62 = scalar_select %p59, %s60, %s61
      %p65 = pneg %p59
      %p66 = scmp.eq.s32.totalorder %s28, 5
      %p67 = por %p65, %p66
      %p68 = scmp.ne.s32.totalorder %s60, %s63
      %p69 = scmp.eq.s32.totalorder %s28, 0
      %p70 = por %p68, %p69
      %p71 = scmp.ne.s32.totalorder %s60, %s63
      %p72 = scmp.eq.s32.totalorder %s33, 5
      %p73 = por %p71, %p72
      %p74 = scmp.ne.s32.totalorder %s63, %s64
      %p75 = scmp.eq.s32.totalorder %s33, 0
      %p76 = por %p74, %p75
      %p77 = scmp.ne.s32.totalorder %s63, %s64
      %p78 = scmp.eq.s32.totalorder %s34, 5
      %p79 = por %p77, %p78
      %p81 = scmp.ne.s32.totalorder %s64, %s80
      %p82 = scmp.eq.s32.totalorder %s34, 0
      %p83 = por %p81, %p82
      %s84 = ssub.s32 %s35, %s47
      %s85 = ssub.s32 %s36, %s43
      %s86 = sor.u32 %s84, %s85
      %p87 = scmp.eq.s32.totalorder %s86, 0
      %s89 = sadd.s32 %s88, 1
      %s90 = scalar_select %p87, %s88, %s89
      %p93 = pneg %p87
      %p94 = scmp.eq.s32.totalorder %s28, 5
      %p95 = por %p93, %p94
      %p96 = scmp.ne.s32.totalorder %s88, %s91
      %p97 = scmp.eq.s32.totalorder %s28, 0
      %p98 = por %p96, %p97
      %p99 = scmp.ne.s32.totalorder %s88, %s91
      %p100 = scmp.eq.s32.totalorder %s33, 5
      %p101 = por %p99, %p100
      %p102 = scmp.ne.s32.totalorder %s91, %s92
      %p103 = scmp.eq.s32.totalorder %s33, 0
      %p104 = por %p102, %p103
      %p105 = scmp.ne.s32.totalorder %s91, %s92
      %p106 = scmp.eq.s32.totalorder %s34, 5
      %p107 = por %p105, %p106
      %p109 = scmp.ne.s32.totalorder %s92, %s108
      %p110 = scmp.eq.s32.totalorder %s34, 0
      %p111 = por %p109, %p110
      %s112 = sadd.s32 %s36, 1
      %s113 = smul.u32 %s112, 64
      %p114 = scmp.lt.s32.totalorder %s113, 191
      %s115 = scalar_select %p114, %s113, 191
      %s116 = sadd.s32 %s43, 1
      %s117 = smul.u32 %s116, 64
      %p118 = scmp.lt.s32.totalorder %s117, 191
      %s119 = scalar_select %p118, %s117, 191
      %s120 = ssub.s32 %s35, %s47
      %s121 = ssub.s32 %s115, %s119
      %s122 = sor.u32 %s120, %s121
      %p123 = scmp.eq.s32.totalorder %s122, 0
      %s125 = sadd.s32 %s124, 1
      %s126 = scalar_select %p123, %s124, %s125
      %p129 = pneg %p123
      %p130 = scmp.eq.s32.totalorder %s28, 5
      %p131 = por %p129, %p130
      %p132 = scmp.ne.s32.totalorder %s124, %s127
      %p133 = scmp.eq.s32.totalorder %s28, 0
      %p134 = por %p132, %p133
      %p135 = scmp.ne.s32.totalorder %s124, %s127
      %p136 = scmp.eq.s32.totalorder %s33, 5
      %p137 = por %p135, %p136
      %p138 = scmp.ne.s32.totalorder %s127, %s128
      %p139 = scmp.eq.s32.totalorder %s33, 0
      %p140 = por %p138, %p139
      %p141 = scmp.ne.s32.totalorder %s127, %s128
      %p142 = scmp.eq.s32.totalorder %s34, 5
      %p143 = por %p141, %p142
      %p145 = scmp.ne.s32.totalorder %s128, %s144
      %p146 = scmp.eq.s32.totalorder %s34, 0
      %p147 = por %p145, %p146
      %s149 = sadd.s32 %s148, 1
      %p152 = scmp.eq.s32.totalorder %s28, 5
      %p153 = scmp.ne.s32.totalorder %s148, %s150
      %p154 = scmp.eq.s32.totalorder %s28, 0
      %p155 = por %p153, %p154
      %p156 = scmp.ne.s32.totalorder %s148, %s150
      %p157 = scmp.eq.s32.totalorder %s33, 5
      %p158 = por %p156, %p157
      %p159 = scmp.ne.s32.totalorder %s150, %s151
      %p160 = scmp.eq.s32.totalorder %s33, 0
      %p161 = por %p159, %p160
      %p162 = scmp.ne.s32.totalorder %s150, %s151
      %p163 = scmp.eq.s32.totalorder %s34, 5
      %p164 = por %p162, %p163
      %p166 = scmp.ne.s32.totalorder %s151, %s165
      %p167 = scmp.eq.s32.totalorder %s34, 0
      %p168 = por %p166, %p167
      %s170 = sadd.s32 %s169, 1
      %p173 = scmp.eq.s32.totalorder %s28, 5
      %p174 = scmp.ne.s32.totalorder %s169, %s171
      %p175 = scmp.eq.s32.totalorder %s28, 0
      %p176 = por %p174, %p175
      %p177 = scmp.ne.s32.totalorder %s169, %s171
      %p178 = scmp.eq.s32.totalorder %s33, 5
      %p179 = por %p177, %p178
      %p180 = scmp.ne.s32.totalorder %s171, %s172
      %p181 = scmp.eq.s32.totalorder %s33, 0
      %p182 = por %p180, %p181
      %p183 = scmp.ne.s32.totalorder %s171, %s172
      %p184 = scmp.eq.s32.totalorder %s34, 5
      %p185 = por %p183, %p184
      %p187 = scmp.ne.s32.totalorder %s172, %s186
      %p188 = scmp.eq.s32.totalorder %s34, 0
      %p189 = por %p187, %p188
      %s191 = sadd.s32 %s190, 1
      %p194 = scmp.eq.s32.totalorder %s28, 5
      %p195 = scmp.ne.s32.totalorder %s190, %s192
      %p196 = scmp.eq.s32.totalorder %s28, 0
      %p197 = por %p195, %p196
      %p198 = scmp.ne.s32.totalorder %s190, %s192
      %p199 = scmp.eq.s32.totalorder %s33, 5
      %p200 = por %p198, %p199
      %p201 = scmp.ne.s32.totalorder %s192, %s193
      %p202 = scmp.eq.s32.totalorder %s33, 0
      %p203 = por %p201, %p202
      %p204 = scmp.ne.s32.totalorder %s192, %s193
      %p205 = scmp.eq.s32.totalorder %s34, 5
      %p206 = por %p204, %p205
      %p208 = scmp.ne.s32.totalorder %s193, %s207
      %p209 = scmp.eq.s32.totalorder %s34, 0
      %p210 = por %p208, %p209
      %s212 = sadd.s32 %s211, 1
      %p215 = scmp.eq.s32.totalorder %s28, 5
      %p216 = scmp.ne.s32.totalorder %s211, %s213
      %p217 = scmp.eq.s32.totalorder %s28, 0
      %p218 = por %p216, %p217
      %p219 = scmp.ne.s32.totalorder %s211, %s213
      %p220 = scmp.eq.s32.totalorder %s33, 5
      %p221 = por %p219, %p220
      %p222 = scmp.ne.s32.totalorder %s213, %s214
      %p223 = scmp.eq.s32.totalorder %s33, 0
      %p224 = por %p222, %p223
      %p225 = scmp.ne.s32.totalorder %s213, %s214
      %p226 = scmp.eq.s32.totalorder %s34, 5
      %p227 = por %p225, %p226
      %p229 = scmp.ne.s32.totalorder %s214, %s228
      %p230 = scmp.eq.s32.totalorder %s34, 0
      %p231 = por %p229, %p230
      %s233 = sadd.s32 %s232, 1
      %p236 = scmp.eq.s32.totalorder %s28, 5
      %p237 = scmp.ne.s32.totalorder %s232, %s234
      %p238 = scmp.eq.s32.totalorder %s28, 0
      %p239 = por %p237, %p238
      %p240 = scmp.ne.s32.totalorder %s232, %s234
      %p241 = scmp.eq.s32.totalorder %s33, 5
      %p242 = por %p240, %p241
      %p243 = scmp.ne.s32.totalorder %s234, %s235
      %p244 = scmp.eq.s32.totalorder %s33, 0
      %p245 = por %p243, %p244
      %p246 = scmp.ne.s32.totalorder %s234, %s235
      %p247 = scmp.eq.s32.totalorder %s34, 5
      %p248 = por %p246, %p247
      %p250 = scmp.ne.s32.totalorder %s235, %s249
      %p251 = scmp.eq.s32.totalorder %s34, 0
      %p252 = por %p250, %p251
      %s254 = sadd.s32 %s253, 1
      %p257 = scmp.eq.s32.totalorder %s28, 5
      %p258 = scmp.ne.s32.totalorder %s253, %s255
      %p259 = scmp.eq.s32.totalorder %s28, 0
      %p260 = por %p258, %p259
      %p261 = scmp.ne.s32.totalorder %s253, %s255
      %p262 = scmp.eq.s32.totalorder %s33, 5
      %p263 = por %p261, %p262
      %p264 = scmp.ne.s32.totalorder %s255, %s256
      %p265 = scmp.eq.s32.totalorder %s33, 0
      %p266 = por %p264, %p265
      %p267 = scmp.ne.s32.totalorder %s255, %s256
      %p268 = scmp.eq.s32.totalorder %s34, 5
      %p269 = por %p267, %p268
      %p271 = scmp.ne.s32.totalorder %s256, %s270
      %p272 = scmp.eq.s32.totalorder %s34, 0
      %p273 = por %p271, %p272
      %s275 = sadd.s32 %s274, 1
      %p278 = scmp.eq.s32.totalorder %s28, 5
      %p279 = scmp.ne.s32.totalorder %s274, %s276
      %p280 = scmp.eq.s32.totalorder %s28, 0
      %p281 = por %p279, %p280
      %p282 = scmp.ne.s32.totalorder %s274, %s276
      %p283 = scmp.eq.s32.totalorder %s33, 5
      %p284 = por %p282, %p283
      %p285 = scmp.ne.s32.totalorder %s276, %s277
      %p286 = scmp.eq.s32.totalorder %s33, 0
      %p287 = por %p285, %p286
      %p288 = scmp.ne.s32.totalorder %s276, %s277
      %p289 = scmp.eq.s32.totalorder %s34, 5
      %p290 = por %p288, %p289
      %p292 = scmp.ne.s32.totalorder %s277, %s291
      %p293 = scmp.eq.s32.totalorder %s34, 0
      %p294 = por %p292, %p293
      %s296 = sadd.s32 %s295, 1
      %p299 = scmp.eq.s32.totalorder %s28, 5
      %p300 = scmp.ne.s32.totalorder %s295, %s297
      %p301 = scmp.eq.s32.totalorder %s28, 0
      %p302 = por %p300, %p301
      %p303 = scmp.ne.s32.totalorder %s295, %s297
      %p304 = scmp.eq.s32.totalorder %s33, 5
      %p305 = por %p303, %p304
      %p306 = scmp.ne.s32.totalorder %s297, %s298
      %p307 = scmp.eq.s32.totalorder %s33, 0
      %p308 = por %p306, %p307
      %p309 = scmp.ne.s32.totalorder %s297, %s298
      %p310 = scmp.eq.s32.totalorder %s34, 5
      %p311 = por %p309, %p310
      %p313 = scmp.ne.s32.totalorder %s298, %s312
      %p314 = scmp.eq.s32.totalorder %s34, 0
      %p315 = por %p313, %p314
      %s316 = ssub.s32 %s35, %s47
      %s317 = ssub.s32 %s36, %s43
      %s318 = sor.u32 %s316, %s317
      %p319 = scmp.eq.s32.totalorder %s318, 0
      %s321 = sadd.s32 %s320, 1
      %s322 = scalar_select %p319, %s320, %s321
      %p325 = pneg %p319
      %p326 = scmp.eq.s32.totalorder %s28, 5
      %p327 = por %p325, %p326
      %p328 = scmp.ne.s32.totalorder %s320, %s323
      %p329 = scmp.eq.s32.totalorder %s28, 0
      %p330 = por %p328, %p329
      %p331 = scmp.ne.s32.totalorder %s320, %s323
      %p332 = scmp.eq.s32.totalorder %s33, 5
      %p333 = por %p331, %p332
      %p334 = scmp.ne.s32.totalorder %s323, %s324
      %p335 = scmp.eq.s32.totalorder %s33, 0
      %p336 = por %p334, %p335
      %p337 = scmp.ne.s32.totalorder %s323, %s324
      %p338 = scmp.eq.s32.totalorder %s34, 5
      %p339 = por %p337, %p338
      %p341 = scmp.ne.s32.totalorder %s324, %s340
      %p342 = scmp.eq.s32.totalorder %s34, 0
      %p343 = por %p341, %p342
      %p344 = scmp.le.s32.totalorder 1, %s28
      %p345 = scmp.lt.s32.totalorder %s28, 7
      %p346 = pnand %p344, %p345
      %p347 = pneg %p346
      // Predicated region
      $region9: #{tpu_custom_call.1} parent=5 // pred_check
        _
      $region10: #{tpu_custom_call.1} parent=5 // pred_check_branch
        %349 = sbr.rel (%p346) target = $region12
      $region11: #{tpu_custom_call.1} parent=5 // pred_region
        %s350 = ssub.s32 %s28, 1
        // Predicated region
        $region13: #{tpu_custom_call.1} parent=11 // pred_check
          %p351 = pneg %p161
        $region14: #{tpu_custom_call.1} parent=11 // pred_check_branch
          %353 = sbr.rel (%p351) target = $region16
        $region15: #{tpu_custom_call.1} parent=11 // pred_region
          _
        $region16: #{tpu_custom_call.1} parent=11 // pred_fallthru
          _
        // Predicated region
        $region17: #{tpu_custom_call.1} parent=11 // pred_check
          %p354 = pneg %p182
        $region18: #{tpu_custom_call.1} parent=11 // pred_check_branch
          %356 = sbr.rel (%p354) target = $region20
        $region19: #{tpu_custom_call.1} parent=11 // pred_region
          %s358 = ssub.s32 1024, 1024
          %359 = vsyncadd [#allocation10], %s358
          %s360 = sshll.u32 [#allocation9], 4
          %s361 = int_to_ptr.vmem [resolvable:$true] %s360
          %366 = dma.hbm_to_vmem [thread:$0]  %s4, 1024, %s361, [#allocation10], 64, 64, 4
        $region20: #{tpu_custom_call.1} parent=11 // pred_fallthru
          _
        // Predicated region
        $region21: #{tpu_custom_call.1} parent=11 // pred_check
          %p367 = pneg %p203
        $region22: #{tpu_custom_call.1} parent=11 // pred_check_branch
          %369 = sbr.rel (%p367) target = $region24
        $region23: #{tpu_custom_call.1} parent=11 // pred_region
          _
        $region24: #{tpu_custom_call.1} parent=11 // pred_fallthru
          _
        // Predicated region
        $region25: #{tpu_custom_call.1} parent=11 // pred_check
          %p370 = pneg %p224
        $region26: #{tpu_custom_call.1} parent=11 // pred_check_branch
          %372 = sbr.rel (%p370) target = $region28
        $region27: #{tpu_custom_call.1} parent=11 // pred_region
          %s374 = ssub.s32 512, 512
          %375 = vsyncadd [#allocation10], %s374
          %s376 = sshll.u32 [#allocation11], 4
          %s377 = int_to_ptr.vmem [resolvable:$true] %s376
          %382 = dma.hbm_to_vmem [thread:$0]  %s6, 512, %s377, [#allocation10], 128, 128, 8
        $region28: #{tpu_custom_call.1} parent=11 // pred_fallthru
          _
        // Predicated region
        $region29: #{tpu_custom_call.1} parent=11 // pred_check
          %p383 = pneg %p245
        $region30: #{tpu_custom_call.1} parent=11 // pred_check_branch
          %385 = sbr.rel (%p383) target = $region32
        $region31: #{tpu_custom_call.1} parent=11 // pred_region
          %s387 = ssub.s32 4096, 4096
          %388 = vsyncadd [#allocation13], %s387
          %s389 = sshll.u32 [#allocation12], 4
          %s390 = int_to_ptr.vmem [resolvable:$true] %s389
          %395 = dma.hbm_to_vmem [thread:$0]  %s7, 4096, %s390, [#allocation13], 64, 64, 4
        $region32: #{tpu_custom_call.1} parent=11 // pred_fallthru
          _
        // Predicated region
        $region33: #{tpu_custom_call.1} parent=11 // pred_check
          %p396 = pneg %p266
        $region34: #{tpu_custom_call.1} parent=11 // pred_check_branch
          %398 = sbr.rel (%p396) target = $region36
        $region35: #{tpu_custom_call.1} parent=11 // pred_region
          _
        $region36: #{tpu_custom_call.1} parent=11 // pred_fallthru
          _
        // Predicated region
        $region37: #{tpu_custom_call.1} parent=11 // pred_check
          %p399 = pneg %p287
        $region38: #{tpu_custom_call.1} parent=11 // pred_check_branch
          %401 = sbr.rel (%p399) target = $region40
        $region39: #{tpu_custom_call.1} parent=11 // pred_region
          %s403 = ssub.s32 1024, 1024
          %404 = vsyncadd [#allocation13], %s403
          %s405 = sshll.u32 [#allocation14], 4
          %s406 = int_to_ptr.vmem [resolvable:$true] %s405
          %411 = dma.hbm_to_vmem [thread:$0]  %s9, 1024, %s406, [#allocation13], 64, 64, 4
        $region40: #{tpu_custom_call.1} parent=11 // pred_fallthru
          _
        // Predicated region
        $region41: #{tpu_custom_call.1} parent=11 // pred_check
          %p412 = pneg %p308
        $region42: #{tpu_custom_call.1} parent=11 // pred_check_branch
          %414 = sbr.rel (%p412) target = $region44
        $region43: #{tpu_custom_call.1} parent=11 // pred_region
          _
        $region44: #{tpu_custom_call.1} parent=11 // pred_fallthru
          _
      $region12: #{tpu_custom_call.1} parent=5 // pred_fallthru
        _
      %p415 = scmp.lt.s32.totalorder %s28, 6
      // Predicated region
      $region45: #{tpu_custom_call.1} parent=5 // pred_check
        %p416 = pneg %p415
      $region46: #{tpu_custom_call.1} parent=5 // pred_check_branch
        %418 = sbr.rel (%p416) target = $region48
      $region47: #{tpu_custom_call.1} parent=5 // pred_region
        // Predicated region
        $region49: #{tpu_custom_call.1} parent=47 // pred_check
          %p419 = pneg %p70
        $region50: #{tpu_custom_call.1} parent=47 // pred_check_branch
          %421 = sbr.rel (%p419) target = $region52
        $region51: #{tpu_custom_call.1} parent=47 // pred_region
          %s422 = sand.u32 %s60, 1
          %s423 = scalar_lea.sflag [#allocation4], %s422
          %s424 = sand.u32 %s60, 1
          %s425 = smul.addr %s424, 4
          %s426 = scalar_lea.vmem [#allocation3], %s425
          %s427 = smul.u32 %s36, 64
          %s428 = ssub.s32 %s427, 1
          %p429 = scmp.gt.s32.totalorder %s428, 0
          %s430 = scalar_select %p429, %s428, 0
          %s432 = ssub.s32 64, 64
          %433 = vsyncadd %s423, %s432
          %s434 = smul.addr %s35, 192
          %s435 = sadd.s32 %s430, %s434
          %s436 = smul.addr %s435, 64
          %s437 = scalar_lea.hbm %s0, %s436
          %s439 = sshll.u32 %s426, 4
          %s440 = int_to_ptr.vmem [resolvable:$true] %s439
          %442 = dma.hbm_to_vmem [thread:$0]  %s437, 64, %s440, %s423
        $region52: #{tpu_custom_call.1} parent=47 // pred_fallthru
          _
        // Predicated region
        $region53: #{tpu_custom_call.1} parent=47 // pred_check
          %p443 = pneg %p98
        $region54: #{tpu_custom_call.1} parent=47 // pred_check_branch
          %445 = sbr.rel (%p443) target = $region56
        $region55: #{tpu_custom_call.1} parent=47 // pred_region
          %s446 = sand.u32 %s28, 1
          %s447 = scalar_lea.sflag [#allocation7], %s446
          %s448 = sand.u32 %s88, 1
          %s449 = smul.addr %s448, 256
          %s450 = scalar_lea.vmem [#allocation6], %s449
          %s451 = smul.u32 64, %s36
          %s453 = ssub.s32 4096, 4096
          %454 = vsyncadd %s447, %s453
          %s455 = smul.addr %s35, 192
          %s456 = sadd.s32 %s451, %s455
          %s457 = smul.addr %s456, 64
          %s458 = scalar_lea.hbm %s1, %s457
          %s459 = sshll.u32 %s450, 4
          %s460 = int_to_ptr.vmem [resolvable:$true] %s459
          %465 = dma.hbm_to_vmem [thread:$0]  %s458, 4096, %s460, %s447, 64, 64, 4
        $region56: #{tpu_custom_call.1} parent=47 // pred_fallthru
          _
        // Predicated region
        $region57: #{tpu_custom_call.1} parent=47 // pred_check
          %p466 = pneg %p134
        $region58: #{tpu_custom_call.1} parent=47 // pred_check_branch
          %468 = sbr.rel (%p466) target = $region60
        $region59: #{tpu_custom_call.1} parent=47 // pred_region
          %s469 = sand.u32 %s28, 1
          %s470 = scalar_lea.sflag [#allocation7], %s469
          %s471 = sand.u32 %s124, 1
          %s472 = smul.addr %s471, 4
          %s473 = scalar_lea.vmem [#allocation8], %s472
          %s474 = sadd.s32 %s36, 1
          %s475 = smul.u32 %s474, 64
          %p476 = scmp.lt.s32.totalorder %s475, 191
          %s477 = scalar_select %p476, %s475, 191
          %s479 = ssub.s32 64, 64
          %480 = vsyncadd %s470, %s479
          %s481 = smul.addr %s35, 192
          %s482 = sadd.s32 %s477, %s481
          %s483 = smul.addr %s482, 64
          %s484 = scalar_lea.hbm %s2, %s483
          %s486 = sshll.u32 %s473, 4
          %s487 = int_to_ptr.vmem [resolvable:$true] %s486
          %489 = dma.hbm_to_vmem [thread:$0]  %s484, 64, %s487, %s470
        $region60: #{tpu_custom_call.1} parent=47 // pred_fallthru
          _
      $region48: #{tpu_custom_call.1} parent=5 // pred_fallthru
        _
      %p490 = scmp.le.s32.totalorder 1, %s28
      %p491 = scmp.lt.s32.totalorder %s28, 7
      %p492 = pnand %p490, %p491
      %p493 = pneg %p492
      // Predicated region
      $region61: #{tpu_custom_call.1} parent=5 // pred_check
        _
      $region62: #{tpu_custom_call.1} parent=5 // pred_check_branch
        %495 = sbr.rel (%p492) target = $region64
      $region63: #{tpu_custom_call.1} parent=5 // pred_region
        %s496 = ssub.s32 %s28, 1
        %s497 = sand.u32 %s63, 1
        %s498 = scalar_lea.sflag [#allocation4], %s497
        %s499 = sand.u32 %s63, 1
        %s500 = smul.addr %s499, 4
        %s501 = scalar_lea.vmem [#allocation3], %s500
        // Predicated region
        $region65: #{tpu_custom_call.1} parent=63 // pred_check
          %p502 = pneg %p76
        $region66: #{tpu_custom_call.1} parent=63 // pred_check_branch
          %504 = sbr.rel (%p502) target = $region68
        $region67: #{tpu_custom_call.1} parent=63 // pred_region
          %505 = dma.done %s498, 64
        $region68: #{tpu_custom_call.1} parent=63 // pred_fallthru
          _
        %s506 = sand.u32 %s33, 1
        %s507 = scalar_lea.sflag [#allocation7], %s506
        %s508 = sand.u32 %s91, 1
        %s509 = smul.addr %s508, 256
        %s510 = scalar_lea.vmem [#allocation6], %s509
        // Predicated region
        $region69: #{tpu_custom_call.1} parent=63 // pred_check
          %p511 = pneg %p104
        $region70: #{tpu_custom_call.1} parent=63 // pred_check_branch
          %513 = sbr.rel (%p511) target = $region72
        $region71: #{tpu_custom_call.1} parent=63 // pred_region
          %514 = dma.done %s507, 4096
        $region72: #{tpu_custom_call.1} parent=63 // pred_fallthru
          _
        %s515 = sand.u32 %s33, 1
        %s516 = scalar_lea.sflag [#allocation7], %s515
        %s517 = sand.u32 %s127, 1
        %s518 = smul.addr %s517, 4
        %s519 = scalar_lea.vmem [#allocation8], %s518
        // Predicated region
        $region73: #{tpu_custom_call.1} parent=63 // pred_check
          %p520 = pneg %p140
        $region74: #{tpu_custom_call.1} parent=63 // pred_check_branch
          %522 = sbr.rel (%p520) target = $region76
        $region75: #{tpu_custom_call.1} parent=63 // pred_region
          %523 = dma.done %s516, 64
        $region76: #{tpu_custom_call.1} parent=63 // pred_fallthru
          _
        // Predicated region
        $region77: #{tpu_custom_call.1} parent=63 // pred_check
          %p524 = pneg %p182
        $region78: #{tpu_custom_call.1} parent=63 // pred_check_branch
          %526 = sbr.rel (%p524) target = $region80
        $region79: #{tpu_custom_call.1} parent=63 // pred_region
          %527 = dma.done [#allocation10], 1024
        $region80: #{tpu_custom_call.1} parent=63 // pred_fallthru
          _
        // Predicated region
        $region81: #{tpu_custom_call.1} parent=63 // pred_check
          %p528 = pneg %p224
        $region82: #{tpu_custom_call.1} parent=63 // pred_check_branch
          %530 = sbr.rel (%p528) target = $region84
        $region83: #{tpu_custom_call.1} parent=63 // pred_region
          %531 = dma.done [#allocation10], 512
        $region84: #{tpu_custom_call.1} parent=63 // pred_fallthru
          _
        // Predicated region
        $region85: #{tpu_custom_call.1} parent=63 // pred_check
          %p532 = pneg %p245
        $region86: #{tpu_custom_call.1} parent=63 // pred_check_branch
          %534 = sbr.rel (%p532) target = $region88
        $region87: #{tpu_custom_call.1} parent=63 // pred_region
          %535 = dma.done [#allocation13], 4096
        $region88: #{tpu_custom_call.1} parent=63 // pred_fallthru
          _
        // Predicated region
        $region89: #{tpu_custom_call.1} parent=63 // pred_check
          %p536 = pneg %p287
        $region90: #{tpu_custom_call.1} parent=63 // pred_check_branch
          %538 = sbr.rel (%p536) target = $region92
        $region91: #{tpu_custom_call.1} parent=63 // pred_region
          %539 = dma.done [#allocation13], 1024
        $region92: #{tpu_custom_call.1} parent=63 // pred_fallthru
          _
        %s540 = sand.u32 %s63, 1
        %s541 = scalar_lea.sflag [#allocation4], %s540
        %s542 = sand.u32 %s63, 1
        %s543 = smul.addr %s542, 4
        %s544 = scalar_lea.vmem [#allocation3], %s543
        %p545 = pneg %p76
        %p546 = pneg %p73
        %s547 = sand.u32 %s33, 1
        %s548 = scalar_lea.sflag [#allocation7], %s547
        %s549 = sand.u32 %s91, 1
        %s550 = smul.addr %s549, 256
        %s551 = scalar_lea.vmem [#allocation6], %s550
        %p552 = pneg %p104
        %p553 = pneg %p101
        %s554 = sand.u32 %s33, 1
        %s555 = scalar_lea.sflag [#allocation7], %s554
        %s556 = sand.u32 %s127, 1
        %s557 = smul.addr %s556, 4
        %s558 = scalar_lea.vmem [#allocation8], %s557
        %p559 = pneg %p140
        %p560 = pneg %p137
        %p561 = pneg %p161
        %p562 = pneg %p158
        %p563 = pneg %p182
        %p564 = pneg %p179
        %p565 = pneg %p203
        %p566 = pneg %p200
        %p567 = pneg %p224
        %p568 = pneg %p221
        %p569 = pneg %p245
        %p570 = pneg %p242
        %p571 = pneg %p266
        %p572 = pneg %p263
        %p573 = pneg %p287
        %p574 = pneg %p284
        %p575 = pneg %p308
        %p576 = pneg %p305
        %p577 = pneg %p336
        %p578 = pneg %p333
        %s579 = sand.u32 %s323, 1
        %s580 = scalar_lea.sflag [#allocation5], %s579
        %s581 = sand.u32 %s323, 1
        %s582 = smul.addr %s581, 256
        %s583 = scalar_lea.vmem [#allocation15], %s582
        %s584 = smul.u32 %s38, 64
        %s585 = ssub.s32 %s584, 1
        %p586 = scmp.gt.s32.totalorder %s585, 0
        %s587 = scalar_select %p586, %s585, 0
        %s588 = smul.u32 64, %s38
        %s589 = sadd.s32 %s38, 1
        %s590 = smul.u32 %s589, 64
        %p591 = scmp.lt.s32.totalorder %s590, 191
        %s592 = scalar_select %p591, %s590, 191
        %s593 = smul.u32 64, %s38
        %s595 = smul.u32 %s38, 512
        %s596 = ssub.s32 %s595, 8
        %p597 = scmp.lt.s32.totalorder %s596, 0
        %s598 = sadd.s32 %s595, 520
        %p599 = scmp.gt.s32.totalorder %s598, 1280
        %p600 = por %p597, %p599
        %v601 = vlaneseq
        %v602 = vshrl.u32 %v601, 7
        %v603 = vadd.s32 %v602, 8
        %v604 = vadd.s32 %v602, 16
        %v605 = vadd.s32 %v602, 24
        %v606 = vadd.s32 %v602, 32
        %v607 = vadd.s32 %v602, 40
        %v608 = vadd.s32 %v602, 48
        %v609 = vadd.s32 %v602, 56
        %v610 = vadd.s32 %v602, 64
        %v611 = vadd.s32 %v602, 72
        %v612 = vadd.s32 %v602, 80
        %v613 = vadd.s32 %v602, 88
        %v614 = vadd.s32 %v602, 96
        %v615 = vadd.s32 %v602, 104
        %v616 = vadd.s32 %v602, 112
        %v617 = vadd.s32 %v602, 120
        %v618 = vadd.s32 %v602, 128
        %v619 = vadd.s32 %v602, 136
        %v620 = vadd.s32 %v602, 144
        %v621 = vadd.s32 %v602, 152
        %v622 = vadd.s32 %v602, 160
        %v623 = vadd.s32 %v602, 168
        %v624 = vadd.s32 %v602, 176
        %v625 = vadd.s32 %v602, 184
        %v626 = vadd.s32 %v602, 192
        %v627 = vadd.s32 %v602, 200
        %v628 = vadd.s32 %v602, 208
        %v629 = vadd.s32 %v602, 216
        %v630 = vadd.s32 %v602, 224
        %v631 = vadd.s32 %v602, 232
        %v632 = vadd.s32 %v602, 240
        %v633 = vadd.s32 %v602, 248
        %v634 = vadd.s32 %v602, 256
        %v635 = vadd.s32 %v602, 264
        %v636 = vadd.s32 %v602, 272
        %v637 = vadd.s32 %v602, 280
        %v638 = vadd.s32 %v602, 288
        %v639 = vadd.s32 %v602, 296
        %v640 = vadd.s32 %v602, 304
        %v641 = vadd.s32 %v602, 312
        %v642 = vadd.s32 %v602, 320
        %v643 = vadd.s32 %v602, 328
        %v644 = vadd.s32 %v602, 336
        %v645 = vadd.s32 %v602, 344
        %v646 = vadd.s32 %v602, 352
        %v647 = vadd.s32 %v602, 360
        %v648 = vadd.s32 %v602, 368
        %v649 = vadd.s32 %v602, 376
        %v650 = vadd.s32 %v602, 384
        %v651 = vadd.s32 %v602, 392
        %v652 = vadd.s32 %v602, 400
        %v653 = vadd.s32 %v602, 408
        %v654 = vadd.s32 %v602, 416
        %v655 = vadd.s32 %v602, 424
        %v656 = vadd.s32 %v602, 432
        %v657 = vadd.s32 %v602, 440
        %v658 = vadd.s32 %v602, 448
        %v659 = vadd.s32 %v602, 456
        %v660 = vadd.s32 %v602, 464
        %v661 = vadd.s32 %v602, 472
        %v662 = vadd.s32 %v602, 480
        %v663 = vadd.s32 %v602, 488
        %v664 = vadd.s32 %v602, 496
        %v665 = vadd.s32 %v602, 504
        %v666 = vadd.s32 %v602, 512
        %v667 = vadd.s32 %v602, 520
        %v668 = vstv %s596
        %v669 = vadd.s32 %v668, %v602
        %v670 = vadd.s32 %v668, %v603
        %v671 = vadd.s32 %v668, %v604
        %v672 = vadd.s32 %v668, %v605
        %v673 = vadd.s32 %v668, %v606
        %v674 = vadd.s32 %v668, %v607
        %v675 = vadd.s32 %v668, %v608
        %v676 = vadd.s32 %v668, %v609
        %v677 = vadd.s32 %v668, %v610
        %v678 = vadd.s32 %v668, %v611
        %v679 = vadd.s32 %v668, %v612
        %v680 = vadd.s32 %v668, %v613
        %v681 = vadd.s32 %v668, %v614
        %v682 = vadd.s32 %v668, %v615
        %v683 = vadd.s32 %v668, %v616
        %v684 = vadd.s32 %v668, %v617
        %v685 = vadd.s32 %v668, %v618
        %v686 = vadd.s32 %v668, %v619
        %v687 = vadd.s32 %v668, %v620
        %v688 = vadd.s32 %v668, %v621
        %v689 = vadd.s32 %v668, %v622
        %v690 = vadd.s32 %v668, %v623
        %v691 = vadd.s32 %v668, %v624
        %v692 = vadd.s32 %v668, %v625
        %v693 = vadd.s32 %v668, %v626
        %v694 = vadd.s32 %v668, %v627
        %v695 = vadd.s32 %v668, %v628
        %v696 = vadd.s32 %v668, %v629
        %v697 = vadd.s32 %v668, %v630
        %v698 = vadd.s32 %v668, %v631
        %v699 = vadd.s32 %v668, %v632
        %v700 = vadd.s32 %v668, %v633
        %v701 = vadd.s32 %v668, %v634
        %v702 = vadd.s32 %v668, %v635
        %v703 = vadd.s32 %v668, %v636
        %v704 = vadd.s32 %v668, %v637
        %v705 = vadd.s32 %v668, %v638
        %v706 = vadd.s32 %v668, %v639
        %v707 = vadd.s32 %v668, %v640
        %v708 = vadd.s32 %v668, %v641
        %v709 = vadd.s32 %v668, %v642
        %v710 = vadd.s32 %v668, %v643
        %v711 = vadd.s32 %v668, %v644
        %v712 = vadd.s32 %v668, %v645
        %v713 = vadd.s32 %v668, %v646
        %v714 = vadd.s32 %v668, %v647
        %v715 = vadd.s32 %v668, %v648
        %v716 = vadd.s32 %v668, %v649
        %v717 = vadd.s32 %v668, %v650
        %v718 = vadd.s32 %v668, %v651
        %v719 = vadd.s32 %v668, %v652
        %v720 = vadd.s32 %v668, %v653
        %v721 = vadd.s32 %v668, %v654
        %v722 = vadd.s32 %v668, %v655
        %v723 = vadd.s32 %v668, %v656
        %v724 = vadd.s32 %v668, %v657
        %v725 = vadd.s32 %v668, %v658
        %v726 = vadd.s32 %v668, %v659
        %v727 = vadd.s32 %v668, %v660
        %v728 = vadd.s32 %v668, %v661
        %v729 = vadd.s32 %v668, %v662
        %v730 = vadd.s32 %v668, %v663
        %v731 = vadd.s32 %v668, %v664
        %v732 = vadd.s32 %v668, %v665
        %v733 = vadd.s32 %v668, %v666
        %v734 = vadd.s32 %v668, %v667
        %vm735 = vcmp.ge.s32.totalorder %v669, 0
        %vm736 = vcmp.ge.s32.totalorder %v670, 0
        %vm737 = vcmp.ge.s32.totalorder %v671, 0
        %vm738 = vcmp.ge.s32.totalorder %v672, 0
        %vm739 = vcmp.ge.s32.totalorder %v673, 0
        %vm740 = vcmp.ge.s32.totalorder %v674, 0
        %vm741 = vcmp.ge.s32.totalorder %v675, 0
        %vm742 = vcmp.ge.s32.totalorder %v676, 0
        %vm743 = vcmp.ge.s32.totalorder %v677, 0
        %vm744 = vcmp.ge.s32.totalorder %v678, 0
        %vm745 = vcmp.ge.s32.totalorder %v679, 0
        %vm746 = vcmp.ge.s32.totalorder %v680, 0
        %vm747 = vcmp.ge.s32.totalorder %v681, 0
        %vm748 = vcmp.ge.s32.totalorder %v682, 0
        %vm749 = vcmp.ge.s32.totalorder %v683, 0
        %vm750 = vcmp.ge.s32.totalorder %v684, 0
        %vm751 = vcmp.ge.s32.totalorder %v685, 0
        %vm752 = vcmp.ge.s32.totalorder %v686, 0
        %vm753 = vcmp.ge.s32.totalorder %v687, 0
        %vm754 = vcmp.ge.s32.totalorder %v688, 0
        %vm755 = vcmp.ge.s32.totalorder %v689, 0
        %vm756 = vcmp.ge.s32.totalorder %v690, 0
        %vm757 = vcmp.ge.s32.totalorder %v691, 0
        %vm758 = vcmp.ge.s32.totalorder %v692, 0
        %vm759 = vcmp.ge.s32.totalorder %v693, 0
        %vm760 = vcmp.ge.s32.totalorder %v694, 0
        %vm761 = vcmp.ge.s32.totalorder %v695, 0
        %vm762 = vcmp.ge.s32.totalorder %v696, 0
        %vm763 = vcmp.ge.s32.totalorder %v697, 0
        %vm764 = vcmp.ge.s32.totalorder %v698, 0
        %vm765 = vcmp.ge.s32.totalorder %v699, 0
        %vm766 = vcmp.ge.s32.totalorder %v700, 0
        %vm767 = vcmp.ge.s32.totalorder %v701, 0
        %vm768 = vcmp.ge.s32.totalorder %v702, 0
        %vm769 = vcmp.ge.s32.totalorder %v703, 0
        %vm770 = vcmp.ge.s32.totalorder %v704, 0
        %vm771 = vcmp.ge.s32.totalorder %v705, 0
        %vm772 = vcmp.ge.s32.totalorder %v706, 0
        %vm773 = vcmp.ge.s32.totalorder %v707, 0
        %vm774 = vcmp.ge.s32.totalorder %v708, 0
        %vm775 = vcmp.ge.s32.totalorder %v709, 0
        %vm776 = vcmp.ge.s32.totalorder %v710, 0
        %vm777 = vcmp.ge.s32.totalorder %v711, 0
        %vm778 = vcmp.ge.s32.totalorder %v712, 0
        %vm779 = vcmp.ge.s32.totalorder %v713, 0
        %vm780 = vcmp.ge.s32.totalorder %v714, 0
        %vm781 = vcmp.ge.s32.totalorder %v715, 0
        %vm782 = vcmp.ge.s32.totalorder %v716, 0
        %vm783 = vcmp.ge.s32.totalorder %v717, 0
        %vm784 = vcmp.ge.s32.totalorder %v718, 0
        %vm785 = vcmp.ge.s32.totalorder %v719, 0
        %vm786 = vcmp.ge.s32.totalorder %v720, 0
        %vm787 = vcmp.ge.s32.totalorder %v721, 0
        %vm788 = vcmp.ge.s32.totalorder %v722, 0
        %vm789 = vcmp.ge.s32.totalorder %v723, 0
        %vm790 = vcmp.ge.s32.totalorder %v724, 0
        %vm791 = vcmp.ge.s32.totalorder %v725, 0
        %vm792 = vcmp.ge.s32.totalorder %v726, 0
        %vm793 = vcmp.ge.s32.totalorder %v727, 0
        %vm794 = vcmp.ge.s32.totalorder %v728, 0
        %vm795 = vcmp.ge.s32.totalorder %v729, 0
        %vm796 = vcmp.ge.s32.totalorder %v730, 0
        %vm797 = vcmp.ge.s32.totalorder %v731, 0
        %vm798 = vcmp.ge.s32.totalorder %v732, 0
        %vm799 = vcmp.ge.s32.totalorder %v733, 0
        %vm800 = vcmp.ge.s32.totalorder %v734, 0
        %vm801 = vcmp.lt.s32.totalorder %v669, 1280
        %vm802 = vcmp.lt.s32.totalorder %v670, 1280
        %vm803 = vcmp.lt.s32.totalorder %v671, 1280
        %vm804 = vcmp.lt.s32.totalorder %v672, 1280
        %vm805 = vcmp.lt.s32.totalorder %v673, 1280
        %vm806 = vcmp.lt.s32.totalorder %v674, 1280
        %vm807 = vcmp.lt.s32.totalorder %v675, 1280
        %vm808 = vcmp.lt.s32.totalorder %v676, 1280
        %vm809 = vcmp.lt.s32.totalorder %v677, 1280
        %vm810 = vcmp.lt.s32.totalorder %v678, 1280
        %vm811 = vcmp.lt.s32.totalorder %v679, 1280
        %vm812 = vcmp.lt.s32.totalorder %v680, 1280
        %vm813 = vcmp.lt.s32.totalorder %v681, 1280
        %vm814 = vcmp.lt.s32.totalorder %v682, 1280
        %vm815 = vcmp.lt.s32.totalorder %v683, 1280
        %vm816 = vcmp.lt.s32.totalorder %v684, 1280
        %vm817 = vcmp.lt.s32.totalorder %v685, 1280
        %vm818 = vcmp.lt.s32.totalorder %v686, 1280
        %vm819 = vcmp.lt.s32.totalorder %v687, 1280
        %vm820 = vcmp.lt.s32.totalorder %v688, 1280
        %vm821 = vcmp.lt.s32.totalorder %v689, 1280
        %vm822 = vcmp.lt.s32.totalorder %v690, 1280
        %vm823 = vcmp.lt.s32.totalorder %v691, 1280
        %vm824 = vcmp.lt.s32.totalorder %v692, 1280
        %vm825 = vcmp.lt.s32.totalorder %v693, 1280
        %vm826 = vcmp.lt.s32.totalorder %v694, 1280
        %vm827 = vcmp.lt.s32.totalorder %v695, 1280
        %vm828 = vcmp.lt.s32.totalorder %v696, 1280
        %vm829 = vcmp.lt.s32.totalorder %v697, 1280
        %vm830 = vcmp.lt.s32.totalorder %v698, 1280
        %vm831 = vcmp.lt.s32.totalorder %v699, 1280
        %vm832 = vcmp.lt.s32.totalorder %v700, 1280
        %vm833 = vcmp.lt.s32.totalorder %v701, 1280
        %vm834 = vcmp.lt.s32.totalorder %v702, 1280
        %vm835 = vcmp.lt.s32.totalorder %v703, 1280
        %vm836 = vcmp.lt.s32.totalorder %v704, 1280
        %vm837 = vcmp.lt.s32.totalorder %v705, 1280
        %vm838 = vcmp.lt.s32.totalorder %v706, 1280
        %vm839 = vcmp.lt.s32.totalorder %v707, 1280
        %vm840 = vcmp.lt.s32.totalorder %v708, 1280
        %vm841 = vcmp.lt.s32.totalorder %v709, 1280
        %vm842 = vcmp.lt.s32.totalorder %v710, 1280
        %vm843 = vcmp.lt.s32.totalorder %v711, 1280
        %vm844 = vcmp.lt.s32.totalorder %v712, 1280
        %vm845 = vcmp.lt.s32.totalorder %v713, 1280
        %vm846 = vcmp.lt.s32.totalorder %v714, 1280
        %vm847 = vcmp.lt.s32.totalorder %v715, 1280
        %vm848 = vcmp.lt.s32.totalorder %v716, 1280
        %vm849 = vcmp.lt.s32.totalorder %v717, 1280
        %vm850 = vcmp.lt.s32.totalorder %v718, 1280
        %vm851 = vcmp.lt.s32.totalorder %v719, 1280
        %vm852 = vcmp.lt.s32.totalorder %v720, 1280
        %vm853 = vcmp.lt.s32.totalorder %v721, 1280
        %vm854 = vcmp.lt.s32.totalorder %v722, 1280
        %vm855 = vcmp.lt.s32.totalorder %v723, 1280
        %vm856 = vcmp.lt.s32.totalorder %v724, 1280
        %vm857 = vcmp.lt.s32.totalorder %v725, 1280
        %vm858 = vcmp.lt.s32.totalorder %v726, 1280
        %vm859 = vcmp.lt.s32.totalorder %v727, 1280
        %vm860 = vcmp.lt.s32.totalorder %v728, 1280
        %vm861 = vcmp.lt.s32.totalorder %v729, 1280
        %vm862 = vcmp.lt.s32.totalorder %v730, 1280
        %vm863 = vcmp.lt.s32.totalorder %v731, 1280
        %vm864 = vcmp.lt.s32.totalorder %v732, 1280
        %vm865 = vcmp.lt.s32.totalorder %v733, 1280
        %vm866 = vcmp.lt.s32.totalorder %v734, 1280
        %vm867 = vmand %vm735, %vm801
        %vm868 = vmand %vm736, %vm802
        %vm869 = vmand %vm737, %vm803
        %vm870 = vmand %vm738, %vm804
        %vm871 = vmand %vm739, %vm805
        %vm872 = vmand %vm740, %vm806
        %vm873 = vmand %vm741, %vm807
        %vm874 = vmand %vm742, %vm808
        %vm875 = vmand %vm743, %vm809
        %vm876 = vmand %vm744, %vm810
        %vm877 = vmand %vm745, %vm811
        %vm878 = vmand %vm746, %vm812
        %vm879 = vmand %vm747, %vm813
        %vm880 = vmand %vm748, %vm814
        %vm881 = vmand %vm749, %vm815
        %vm882 = vmand %vm750, %vm816
        %vm883 = vmand %vm751, %vm817
        %vm884 = vmand %vm752, %vm818
        %vm885 = vmand %vm753, %vm819
        %vm886 = vmand %vm754, %vm820
        %vm887 = vmand %vm755, %vm821
        %vm888 = vmand %vm756, %vm822
        %vm889 = vmand %vm757, %vm823
        %vm890 = vmand %vm758, %vm824
        %vm891 = vmand %vm759, %vm825
        %vm892 = vmand %vm760, %vm826
        %vm893 = vmand %vm761, %vm827
        %vm894 = vmand %vm762, %vm828
        %vm895 = vmand %vm763, %vm829
        %vm896 = vmand %vm764, %vm830
        %vm897 = vmand %vm765, %vm831
        %vm898 = vmand %vm766, %vm832
        %vm899 = vmand %vm767, %vm833
        %vm900 = vmand %vm768, %vm834
        %vm901 = vmand %vm769, %vm835
        %vm902 = vmand %vm770, %vm836
        %vm903 = vmand %vm771, %vm837
        %vm904 = vmand %vm772, %vm838
        %vm905 = vmand %vm773, %vm839
        %vm906 = vmand %vm774, %vm840
        %vm907 = vmand %vm775, %vm841
        %vm908 = vmand %vm776, %vm842
        %vm909 = vmand %vm777, %vm843
        %vm910 = vmand %vm778, %vm844
        %vm911 = vmand %vm779, %vm845
        %vm912 = vmand %vm780, %vm846
        %vm913 = vmand %vm781, %vm847
        %vm914 = vmand %vm782, %vm848
        %vm915 = vmand %vm783, %vm849
        %vm916 = vmand %vm784, %vm850
        %vm917 = vmand %vm785, %vm851
        %vm918 = vmand %vm786, %vm852
        %vm919 = vmand %vm787, %vm853
        %vm920 = vmand %vm788, %vm854
        %vm921 = vmand %vm789, %vm855
        %vm922 = vmand %vm790, %vm856
        %vm923 = vmand %vm791, %vm857
        %vm924 = vmand %vm792, %vm858
        %vm925 = vmand %vm793, %vm859
        %vm926 = vmand %vm794, %vm860
        %vm927 = vmand %vm795, %vm861
        %vm928 = vmand %vm796, %vm862
        %vm929 = vmand %vm797, %vm863
        %vm930 = vmand %vm798, %vm864
        %vm931 = vmand %vm799, %vm865
        %vm932 = vmand %vm800, %vm866
        %v933 = vsel %vm867, 1, 0
        %v934 = vsel %vm868, 1, 0
        %v935 = vsel %vm869, 1, 0
        %v936 = vsel %vm870, 1, 0
        %v937 = vsel %vm871, 1, 0
        %v938 = vsel %vm872, 1, 0
        %v939 = vsel %vm873, 1, 0
        %v940 = vsel %vm874, 1, 0
        %v941 = vsel %vm875, 1, 0
        %v942 = vsel %vm876, 1, 0
        %v943 = vsel %vm877, 1, 0
        %v944 = vsel %vm878, 1, 0
        %v945 = vsel %vm879, 1, 0
        %v946 = vsel %vm880, 1, 0
        %v947 = vsel %vm881, 1, 0
        %v948 = vsel %vm882, 1, 0
        %v949 = vsel %vm883, 1, 0
        %v950 = vsel %vm884, 1, 0
        %v951 = vsel %vm885, 1, 0
        %v952 = vsel %vm886, 1, 0
        %v953 = vsel %vm887, 1, 0
        %v954 = vsel %vm888, 1, 0
        %v955 = vsel %vm889, 1, 0
        %v956 = vsel %vm890, 1, 0
        %v957 = vsel %vm891, 1, 0
        %v958 = vsel %vm892, 1, 0
        %v959 = vsel %vm893, 1, 0
        %v960 = vsel %vm894, 1, 0
        %v961 = vsel %vm895, 1, 0
        %v962 = vsel %vm896, 1, 0
        %v963 = vsel %vm897, 1, 0
        %v964 = vsel %vm898, 1, 0
        %v965 = vsel %vm899, 1, 0
        %v966 = vsel %vm900, 1, 0
        %v967 = vsel %vm901, 1, 0
        %v968 = vsel %vm902, 1, 0
        %v969 = vsel %vm903, 1, 0
        %v970 = vsel %vm904, 1, 0
        %v971 = vsel %vm905, 1, 0
        %v972 = vsel %vm906, 1, 0
        %v973 = vsel %vm907, 1, 0
        %v974 = vsel %vm908, 1, 0
        %v975 = vsel %vm909, 1, 0
        %v976 = vsel %vm910, 1, 0
        %v977 = vsel %vm911, 1, 0
        %v978 = vsel %vm912, 1, 0
        %v979 = vsel %vm913, 1, 0
        %v980 = vsel %vm914, 1, 0
        %v981 = vsel %vm915, 1, 0
        %v982 = vsel %vm916, 1, 0
        %v983 = vsel %vm917, 1, 0
        %v984 = vsel %vm918, 1, 0
        %v985 = vsel %vm919, 1, 0
        %v986 = vsel %vm920, 1, 0
        %v987 = vsel %vm921, 1, 0
        %v988 = vsel %vm922, 1, 0
        %v989 = vsel %vm923, 1, 0
        %v990 = vsel %vm924, 1, 0
        %v991 = vsel %vm925, 1, 0
        %v992 = vsel %vm926, 1, 0
        %v993 = vsel %vm927, 1, 0
        %v994 = vsel %vm928, 1, 0
        %v995 = vsel %vm929, 1, 0
        %v996 = vsel %vm930, 1, 0
        %v997 = vsel %vm931, 1, 0
        %v998 = vsel %vm932, 1, 0
        %v999 = vcvt.s32.f32 %v933
        %v1000 = vcvt.s32.f32 %v934
        %v1001 = vcvt.s32.f32 %v935
        %v1002 = vcvt.s32.f32 %v936
        %v1003 = vcvt.s32.f32 %v937
        %v1004 = vcvt.s32.f32 %v938
        %v1005 = vcvt.s32.f32 %v939
        %v1006 = vcvt.s32.f32 %v940
        %v1007 = vcvt.s32.f32 %v941
        %v1008 = vcvt.s32.f32 %v942
        %v1009 = vcvt.s32.f32 %v943
        %v1010 = vcvt.s32.f32 %v944
        %v1011 = vcvt.s32.f32 %v945
        %v1012 = vcvt.s32.f32 %v946
        %v1013 = vcvt.s32.f32 %v947
        %v1014 = vcvt.s32.f32 %v948
        %v1015 = vcvt.s32.f32 %v949
        %v1016 = vcvt.s32.f32 %v950
        %v1017 = vcvt.s32.f32 %v951
        %v1018 = vcvt.s32.f32 %v952
        %v1019 = vcvt.s32.f32 %v953
        %v1020 = vcvt.s32.f32 %v954
        %v1021 = vcvt.s32.f32 %v955
        %v1022 = vcvt.s32.f32 %v956
        %v1023 = vcvt.s32.f32 %v957
        %v1024 = vcvt.s32.f32 %v958
        %v1025 = vcvt.s32.f32 %v959
        %v1026 = vcvt.s32.f32 %v960
        %v1027 = vcvt.s32.f32 %v961
        %v1028 = vcvt.s32.f32 %v962
        %v1029 = vcvt.s32.f32 %v963
        %v1030 = vcvt.s32.f32 %v964
        %v1031 = vcvt.s32.f32 %v965
        %v1032 = vcvt.s32.f32 %v966
        %v1033 = vcvt.s32.f32 %v967
        %v1034 = vcvt.s32.f32 %v968
        %v1035 = vcvt.s32.f32 %v969
        %v1036 = vcvt.s32.f32 %v970
        %v1037 = vcvt.s32.f32 %v971
        %v1038 = vcvt.s32.f32 %v972
        %v1039 = vcvt.s32.f32 %v973
        %v1040 = vcvt.s32.f32 %v974
        %v1041 = vcvt.s32.f32 %v975
        %v1042 = vcvt.s32.f32 %v976
        %v1043 = vcvt.s32.f32 %v977
        %v1044 = vcvt.s32.f32 %v978
        %v1045 = vcvt.s32.f32 %v979
        %v1046 = vcvt.s32.f32 %v980
        %v1047 = vcvt.s32.f32 %v981
        %v1048 = vcvt.s32.f32 %v982
        %v1049 = vcvt.s32.f32 %v983
        %v1050 = vcvt.s32.f32 %v984
        %v1051 = vcvt.s32.f32 %v985
        %v1052 = vcvt.s32.f32 %v986
        %v1053 = vcvt.s32.f32 %v987
        %v1054 = vcvt.s32.f32 %v988
        %v1055 = vcvt.s32.f32 %v989
        %v1056 = vcvt.s32.f32 %v990
        %v1057 = vcvt.s32.f32 %v991
        %v1058 = vcvt.s32.f32 %v992
        %v1059 = vcvt.s32.f32 %v993
        %v1060 = vcvt.s32.f32 %v994
        %v1061 = vcvt.s32.f32 %v995
        %v1062 = vcvt.s32.f32 %v996
        %v1063 = vcvt.s32.f32 %v997
        %v1064 = vcvt.s32.f32 %v998
        %v1065 = vld [vmem:[%s501] sm:$0xf]
        %v1066 = vunpack.c.l.bf16 %v1065
        %1067 = vst [vmem:[#allocation2] sm:$0xff] %v1066
        %v1068 = vld [vmem:[%s510] sm:$0xf]
        %v1069 = vld [vmem:[%s510 + $0x4] sm:$0xf]
        %v1070 = vld [vmem:[%s510 + $0x8] sm:$0xf]
        %v1071 = vld [vmem:[%s510 + $0xc] sm:$0xf]
        %v1072 = vld [vmem:[%s510 + $0x10] sm:$0xf]
        %v1073 = vld [vmem:[%s510 + $0x14] sm:$0xf]
        %v1074 = vld [vmem:[%s510 + $0x18] sm:$0xf]
        %v1075 = vld [vmem:[%s510 + $0x1c] sm:$0xf]
        %v1076 = vld [vmem:[%s510 + $0x20] sm:$0xf]
        %v1077 = vld [vmem:[%s510 + $0x24] sm:$0xf]
        %v1078 = vld [vmem:[%s510 + $0x28] sm:$0xf]
        %v1079 = vld [vmem:[%s510 + $0x2c] sm:$0xf]
        %v1080 = vld [vmem:[%s510 + $0x30] sm:$0xf]
        %v1081 = vld [vmem:[%s510 + $0x34] sm:$0xf]
        %v1082 = vld [vmem:[%s510 + $0x38] sm:$0xf]
        %v1083 = vld [vmem:[%s510 + $0x3c] sm:$0xf]
        %v1084 = vld [vmem:[%s510 + $0x40] sm:$0xf]
        %v1085 = vld [vmem:[%s510 + $0x44] sm:$0xf]
        %v1086 = vld [vmem:[%s510 + $0x48] sm:$0xf]
        %v1087 = vld [vmem:[%s510 + $0x4c] sm:$0xf]
        %v1088 = vld [vmem:[%s510 + $0x50] sm:$0xf]
        %v1089 = vld [vmem:[%s510 + $0x54] sm:$0xf]
        %v1090 = vld [vmem:[%s510 + $0x58] sm:$0xf]
        %v1091 = vld [vmem:[%s510 + $0x5c] sm:$0xf]
        %v1092 = vld [vmem:[%s510 + $0x60] sm:$0xf]
        %v1093 = vld [vmem:[%s510 + $0x64] sm:$0xf]
        %v1094 = vld [vmem:[%s510 + $0x68] sm:$0xf]
        %v1095 = vld [vmem:[%s510 + $0x6c] sm:$0xf]
        %v1096 = vld [vmem:[%s510 + $0x70] sm:$0xf]
        %v1097 = vld [vmem:[%s510 + $0x74] sm:$0xf]
        %v1098 = vld [vmem:[%s510 + $0x78] sm:$0xf]
        %v1099 = vld [vmem:[%s510 + $0x7c] sm:$0xf]
        %v1100 = vld [vmem:[%s510 + $0x80] sm:$0xf]
        %v1101 = vld [vmem:[%s510 + $0x84] sm:$0xf]
        %v1102 = vld [vmem:[%s510 + $0x88] sm:$0xf]
        %v1103 = vld [vmem:[%s510 + $0x8c] sm:$0xf]
        %v1104 = vld [vmem:[%s510 + $0x90] sm:$0xf]
        %v1105 = vld [vmem:[%s510 + $0x94] sm:$0xf]
        %v1106 = vld [vmem:[%s510 + $0x98] sm:$0xf]
        %v1107 = vld [vmem:[%s510 + $0x9c] sm:$0xf]
        %v1108 = vld [vmem:[%s510 + $0xa0] sm:$0xf]
        %v1109 = vld [vmem:[%s510 + $0xa4] sm:$0xf]
        %v1110 = vld [vmem:[%s510 + $0xa8] sm:$0xf]
        %v1111 = vld [vmem:[%s510 + $0xac] sm:$0xf]
        %v1112 = vld [vmem:[%s510 + $0xb0] sm:$0xf]
        %v1113 = vld [vmem:[%s510 + $0xb4] sm:$0xf]
        %v1114 = vld [vmem:[%s510 + $0xb8] sm:$0xf]
        %v1115 = vld [vmem:[%s510 + $0xbc] sm:$0xf]
        %v1116 = vld [vmem:[%s510 + $0xc0] sm:$0xf]
        %v1117 = vld [vmem:[%s510 + $0xc4] sm:$0xf]
        %v1118 = vld [vmem:[%s510 + $0xc8] sm:$0xf]
        %v1119 = vld [vmem:[%s510 + $0xcc] sm:$0xf]
        %v1120 = vld [vmem:[%s510 + $0xd0] sm:$0xf]
        %v1121 = vld [vmem:[%s510 + $0xd4] sm:$0xf]
        %v1122 = vld [vmem:[%s510 + $0xd8] sm:$0xf]
        %v1123 = vld [vmem:[%s510 + $0xdc] sm:$0xf]
        %v1124 = vld [vmem:[%s510 + $0xe0] sm:$0xf]
        %v1125 = vld [vmem:[%s510 + $0xe4] sm:$0xf]
        %v1126 = vld [vmem:[%s510 + $0xe8] sm:$0xf]
        %v1127 = vld [vmem:[%s510 + $0xec] sm:$0xf]
        %v1128 = vld [vmem:[%s510 + $0xf0] sm:$0xf]
        %v1129 = vld [vmem:[%s510 + $0xf4] sm:$0xf]
        %v1130 = vld [vmem:[%s510 + $0xf8] sm:$0xf]
        %v1131 = vld [vmem:[%s510 + $0xfc] sm:$0xf]
        %v1132 = vunpack.c.l.bf16 %v1068
        %v1133 = vunpack.c.l.bf16 %v1069
        %v1134 = vunpack.c.l.bf16 %v1070
        %v1135 = vunpack.c.l.bf16 %v1071
        %v1136 = vunpack.c.l.bf16 %v1072
        %v1137 = vunpack.c.l.bf16 %v1073
        %v1138 = vunpack.c.l.bf16 %v1074
        %v1139 = vunpack.c.l.bf16 %v1075
        %v1140 = vunpack.c.l.bf16 %v1076
        %v1141 = vunpack.c.l.bf16 %v1077
        %v1142 = vunpack.c.l.bf16 %v1078
        %v1143 = vunpack.c.l.bf16 %v1079
        %v1144 = vunpack.c.l.bf16 %v1080
        %v1145 = vunpack.c.l.bf16 %v1081
        %v1146 = vunpack.c.l.bf16 %v1082
        %v1147 = vunpack.c.l.bf16 %v1083
        %v1148 = vunpack.c.l.bf16 %v1084
        %v1149 = vunpack.c.l.bf16 %v1085
        %v1150 = vunpack.c.l.bf16 %v1086
        %v1151 = vunpack.c.l.bf16 %v1087
        %v1152 = vunpack.c.l.bf16 %v1088
        %v1153 = vunpack.c.l.bf16 %v1089
        %v1154 = vunpack.c.l.bf16 %v1090
        %v1155 = vunpack.c.l.bf16 %v1091
        %v1156 = vunpack.c.l.bf16 %v1092
        %v1157 = vunpack.c.l.bf16 %v1093
        %v1158 = vunpack.c.l.bf16 %v1094
        %v1159 = vunpack.c.l.bf16 %v1095
        %v1160 = vunpack.c.l.bf16 %v1096
        %v1161 = vunpack.c.l.bf16 %v1097
        %v1162 = vunpack.c.l.bf16 %v1098
        %v1163 = vunpack.c.l.bf16 %v1099
        %v1164 = vunpack.c.l.bf16 %v1100
        %v1165 = vunpack.c.l.bf16 %v1101
        %v1166 = vunpack.c.l.bf16 %v1102
        %v1167 = vunpack.c.l.bf16 %v1103
        %v1168 = vunpack.c.l.bf16 %v1104
        %v1169 = vunpack.c.l.bf16 %v1105
        %v1170 = vunpack.c.l.bf16 %v1106
        %v1171 = vunpack.c.l.bf16 %v1107
        %v1172 = vunpack.c.l.bf16 %v1108
        %v1173 = vunpack.c.l.bf16 %v1109
        %v1174 = vunpack.c.l.bf16 %v1110
        %v1175 = vunpack.c.l.bf16 %v1111
        %v1176 = vunpack.c.l.bf16 %v1112
        %v1177 = vunpack.c.l.bf16 %v1113
        %v1178 = vunpack.c.l.bf16 %v1114
        %v1179 = vunpack.c.l.bf16 %v1115
        %v1180 = vunpack.c.l.bf16 %v1116
        %v1181 = vunpack.c.l.bf16 %v1117
        %v1182 = vunpack.c.l.bf16 %v1118
        %v1183 = vunpack.c.l.bf16 %v1119
        %v1184 = vunpack.c.l.bf16 %v1120
        %v1185 = vunpack.c.l.bf16 %v1121
        %v1186 = vunpack.c.l.bf16 %v1122
        %v1187 = vunpack.c.l.bf16 %v1123
        %v1188 = vunpack.c.l.bf16 %v1124
        %v1189 = vunpack.c.l.bf16 %v1125
        %v1190 = vunpack.c.l.bf16 %v1126
        %v1191 = vunpack.c.l.bf16 %v1127
        %v1192 = vunpack.c.l.bf16 %v1128
        %v1193 = vunpack.c.l.bf16 %v1129
        %v1194 = vunpack.c.l.bf16 %v1130
        %v1195 = vunpack.c.l.bf16 %v1131
        %1196 = vst [vmem:[#allocation2 + $0x8] sm:$0xff] %v1132
        %1197 = vst [vmem:[#allocation2 + $0x10] sm:$0xff] %v1133
        %1198 = vst [vmem:[#allocation2 + $0x18] sm:$0xff] %v1134
        %1199 = vst [vmem:[#allocation2 + $0x20] sm:$0xff] %v1135
        %1200 = vst [vmem:[#allocation2 + $0x28] sm:$0xff] %v1136
        %1201 = vst [vmem:[#allocation2 + $0x30] sm:$0xff] %v1137
        %1202 = vst [vmem:[#allocation2 + $0x38] sm:$0xff] %v1138
        %1203 = vst [vmem:[#allocation2 + $0x40] sm:$0xff] %v1139
        %1204 = vst [vmem:[#allocation2 + $0x48] sm:$0xff] %v1140
        %1205 = vst [vmem:[#allocation2 + $0x50] sm:$0xff] %v1141
        %1206 = vst [vmem:[#allocation2 + $0x58] sm:$0xff] %v1142
        %1207 = vst [vmem:[#allocation2 + $0x60] sm:$0xff] %v1143
        %1208 = vst [vmem:[#allocation2 + $0x68] sm:$0xff] %v1144
        %1209 = vst [vmem:[#allocation2 + $0x70] sm:$0xff] %v1145
        %1210 = vst [vmem:[#allocation2 + $0x78] sm:$0xff] %v1146
        %1211 = vst [vmem:[#allocation2 + $0x80] sm:$0xff] %v1147
        %1212 = vst [vmem:[#allocation2 + $0x88] sm:$0xff] %v1148
        %1213 = vst [vmem:[#allocation2 + $0x90] sm:$0xff] %v1149
        %1214 = vst [vmem:[#allocation2 + $0x98] sm:$0xff] %v1150
        %1215 = vst [vmem:[#allocation2 + $0xa0] sm:$0xff] %v1151
        %1216 = vst [vmem:[#allocation2 + $0xa8] sm:$0xff] %v1152
        %1217 = vst [vmem:[#allocation2 + $0xb0] sm:$0xff] %v1153
        %1218 = vst [vmem:[#allocation2 + $0xb8] sm:$0xff] %v1154
        %1219 = vst [vmem:[#allocation2 + $0xc0] sm:$0xff] %v1155
        %1220 = vst [vmem:[#allocation2 + $0xc8] sm:$0xff] %v1156
        %1221 = vst [vmem:[#allocation2 + $0xd0] sm:$0xff] %v1157
        %1222 = vst [vmem:[#allocation2 + $0xd8] sm:$0xff] %v1158
        %1223 = vst [vmem:[#allocation2 + $0xe0] sm:$0xff] %v1159
        %1224 = vst [vmem:[#allocation2 + $0xe8] sm:$0xff] %v1160
        %1225 = vst [vmem:[#allocation2 + $0xf0] sm:$0xff] %v1161
        %1226 = vst [vmem:[#allocation2 + $0xf8] sm:$0xff] %v1162
        %1227 = vst [vmem:[#allocation2 + $0x100] sm:$0xff] %v1163
        %1228 = vst [vmem:[#allocation2 + $0x108] sm:$0xff] %v1164
        %1229 = vst [vmem:[#allocation2 + $0x110] sm:$0xff] %v1165
        %1230 = vst [vmem:[#allocation2 + $0x118] sm:$0xff] %v1166
        %1231 = vst [vmem:[#allocation2 + $0x120] sm:$0xff] %v1167
        %1232 = vst [vmem:[#allocation2 + $0x128] sm:$0xff] %v1168
        %1233 = vst [vmem:[#allocation2 + $0x130] sm:$0xff] %v1169
        %1234 = vst [vmem:[#allocation2 + $0x138] sm:$0xff] %v1170
        %1235 = vst [vmem:[#allocation2 + $0x140] sm:$0xff] %v1171
        %1236 = vst [vmem:[#allocation2 + $0x148] sm:$0xff] %v1172
        %1237 = vst [vmem:[#allocation2 + $0x150] sm:$0xff] %v1173
        %1238 = vst [vmem:[#allocation2 + $0x158] sm:$0xff] %v1174
        %1239 = vst [vmem:[#allocation2 + $0x160] sm:$0xff] %v1175
        %1240 = vst [vmem:[#allocation2 + $0x168] sm:$0xff] %v1176
        %1241 = vst [vmem:[#allocation2 + $0x170] sm:$0xff] %v1177
        %1242 = vst [vmem:[#allocation2 + $0x178] sm:$0xff] %v1178
        %1243 = vst [vmem:[#allocation2 + $0x180] sm:$0xff] %v1179
        %1244 = vst [vmem:[#allocation2 + $0x188] sm:$0xff] %v1180
        %1245 = vst [vmem:[#allocation2 + $0x190] sm:$0xff] %v1181
        %1246 = vst [vmem:[#allocation2 + $0x198] sm:$0xff] %v1182
        %1247 = vst [vmem:[#allocation2 + $0x1a0] sm:$0xff] %v1183
        %1248 = vst [vmem:[#allocation2 + $0x1a8] sm:$0xff] %v1184
        %1249 = vst [vmem:[#allocation2 + $0x1b0] sm:$0xff] %v1185
        %1250 = vst [vmem:[#allocation2 + $0x1b8] sm:$0xff] %v1186
        %1251 = vst [vmem:[#allocation2 + $0x1c0] sm:$0xff] %v1187
        %1252 = vst [vmem:[#allocation2 + $0x1c8] sm:$0xff] %v1188
        %1253 = vst [vmem:[#allocation2 + $0x1d0] sm:$0xff] %v1189
        %1254 = vst [vmem:[#allocation2 + $0x1d8] sm:$0xff] %v1190
        %1255 = vst [vmem:[#allocation2 + $0x1e0] sm:$0xff] %v1191
        %1256 = vst [vmem:[#allocation2 + $0x1e8] sm:$0xff] %v1192
        %1257 = vst [vmem:[#allocation2 + $0x1f0] sm:$0xff] %v1193
        %1258 = vst [vmem:[#allocation2 + $0x1f8] sm:$0xff] %v1194
        %1259 = vst [vmem:[#allocation2 + $0x200] sm:$0xff] %v1195
        %v1260 = vld [vmem:[%s519] sm:$0xf]
        %v1261 = vunpack.c.l.bf16 %v1260
        %1262 = vst [vmem:[#allocation2 + $0x208] sm:$0xff] %v1261
        // Predicated region
        $region93: #{tpu_custom_call.1} parent=63 // pred_check
          %p1263 = pneg %p600
        $region94: #{tpu_custom_call.1} parent=63 // pred_check_branch
          %1265 = sbr.rel (%p1263) target = $region96
        $region95: #{tpu_custom_call.1} parent=63 // pred_region
          %v1266 = vld [vmem:[#allocation2] sm:$0xff]
          %v1267 = vld [vmem:[#allocation2 + $0x8] sm:$0xff]
          %v1268 = vld [vmem:[#allocation2 + $0x10] sm:$0xff]
          %v1269 = vld [vmem:[#allocation2 + $0x18] sm:$0xff]
          %v1270 = vld [vmem:[#allocation2 + $0x20] sm:$0xff]
          %v1271 = vld [vmem:[#allocation2 + $0x28] sm:$0xff]
          %v1272 = vld [vmem:[#allocation2 + $0x30] sm:$0xff]
          %v1273 = vld [vmem:[#allocation2 + $0x38] sm:$0xff]
          %v1274 = vld [vmem:[#allocation2 + $0x40] sm:$0xff]
          %v1275 = vld [vmem:[#allocation2 + $0x48] sm:$0xff]
          %v1276 = vld [vmem:[#allocation2 + $0x50] sm:$0xff]
          %v1277 = vld [vmem:[#allocation2 + $0x58] sm:$0xff]
          %v1278 = vld [vmem:[#allocation2 + $0x60] sm:$0xff]
          %v1279 = vld [vmem:[#allocation2 + $0x68] sm:$0xff]
          %v1280 = vld [vmem:[#allocation2 + $0x70] sm:$0xff]
          %v1281 = vld [vmem:[#allocation2 + $0x78] sm:$0xff]
          %v1282 = vld [vmem:[#allocation2 + $0x80] sm:$0xff]
          %v1283 = vld [vmem:[#allocation2 + $0x88] sm:$0xff]
          %v1284 = vld [vmem:[#allocation2 + $0x90] sm:$0xff]
          %v1285 = vld [vmem:[#allocation2 + $0x98] sm:$0xff]
          %v1286 = vld [vmem:[#allocation2 + $0xa0] sm:$0xff]
          %v1287 = vld [vmem:[#allocation2 + $0xa8] sm:$0xff]
          %v1288 = vld [vmem:[#allocation2 + $0xb0] sm:$0xff]
          %v1289 = vld [vmem:[#allocation2 + $0xb8] sm:$0xff]
          %v1290 = vld [vmem:[#allocation2 + $0xc0] sm:$0xff]
          %v1291 = vld [vmem:[#allocation2 + $0xc8] sm:$0xff]
          %v1292 = vld [vmem:[#allocation2 + $0xd0] sm:$0xff]
          %v1293 = vld [vmem:[#allocation2 + $0xd8] sm:$0xff]
          %v1294 = vld [vmem:[#allocation2 + $0xe0] sm:$0xff]
          %v1295 = vld [vmem:[#allocation2 + $0xe8] sm:$0xff]
          %v1296 = vld [vmem:[#allocation2 + $0xf0] sm:$0xff]
          %v1297 = vld [vmem:[#allocation2 + $0xf8] sm:$0xff]
          %v1298 = vld [vmem:[#allocation2 + $0x100] sm:$0xff]
          %v1299 = vld [vmem:[#allocation2 + $0x108] sm:$0xff]
          %v1300 = vld [vmem:[#allocation2 + $0x110] sm:$0xff]
          %v1301 = vld [vmem:[#allocation2 + $0x118] sm:$0xff]
          %v1302 = vld [vmem:[#allocation2 + $0x120] sm:$0xff]
          %v1303 = vld [vmem:[#allocation2 + $0x128] sm:$0xff]
          %v1304 = vld [vmem:[#allocation2 + $0x130] sm:$0xff]
          %v1305 = vld [vmem:[#allocation2 + $0x138] sm:$0xff]
          %v1306 = vld [vmem:[#allocation2 + $0x140] sm:$0xff]
          %v1307 = vld [vmem:[#allocation2 + $0x148] sm:$0xff]
          %v1308 = vld [vmem:[#allocation2 + $0x150] sm:$0xff]
          %v1309 = vld [vmem:[#allocation2 + $0x158] sm:$0xff]
          %v1310 = vld [vmem:[#allocation2 + $0x160] sm:$0xff]
          %v1311 = vld [vmem:[#allocation2 + $0x168] sm:$0xff]
          %v1312 = vld [vmem:[#allocation2 + $0x170] sm:$0xff]
          %v1313 = vld [vmem:[#allocation2 + $0x178] sm:$0xff]
          %v1314 = vld [vmem:[#allocation2 + $0x180] sm:$0xff]
          %v1315 = vld [vmem:[#allocation2 + $0x188] sm:$0xff]
          %v1316 = vld [vmem:[#allocation2 + $0x190] sm:$0xff]
          %v1317 = vld [vmem:[#allocation2 + $0x198] sm:$0xff]
          %v1318 = vld [vmem:[#allocation2 + $0x1a0] sm:$0xff]
          %v1319 = vld [vmem:[#allocation2 + $0x1a8] sm:$0xff]
          %v1320 = vld [vmem:[#allocation2 + $0x1b0] sm:$0xff]
          %v1321 = vld [vmem:[#allocation2 + $0x1b8] sm:$0xff]
          %v1322 = vld [vmem:[#allocation2 + $0x1c0] sm:$0xff]
          %v1323 = vld [vmem:[#allocation2 + $0x1c8] sm:$0xff]
          %v1324 = vld [vmem:[#allocation2 + $0x1d0] sm:$0xff]
          %v1325 = vld [vmem:[#allocation2 + $0x1d8] sm:$0xff]
          %v1326 = vld [vmem:[#allocation2 + $0x1e0] sm:$0xff]
          %v1327 = vld [vmem:[#allocation2 + $0x1e8] sm:$0xff]
          %v1328 = vld [vmem:[#allocation2 + $0x1f0] sm:$0xff]
          %v1329 = vld [vmem:[#allocation2 + $0x1f8] sm:$0xff]
          %v1330 = vld [vmem:[#allocation2 + $0x200] sm:$0xff]
          %v1331 = vld [vmem:[#allocation2 + $0x208] sm:$0xff]
          %v1332 = vmul.f32 %v1266, %v999
          %v1333 = vmul.f32 %v1267, %v1000
          %v1334 = vmul.f32 %v1268, %v1001
          %v1335 = vmul.f32 %v1269, %v1002
          %v1336 = vmul.f32 %v1270, %v1003
          %v1337 = vmul.f32 %v1271, %v1004
          %v1338 = vmul.f32 %v1272, %v1005
          %v1339 = vmul.f32 %v1273, %v1006
          %v1340 = vmul.f32 %v1274, %v1007
          %v1341 = vmul.f32 %v1275, %v1008
          %v1342 = vmul.f32 %v1276, %v1009
          %v1343 = vmul.f32 %v1277, %v1010
          %v1344 = vmul.f32 %v1278, %v1011
          %v1345 = vmul.f32 %v1279, %v1012
          %v1346 = vmul.f32 %v1280, %v1013
          %v1347 = vmul.f32 %v1281, %v1014
          %v1348 = vmul.f32 %v1282, %v1015
          %v1349 = vmul.f32 %v1283, %v1016
          %v1350 = vmul.f32 %v1284, %v1017
          %v1351 = vmul.f32 %v1285, %v1018
          %v1352 = vmul.f32 %v1286, %v1019
          %v1353 = vmul.f32 %v1287, %v1020
          %v1354 = vmul.f32 %v1288, %v1021
          %v1355 = vmul.f32 %v1289, %v1022
          %v1356 = vmul.f32 %v1290, %v1023
          %v1357 = vmul.f32 %v1291, %v1024
          %v1358 = vmul.f32 %v1292, %v1025
          %v1359 = vmul.f32 %v1293, %v1026
          %v1360 = vmul.f32 %v1294, %v1027
          %v1361 = vmul.f32 %v1295, %v1028
          %v1362 = vmul.f32 %v1296, %v1029
          %v1363 = vmul.f32 %v1297, %v1030
          %v1364 = vmul.f32 %v1298, %v1031
          %v1365 = vmul.f32 %v1299, %v1032
          %v1366 = vmul.f32 %v1300, %v1033
          %v1367 = vmul.f32 %v1301, %v1034
          %v1368 = vmul.f32 %v1302, %v1035
          %v1369 = vmul.f32 %v1303, %v1036
          %v1370 = vmul.f32 %v1304, %v1037
          %v1371 = vmul.f32 %v1305, %v1038
          %v1372 = vmul.f32 %v1306, %v1039
          %v1373 = vmul.f32 %v1307, %v1040
          %v1374 = vmul.f32 %v1308, %v1041
          %v1375 = vmul.f32 %v1309, %v1042
          %v1376 = vmul.f32 %v1310, %v1043
          %v1377 = vmul.f32 %v1311, %v1044
          %v1378 = vmul.f32 %v1312, %v1045
          %v1379 = vmul.f32 %v1313, %v1046
          %v1380 = vmul.f32 %v1314, %v1047
          %v1381 = vmul.f32 %v1315, %v1048
          %v1382 = vmul.f32 %v1316, %v1049
          %v1383 = vmul.f32 %v1317, %v1050
          %v1384 = vmul.f32 %v1318, %v1051
          %v1385 = vmul.f32 %v1319, %v1052
          %v1386 = vmul.f32 %v1320, %v1053
          %v1387 = vmul.f32 %v1321, %v1054
          %v1388 = vmul.f32 %v1322, %v1055
          %v1389 = vmul.f32 %v1323, %v1056
          %v1390 = vmul.f32 %v1324, %v1057
          %v1391 = vmul.f32 %v1325, %v1058
          %v1392 = vmul.f32 %v1326, %v1059
          %v1393 = vmul.f32 %v1327, %v1060
          %v1394 = vmul.f32 %v1328, %v1061
          %v1395 = vmul.f32 %v1329, %v1062
          %v1396 = vmul.f32 %v1330, %v1063
          %v1397 = vmul.f32 %v1331, %v1064
          %1398 = vst [vmem:[#allocation2] sm:$0xff] %v1332
          %1399 = vst [vmem:[#allocation2 + $0x8] sm:$0xff] %v1333
          %1400 = vst [vmem:[#allocation2 + $0x10] sm:$0xff] %v1334
          %1401 = vst [vmem:[#allocation2 + $0x18] sm:$0xff] %v1335
          %1402 = vst [vmem:[#allocation2 + $0x20] sm:$0xff] %v1336
          %1403 = vst [vmem:[#allocation2 + $0x28] sm:$0xff] %v1337
          %1404 = vst [vmem:[#allocation2 + $0x30] sm:$0xff] %v1338
          %1405 = vst [vmem:[#allocation2 + $0x38] sm:$0xff] %v1339
          %1406 = vst [vmem:[#allocation2 + $0x40] sm:$0xff] %v1340
          %1407 = vst [vmem:[#allocation2 + $0x48] sm:$0xff] %v1341
          %1408 = vst [vmem:[#allocation2 + $0x50] sm:$0xff] %v1342
          %1409 = vst [vmem:[#allocation2 + $0x58] sm:$0xff] %v1343
          %1410 = vst [vmem:[#allocation2 + $0x60] sm:$0xff] %v1344
          %1411 = vst [vmem:[#allocation2 + $0x68] sm:$0xff] %v1345
          %1412 = vst [vmem:[#allocation2 + $0x70] sm:$0xff] %v1346
          %1413 = vst [vmem:[#allocation2 + $0x78] sm:$0xff] %v1347
          %1414 = vst [vmem:[#allocation2 + $0x80] sm:$0xff] %v1348
          %1415 = vst [vmem:[#allocation2 + $0x88] sm:$0xff] %v1349
          %1416 = vst [vmem:[#allocation2 + $0x90] sm:$0xff] %v1350
          %1417 = vst [vmem:[#allocation2 + $0x98] sm:$0xff] %v1351
          %1418 = vst [vmem:[#allocation2 + $0xa0] sm:$0xff] %v1352
          %1419 = vst [vmem:[#allocation2 + $0xa8] sm:$0xff] %v1353
          %1420 = vst [vmem:[#allocation2 + $0xb0] sm:$0xff] %v1354
          %1421 = vst [vmem:[#allocation2 + $0xb8] sm:$0xff] %v1355
          %1422 = vst [vmem:[#allocation2 + $0xc0] sm:$0xff] %v1356
          %1423 = vst [vmem:[#allocation2 + $0xc8] sm:$0xff] %v1357
          %1424 = vst [vmem:[#allocation2 + $0xd0] sm:$0xff] %v1358
          %1425 = vst [vmem:[#allocation2 + $0xd8] sm:$0xff] %v1359
          %1426 = vst [vmem:[#allocation2 + $0xe0] sm:$0xff] %v1360
          %1427 = vst [vmem:[#allocation2 + $0xe8] sm:$0xff] %v1361
          %1428 = vst [vmem:[#allocation2 + $0xf0] sm:$0xff] %v1362
          %1429 = vst [vmem:[#allocation2 + $0xf8] sm:$0xff] %v1363
          %1430 = vst [vmem:[#allocation2 + $0x100] sm:$0xff] %v1364
          %1431 = vst [vmem:[#allocation2 + $0x108] sm:$0xff] %v1365
          %1432 = vst [vmem:[#allocation2 + $0x110] sm:$0xff] %v1366
          %1433 = vst [vmem:[#allocation2 + $0x118] sm:$0xff] %v1367
          %1434 = vst [vmem:[#allocation2 + $0x120] sm:$0xff] %v1368
          %1435 = vst [vmem:[#allocation2 + $0x128] sm:$0xff] %v1369
          %1436 = vst [vmem:[#allocation2 + $0x130] sm:$0xff] %v1370
          %1437 = vst [vmem:[#allocation2 + $0x138] sm:$0xff] %v1371
          %1438 = vst [vmem:[#allocation2 + $0x140] sm:$0xff] %v1372
          %1439 = vst [vmem:[#allocation2 + $0x148] sm:$0xff] %v1373
          %1440 = vst [vmem:[#allocation2 + $0x150] sm:$0xff] %v1374
          %1441 = vst [vmem:[#allocation2 + $0x158] sm:$0xff] %v1375
          %1442 = vst [vmem:[#allocation2 + $0x160] sm:$0xff] %v1376
          %1443 = vst [vmem:[#allocation2 + $0x168] sm:$0xff] %v1377
          %1444 = vst [vmem:[#allocation2 + $0x170] sm:$0xff] %v1378
          %1445 = vst [vmem:[#allocation2 + $0x178] sm:$0xff] %v1379
          %1446 = vst [vmem:[#allocation2 + $0x180] sm:$0xff] %v1380
          %1447 = vst [vmem:[#allocation2 + $0x188] sm:$0xff] %v1381
          %1448 = vst [vmem:[#allocation2 + $0x190] sm:$0xff] %v1382
          %1449 = vst [vmem:[#allocation2 + $0x198] sm:$0xff] %v1383
          %1450 = vst [vmem:[#allocation2 + $0x1a0] sm:$0xff] %v1384
          %1451 = vst [vmem:[#allocation2 + $0x1a8] sm:$0xff] %v1385
          %1452 = vst [vmem:[#allocation2 + $0x1b0] sm:$0xff] %v1386
          %1453 = vst [vmem:[#allocation2 + $0x1b8] sm:$0xff] %v1387
          %1454 = vst [vmem:[#allocation2 + $0x1c0] sm:$0xff] %v1388
          %1455 = vst [vmem:[#allocation2 + $0x1c8] sm:$0xff] %v1389
          %1456 = vst [vmem:[#allocation2 + $0x1d0] sm:$0xff] %v1390
          %1457 = vst [vmem:[#allocation2 + $0x1d8] sm:$0xff] %v1391
          %1458 = vst [vmem:[#allocation2 + $0x1e0] sm:$0xff] %v1392
          %1459 = vst [vmem:[#allocation2 + $0x1e8] sm:$0xff] %v1393
          %1460 = vst [vmem:[#allocation2 + $0x1f0] sm:$0xff] %v1394
          %1461 = vst [vmem:[#allocation2 + $0x1f8] sm:$0xff] %v1395
          %1462 = vst [vmem:[#allocation2 + $0x200] sm:$0xff] %v1396
          %1463 = vst [vmem:[#allocation2 + $0x208] sm:$0xff] %v1397
        $region96: #{tpu_custom_call.1} parent=63 // pred_fallthru
          _
        %v1464 = vld [vmem:[#allocation2] sm:$0xff]
        %v1465 = vld [vmem:[#allocation2 + $0x8] sm:$0xff]
        %v1466 = vld [vmem:[#allocation2 + $0x10] sm:$0xff]
        %v1467 = vld [vmem:[#allocation2 + $0x18] sm:$0xff]
        %v1468 = vld [vmem:[#allocation2 + $0x20] sm:$0xff]
        %v1469 = vld [vmem:[#allocation2 + $0x28] sm:$0xff]
        %v1470 = vld [vmem:[#allocation2 + $0x30] sm:$0xff]
        %v1471 = vld [vmem:[#allocation2 + $0x38] sm:$0xff]
        %v1472 = vld [vmem:[#allocation2 + $0x40] sm:$0xff]
        %v1473 = vld [vmem:[#allocation2 + $0x48] sm:$0xff]
        %v1474 = vld [vmem:[#allocation2 + $0x50] sm:$0xff]
        %v1475 = vld [vmem:[#allocation2 + $0x58] sm:$0xff]
        %v1476 = vld [vmem:[#allocation2 + $0x60] sm:$0xff]
        %v1477 = vld [vmem:[#allocation2 + $0x68] sm:$0xff]
        %v1478 = vld [vmem:[#allocation2 + $0x70] sm:$0xff]
        %v1479 = vld [vmem:[#allocation2 + $0x78] sm:$0xff]
        %v1480 = vld [vmem:[#allocation2 + $0x80] sm:$0xff]
        %v1481 = vld [vmem:[#allocation2 + $0x88] sm:$0xff]
        %v1482 = vld [vmem:[#allocation2 + $0x90] sm:$0xff]
        %v1483 = vld [vmem:[#allocation2 + $0x98] sm:$0xff]
        %v1484 = vld [vmem:[#allocation2 + $0xa0] sm:$0xff]
        %v1485 = vld [vmem:[#allocation2 + $0xa8] sm:$0xff]
        %v1486 = vld [vmem:[#allocation2 + $0xb0] sm:$0xff]
        %v1487 = vld [vmem:[#allocation2 + $0xb8] sm:$0xff]
        %v1488 = vld [vmem:[#allocation2 + $0xc0] sm:$0xff]
        %v1489 = vld [vmem:[#allocation2 + $0xc8] sm:$0xff]
        %v1490 = vld [vmem:[#allocation2 + $0xd0] sm:$0xff]
        %v1491 = vld [vmem:[#allocation2 + $0xd8] sm:$0xff]
        %v1492 = vld [vmem:[#allocation2 + $0xe0] sm:$0xff]
        %v1493 = vld [vmem:[#allocation2 + $0xe8] sm:$0xff]
        %v1494 = vld [vmem:[#allocation2 + $0xf0] sm:$0xff]
        %v1495 = vld [vmem:[#allocation2 + $0xf8] sm:$0xff]
        %v1496 = vld [vmem:[#allocation2 + $0x100] sm:$0xff]
        %v1497 = vld [vmem:[#allocation2 + $0x108] sm:$0xff]
        %v1498 = vld [vmem:[#allocation2 + $0x110] sm:$0xff]
        %v1499 = vld [vmem:[#allocation2 + $0x118] sm:$0xff]
        %v1500 = vld [vmem:[#allocation2 + $0x120] sm:$0xff]
        %v1501 = vld [vmem:[#allocation2 + $0x128] sm:$0xff]
        %v1502 = vld [vmem:[#allocation2 + $0x130] sm:$0xff]
        %v1503 = vld [vmem:[#allocation2 + $0x138] sm:$0xff]
        %v1504 = vld [vmem:[#allocation2 + $0x140] sm:$0xff]
        %v1505 = vld [vmem:[#allocation2 + $0x148] sm:$0xff]
        %v1506 = vld [vmem:[#allocation2 + $0x150] sm:$0xff]
        %v1507 = vld [vmem:[#allocation2 + $0x158] sm:$0xff]
        %v1508 = vld [vmem:[#allocation2 + $0x160] sm:$0xff]
        %v1509 = vld [vmem:[#allocation2 + $0x168] sm:$0xff]
        %v1510 = vld [vmem:[#allocation2 + $0x170] sm:$0xff]
        %v1511 = vld [vmem:[#allocation2 + $0x178] sm:$0xff]
        %v1512 = vld [vmem:[#allocation2 + $0x180] sm:$0xff]
        %v1513 = vld [vmem:[#allocation2 + $0x188] sm:$0xff]
        %v1514 = vld [vmem:[#allocation2 + $0x190] sm:$0xff]
        %v1515 = vld [vmem:[#allocation2 + $0x198] sm:$0xff]
        %v1516 = vld [vmem:[#allocation2 + $0x1a0] sm:$0xff]
        %v1517 = vld [vmem:[#allocation2 + $0x1a8] sm:$0xff]
        %v1518 = vld [vmem:[#allocation2 + $0x1b0] sm:$0xff]
        %v1519 = vld [vmem:[#allocation2 + $0x1b8] sm:$0xff]
        %v1520 = vld [vmem:[#allocation2 + $0x1c0] sm:$0xff]
        %v1521 = vld [vmem:[#allocation2 + $0x1c8] sm:$0xff]
        %v1522 = vld [vmem:[#allocation2 + $0x1d0] sm:$0xff]
        %v1523 = vld [vmem:[#allocation2 + $0x1d8] sm:$0xff]
        %v1524 = vld [vmem:[#allocation2 + $0x1e0] sm:$0xff]
        %v1525 = vld [vmem:[#allocation2 + $0x1e8] sm:$0xff]
        %v1526 = vld [vmem:[#allocation2 + $0x1f0] sm:$0xff]
        %v1527 = vld [vmem:[#allocation2 + $0x1f8] sm:$0xff]
        %v1528 = vld [vmem:[#allocation2 + $0x200] sm:$0xff]
        %v1529 = vld [vmem:[#allocation2 + $0x208] sm:$0xff]
        %v1530 = vld [vmem:[%s3] sm:$0xff]
        %v1531 = vld [vmem:[#allocation9] sm:$0xf]
        %v1532 = vld [vmem:[#allocation9 + $0x4] sm:$0xf]
        %v1533 = vld [vmem:[#allocation9 + $0x8] sm:$0xf]
        %v1534 = vld [vmem:[#allocation9 + $0xc] sm:$0xf]
        %v1535 = vld [vmem:[#allocation9 + $0x10] sm:$0xf]
        %v1536 = vld [vmem:[#allocation9 + $0x14] sm:$0xf]
        %v1537 = vld [vmem:[#allocation9 + $0x18] sm:$0xf]
        %v1538 = vld [vmem:[#allocation9 + $0x1c] sm:$0xf]
        %v1539 = vld [vmem:[#allocation9 + $0x20] sm:$0xf]
        %v1540 = vld [vmem:[#allocation9 + $0x24] sm:$0xf]
        %v1541 = vld [vmem:[#allocation9 + $0x28] sm:$0xf]
        %v1542 = vld [vmem:[#allocation9 + $0x2c] sm:$0xf]
        %v1543 = vld [vmem:[#allocation9 + $0x30] sm:$0xf]
        %v1544 = vld [vmem:[#allocation9 + $0x34] sm:$0xf]
        %v1545 = vld [vmem:[#allocation9 + $0x38] sm:$0xf]
        %v1546 = vld [vmem:[#allocation9 + $0x3c] sm:$0xf]
        %v1547 = vld [vmem:[%s5] sm:$0x1]
        %v1548 = vlaneseq
        %v1549 = vshrl.u32 %v1548, 7
        %v1550 = vsub.s32 1, %v1549
        %v1551 = vrot.slane %v1530, %v1550
        %v1552 = vmul.f32 %v1464, %v1551
        %v1553 = vmul.f32 %v1465, %v1551
        %v1554 = vmul.f32 %v1466, %v1551
        %v1555 = vmul.f32 %v1467, %v1551
        %v1556 = vmul.f32 %v1468, %v1551
        %v1557 = vmul.f32 %v1469, %v1551
        %v1558 = vmul.f32 %v1470, %v1551
        %v1559 = vmul.f32 %v1471, %v1551
        %v1560 = vmul.f32 %v1472, %v1551
        %v1561 = vmul.f32 %v1473, %v1551
        %v1562 = vmul.f32 %v1474, %v1551
        %v1563 = vmul.f32 %v1475, %v1551
        %v1564 = vmul.f32 %v1476, %v1551
        %v1565 = vmul.f32 %v1477, %v1551
        %v1566 = vmul.f32 %v1478, %v1551
        %v1567 = vmul.f32 %v1479, %v1551
        %v1568 = vmul.f32 %v1480, %v1551
        %v1569 = vmul.f32 %v1481, %v1551
        %v1570 = vmul.f32 %v1482, %v1551
        %v1571 = vmul.f32 %v1483, %v1551
        %v1572 = vmul.f32 %v1484, %v1551
        %v1573 = vmul.f32 %v1485, %v1551
        %v1574 = vmul.f32 %v1486, %v1551
        %v1575 = vmul.f32 %v1487, %v1551
        %v1576 = vmul.f32 %v1488, %v1551
        %v1577 = vmul.f32 %v1489, %v1551
        %v1578 = vmul.f32 %v1490, %v1551
        %v1579 = vmul.f32 %v1491, %v1551
        %v1580 = vmul.f32 %v1492, %v1551
        %v1581 = vmul.f32 %v1493, %v1551
        %v1582 = vmul.f32 %v1494, %v1551
        %v1583 = vmul.f32 %v1495, %v1551
        %v1584 = vmul.f32 %v1496, %v1551
        %v1585 = vmul.f32 %v1497, %v1551
        %v1586 = vmul.f32 %v1498, %v1551
        %v1587 = vmul.f32 %v1499, %v1551
        %v1588 = vmul.f32 %v1500, %v1551
        %v1589 = vmul.f32 %v1501, %v1551
        %v1590 = vmul.f32 %v1502, %v1551
        %v1591 = vmul.f32 %v1503, %v1551
        %v1592 = vmul.f32 %v1504, %v1551
        %v1593 = vmul.f32 %v1505, %v1551
        %v1594 = vmul.f32 %v1506, %v1551
        %v1595 = vmul.f32 %v1507, %v1551
        %v1596 = vmul.f32 %v1508, %v1551
        %v1597 = vmul.f32 %v1509, %v1551
        %v1598 = vmul.f32 %v1510, %v1551
        %v1599 = vmul.f32 %v1511, %v1551
        %v1600 = vmul.f32 %v1512, %v1551
        %v1601 = vmul.f32 %v1513, %v1551
        %v1602 = vmul.f32 %v1514, %v1551
        %v1603 = vmul.f32 %v1515, %v1551
        %v1604 = vmul.f32 %v1516, %v1551
        %v1605 = vmul.f32 %v1517, %v1551
        %v1606 = vmul.f32 %v1518, %v1551
        %v1607 = vmul.f32 %v1519, %v1551
        %v1608 = vmul.f32 %v1520, %v1551
        %v1609 = vmul.f32 %v1521, %v1551
        %v1610 = vmul.f32 %v1522, %v1551
        %v1611 = vmul.f32 %v1523, %v1551
        %v1612 = vmul.f32 %v1524, %v1551
        %v1613 = vmul.f32 %v1525, %v1551
        %v1614 = vmul.f32 %v1526, %v1551
        %v1615 = vmul.f32 %v1527, %v1551
        %v1616 = vmul.f32 %v1528, %v1551
        %v1617 = vmul.f32 %v1529, %v1551
        %v1618 = vrot.slane %v1464, 7
        %v1619 = vrot.slane %v1465, 7
        %v1620 = vrot.slane %v1466, 7
        %v1621 = vrot.slane %v1467, 7
        %v1622 = vrot.slane %v1468, 7
        %v1623 = vrot.slane %v1469, 7
        %v1624 = vrot.slane %v1470, 7
        %v1625 = vrot.slane %v1471, 7
        %v1626 = vrot.slane %v1472, 7
        %v1627 = vrot.slane %v1473, 7
        %v1628 = vrot.slane %v1474, 7
        %v1629 = vrot.slane %v1475, 7
        %v1630 = vrot.slane %v1476, 7
        %v1631 = vrot.slane %v1477, 7
        %v1632 = vrot.slane %v1478, 7
        %v1633 = vrot.slane %v1479, 7
        %v1634 = vrot.slane %v1480, 7
        %v1635 = vrot.slane %v1481, 7
        %v1636 = vrot.slane %v1482, 7
        %v1637 = vrot.slane %v1483, 7
        %v1638 = vrot.slane %v1484, 7
        %v1639 = vrot.slane %v1485, 7
        %v1640 = vrot.slane %v1486, 7
        %v1641 = vrot.slane %v1487, 7
        %v1642 = vrot.slane %v1488, 7
        %v1643 = vrot.slane %v1489, 7
        %v1644 = vrot.slane %v1490, 7
        %v1645 = vrot.slane %v1491, 7
        %v1646 = vrot.slane %v1492, 7
        %v1647 = vrot.slane %v1493, 7
        %v1648 = vrot.slane %v1494, 7
        %v1649 = vrot.slane %v1495, 7
        %v1650 = vrot.slane %v1496, 7
        %v1651 = vrot.slane %v1497, 7
        %v1652 = vrot.slane %v1498, 7
        %v1653 = vrot.slane %v1499, 7
        %v1654 = vrot.slane %v1500, 7
        %v1655 = vrot.slane %v1501, 7
        %v1656 = vrot.slane %v1502, 7
        %v1657 = vrot.slane %v1503, 7
        %v1658 = vrot.slane %v1504, 7
        %v1659 = vrot.slane %v1505, 7
        %v1660 = vrot.slane %v1506, 7
        %v1661 = vrot.slane %v1507, 7
        %v1662 = vrot.slane %v1508, 7
        %v1663 = vrot.slane %v1509, 7
        %v1664 = vrot.slane %v1510, 7
        %v1665 = vrot.slane %v1511, 7
        %v1666 = vrot.slane %v1512, 7
        %v1667 = vrot.slane %v1513, 7
        %v1668 = vrot.slane %v1514, 7
        %v1669 = vrot.slane %v1515, 7
        %v1670 = vrot.slane %v1516, 7
        %v1671 = vrot.slane %v1517, 7
        %v1672 = vrot.slane %v1518, 7
        %v1673 = vrot.slane %v1519, 7
        %v1674 = vrot.slane %v1520, 7
        %v1675 = vrot.slane %v1521, 7
        %v1676 = vrot.slane %v1522, 7
        %v1677 = vrot.slane %v1523, 7
        %v1678 = vrot.slane %v1524, 7
        %v1679 = vrot.slane %v1525, 7
        %v1680 = vrot.slane %v1526, 7
        %v1681 = vrot.slane %v1527, 7
        %v1682 = vrot.slane %v1528, 7
        %v1683 = vrot.slane %v1529, 7
        %vm1684 = vcmp.lt.s32.totalorder %v602, 1
        %v1685 = vsel %vm1684, %v1682, %v1683
        %v1686 = vsel %vm1684, %v1681, %v1682
        %v1687 = vsel %vm1684, %v1680, %v1681
        %v1688 = vsel %vm1684, %v1679, %v1680
        %v1689 = vsel %vm1684, %v1678, %v1679
        %v1690 = vsel %vm1684, %v1677, %v1678
        %v1691 = vsel %vm1684, %v1676, %v1677
        %v1692 = vsel %vm1684, %v1675, %v1676
        %v1693 = vsel %vm1684, %v1674, %v1675
        %v1694 = vsel %vm1684, %v1673, %v1674
        %v1695 = vsel %vm1684, %v1672, %v1673
        %v1696 = vsel %vm1684, %v1671, %v1672
        %v1697 = vsel %vm1684, %v1670, %v1671
        %v1698 = vsel %vm1684, %v1669, %v1670
        %v1699 = vsel %vm1684, %v1668, %v1669
        %v1700 = vsel %vm1684, %v1667, %v1668
        %v1701 = vsel %vm1684, %v1666, %v1667
        %v1702 = vsel %vm1684, %v1665, %v1666
        %v1703 = vsel %vm1684, %v1664, %v1665
        %v1704 = vsel %vm1684, %v1663, %v1664
        %v1705 = vsel %vm1684, %v1662, %v1663
        %v1706 = vsel %vm1684, %v1661, %v1662
        %v1707 = vsel %vm1684, %v1660, %v1661
        %v1708 = vsel %vm1684, %v1659, %v1660
        %v1709 = vsel %vm1684, %v1658, %v1659
        %v1710 = vsel %vm1684, %v1657, %v1658
        %v1711 = vsel %vm1684, %v1656, %v1657
        %v1712 = vsel %vm1684, %v1655, %v1656
        %v1713 = vsel %vm1684, %v1654, %v1655
        %v1714 = vsel %vm1684, %v1653, %v1654
        %v1715 = vsel %vm1684, %v1652, %v1653
        %v1716 = vsel %vm1684, %v1651, %v1652
        %v1717 = vsel %vm1684, %v1650, %v1651
        %v1718 = vsel %vm1684, %v1649, %v1650
        %v1719 = vsel %vm1684, %v1648, %v1649
        %v1720 = vsel %vm1684, %v1647, %v1648
        %v1721 = vsel %vm1684, %v1646, %v1647
        %v1722 = vsel %vm1684, %v1645, %v1646
        %v1723 = vsel %vm1684, %v1644, %v1645
        %v1724 = vsel %vm1684, %v1643, %v1644
        %v1725 = vsel %vm1684, %v1642, %v1643
        %v1726 = vsel %vm1684, %v1641, %v1642
        %v1727 = vsel %vm1684, %v1640, %v1641
        %v1728 = vsel %vm1684, %v1639, %v1640
        %v1729 = vsel %vm1684, %v1638, %v1639
        %v1730 = vsel %vm1684, %v1637, %v1638
        %v1731 = vsel %vm1684, %v1636, %v1637
        %v1732 = vsel %vm1684, %v1635, %v1636
        %v1733 = vsel %vm1684, %v1634, %v1635
        %v1734 = vsel %vm1684, %v1633, %v1634
        %v1735 = vsel %vm1684, %v1632, %v1633
        %v1736 = vsel %vm1684, %v1631, %v1632
        %v1737 = vsel %vm1684, %v1630, %v1631
        %v1738 = vsel %vm1684, %v1629, %v1630
        %v1739 = vsel %vm1684, %v1628, %v1629
        %v1740 = vsel %vm1684, %v1627, %v1628
        %v1741 = vsel %vm1684, %v1626, %v1627
        %v1742 = vsel %vm1684, %v1625, %v1626
        %v1743 = vsel %vm1684, %v1624, %v1625
        %v1744 = vsel %vm1684, %v1623, %v1624
        %v1745 = vsel %vm1684, %v1622, %v1623
        %v1746 = vsel %vm1684, %v1621, %v1622
        %v1747 = vsel %vm1684, %v1620, %v1621
        %v1748 = vsel %vm1684, %v1619, %v1620
        %v1749 = vsel %vm1684, %v1618, %v1619
        %v1750 = vsel %vm1684, %v1683, %v1618
        %v1751 = vlaneseq
        %v1752 = vshrl.u32 %v1751, 7
        %v1753 = vsub.s32 0, %v1752
        %v1754 = vrot.slane %v1530, %v1753
        %v1755 = vmul.f32 %v1750, %v1754
        %v1756 = vmul.f32 %v1749, %v1754
        %v1757 = vmul.f32 %v1748, %v1754
        %v1758 = vmul.f32 %v1747, %v1754
        %v1759 = vmul.f32 %v1746, %v1754
        %v1760 = vmul.f32 %v1745, %v1754
        %v1761 = vmul.f32 %v1744, %v1754
        %v1762 = vmul.f32 %v1743, %v1754
        %v1763 = vmul.f32 %v1742, %v1754
        %v1764 = vmul.f32 %v1741, %v1754
        %v1765 = vmul.f32 %v1740, %v1754
        %v1766 = vmul.f32 %v1739, %v1754
        %v1767 = vmul.f32 %v1738, %v1754
        %v1768 = vmul.f32 %v1737, %v1754
        %v1769 = vmul.f32 %v1736, %v1754
        %v1770 = vmul.f32 %v1735, %v1754
        %v1771 = vmul.f32 %v1734, %v1754
        %v1772 = vmul.f32 %v1733, %v1754
        %v1773 = vmul.f32 %v1732, %v1754
        %v1774 = vmul.f32 %v1731, %v1754
        %v1775 = vmul.f32 %v1730, %v1754
        %v1776 = vmul.f32 %v1729, %v1754
        %v1777 = vmul.f32 %v1728, %v1754
        %v1778 = vmul.f32 %v1727, %v1754
        %v1779 = vmul.f32 %v1726, %v1754
        %v1780 = vmul.f32 %v1725, %v1754
        %v1781 = vmul.f32 %v1724, %v1754
        %v1782 = vmul.f32 %v1723, %v1754
        %v1783 = vmul.f32 %v1722, %v1754
        %v1784 = vmul.f32 %v1721, %v1754
        %v1785 = vmul.f32 %v1720, %v1754
        %v1786 = vmul.f32 %v1719, %v1754
        %v1787 = vmul.f32 %v1718, %v1754
        %v1788 = vmul.f32 %v1717, %v1754
        %v1789 = vmul.f32 %v1716, %v1754
        %v1790 = vmul.f32 %v1715, %v1754
        %v1791 = vmul.f32 %v1714, %v1754
        %v1792 = vmul.f32 %v1713, %v1754
        %v1793 = vmul.f32 %v1712, %v1754
        %v1794 = vmul.f32 %v1711, %v1754
        %v1795 = vmul.f32 %v1710, %v1754
        %v1796 = vmul.f32 %v1709, %v1754
        %v1797 = vmul.f32 %v1708, %v1754
        %v1798 = vmul.f32 %v1707, %v1754
        %v1799 = vmul.f32 %v1706, %v1754
        %v1800 = vmul.f32 %v1705, %v1754
        %v1801 = vmul.f32 %v1704, %v1754
        %v1802 = vmul.f32 %v1703, %v1754
        %v1803 = vmul.f32 %v1702, %v1754
        %v1804 = vmul.f32 %v1701, %v1754
        %v1805 = vmul.f32 %v1700, %v1754
        %v1806 = vmul.f32 %v1699, %v1754
        %v1807 = vmul.f32 %v1698, %v1754
        %v1808 = vmul.f32 %v1697, %v1754
        %v1809 = vmul.f32 %v1696, %v1754
        %v1810 = vmul.f32 %v1695, %v1754
        %v1811 = vmul.f32 %v1694, %v1754
        %v1812 = vmul.f32 %v1693, %v1754
        %v1813 = vmul.f32 %v1692, %v1754
        %v1814 = vmul.f32 %v1691, %v1754
        %v1815 = vmul.f32 %v1690, %v1754
        %v1816 = vmul.f32 %v1689, %v1754
        %v1817 = vmul.f32 %v1688, %v1754
        %v1818 = vmul.f32 %v1687, %v1754
        %v1819 = vmul.f32 %v1686, %v1754
        %v1820 = vmul.f32 %v1685, %v1754
        %v1821 = vadd.f32 %v1552, %v1755
        %v1822 = vadd.f32 %v1553, %v1756
        %v1823 = vadd.f32 %v1554, %v1757
        %v1824 = vadd.f32 %v1555, %v1758
        %v1825 = vadd.f32 %v1556, %v1759
        %v1826 = vadd.f32 %v1557, %v1760
        %v1827 = vadd.f32 %v1558, %v1761
        %v1828 = vadd.f32 %v1559, %v1762
        %v1829 = vadd.f32 %v1560, %v1763
        %v1830 = vadd.f32 %v1561, %v1764
        %v1831 = vadd.f32 %v1562, %v1765
        %v1832 = vadd.f32 %v1563, %v1766
        %v1833 = vadd.f32 %v1564, %v1767
        %v1834 = vadd.f32 %v1565, %v1768
        %v1835 = vadd.f32 %v1566, %v1769
        %v1836 = vadd.f32 %v1567, %v1770
        %v1837 = vadd.f32 %v1568, %v1771
        %v1838 = vadd.f32 %v1569, %v1772
        %v1839 = vadd.f32 %v1570, %v1773
        %v1840 = vadd.f32 %v1571, %v1774
        %v1841 = vadd.f32 %v1572, %v1775
        %v1842 = vadd.f32 %v1573, %v1776
        %v1843 = vadd.f32 %v1574, %v1777
        %v1844 = vadd.f32 %v1575, %v1778
        %v1845 = vadd.f32 %v1576, %v1779
        %v1846 = vadd.f32 %v1577, %v1780
        %v1847 = vadd.f32 %v1578, %v1781
        %v1848 = vadd.f32 %v1579, %v1782
        %v1849 = vadd.f32 %v1580, %v1783
        %v1850 = vadd.f32 %v1581, %v1784
        %v1851 = vadd.f32 %v1582, %v1785
        %v1852 = vadd.f32 %v1583, %v1786
        %v1853 = vadd.f32 %v1584, %v1787
        %v1854 = vadd.f32 %v1585, %v1788
        %v1855 = vadd.f32 %v1586, %v1789
        %v1856 = vadd.f32 %v1587, %v1790
        %v1857 = vadd.f32 %v1588, %v1791
        %v1858 = vadd.f32 %v1589, %v1792
        %v1859 = vadd.f32 %v1590, %v1793
        %v1860 = vadd.f32 %v1591, %v1794
        %v1861 = vadd.f32 %v1592, %v1795
        %v1862 = vadd.f32 %v1593, %v1796
        %v1863 = vadd.f32 %v1594, %v1797
        %v1864 = vadd.f32 %v1595, %v1798
        %v1865 = vadd.f32 %v1596, %v1799
        %v1866 = vadd.f32 %v1597, %v1800
        %v1867 = vadd.f32 %v1598, %v1801
        %v1868 = vadd.f32 %v1599, %v1802
        %v1869 = vadd.f32 %v1600, %v1803
        %v1870 = vadd.f32 %v1601, %v1804
        %v1871 = vadd.f32 %v1602, %v1805
        %v1872 = vadd.f32 %v1603, %v1806
        %v1873 = vadd.f32 %v1604, %v1807
        %v1874 = vadd.f32 %v1605, %v1808
        %v1875 = vadd.f32 %v1606, %v1809
        %v1876 = vadd.f32 %v1607, %v1810
        %v1877 = vadd.f32 %v1608, %v1811
        %v1878 = vadd.f32 %v1609, %v1812
        %v1879 = vadd.f32 %v1610, %v1813
        %v1880 = vadd.f32 %v1611, %v1814
        %v1881 = vadd.f32 %v1612, %v1815
        %v1882 = vadd.f32 %v1613, %v1816
        %v1883 = vadd.f32 %v1614, %v1817
        %v1884 = vadd.f32 %v1615, %v1818
        %v1885 = vadd.f32 %v1616, %v1819
        %v1886 = vadd.f32 %v1617, %v1820
        %v1887 = vrot.slane %v1464, 1
        %v1888 = vrot.slane %v1465, 1
        %v1889 = vrot.slane %v1466, 1
        %v1890 = vrot.slane %v1467, 1
        %v1891 = vrot.slane %v1468, 1
        %v1892 = vrot.slane %v1469, 1
        %v1893 = vrot.slane %v1470, 1
        %v1894 = vrot.slane %v1471, 1
        %v1895 = vrot.slane %v1472, 1
        %v1896 = vrot.slane %v1473, 1
        %v1897 = vrot.slane %v1474, 1
        %v1898 = vrot.slane %v1475, 1
        %v1899 = vrot.slane %v1476, 1
        %v1900 = vrot.slane %v1477, 1
        %v1901 = vrot.slane %v1478, 1
        %v1902 = vrot.slane %v1479, 1
        %v1903 = vrot.slane %v1480, 1
        %v1904 = vrot.slane %v1481, 1
        %v1905 = vrot.slane %v1482, 1
        %v1906 = vrot.slane %v1483, 1
        %v1907 = vrot.slane %v1484, 1
        %v1908 = vrot.slane %v1485, 1
        %v1909 = vrot.slane %v1486, 1
        %v1910 = vrot.slane %v1487, 1
        %v1911 = vrot.slane %v1488, 1
        %v1912 = vrot.slane %v1489, 1
        %v1913 = vrot.slane %v1490, 1
        %v1914 = vrot.slane %v1491, 1
        %v1915 = vrot.slane %v1492, 1
        %v1916 = vrot.slane %v1493, 1
        %v1917 = vrot.slane %v1494, 1
        %v1918 = vrot.slane %v1495, 1
        %v1919 = vrot.slane %v1496, 1
        %v1920 = vrot.slane %v1497, 1
        %v1921 = vrot.slane %v1498, 1
        %v1922 = vrot.slane %v1499, 1
        %v1923 = vrot.slane %v1500, 1
        %v1924 = vrot.slane %v1501, 1
        %v1925 = vrot.slane %v1502, 1
        %v1926 = vrot.slane %v1503, 1
        %v1927 = vrot.slane %v1504, 1
        %v1928 = vrot.slane %v1505, 1
        %v1929 = vrot.slane %v1506, 1
        %v1930 = vrot.slane %v1507, 1
        %v1931 = vrot.slane %v1508, 1
        %v1932 = vrot.slane %v1509, 1
        %v1933 = vrot.slane %v1510, 1
        %v1934 = vrot.slane %v1511, 1
        %v1935 = vrot.slane %v1512, 1
        %v1936 = vrot.slane %v1513, 1
        %v1937 = vrot.slane %v1514, 1
        %v1938 = vrot.slane %v1515, 1
        %v1939 = vrot.slane %v1516, 1
        %v1940 = vrot.slane %v1517, 1
        %v1941 = vrot.slane %v1518, 1
        %v1942 = vrot.slane %v1519, 1
        %v1943 = vrot.slane %v1520, 1
        %v1944 = vrot.slane %v1521, 1
        %v1945 = vrot.slane %v1522, 1
        %v1946 = vrot.slane %v1523, 1
        %v1947 = vrot.slane %v1524, 1
        %v1948 = vrot.slane %v1525, 1
        %v1949 = vrot.slane %v1526, 1
        %v1950 = vrot.slane %v1527, 1
        %v1951 = vrot.slane %v1528, 1
        %v1952 = vrot.slane %v1529, 1
        %vm1953 = vcmp.lt.s32.totalorder %v602, 7
        %v1954 = vsel %vm1953, %v1951, %v1952
        %v1955 = vsel %vm1953, %v1950, %v1951
        %v1956 = vsel %vm1953, %v1949, %v1950
        %v1957 = vsel %vm1953, %v1948, %v1949
        %v1958 = vsel %vm1953, %v1947, %v1948
        %v1959 = vsel %vm1953, %v1946, %v1947
        %v1960 = vsel %vm1953, %v1945, %v1946
        %v1961 = vsel %vm1953, %v1944, %v1945
        %v1962 = vsel %vm1953, %v1943, %v1944
        %v1963 = vsel %vm1953, %v1942, %v1943
        %v1964 = vsel %vm1953, %v1941, %v1942
        %v1965 = vsel %vm1953, %v1940, %v1941
        %v1966 = vsel %vm1953, %v1939, %v1940
        %v1967 = vsel %vm1953, %v1938, %v1939
        %v1968 = vsel %vm1953, %v1937, %v1938
        %v1969 = vsel %vm1953, %v1936, %v1937
        %v1970 = vsel %vm1953, %v1935, %v1936
        %v1971 = vsel %vm1953, %v1934, %v1935
        %v1972 = vsel %vm1953, %v1933, %v1934
        %v1973 = vsel %vm1953, %v1932, %v1933
        %v1974 = vsel %vm1953, %v1931, %v1932
        %v1975 = vsel %vm1953, %v1930, %v1931
        %v1976 = vsel %vm1953, %v1929, %v1930
        %v1977 = vsel %vm1953, %v1928, %v1929
        %v1978 = vsel %vm1953, %v1927, %v1928
        %v1979 = vsel %vm1953, %v1926, %v1927
        %v1980 = vsel %vm1953, %v1925, %v1926
        %v1981 = vsel %vm1953, %v1924, %v1925
        %v1982 = vsel %vm1953, %v1923, %v1924
        %v1983 = vsel %vm1953, %v1922, %v1923
        %v1984 = vsel %vm1953, %v1921, %v1922
        %v1985 = vsel %vm1953, %v1920, %v1921
        %v1986 = vsel %vm1953, %v1919, %v1920
        %v1987 = vsel %vm1953, %v1918, %v1919
        %v1988 = vsel %vm1953, %v1917, %v1918
        %v1989 = vsel %vm1953, %v1916, %v1917
        %v1990 = vsel %vm1953, %v1915, %v1916
        %v1991 = vsel %vm1953, %v1914, %v1915
        %v1992 = vsel %vm1953, %v1913, %v1914
        %v1993 = vsel %vm1953, %v1912, %v1913
        %v1994 = vsel %vm1953, %v1911, %v1912
        %v1995 = vsel %vm1953, %v1910, %v1911
        %v1996 = vsel %vm1953, %v1909, %v1910
        %v1997 = vsel %vm1953, %v1908, %v1909
        %v1998 = vsel %vm1953, %v1907, %v1908
        %v1999 = vsel %vm1953, %v1906, %v1907
        %v2000 = vsel %vm1953, %v1905, %v1906
        %v2001 = vsel %vm1953, %v1904, %v1905
        %v2002 = vsel %vm1953, %v1903, %v1904
        %v2003 = vsel %vm1953, %v1902, %v1903
        %v2004 = vsel %vm1953, %v1901, %v1902
        %v2005 = vsel %vm1953, %v1900, %v1901
        %v2006 = vsel %vm1953, %v1899, %v1900
        %v2007 = vsel %vm1953, %v1898, %v1899
        %v2008 = vsel %vm1953, %v1897, %v1898
        %v2009 = vsel %vm1953, %v1896, %v1897
        %v2010 = vsel %vm1953, %v1895, %v1896
        %v2011 = vsel %vm1953, %v1894, %v1895
        %v2012 = vsel %vm1953, %v1893, %v1894
        %v2013 = vsel %vm1953, %v1892, %v1893
        %v2014 = vsel %vm1953, %v1891, %v1892
        %v2015 = vsel %vm1953, %v1890, %v1891
        %v2016 = vsel %vm1953, %v1889, %v1890
        %v2017 = vsel %vm1953, %v1888, %v1889
        %v2018 = vsel %vm1953, %v1887, %v1888
        %v2019 = vsel %vm1953, %v1952, %v1887
        %v2020 = vlaneseq
        %v2021 = vshrl.u32 %v2020, 7
        %v2022 = vsub.s32 2, %v2021
        %v2023 = vrot.slane %v1530, %v2022
        %v2024 = vmul.f32 %v2018, %v2023
        %v2025 = vmul.f32 %v2017, %v2023
        %v2026 = vmul.f32 %v2016, %v2023
        %v2027 = vmul.f32 %v2015, %v2023
        %v2028 = vmul.f32 %v2014, %v2023
        %v2029 = vmul.f32 %v2013, %v2023
        %v2030 = vmul.f32 %v2012, %v2023
        %v2031 = vmul.f32 %v2011, %v2023
        %v2032 = vmul.f32 %v2010, %v2023
        %v2033 = vmul.f32 %v2009, %v2023
        %v2034 = vmul.f32 %v2008, %v2023
        %v2035 = vmul.f32 %v2007, %v2023
        %v2036 = vmul.f32 %v2006, %v2023
        %v2037 = vmul.f32 %v2005, %v2023
        %v2038 = vmul.f32 %v2004, %v2023
        %v2039 = vmul.f32 %v2003, %v2023
        %v2040 = vmul.f32 %v2002, %v2023
        %v2041 = vmul.f32 %v2001, %v2023
        %v2042 = vmul.f32 %v2000, %v2023
        %v2043 = vmul.f32 %v1999, %v2023
        %v2044 = vmul.f32 %v1998, %v2023
        %v2045 = vmul.f32 %v1997, %v2023
        %v2046 = vmul.f32 %v1996, %v2023
        %v2047 = vmul.f32 %v1995, %v2023
        %v2048 = vmul.f32 %v1994, %v2023
        %v2049 = vmul.f32 %v1993, %v2023
        %v2050 = vmul.f32 %v1992, %v2023
        %v2051 = vmul.f32 %v1991, %v2023
        %v2052 = vmul.f32 %v1990, %v2023
        %v2053 = vmul.f32 %v1989, %v2023
        %v2054 = vmul.f32 %v1988, %v2023
        %v2055 = vmul.f32 %v1987, %v2023
        %v2056 = vmul.f32 %v1986, %v2023
        %v2057 = vmul.f32 %v1985, %v2023
        %v2058 = vmul.f32 %v1984, %v2023
        %v2059 = vmul.f32 %v1983, %v2023
        %v2060 = vmul.f32 %v1982, %v2023
        %v2061 = vmul.f32 %v1981, %v2023
        %v2062 = vmul.f32 %v1980, %v2023
        %v2063 = vmul.f32 %v1979, %v2023
        %v2064 = vmul.f32 %v1978, %v2023
        %v2065 = vmul.f32 %v1977, %v2023
        %v2066 = vmul.f32 %v1976, %v2023
        %v2067 = vmul.f32 %v1975, %v2023
        %v2068 = vmul.f32 %v1974, %v2023
        %v2069 = vmul.f32 %v1973, %v2023
        %v2070 = vmul.f32 %v1972, %v2023
        %v2071 = vmul.f32 %v1971, %v2023
        %v2072 = vmul.f32 %v1970, %v2023
        %v2073 = vmul.f32 %v1969, %v2023
        %v2074 = vmul.f32 %v1968, %v2023
        %v2075 = vmul.f32 %v1967, %v2023
        %v2076 = vmul.f32 %v1966, %v2023
        %v2077 = vmul.f32 %v1965, %v2023
        %v2078 = vmul.f32 %v1964, %v2023
        %v2079 = vmul.f32 %v1963, %v2023
        %v2080 = vmul.f32 %v1962, %v2023
        %v2081 = vmul.f32 %v1961, %v2023
        %v2082 = vmul.f32 %v1960, %v2023
        %v2083 = vmul.f32 %v1959, %v2023
        %v2084 = vmul.f32 %v1958, %v2023
        %v2085 = vmul.f32 %v1957, %v2023
        %v2086 = vmul.f32 %v1956, %v2023
        %v2087 = vmul.f32 %v1955, %v2023
        %v2088 = vmul.f32 %v1954, %v2023
        %v2089 = vmul.f32 %v2019, %v2023
        %v2090 = vadd.f32 %v1821, %v2024
        %v2091 = vadd.f32 %v1822, %v2025
        %v2092 = vadd.f32 %v1823, %v2026
        %v2093 = vadd.f32 %v1824, %v2027
        %v2094 = vadd.f32 %v1825, %v2028
        %v2095 = vadd.f32 %v1826, %v2029
        %v2096 = vadd.f32 %v1827, %v2030
        %v2097 = vadd.f32 %v1828, %v2031
        %v2098 = vadd.f32 %v1829, %v2032
        %v2099 = vadd.f32 %v1830, %v2033
        %v2100 = vadd.f32 %v1831, %v2034
        %v2101 = vadd.f32 %v1832, %v2035
        %v2102 = vadd.f32 %v1833, %v2036
        %v2103 = vadd.f32 %v1834, %v2037
        %v2104 = vadd.f32 %v1835, %v2038
        %v2105 = vadd.f32 %v1836, %v2039
        %v2106 = vadd.f32 %v1837, %v2040
        %v2107 = vadd.f32 %v1838, %v2041
        %v2108 = vadd.f32 %v1839, %v2042
        %v2109 = vadd.f32 %v1840, %v2043
        %v2110 = vadd.f32 %v1841, %v2044
        %v2111 = vadd.f32 %v1842, %v2045
        %v2112 = vadd.f32 %v1843, %v2046
        %v2113 = vadd.f32 %v1844, %v2047
        %v2114 = vadd.f32 %v1845, %v2048
        %v2115 = vadd.f32 %v1846, %v2049
        %v2116 = vadd.f32 %v1847, %v2050
        %v2117 = vadd.f32 %v1848, %v2051
        %v2118 = vadd.f32 %v1849, %v2052
        %v2119 = vadd.f32 %v1850, %v2053
        %v2120 = vadd.f32 %v1851, %v2054
        %v2121 = vadd.f32 %v1852, %v2055
        %v2122 = vadd.f32 %v1853, %v2056
        %v2123 = vadd.f32 %v1854, %v2057
        %v2124 = vadd.f32 %v1855, %v2058
        %v2125 = vadd.f32 %v1856, %v2059
        %v2126 = vadd.f32 %v1857, %v2060
        %v2127 = vadd.f32 %v1858, %v2061
        %v2128 = vadd.f32 %v1859, %v2062
        %v2129 = vadd.f32 %v1860, %v2063
        %v2130 = vadd.f32 %v1861, %v2064
        %v2131 = vadd.f32 %v1862, %v2065
        %v2132 = vadd.f32 %v1863, %v2066
        %v2133 = vadd.f32 %v1864, %v2067
        %v2134 = vadd.f32 %v1865, %v2068
        %v2135 = vadd.f32 %v1866, %v2069
        %v2136 = vadd.f32 %v1867, %v2070
        %v2137 = vadd.f32 %v1868, %v2071
        %v2138 = vadd.f32 %v1869, %v2072
        %v2139 = vadd.f32 %v1870, %v2073
        %v2140 = vadd.f32 %v1871, %v2074
        %v2141 = vadd.f32 %v1872, %v2075
        %v2142 = vadd.f32 %v1873, %v2076
        %v2143 = vadd.f32 %v1874, %v2077
        %v2144 = vadd.f32 %v1875, %v2078
        %v2145 = vadd.f32 %v1876, %v2079
        %v2146 = vadd.f32 %v1877, %v2080
        %v2147 = vadd.f32 %v1878, %v2081
        %v2148 = vadd.f32 %v1879, %v2082
        %v2149 = vadd.f32 %v1880, %v2083
        %v2150 = vadd.f32 %v1881, %v2084
        %v2151 = vadd.f32 %v1882, %v2085
        %v2152 = vadd.f32 %v1883, %v2086
        %v2153 = vadd.f32 %v1884, %v2087
        %v2154 = vadd.f32 %v1885, %v2088
        %v2155 = vadd.f32 %v1886, %v2089
        %v2156 = vpack.c.bf16 %v2091, %v2090
        %v2157 = vpack.c.bf16 %v2093, %v2092
        %v2158 = vpack.c.bf16 %v2095, %v2094
        %v2159 = vpack.c.bf16 %v2097, %v2096
        %v2160 = vpack.c.bf16 %v2099, %v2098
        %v2161 = vpack.c.bf16 %v2101, %v2100
        %v2162 = vpack.c.bf16 %v2103, %v2102
        %v2163 = vpack.c.bf16 %v2105, %v2104
        %v2164 = vpack.c.bf16 %v2107, %v2106
        %v2165 = vpack.c.bf16 %v2109, %v2108
        %v2166 = vpack.c.bf16 %v2111, %v2110
        %v2167 = vpack.c.bf16 %v2113, %v2112
        %v2168 = vpack.c.bf16 %v2115, %v2114
        %v2169 = vpack.c.bf16 %v2117, %v2116
        %v2170 = vpack.c.bf16 %v2119, %v2118
        %v2171 = vpack.c.bf16 %v2121, %v2120
        %v2172 = vpack.c.bf16 %v2123, %v2122
        %v2173 = vpack.c.bf16 %v2125, %v2124
        %v2174 = vpack.c.bf16 %v2127, %v2126
        %v2175 = vpack.c.bf16 %v2129, %v2128
        %v2176 = vpack.c.bf16 %v2131, %v2130
        %v2177 = vpack.c.bf16 %v2133, %v2132
        %v2178 = vpack.c.bf16 %v2135, %v2134
        %v2179 = vpack.c.bf16 %v2137, %v2136
        %v2180 = vpack.c.bf16 %v2139, %v2138
        %v2181 = vpack.c.bf16 %v2141, %v2140
        %v2182 = vpack.c.bf16 %v2143, %v2142
        %v2183 = vpack.c.bf16 %v2145, %v2144
        %v2184 = vpack.c.bf16 %v2147, %v2146
        %v2185 = vpack.c.bf16 %v2149, %v2148
        %v2186 = vpack.c.bf16 %v2151, %v2150
        %v2187 = vpack.c.bf16 %v2153, %v2152
        %v2188 = vpack.c.bf16 %v2155, %v2154
        %v2190 = vlaneseq
        %v2191 = vshrl.u32 %v2190, 7
        %v2192 = vsub.s32 0, %v2191
        %v2193 = vrot.slane %v1547, %v2192
        %v2211 = vunpack.c.l.b16 %v1531
        %v2212 = vunpack.c.l.b16 %v1532
        %v2213 = vunpack.c.l.b16 %v1533
        %v2214 = vunpack.c.l.b16 %v1534
        %v2215 = vunpack.c.l.b16 %v1535
        %v2216 = vunpack.c.l.b16 %v1536
        %v2217 = vunpack.c.l.b16 %v1537
        %v2218 = vunpack.c.l.b16 %v1538
        %v2219 = vunpack.c.l.b16 %v1539
        %v2220 = vunpack.c.l.b16 %v1540
        %v2221 = vunpack.c.l.b16 %v1541
        %v2222 = vunpack.c.l.b16 %v1542
        %v2223 = vunpack.c.l.b16 %v1543
        %v2224 = vunpack.c.l.b16 %v1544
        %v2225 = vunpack.c.l.b16 %v1545
        %v2226 = vunpack.c.l.b16 %v1546
        %v2227 = vpack.c.b16 %v2212, %v2211
        %v2228 = vpack.c.b16 %v2214, %v2213
        %v2229 = vpack.c.b16 %v2216, %v2215
        %v2230 = vpack.c.b16 %v2218, %v2217
        %v2231 = vpack.c.b16 %v2220, %v2219
        %v2232 = vpack.c.b16 %v2222, %v2221
        %v2233 = vpack.c.b16 %v2224, %v2223
        %v2234 = vpack.c.b16 %v2226, %v2225
        %2243 = vmatprep.subr.bf16.mxu0 0
        %2244 = vmatpush1.bf16.msra.mxu0 %v2227
        %2245 = vmatprep.subr.bf16.mxu0 0
        %2246 = vmatpush1.bf16.msra.mxu0 %v2228
        %2247 = vmatprep.subr.bf16.mxu0 0
        %2248 = vmatpush1.bf16.msra.mxu0 %v2229
        %2249 = vmatprep.subr.bf16.mxu0 0
        %2250 = vmatpush1.bf16.msra.mxu0 %v2230
        %2251 = vmatprep.subr.bf16.mxu0 0
        %2252 = vmatpush1.bf16.msra.mxu0 %v2231
        %2253 = vmatprep.subr.bf16.mxu0 0
        %2254 = vmatpush1.bf16.msra.mxu0 %v2232
        %2255 = vmatprep.subr.bf16.mxu0 0
        %2256 = vmatpush1.bf16.msra.mxu0 %v2233
        %2257 = vmatprep.subr.bf16.mxu0 0
        %2258 = vmatpush1.bf16.msra.mxu0 %v2234
        %2259 = vmatprep.subr.bf16.mxu0 0
        %2260 = vmatpush1.bf16.msra.mxu0 0
        %2261 = vmatprep.subr.bf16.mxu0 0
        %2262 = vmatpush1.bf16.msra.mxu0 0
        %2263 = vmatprep.subr.bf16.mxu0 0
        %2264 = vmatpush1.bf16.msra.mxu0 0
        %2265 = vmatprep.subr.bf16.mxu0 0
        %2266 = vmatpush1.bf16.msra.mxu0 0
        %2267 = vmatprep.subr.bf16.mxu0 0
        %2268 = vmatpush1.bf16.msra.mxu0 0
        %2269 = vmatprep.subr.bf16.mxu0 0
        %2270 = vmatpush1.bf16.msra.mxu0 0
        %2271 = vmatprep.subr.bf16.mxu0 0
        %2272 = vmatpush1.bf16.msra.mxu0 0
        %2273 = vmatprep.subr.bf16.mxu0 0
        %2274 = vmatpush1.bf16.msra.mxu0 0
        %2275 = vmatprep.mubr.bf16.mxu0 0
        %2276 = vmatmul.mubr.bf16.gmra.mrb[0].mxu0 %v2156
        %v2277 = vpop.f32.mrb[0].mxu0
        %v2278 = vadd.f32 %v2193, %v2277
        %v2279 = vpop.f32.mrb[0].mxu0
        %v2280 = vpop.f32.mrb[0].mxu0
        %v2281 = vadd.f32 %v2193, %v2280
        %v2282 = vpop.f32.mrb[0].mxu0
        %2283 = vmatprep.mubr.bf16.mxu0 0
        %2284 = vmatmul.mubr.bf16.gmra.mrb[0].mxu0 %v2157
        %v2285 = vpop.f32.mrb[0].mxu0
        %v2286 = vadd.f32 %v2193, %v2285
        %v2287 = vpop.f32.mrb[0].mxu0
        %v2288 = vpop.f32.mrb[0].mxu0
        %v2289 = vadd.f32 %v2193, %v2288
        %v2290 = vpop.f32.mrb[0].mxu0
        %2291 = vmatprep.mubr.bf16.mxu0 0
        %2292 = vmatmul.mubr.bf16.gmra.mrb[0].mxu0 %v2158
        %v2293 = vpop.f32.mrb[0].mxu0
        %v2294 = vadd.f32 %v2193, %v2293
        %v2295 = vpop.f32.mrb[0].mxu0
        %v2296 = vpop.f32.mrb[0].mxu0
        %v2297 = vadd.f32 %v2193, %v2296
        %v2298 = vpop.f32.mrb[0].mxu0
        %2299 = vmatprep.mubr.bf16.mxu0 0
        %2300 = vmatmul.mubr.bf16.gmra.mrb[0].mxu0 %v2159
        %v2301 = vpop.f32.mrb[0].mxu0
        %v2302 = vadd.f32 %v2193, %v2301
        %v2303 = vpop.f32.mrb[0].mxu0
        %v2304 = vpop.f32.mrb[0].mxu0
        %v2305 = vadd.f32 %v2193, %v2304
        %v2306 = vpop.f32.mrb[0].mxu0
        %2307 = vmatprep.mubr.bf16.mxu0 0
        %2308 = vmatmul.mubr.bf16.gmra.mrb[0].mxu0 %v2160
        %v2309 = vpop.f32.mrb[0].mxu0
        %v2310 = vadd.f32 %v2193, %v2309
        %v2311 = vpop.f32.mrb[0].mxu0
        %v2312 = vpop.f32.mrb[0].mxu0
        %v2313 = vadd.f32 %v2193, %v2312
        %v2314 = vpop.f32.mrb[0].mxu0
        %2315 = vmatprep.mubr.bf16.mxu0 0
        %2316 = vmatmul.mubr.bf16.gmra.mrb[0].mxu0 %v2161
        %v2317 = vpop.f32.mrb[0].mxu0
        %v2318 = vadd.f32 %v2193, %v2317
        %v2319 = vpop.f32.mrb[0].mxu0
        %v2320 = vpop.f32.mrb[0].mxu0
        %v2321 = vadd.f32 %v2193, %v2320
        %v2322 = vpop.f32.mrb[0].mxu0
        %2323 = vmatprep.mubr.bf16.mxu0 0
        %2324 = vmatmul.mubr.bf16.gmra.mrb[0].mxu0 %v2162
        %v2325 = vpop.f32.mrb[0].mxu0
        %v2326 = vadd.f32 %v2193, %v2325
        %v2327 = vpop.f32.mrb[0].mxu0
        %v2328 = vpop.f32.mrb[0].mxu0
        %v2329 = vadd.f32 %v2193, %v2328
        %v2330 = vpop.f32.mrb[0].mxu0
        %2331 = vmatprep.mubr.bf16.mxu0 0
        %2332 = vmatmul.mubr.bf16.gmra.mrb[0].mxu0 %v2163
        %v2333 = vpop.f32.mrb[0].mxu0
        %v2334 = vadd.f32 %v2193, %v2333
        %v2335 = vpop.f32.mrb[0].mxu0
        %v2336 = vpop.f32.mrb[0].mxu0
        %v2337 = vadd.f32 %v2193, %v2336
        %v2338 = vpop.f32.mrb[0].mxu0
        %2339 = vmatprep.mubr.bf16.mxu0 0
        %2340 = vmatmul.mubr.bf16.gmra.mrb[0].mxu0 %v2164
        %v2341 = vpop.f32.mrb[0].mxu0
        %v2342 = vadd.f32 %v2193, %v2341
        %v2343 = vpop.f32.mrb[0].mxu0
        %v2344 = vpop.f32.mrb[0].mxu0
        %v2345 = vadd.f32 %v2193, %v2344
        %v2346 = vpop.f32.mrb[0].mxu0
        %2347 = vmatprep.mubr.bf16.mxu0 0
        %2348 = vmatmul.mubr.bf16.gmra.mrb[0].mxu0 %v2165
        %v2349 = vpop.f32.mrb[0].mxu0
        %v2350 = vadd.f32 %v2193, %v2349
        %v2351 = vpop.f32.mrb[0].mxu0
        %v2352 = vpop.f32.mrb[0].mxu0
        %v2353 = vadd.f32 %v2193, %v2352
        %v2354 = vpop.f32.mrb[0].mxu0
        %2355 = vmatprep.mubr.bf16.mxu0 0
        %2356 = vmatmul.mubr.bf16.gmra.mrb[0].mxu0 %v2166
        %v2357 = vpop.f32.mrb[0].mxu0
        %v2358 = vadd.f32 %v2193, %v2357
        %v2359 = vpop.f32.mrb[0].mxu0
        %v2360 = vpop.f32.mrb[0].mxu0
        %v2361 = vadd.f32 %v2193, %v2360
        %v2362 = vpop.f32.mrb[0].mxu0
        %2363 = vmatprep.mubr.bf16.mxu0 0
        %2364 = vmatmul.mubr.bf16.gmra.mrb[0].mxu0 %v2167
        %v2365 = vpop.f32.mrb[0].mxu0
        %v2366 = vadd.f32 %v2193, %v2365
        %v2367 = vpop.f32.mrb[0].mxu0
        %v2368 = vpop.f32.mrb[0].mxu0
        %v2369 = vadd.f32 %v2193, %v2368
        %v2370 = vpop.f32.mrb[0].mxu0
        %2371 = vmatprep.mubr.bf16.mxu0 0
        %2372 = vmatmul.mubr.bf16.gmra.mrb[0].mxu0 %v2168
        %v2373 = vpop.f32.mrb[0].mxu0
        %v2374 = vadd.f32 %v2193, %v2373
        %v2375 = vpop.f32.mrb[0].mxu0
        %v2376 = vpop.f32.mrb[0].mxu0
        %v2377 = vadd.f32 %v2193, %v2376
        %v2378 = vpop.f32.mrb[0].mxu0
        %2379 = vmatprep.mubr.bf16.mxu0 0
        %2380 = vmatmul.mubr.bf16.gmra.mrb[0].mxu0 %v2169
        %v2381 = vpop.f32.mrb[0].mxu0
        %v2382 = vadd.f32 %v2193, %v2381
        %v2383 = vpop.f32.mrb[0].mxu0
        %v2384 = vpop.f32.mrb[0].mxu0
        %v2385 = vadd.f32 %v2193, %v2384
        %v2386 = vpop.f32.mrb[0].mxu0
        %2387 = vmatprep.mubr.bf16.mxu0 0
        %2388 = vmatmul.mubr.bf16.gmra.mrb[0].mxu0 %v2170
        %v2389 = vpop.f32.mrb[0].mxu0
        %v2390 = vadd.f32 %v2193, %v2389
        %v2391 = vpop.f32.mrb[0].mxu0
        %v2392 = vpop.f32.mrb[0].mxu0
        %v2393 = vadd.f32 %v2193, %v2392
        %v2394 = vpop.f32.mrb[0].mxu0
        %2395 = vmatprep.mubr.bf16.mxu0 0
        %2396 = vmatmul.mubr.bf16.gmra.mrb[0].mxu0 %v2171
        %v2397 = vpop.f32.mrb[0].mxu0
        %v2398 = vadd.f32 %v2193, %v2397
        %v2399 = vpop.f32.mrb[0].mxu0
        %v2400 = vpop.f32.mrb[0].mxu0
        %v2401 = vadd.f32 %v2193, %v2400
        %v2402 = vpop.f32.mrb[0].mxu0
        %2403 = vmatprep.mubr.bf16.mxu0 0
        %2404 = vmatmul.mubr.bf16.gmra.mrb[0].mxu0 %v2172
        %v2405 = vpop.f32.mrb[0].mxu0
        %v2406 = vadd.f32 %v2193, %v2405
        %v2407 = vpop.f32.mrb[0].mxu0
        %v2408 = vpop.f32.mrb[0].mxu0
        %v2409 = vadd.f32 %v2193, %v2408
        %v2410 = vpop.f32.mrb[0].mxu0
        %2411 = vmatprep.mubr.bf16.mxu0 0
        %2412 = vmatmul.mubr.bf16.gmra.mrb[0].mxu0 %v2173
        %v2413 = vpop.f32.mrb[0].mxu0
        %v2414 = vadd.f32 %v2193, %v2413
        %v2415 = vpop.f32.mrb[0].mxu0
        %v2416 = vpop.f32.mrb[0].mxu0
        %v2417 = vadd.f32 %v2193, %v2416
        %v2418 = vpop.f32.mrb[0].mxu0
        %2419 = vmatprep.mubr.bf16.mxu0 0
        %2420 = vmatmul.mubr.bf16.gmra.mrb[0].mxu0 %v2174
        %v2421 = vpop.f32.mrb[0].mxu0
        %v2422 = vadd.f32 %v2193, %v2421
        %v2423 = vpop.f32.mrb[0].mxu0
        %v2424 = vpop.f32.mrb[0].mxu0
        %v2425 = vadd.f32 %v2193, %v2424
        %v2426 = vpop.f32.mrb[0].mxu0
        %2427 = vmatprep.mubr.bf16.mxu0 0
        %2428 = vmatmul.mubr.bf16.gmra.mrb[0].mxu0 %v2175
        %v2429 = vpop.f32.mrb[0].mxu0
        %v2430 = vadd.f32 %v2193, %v2429
        %v2431 = vpop.f32.mrb[0].mxu0
        %v2432 = vpop.f32.mrb[0].mxu0
        %v2433 = vadd.f32 %v2193, %v2432
        %v2434 = vpop.f32.mrb[0].mxu0
        %2435 = vmatprep.mubr.bf16.mxu0 0
        %2436 = vmatmul.mubr.bf16.gmra.mrb[0].mxu0 %v2176
        %v2437 = vpop.f32.mrb[0].mxu0
        %v2438 = vadd.f32 %v2193, %v2437
        %v2439 = vpop.f32.mrb[0].mxu0
        %v2440 = vpop.f32.mrb[0].mxu0
        %v2441 = vadd.f32 %v2193, %v2440
        %v2442 = vpop.f32.mrb[0].mxu0
        %2443 = vmatprep.mubr.bf16.mxu0 0
        %2444 = vmatmul.mubr.bf16.gmra.mrb[0].mxu0 %v2177
        %v2445 = vpop.f32.mrb[0].mxu0
        %v2446 = vadd.f32 %v2193, %v2445
        %v2447 = vpop.f32.mrb[0].mxu0
        %v2448 = vpop.f32.mrb[0].mxu0
        %v2449 = vadd.f32 %v2193, %v2448
        %v2450 = vpop.f32.mrb[0].mxu0
        %2451 = vmatprep.mubr.bf16.mxu0 0
        %2452 = vmatmul.mubr.bf16.gmra.mrb[0].mxu0 %v2178
        %v2453 = vpop.f32.mrb[0].mxu0
        %v2454 = vadd.f32 %v2193, %v2453
        %v2455 = vpop.f32.mrb[0].mxu0
        %v2456 = vpop.f32.mrb[0].mxu0
        %v2457 = vadd.f32 %v2193, %v2456
        %v2458 = vpop.f32.mrb[0].mxu0
        %2459 = vmatprep.mubr.bf16.mxu0 0
        %2460 = vmatmul.mubr.bf16.gmra.mrb[0].mxu0 %v2179
        %v2461 = vpop.f32.mrb[0].mxu0
        %v2462 = vadd.f32 %v2193, %v2461
        %v2463 = vpop.f32.mrb[0].mxu0
        %v2464 = vpop.f32.mrb[0].mxu0
        %v2465 = vadd.f32 %v2193, %v2464
        %v2466 = vpop.f32.mrb[0].mxu0
        %2467 = vmatprep.mubr.bf16.mxu0 0
        %2468 = vmatmul.mubr.bf16.gmra.mrb[0].mxu0 %v2180
        %v2469 = vpop.f32.mrb[0].mxu0
        %v2470 = vadd.f32 %v2193, %v2469
        %v2471 = vpop.f32.mrb[0].mxu0
        %v2472 = vpop.f32.mrb[0].mxu0
        %v2473 = vadd.f32 %v2193, %v2472
        %v2474 = vpop.f32.mrb[0].mxu0
        %2475 = vmatprep.mubr.bf16.mxu0 0
        %2476 = vmatmul.mubr.bf16.gmra.mrb[0].mxu0 %v2181
        %v2477 = vpop.f32.mrb[0].mxu0
        %v2478 = vadd.f32 %v2193, %v2477
        %v2479 = vpop.f32.mrb[0].mxu0
        %v2480 = vpop.f32.mrb[0].mxu0
        %v2481 = vadd.f32 %v2193, %v2480
        %v2482 = vpop.f32.mrb[0].mxu0
        %2483 = vmatprep.mubr.bf16.mxu0 0
        %2484 = vmatmul.mubr.bf16.gmra.mrb[0].mxu0 %v2182
        %v2485 = vpop.f32.mrb[0].mxu0
        %v2486 = vadd.f32 %v2193, %v2485
        %v2487 = vpop.f32.mrb[0].mxu0
        %v2488 = vpop.f32.mrb[0].mxu0
        %v2489 = vadd.f32 %v2193, %v2488
        %v2490 = vpop.f32.mrb[0].mxu0
        %2491 = vmatprep.mubr.bf16.mxu0 0
        %2492 = vmatmul.mubr.bf16.gmra.mrb[0].mxu0 %v2183
        %v2493 = vpop.f32.mrb[0].mxu0
        %v2494 = vadd.f32 %v2193, %v2493
        %v2495 = vpop.f32.mrb[0].mxu0
        %v2496 = vpop.f32.mrb[0].mxu0
        %v2497 = vadd.f32 %v2193, %v2496
        %v2498 = vpop.f32.mrb[0].mxu0
        %2499 = vmatprep.mubr.bf16.mxu0 0
        %2500 = vmatmul.mubr.bf16.gmra.mrb[0].mxu0 %v2184
        %v2501 = vpop.f32.mrb[0].mxu0
        %v2502 = vadd.f32 %v2193, %v2501
        %v2503 = vpop.f32.mrb[0].mxu0
        %v2504 = vpop.f32.mrb[0].mxu0
        %v2505 = vadd.f32 %v2193, %v2504
        %v2506 = vpop.f32.mrb[0].mxu0
        %2507 = vmatprep.mubr.bf16.mxu0 0
        %2508 = vmatmul.mubr.bf16.gmra.mrb[0].mxu0 %v2185
        %v2509 = vpop.f32.mrb[0].mxu0
        %v2510 = vadd.f32 %v2193, %v2509
        %v2511 = vpop.f32.mrb[0].mxu0
        %v2512 = vpop.f32.mrb[0].mxu0
        %v2513 = vadd.f32 %v2193, %v2512
        %v2514 = vpop.f32.mrb[0].mxu0
        %2515 = vmatprep.mubr.bf16.mxu0 0
        %2516 = vmatmul.mubr.bf16.gmra.mrb[0].mxu0 %v2186
        %v2517 = vpop.f32.mrb[0].mxu0
        %v2518 = vadd.f32 %v2193, %v2517
        %v2519 = vpop.f32.mrb[0].mxu0
        %v2520 = vpop.f32.mrb[0].mxu0
        %v2521 = vadd.f32 %v2193, %v2520
        %v2522 = vpop.f32.mrb[0].mxu0
        %2523 = vmatprep.mubr.bf16.mxu0 0
        %2524 = vmatmul.mubr.bf16.gmra.mrb[0].mxu0 %v2187
        %v2525 = vpop.f32.mrb[0].mxu0
        %v2526 = vadd.f32 %v2193, %v2525
        %v2527 = vpop.f32.mrb[0].mxu0
        %v2528 = vpop.f32.mrb[0].mxu0
        %v2529 = vadd.f32 %v2193, %v2528
        %v2530 = vpop.f32.mrb[0].mxu0
        %2531 = vmatprep.mubr.bf16.mxu0 0
        %2532 = vmatmul.mubr.bf16.gmra.mrb[0].mxu0 %v2188
        %v2533 = vpop.f32.mrb[0].mxu0
        %v2534 = vadd.f32 %v2193, %v2533
        %v2535 = vpop.f32.mrb[0].mxu0
        %v2536 = vpop.f32.mrb[0].mxu0
        %v2537 = vadd.f32 %v2193, %v2536
        %v2538 = vpop.f32.mrb[0].mxu0
        %2539 = vdwg.mxu0
        %v2540 = vmax.f32 %v2278, 0.0
        %v2541 = vmax.f32 %v2281, 0.0
        %v2542 = vmax.f32 %v2286, 0.0
        %v2543 = vmax.f32 %v2289, 0.0
        %v2544 = vmax.f32 %v2294, 0.0
        %v2545 = vmax.f32 %v2297, 0.0
        %v2546 = vmax.f32 %v2302, 0.0
        %v2547 = vmax.f32 %v2305, 0.0
        %v2548 = vmax.f32 %v2310, 0.0
        %v2549 = vmax.f32 %v2313, 0.0
        %v2550 = vmax.f32 %v2318, 0.0
        %v2551 = vmax.f32 %v2321, 0.0
        %v2552 = vmax.f32 %v2326, 0.0
        %v2553 = vmax.f32 %v2329, 0.0
        %v2554 = vmax.f32 %v2334, 0.0
        %v2555 = vmax.f32 %v2337, 0.0
        %v2556 = vmax.f32 %v2342, 0.0
        %v2557 = vmax.f32 %v2345, 0.0
        %v2558 = vmax.f32 %v2350, 0.0
        %v2559 = vmax.f32 %v2353, 0.0
        %v2560 = vmax.f32 %v2358, 0.0
        %v2561 = vmax.f32 %v2361, 0.0
        %v2562 = vmax.f32 %v2366, 0.0
        %v2563 = vmax.f32 %v2369, 0.0
        %v2564 = vmax.f32 %v2374, 0.0
        %v2565 = vmax.f32 %v2377, 0.0
        %v2566 = vmax.f32 %v2382, 0.0
        %v2567 = vmax.f32 %v2385, 0.0
        %v2568 = vmax.f32 %v2390, 0.0
        %v2569 = vmax.f32 %v2393, 0.0
        %v2570 = vmax.f32 %v2398, 0.0
        %v2571 = vmax.f32 %v2401, 0.0
        %v2572 = vmax.f32 %v2406, 0.0
        %v2573 = vmax.f32 %v2409, 0.0
        %v2574 = vmax.f32 %v2414, 0.0
        %v2575 = vmax.f32 %v2417, 0.0
        %v2576 = vmax.f32 %v2422, 0.0
        %v2577 = vmax.f32 %v2425, 0.0
        %v2578 = vmax.f32 %v2430, 0.0
        %v2579 = vmax.f32 %v2433, 0.0
        %v2580 = vmax.f32 %v2438, 0.0
        %v2581 = vmax.f32 %v2441, 0.0
        %v2582 = vmax.f32 %v2446, 0.0
        %v2583 = vmax.f32 %v2449, 0.0
        %v2584 = vmax.f32 %v2454, 0.0
        %v2585 = vmax.f32 %v2457, 0.0
        %v2586 = vmax.f32 %v2462, 0.0
        %v2587 = vmax.f32 %v2465, 0.0
        %v2588 = vmax.f32 %v2470, 0.0
        %v2589 = vmax.f32 %v2473, 0.0
        %v2590 = vmax.f32 %v2478, 0.0
        %v2591 = vmax.f32 %v2481, 0.0
        %v2592 = vmax.f32 %v2486, 0.0
        %v2593 = vmax.f32 %v2489, 0.0
        %v2594 = vmax.f32 %v2494, 0.0
        %v2595 = vmax.f32 %v2497, 0.0
        %v2596 = vmax.f32 %v2502, 0.0
        %v2597 = vmax.f32 %v2505, 0.0
        %v2598 = vmax.f32 %v2510, 0.0
        %v2599 = vmax.f32 %v2513, 0.0
        %v2600 = vmax.f32 %v2518, 0.0
        %v2601 = vmax.f32 %v2521, 0.0
        %v2602 = vmax.f32 %v2526, 0.0
        %v2603 = vmax.f32 %v2529, 0.0
        %v2604 = vmax.f32 %v2534, 0.0
        %v2605 = vmax.f32 %v2537, 0.0
        %2606 = vst [vmem:[#allocation2] sm:$0xff] %v2540
        %2607 = vst [vmem:[#allocation2 + $0x8] sm:$0xff] %v2541
        %2608 = vst [vmem:[#allocation2 + $0x10] sm:$0xff] %v2542
        %2609 = vst [vmem:[#allocation2 + $0x18] sm:$0xff] %v2543
        %2610 = vst [vmem:[#allocation2 + $0x20] sm:$0xff] %v2544
        %2611 = vst [vmem:[#allocation2 + $0x28] sm:$0xff] %v2545
        %2612 = vst [vmem:[#allocation2 + $0x30] sm:$0xff] %v2546
        %2613 = vst [vmem:[#allocation2 + $0x38] sm:$0xff] %v2547
        %2614 = vst [vmem:[#allocation2 + $0x40] sm:$0xff] %v2548
        %2615 = vst [vmem:[#allocation2 + $0x48] sm:$0xff] %v2549
        %2616 = vst [vmem:[#allocation2 + $0x50] sm:$0xff] %v2550
        %2617 = vst [vmem:[#allocation2 + $0x58] sm:$0xff] %v2551
        %2618 = vst [vmem:[#allocation2 + $0x60] sm:$0xff] %v2552
        %2619 = vst [vmem:[#allocation2 + $0x68] sm:$0xff] %v2553
        %2620 = vst [vmem:[#allocation2 + $0x70] sm:$0xff] %v2554
        %2621 = vst [vmem:[#allocation2 + $0x78] sm:$0xff] %v2555
        %2622 = vst [vmem:[#allocation2 + $0x80] sm:$0xff] %v2556
        %2623 = vst [vmem:[#allocation2 + $0x88] sm:$0xff] %v2557
        %2624 = vst [vmem:[#allocation2 + $0x90] sm:$0xff] %v2558
        %2625 = vst [vmem:[#allocation2 + $0x98] sm:$0xff] %v2559
        %2626 = vst [vmem:[#allocation2 + $0xa0] sm:$0xff] %v2560
        %2627 = vst [vmem:[#allocation2 + $0xa8] sm:$0xff] %v2561
        %2628 = vst [vmem:[#allocation2 + $0xb0] sm:$0xff] %v2562
        %2629 = vst [vmem:[#allocation2 + $0xb8] sm:$0xff] %v2563
        %2630 = vst [vmem:[#allocation2 + $0xc0] sm:$0xff] %v2564
        %2631 = vst [vmem:[#allocation2 + $0xc8] sm:$0xff] %v2565
        %2632 = vst [vmem:[#allocation2 + $0xd0] sm:$0xff] %v2566
        %2633 = vst [vmem:[#allocation2 + $0xd8] sm:$0xff] %v2567
        %2634 = vst [vmem:[#allocation2 + $0xe0] sm:$0xff] %v2568
        %2635 = vst [vmem:[#allocation2 + $0xe8] sm:$0xff] %v2569
        %2636 = vst [vmem:[#allocation2 + $0xf0] sm:$0xff] %v2570
        %2637 = vst [vmem:[#allocation2 + $0xf8] sm:$0xff] %v2571
        %2638 = vst [vmem:[#allocation2 + $0x100] sm:$0xff] %v2572
        %2639 = vst [vmem:[#allocation2 + $0x108] sm:$0xff] %v2573
        %2640 = vst [vmem:[#allocation2 + $0x110] sm:$0xff] %v2574
        %2641 = vst [vmem:[#allocation2 + $0x118] sm:$0xff] %v2575
        %2642 = vst [vmem:[#allocation2 + $0x120] sm:$0xff] %v2576
        %2643 = vst [vmem:[#allocation2 + $0x128] sm:$0xff] %v2577
        %2644 = vst [vmem:[#allocation2 + $0x130] sm:$0xff] %v2578
        %2645 = vst [vmem:[#allocation2 + $0x138] sm:$0xff] %v2579
        %2646 = vst [vmem:[#allocation2 + $0x140] sm:$0xff] %v2580
        %2647 = vst [vmem:[#allocation2 + $0x148] sm:$0xff] %v2581
        %2648 = vst [vmem:[#allocation2 + $0x150] sm:$0xff] %v2582
        %2649 = vst [vmem:[#allocation2 + $0x158] sm:$0xff] %v2583
        %2650 = vst [vmem:[#allocation2 + $0x160] sm:$0xff] %v2584
        %2651 = vst [vmem:[#allocation2 + $0x168] sm:$0xff] %v2585
        %2652 = vst [vmem:[#allocation2 + $0x170] sm:$0xff] %v2586
        %2653 = vst [vmem:[#allocation2 + $0x178] sm:$0xff] %v2587
        %2654 = vst [vmem:[#allocation2 + $0x180] sm:$0xff] %v2588
        %2655 = vst [vmem:[#allocation2 + $0x188] sm:$0xff] %v2589
        %2656 = vst [vmem:[#allocation2 + $0x190] sm:$0xff] %v2590
        %2657 = vst [vmem:[#allocation2 + $0x198] sm:$0xff] %v2591
        %2658 = vst [vmem:[#allocation2 + $0x1a0] sm:$0xff] %v2592
        %2659 = vst [vmem:[#allocation2 + $0x1a8] sm:$0xff] %v2593
        %2660 = vst [vmem:[#allocation2 + $0x1b0] sm:$0xff] %v2594
        %2661 = vst [vmem:[#allocation2 + $0x1b8] sm:$0xff] %v2595
        %2662 = vst [vmem:[#allocation2 + $0x1c0] sm:$0xff] %v2596
        %2663 = vst [vmem:[#allocation2 + $0x1c8] sm:$0xff] %v2597
        %2664 = vst [vmem:[#allocation2 + $0x1d0] sm:$0xff] %v2598
        %2665 = vst [vmem:[#allocation2 + $0x1d8] sm:$0xff] %v2599
        %2666 = vst [vmem:[#allocation2 + $0x1e0] sm:$0xff] %v2600
        %2667 = vst [vmem:[#allocation2 + $0x1e8] sm:$0xff] %v2601
        %2668 = vst [vmem:[#allocation2 + $0x1f0] sm:$0xff] %v2602
        %2669 = vst [vmem:[#allocation2 + $0x1f8] sm:$0xff] %v2603
        %2670 = vst [vmem:[#allocation2 + $0x200] sm:$0xff] %v2604
        %2671 = vst [vmem:[#allocation2 + $0x208] sm:$0xff] %v2605
        // Predicated region
        $region97: #{tpu_custom_call.1} parent=63 // pred_check
          %p2672 = pneg %p600
        $region98: #{tpu_custom_call.1} parent=63 // pred_check_branch
          %2674 = sbr.rel (%p2672) target = $region100
        $region99: #{tpu_custom_call.1} parent=63 // pred_region
          %v2675 = vld [vmem:[#allocation2] sm:$0xff]
          %v2676 = vld [vmem:[#allocation2 + $0x8] sm:$0xff]
          %v2677 = vld [vmem:[#allocation2 + $0x10] sm:$0xff]
          %v2678 = vld [vmem:[#allocation2 + $0x18] sm:$0xff]
          %v2679 = vld [vmem:[#allocation2 + $0x20] sm:$0xff]
          %v2680 = vld [vmem:[#allocation2 + $0x28] sm:$0xff]
          %v2681 = vld [vmem:[#allocation2 + $0x30] sm:$0xff]
          %v2682 = vld [vmem:[#allocation2 + $0x38] sm:$0xff]
          %v2683 = vld [vmem:[#allocation2 + $0x40] sm:$0xff]
          %v2684 = vld [vmem:[#allocation2 + $0x48] sm:$0xff]
          %v2685 = vld [vmem:[#allocation2 + $0x50] sm:$0xff]
          %v2686 = vld [vmem:[#allocation2 + $0x58] sm:$0xff]
          %v2687 = vld [vmem:[#allocation2 + $0x60] sm:$0xff]
          %v2688 = vld [vmem:[#allocation2 + $0x68] sm:$0xff]
          %v2689 = vld [vmem:[#allocation2 + $0x70] sm:$0xff]
          %v2690 = vld [vmem:[#allocation2 + $0x78] sm:$0xff]
          %v2691 = vld [vmem:[#allocation2 + $0x80] sm:$0xff]
          %v2692 = vld [vmem:[#allocation2 + $0x88] sm:$0xff]
          %v2693 = vld [vmem:[#allocation2 + $0x90] sm:$0xff]
          %v2694 = vld [vmem:[#allocation2 + $0x98] sm:$0xff]
          %v2695 = vld [vmem:[#allocation2 + $0xa0] sm:$0xff]
          %v2696 = vld [vmem:[#allocation2 + $0xa8] sm:$0xff]
          %v2697 = vld [vmem:[#allocation2 + $0xb0] sm:$0xff]
          %v2698 = vld [vmem:[#allocation2 + $0xb8] sm:$0xff]
          %v2699 = vld [vmem:[#allocation2 + $0xc0] sm:$0xff]
          %v2700 = vld [vmem:[#allocation2 + $0xc8] sm:$0xff]
          %v2701 = vld [vmem:[#allocation2 + $0xd0] sm:$0xff]
          %v2702 = vld [vmem:[#allocation2 + $0xd8] sm:$0xff]
          %v2703 = vld [vmem:[#allocation2 + $0xe0] sm:$0xff]
          %v2704 = vld [vmem:[#allocation2 + $0xe8] sm:$0xff]
          %v2705 = vld [vmem:[#allocation2 + $0xf0] sm:$0xff]
          %v2706 = vld [vmem:[#allocation2 + $0xf8] sm:$0xff]
          %v2707 = vld [vmem:[#allocation2 + $0x100] sm:$0xff]
          %v2708 = vld [vmem:[#allocation2 + $0x108] sm:$0xff]
          %v2709 = vld [vmem:[#allocation2 + $0x110] sm:$0xff]
          %v2710 = vld [vmem:[#allocation2 + $0x118] sm:$0xff]
          %v2711 = vld [vmem:[#allocation2 + $0x120] sm:$0xff]
          %v2712 = vld [vmem:[#allocation2 + $0x128] sm:$0xff]
          %v2713 = vld [vmem:[#allocation2 + $0x130] sm:$0xff]
          %v2714 = vld [vmem:[#allocation2 + $0x138] sm:$0xff]
          %v2715 = vld [vmem:[#allocation2 + $0x140] sm:$0xff]
          %v2716 = vld [vmem:[#allocation2 + $0x148] sm:$0xff]
          %v2717 = vld [vmem:[#allocation2 + $0x150] sm:$0xff]
          %v2718 = vld [vmem:[#allocation2 + $0x158] sm:$0xff]
          %v2719 = vld [vmem:[#allocation2 + $0x160] sm:$0xff]
          %v2720 = vld [vmem:[#allocation2 + $0x168] sm:$0xff]
          %v2721 = vld [vmem:[#allocation2 + $0x170] sm:$0xff]
          %v2722 = vld [vmem:[#allocation2 + $0x178] sm:$0xff]
          %v2723 = vld [vmem:[#allocation2 + $0x180] sm:$0xff]
          %v2724 = vld [vmem:[#allocation2 + $0x188] sm:$0xff]
          %v2725 = vld [vmem:[#allocation2 + $0x190] sm:$0xff]
          %v2726 = vld [vmem:[#allocation2 + $0x198] sm:$0xff]
          %v2727 = vld [vmem:[#allocation2 + $0x1a0] sm:$0xff]
          %v2728 = vld [vmem:[#allocation2 + $0x1a8] sm:$0xff]
          %v2729 = vld [vmem:[#allocation2 + $0x1b0] sm:$0xff]
          %v2730 = vld [vmem:[#allocation2 + $0x1b8] sm:$0xff]
          %v2731 = vld [vmem:[#allocation2 + $0x1c0] sm:$0xff]
          %v2732 = vld [vmem:[#allocation2 + $0x1c8] sm:$0xff]
          %v2733 = vld [vmem:[#allocation2 + $0x1d0] sm:$0xff]
          %v2734 = vld [vmem:[#allocation2 + $0x1d8] sm:$0xff]
          %v2735 = vld [vmem:[#allocation2 + $0x1e0] sm:$0xff]
          %v2736 = vld [vmem:[#allocation2 + $0x1e8] sm:$0xff]
          %v2737 = vld [vmem:[#allocation2 + $0x1f0] sm:$0xff]
          %v2738 = vld [vmem:[#allocation2 + $0x1f8] sm:$0xff]
          %v2739 = vld [vmem:[#allocation2 + $0x200] sm:$0xff]
          %v2740 = vld [vmem:[#allocation2 + $0x208] sm:$0xff]
          %v2741 = vmul.f32 %v2675, %v999
          %v2742 = vmul.f32 %v2676, %v1000
          %v2743 = vmul.f32 %v2677, %v1001
          %v2744 = vmul.f32 %v2678, %v1002
          %v2745 = vmul.f32 %v2679, %v1003
          %v2746 = vmul.f32 %v2680, %v1004
          %v2747 = vmul.f32 %v2681, %v1005
          %v2748 = vmul.f32 %v2682, %v1006
          %v2749 = vmul.f32 %v2683, %v1007
          %v2750 = vmul.f32 %v2684, %v1008
          %v2751 = vmul.f32 %v2685, %v1009
          %v2752 = vmul.f32 %v2686, %v1010
          %v2753 = vmul.f32 %v2687, %v1011
          %v2754 = vmul.f32 %v2688, %v1012
          %v2755 = vmul.f32 %v2689, %v1013
          %v2756 = vmul.f32 %v2690, %v1014
          %v2757 = vmul.f32 %v2691, %v1015
          %v2758 = vmul.f32 %v2692, %v1016
          %v2759 = vmul.f32 %v2693, %v1017
          %v2760 = vmul.f32 %v2694, %v1018
          %v2761 = vmul.f32 %v2695, %v1019
          %v2762 = vmul.f32 %v2696, %v1020
          %v2763 = vmul.f32 %v2697, %v1021
          %v2764 = vmul.f32 %v2698, %v1022
          %v2765 = vmul.f32 %v2699, %v1023
          %v2766 = vmul.f32 %v2700, %v1024
          %v2767 = vmul.f32 %v2701, %v1025
          %v2768 = vmul.f32 %v2702, %v1026
          %v2769 = vmul.f32 %v2703, %v1027
          %v2770 = vmul.f32 %v2704, %v1028
          %v2771 = vmul.f32 %v2705, %v1029
          %v2772 = vmul.f32 %v2706, %v1030
          %v2773 = vmul.f32 %v2707, %v1031
          %v2774 = vmul.f32 %v2708, %v1032
          %v2775 = vmul.f32 %v2709, %v1033
          %v2776 = vmul.f32 %v2710, %v1034
          %v2777 = vmul.f32 %v2711, %v1035
          %v2778 = vmul.f32 %v2712, %v1036
          %v2779 = vmul.f32 %v2713, %v1037
          %v2780 = vmul.f32 %v2714, %v1038
          %v2781 = vmul.f32 %v2715, %v1039
          %v2782 = vmul.f32 %v2716, %v1040
          %v2783 = vmul.f32 %v2717, %v1041
          %v2784 = vmul.f32 %v2718, %v1042
          %v2785 = vmul.f32 %v2719, %v1043
          %v2786 = vmul.f32 %v2720, %v1044
          %v2787 = vmul.f32 %v2721, %v1045
          %v2788 = vmul.f32 %v2722, %v1046
          %v2789 = vmul.f32 %v2723, %v1047
          %v2790 = vmul.f32 %v2724, %v1048
          %v2791 = vmul.f32 %v2725, %v1049
          %v2792 = vmul.f32 %v2726, %v1050
          %v2793 = vmul.f32 %v2727, %v1051
          %v2794 = vmul.f32 %v2728, %v1052
          %v2795 = vmul.f32 %v2729, %v1053
          %v2796 = vmul.f32 %v2730, %v1054
          %v2797 = vmul.f32 %v2731, %v1055
          %v2798 = vmul.f32 %v2732, %v1056
          %v2799 = vmul.f32 %v2733, %v1057
          %v2800 = vmul.f32 %v2734, %v1058
          %v2801 = vmul.f32 %v2735, %v1059
          %v2802 = vmul.f32 %v2736, %v1060
          %v2803 = vmul.f32 %v2737, %v1061
          %v2804 = vmul.f32 %v2738, %v1062
          %v2805 = vmul.f32 %v2739, %v1063
          %v2806 = vmul.f32 %v2740, %v1064
          %2807 = vst [vmem:[#allocation2] sm:$0xff] %v2741
          %2808 = vst [vmem:[#allocation2 + $0x8] sm:$0xff] %v2742
          %2809 = vst [vmem:[#allocation2 + $0x10] sm:$0xff] %v2743
          %2810 = vst [vmem:[#allocation2 + $0x18] sm:$0xff] %v2744
          %2811 = vst [vmem:[#allocation2 + $0x20] sm:$0xff] %v2745
          %2812 = vst [vmem:[#allocation2 + $0x28] sm:$0xff] %v2746
          %2813 = vst [vmem:[#allocation2 + $0x30] sm:$0xff] %v2747
          %2814 = vst [vmem:[#allocation2 + $0x38] sm:$0xff] %v2748
          %2815 = vst [vmem:[#allocation2 + $0x40] sm:$0xff] %v2749
          %2816 = vst [vmem:[#allocation2 + $0x48] sm:$0xff] %v2750
          %2817 = vst [vmem:[#allocation2 + $0x50] sm:$0xff] %v2751
          %2818 = vst [vmem:[#allocation2 + $0x58] sm:$0xff] %v2752
          %2819 = vst [vmem:[#allocation2 + $0x60] sm:$0xff] %v2753
          %2820 = vst [vmem:[#allocation2 + $0x68] sm:$0xff] %v2754
          %2821 = vst [vmem:[#allocation2 + $0x70] sm:$0xff] %v2755
          %2822 = vst [vmem:[#allocation2 + $0x78] sm:$0xff] %v2756
          %2823 = vst [vmem:[#allocation2 + $0x80] sm:$0xff] %v2757
          %2824 = vst [vmem:[#allocation2 + $0x88] sm:$0xff] %v2758
          %2825 = vst [vmem:[#allocation2 + $0x90] sm:$0xff] %v2759
          %2826 = vst [vmem:[#allocation2 + $0x98] sm:$0xff] %v2760
          %2827 = vst [vmem:[#allocation2 + $0xa0] sm:$0xff] %v2761
          %2828 = vst [vmem:[#allocation2 + $0xa8] sm:$0xff] %v2762
          %2829 = vst [vmem:[#allocation2 + $0xb0] sm:$0xff] %v2763
          %2830 = vst [vmem:[#allocation2 + $0xb8] sm:$0xff] %v2764
          %2831 = vst [vmem:[#allocation2 + $0xc0] sm:$0xff] %v2765
          %2832 = vst [vmem:[#allocation2 + $0xc8] sm:$0xff] %v2766
          %2833 = vst [vmem:[#allocation2 + $0xd0] sm:$0xff] %v2767
          %2834 = vst [vmem:[#allocation2 + $0xd8] sm:$0xff] %v2768
          %2835 = vst [vmem:[#allocation2 + $0xe0] sm:$0xff] %v2769
          %2836 = vst [vmem:[#allocation2 + $0xe8] sm:$0xff] %v2770
          %2837 = vst [vmem:[#allocation2 + $0xf0] sm:$0xff] %v2771
          %2838 = vst [vmem:[#allocation2 + $0xf8] sm:$0xff] %v2772
          %2839 = vst [vmem:[#allocation2 + $0x100] sm:$0xff] %v2773
          %2840 = vst [vmem:[#allocation2 + $0x108] sm:$0xff] %v2774
          %2841 = vst [vmem:[#allocation2 + $0x110] sm:$0xff] %v2775
          %2842 = vst [vmem:[#allocation2 + $0x118] sm:$0xff] %v2776
          %2843 = vst [vmem:[#allocation2 + $0x120] sm:$0xff] %v2777
          %2844 = vst [vmem:[#allocation2 + $0x128] sm:$0xff] %v2778
          %2845 = vst [vmem:[#allocation2 + $0x130] sm:$0xff] %v2779
          %2846 = vst [vmem:[#allocation2 + $0x138] sm:$0xff] %v2780
          %2847 = vst [vmem:[#allocation2 + $0x140] sm:$0xff] %v2781
          %2848 = vst [vmem:[#allocation2 + $0x148] sm:$0xff] %v2782
          %2849 = vst [vmem:[#allocation2 + $0x150] sm:$0xff] %v2783
          %2850 = vst [vmem:[#allocation2 + $0x158] sm:$0xff] %v2784
          %2851 = vst [vmem:[#allocation2 + $0x160] sm:$0xff] %v2785
          %2852 = vst [vmem:[#allocation2 + $0x168] sm:$0xff] %v2786
          %2853 = vst [vmem:[#allocation2 + $0x170] sm:$0xff] %v2787
          %2854 = vst [vmem:[#allocation2 + $0x178] sm:$0xff] %v2788
          %2855 = vst [vmem:[#allocation2 + $0x180] sm:$0xff] %v2789
          %2856 = vst [vmem:[#allocation2 + $0x188] sm:$0xff] %v2790
          %2857 = vst [vmem:[#allocation2 + $0x190] sm:$0xff] %v2791
          %2858 = vst [vmem:[#allocation2 + $0x198] sm:$0xff] %v2792
          %2859 = vst [vmem:[#allocation2 + $0x1a0] sm:$0xff] %v2793
          %2860 = vst [vmem:[#allocation2 + $0x1a8] sm:$0xff] %v2794
          %2861 = vst [vmem:[#allocation2 + $0x1b0] sm:$0xff] %v2795
          %2862 = vst [vmem:[#allocation2 + $0x1b8] sm:$0xff] %v2796
          %2863 = vst [vmem:[#allocation2 + $0x1c0] sm:$0xff] %v2797
          %2864 = vst [vmem:[#allocation2 + $0x1c8] sm:$0xff] %v2798
          %2865 = vst [vmem:[#allocation2 + $0x1d0] sm:$0xff] %v2799
          %2866 = vst [vmem:[#allocation2 + $0x1d8] sm:$0xff] %v2800
          %2867 = vst [vmem:[#allocation2 + $0x1e0] sm:$0xff] %v2801
          %2868 = vst [vmem:[#allocation2 + $0x1e8] sm:$0xff] %v2802
          %2869 = vst [vmem:[#allocation2 + $0x1f0] sm:$0xff] %v2803
          %2870 = vst [vmem:[#allocation2 + $0x1f8] sm:$0xff] %v2804
          %2871 = vst [vmem:[#allocation2 + $0x200] sm:$0xff] %v2805
          %2872 = vst [vmem:[#allocation2 + $0x208] sm:$0xff] %v2806
        $region100: #{tpu_custom_call.1} parent=63 // pred_fallthru
          _
        %v2873 = vld [vmem:[#allocation2] sm:$0xff]
        %v2874 = vld [vmem:[#allocation2 + $0x8] sm:$0xff]
        %v2875 = vld [vmem:[#allocation2 + $0x10] sm:$0xff]
        %v2876 = vld [vmem:[#allocation2 + $0x18] sm:$0xff]
        %v2877 = vld [vmem:[#allocation2 + $0x20] sm:$0xff]
        %v2878 = vld [vmem:[#allocation2 + $0x28] sm:$0xff]
        %v2879 = vld [vmem:[#allocation2 + $0x30] sm:$0xff]
        %v2880 = vld [vmem:[#allocation2 + $0x38] sm:$0xff]
        %v2881 = vld [vmem:[#allocation2 + $0x40] sm:$0xff]
        %v2882 = vld [vmem:[#allocation2 + $0x48] sm:$0xff]
        %v2883 = vld [vmem:[#allocation2 + $0x50] sm:$0xff]
        %v2884 = vld [vmem:[#allocation2 + $0x58] sm:$0xff]
        %v2885 = vld [vmem:[#allocation2 + $0x60] sm:$0xff]
        %v2886 = vld [vmem:[#allocation2 + $0x68] sm:$0xff]
        %v2887 = vld [vmem:[#allocation2 + $0x70] sm:$0xff]
        %v2888 = vld [vmem:[#allocation2 + $0x78] sm:$0xff]
        %v2889 = vld [vmem:[#allocation2 + $0x80] sm:$0xff]
        %v2890 = vld [vmem:[#allocation2 + $0x88] sm:$0xff]
        %v2891 = vld [vmem:[#allocation2 + $0x90] sm:$0xff]
        %v2892 = vld [vmem:[#allocation2 + $0x98] sm:$0xff]
        %v2893 = vld [vmem:[#allocation2 + $0xa0] sm:$0xff]
        %v2894 = vld [vmem:[#allocation2 + $0xa8] sm:$0xff]
        %v2895 = vld [vmem:[#allocation2 + $0xb0] sm:$0xff]
        %v2896 = vld [vmem:[#allocation2 + $0xb8] sm:$0xff]
        %v2897 = vld [vmem:[#allocation2 + $0xc0] sm:$0xff]
        %v2898 = vld [vmem:[#allocation2 + $0xc8] sm:$0xff]
        %v2899 = vld [vmem:[#allocation2 + $0xd0] sm:$0xff]
        %v2900 = vld [vmem:[#allocation2 + $0xd8] sm:$0xff]
        %v2901 = vld [vmem:[#allocation2 + $0xe0] sm:$0xff]
        %v2902 = vld [vmem:[#allocation2 + $0xe8] sm:$0xff]
        %v2903 = vld [vmem:[#allocation2 + $0xf0] sm:$0xff]
        %v2904 = vld [vmem:[#allocation2 + $0xf8] sm:$0xff]
        %v2905 = vld [vmem:[#allocation2 + $0x100] sm:$0xff]
        %v2906 = vld [vmem:[#allocation2 + $0x108] sm:$0xff]
        %v2907 = vld [vmem:[#allocation2 + $0x110] sm:$0xff]
        %v2908 = vld [vmem:[#allocation2 + $0x118] sm:$0xff]
        %v2909 = vld [vmem:[#allocation2 + $0x120] sm:$0xff]
        %v2910 = vld [vmem:[#allocation2 + $0x128] sm:$0xff]
        %v2911 = vld [vmem:[#allocation2 + $0x130] sm:$0xff]
        %v2912 = vld [vmem:[#allocation2 + $0x138] sm:$0xff]
        %v2913 = vld [vmem:[#allocation2 + $0x140] sm:$0xff]
        %v2914 = vld [vmem:[#allocation2 + $0x148] sm:$0xff]
        %v2915 = vld [vmem:[#allocation2 + $0x150] sm:$0xff]
        %v2916 = vld [vmem:[#allocation2 + $0x158] sm:$0xff]
        %v2917 = vld [vmem:[#allocation2 + $0x160] sm:$0xff]
        %v2918 = vld [vmem:[#allocation2 + $0x168] sm:$0xff]
        %v2919 = vld [vmem:[#allocation2 + $0x170] sm:$0xff]
        %v2920 = vld [vmem:[#allocation2 + $0x178] sm:$0xff]
        %v2921 = vld [vmem:[#allocation2 + $0x180] sm:$0xff]
        %v2922 = vld [vmem:[#allocation2 + $0x188] sm:$0xff]
        %v2923 = vld [vmem:[#allocation2 + $0x190] sm:$0xff]
        %v2924 = vld [vmem:[#allocation2 + $0x198] sm:$0xff]
        %v2925 = vld [vmem:[#allocation2 + $0x1a0] sm:$0xff]
        %v2926 = vld [vmem:[#allocation2 + $0x1a8] sm:$0xff]
        %v2927 = vld [vmem:[#allocation2 + $0x1b0] sm:$0xff]
        %v2928 = vld [vmem:[#allocation2 + $0x1b8] sm:$0xff]
        %v2929 = vld [vmem:[#allocation2 + $0x1c0] sm:$0xff]
        %v2930 = vld [vmem:[#allocation2 + $0x1c8] sm:$0xff]
        %v2931 = vld [vmem:[#allocation2 + $0x1d0] sm:$0xff]
        %v2932 = vld [vmem:[#allocation2 + $0x1d8] sm:$0xff]
        %v2933 = vld [vmem:[#allocation2 + $0x1e0] sm:$0xff]
        %v2934 = vld [vmem:[#allocation2 + $0x1e8] sm:$0xff]
        %v2935 = vld [vmem:[#allocation2 + $0x1f0] sm:$0xff]
        %v2936 = vld [vmem:[#allocation2 + $0x1f8] sm:$0xff]
        %v2937 = vld [vmem:[#allocation2 + $0x200] sm:$0xff]
        %v2938 = vld [vmem:[#allocation2 + $0x208] sm:$0xff]
        %v2939 = vld [vmem:[#allocation11] sm:$0xff]
        %v2940 = vld [vmem:[#allocation12] sm:$0xf]
        %v2941 = vld [vmem:[#allocation12 + $0x4] sm:$0xf]
        %v2942 = vld [vmem:[#allocation12 + $0x8] sm:$0xf]
        %v2943 = vld [vmem:[#allocation12 + $0xc] sm:$0xf]
        %v2944 = vld [vmem:[#allocation12 + $0x10] sm:$0xf]
        %v2945 = vld [vmem:[#allocation12 + $0x14] sm:$0xf]
        %v2946 = vld [vmem:[#allocation12 + $0x18] sm:$0xf]
        %v2947 = vld [vmem:[#allocation12 + $0x1c] sm:$0xf]
        %v2948 = vld [vmem:[#allocation12 + $0x20] sm:$0xf]
        %v2949 = vld [vmem:[#allocation12 + $0x24] sm:$0xf]
        %v2950 = vld [vmem:[#allocation12 + $0x28] sm:$0xf]
        %v2951 = vld [vmem:[#allocation12 + $0x2c] sm:$0xf]
        %v2952 = vld [vmem:[#allocation12 + $0x30] sm:$0xf]
        %v2953 = vld [vmem:[#allocation12 + $0x34] sm:$0xf]
        %v2954 = vld [vmem:[#allocation12 + $0x38] sm:$0xf]
        %v2955 = vld [vmem:[#allocation12 + $0x3c] sm:$0xf]
        %v2956 = vld [vmem:[%s8] sm:$0x1]
        %v2957 = vlaneseq
        %v2958 = vshrl.u32 %v2957, 7
        %v2959 = vsub.s32 1, %v2958
        %v2960 = vrot.slane %v2939, %v2959
        %v2961 = vmul.f32 %v2873, %v2960
        %v2962 = vmul.f32 %v2874, %v2960
        %v2963 = vmul.f32 %v2875, %v2960
        %v2964 = vmul.f32 %v2876, %v2960
        %v2965 = vmul.f32 %v2877, %v2960
        %v2966 = vmul.f32 %v2878, %v2960
        %v2967 = vmul.f32 %v2879, %v2960
        %v2968 = vmul.f32 %v2880, %v2960
        %v2969 = vmul.f32 %v2881, %v2960
        %v2970 = vmul.f32 %v2882, %v2960
        %v2971 = vmul.f32 %v2883, %v2960
        %v2972 = vmul.f32 %v2884, %v2960
        %v2973 = vmul.f32 %v2885, %v2960
        %v2974 = vmul.f32 %v2886, %v2960
        %v2975 = vmul.f32 %v2887, %v2960
        %v2976 = vmul.f32 %v2888, %v2960
        %v2977 = vmul.f32 %v2889, %v2960
        %v2978 = vmul.f32 %v2890, %v2960
        %v2979 = vmul.f32 %v2891, %v2960
        %v2980 = vmul.f32 %v2892, %v2960
        %v2981 = vmul.f32 %v2893, %v2960
        %v2982 = vmul.f32 %v2894, %v2960
        %v2983 = vmul.f32 %v2895, %v2960
        %v2984 = vmul.f32 %v2896, %v2960
        %v2985 = vmul.f32 %v2897, %v2960
        %v2986 = vmul.f32 %v2898, %v2960
        %v2987 = vmul.f32 %v2899, %v2960
        %v2988 = vmul.f32 %v2900, %v2960
        %v2989 = vmul.f32 %v2901, %v2960
        %v2990 = vmul.f32 %v2902, %v2960
        %v2991 = vmul.f32 %v2903, %v2960
        %v2992 = vmul.f32 %v2904, %v2960
        %v2993 = vmul.f32 %v2905, %v2960
        %v2994 = vmul.f32 %v2906, %v2960
        %v2995 = vmul.f32 %v2907, %v2960
        %v2996 = vmul.f32 %v2908, %v2960
        %v2997 = vmul.f32 %v2909, %v2960
        %v2998 = vmul.f32 %v2910, %v2960
        %v2999 = vmul.f32 %v2911, %v2960
        %v3000 = vmul.f32 %v2912, %v2960
        %v3001 = vmul.f32 %v2913, %v2960
        %v3002 = vmul.f32 %v2914, %v2960
        %v3003 = vmul.f32 %v2915, %v2960
        %v3004 = vmul.f32 %v2916, %v2960
        %v3005 = vmul.f32 %v2917, %v2960
        %v3006 = vmul.f32 %v2918, %v2960
        %v3007 = vmul.f32 %v2919, %v2960
        %v3008 = vmul.f32 %v2920, %v2960
        %v3009 = vmul.f32 %v2921, %v2960
        %v3010 = vmul.f32 %v2922, %v2960
        %v3011 = vmul.f32 %v2923, %v2960
        %v3012 = vmul.f32 %v2924, %v2960
        %v3013 = vmul.f32 %v2925, %v2960
        %v3014 = vmul.f32 %v2926, %v2960
        %v3015 = vmul.f32 %v2927, %v2960
        %v3016 = vmul.f32 %v2928, %v2960
        %v3017 = vmul.f32 %v2929, %v2960
        %v3018 = vmul.f32 %v2930, %v2960
        %v3019 = vmul.f32 %v2931, %v2960
        %v3020 = vmul.f32 %v2932, %v2960
        %v3021 = vmul.f32 %v2933, %v2960
        %v3022 = vmul.f32 %v2934, %v2960
        %v3023 = vmul.f32 %v2935, %v2960
        %v3024 = vmul.f32 %v2936, %v2960
        %v3025 = vmul.f32 %v2937, %v2960
        %v3026 = vmul.f32 %v2938, %v2960
        %v3027 = vrot.slane %v2873, 7
        %v3028 = vrot.slane %v2874, 7
        %v3029 = vrot.slane %v2875, 7
        %v3030 = vrot.slane %v2876, 7
        %v3031 = vrot.slane %v2877, 7
        %v3032 = vrot.slane %v2878, 7
        %v3033 = vrot.slane %v2879, 7
        %v3034 = vrot.slane %v2880, 7
        %v3035 = vrot.slane %v2881, 7
        %v3036 = vrot.slane %v2882, 7
        %v3037 = vrot.slane %v2883, 7
        %v3038 = vrot.slane %v2884, 7
        %v3039 = vrot.slane %v2885, 7
        %v3040 = vrot.slane %v2886, 7
        %v3041 = vrot.slane %v2887, 7
        %v3042 = vrot.slane %v2888, 7
        %v3043 = vrot.slane %v2889, 7
        %v3044 = vrot.slane %v2890, 7
        %v3045 = vrot.slane %v2891, 7
        %v3046 = vrot.slane %v2892, 7
        %v3047 = vrot.slane %v2893, 7
        %v3048 = vrot.slane %v2894, 7
        %v3049 = vrot.slane %v2895, 7
        %v3050 = vrot.slane %v2896, 7
        %v3051 = vrot.slane %v2897, 7
        %v3052 = vrot.slane %v2898, 7
        %v3053 = vrot.slane %v2899, 7
        %v3054 = vrot.slane %v2900, 7
        %v3055 = vrot.slane %v2901, 7
        %v3056 = vrot.slane %v2902, 7
        %v3057 = vrot.slane %v2903, 7
        %v3058 = vrot.slane %v2904, 7
        %v3059 = vrot.slane %v2905, 7
        %v3060 = vrot.slane %v2906, 7
        %v3061 = vrot.slane %v2907, 7
        %v3062 = vrot.slane %v2908, 7
        %v3063 = vrot.slane %v2909, 7
        %v3064 = vrot.slane %v2910, 7
        %v3065 = vrot.slane %v2911, 7
        %v3066 = vrot.slane %v2912, 7
        %v3067 = vrot.slane %v2913, 7
        %v3068 = vrot.slane %v2914, 7
        %v3069 = vrot.slane %v2915, 7
        %v3070 = vrot.slane %v2916, 7
        %v3071 = vrot.slane %v2917, 7
        %v3072 = vrot.slane %v2918, 7
        %v3073 = vrot.slane %v2919, 7
        %v3074 = vrot.slane %v2920, 7
        %v3075 = vrot.slane %v2921, 7
        %v3076 = vrot.slane %v2922, 7
        %v3077 = vrot.slane %v2923, 7
        %v3078 = vrot.slane %v2924, 7
        %v3079 = vrot.slane %v2925, 7
        %v3080 = vrot.slane %v2926, 7
        %v3081 = vrot.slane %v2927, 7
        %v3082 = vrot.slane %v2928, 7
        %v3083 = vrot.slane %v2929, 7
        %v3084 = vrot.slane %v2930, 7
        %v3085 = vrot.slane %v2931, 7
        %v3086 = vrot.slane %v2932, 7
        %v3087 = vrot.slane %v2933, 7
        %v3088 = vrot.slane %v2934, 7
        %v3089 = vrot.slane %v2935, 7
        %v3090 = vrot.slane %v2936, 7
        %v3091 = vrot.slane %v2937, 7
        %v3092 = vrot.slane %v2938, 7
        %v3093 = vsel %vm1684, %v3091, %v3092
        %v3094 = vsel %vm1684, %v3090, %v3091
        %v3095 = vsel %vm1684, %v3089, %v3090
        %v3096 = vsel %vm1684, %v3088, %v3089
        %v3097 = vsel %vm1684, %v3087, %v3088
        %v3098 = vsel %vm1684, %v3086, %v3087
        %v3099 = vsel %vm1684, %v3085, %v3086
        %v3100 = vsel %vm1684, %v3084, %v3085
        %v3101 = vsel %vm1684, %v3083, %v3084
        %v3102 = vsel %vm1684, %v3082, %v3083
        %v3103 = vsel %vm1684, %v3081, %v3082
        %v3104 = vsel %vm1684, %v3080, %v3081
        %v3105 = vsel %vm1684, %v3079, %v3080
        %v3106 = vsel %vm1684, %v3078, %v3079
        %v3107 = vsel %vm1684, %v3077, %v3078
        %v3108 = vsel %vm1684, %v3076, %v3077
        %v3109 = vsel %vm1684, %v3075, %v3076
        %v3110 = vsel %vm1684, %v3074, %v3075
        %v3111 = vsel %vm1684, %v3073, %v3074
        %v3112 = vsel %vm1684, %v3072, %v3073
        %v3113 = vsel %vm1684, %v3071, %v3072
        %v3114 = vsel %vm1684, %v3070, %v3071
        %v3115 = vsel %vm1684, %v3069, %v3070
        %v3116 = vsel %vm1684, %v3068, %v3069
        %v3117 = vsel %vm1684, %v3067, %v3068
        %v3118 = vsel %vm1684, %v3066, %v3067
        %v3119 = vsel %vm1684, %v3065, %v3066
        %v3120 = vsel %vm1684, %v3064, %v3065
        %v3121 = vsel %vm1684, %v3063, %v3064
        %v3122 = vsel %vm1684, %v3062, %v3063
        %v3123 = vsel %vm1684, %v3061, %v3062
        %v3124 = vsel %vm1684, %v3060, %v3061
        %v3125 = vsel %vm1684, %v3059, %v3060
        %v3126 = vsel %vm1684, %v3058, %v3059
        %v3127 = vsel %vm1684, %v3057, %v3058
        %v3128 = vsel %vm1684, %v3056, %v3057
        %v3129 = vsel %vm1684, %v3055, %v3056
        %v3130 = vsel %vm1684, %v3054, %v3055
        %v3131 = vsel %vm1684, %v3053, %v3054
        %v3132 = vsel %vm1684, %v3052, %v3053
        %v3133 = vsel %vm1684, %v3051, %v3052
        %v3134 = vsel %vm1684, %v3050, %v3051
        %v3135 = vsel %vm1684, %v3049, %v3050
        %v3136 = vsel %vm1684, %v3048, %v3049
        %v3137 = vsel %vm1684, %v3047, %v3048
        %v3138 = vsel %vm1684, %v3046, %v3047
        %v3139 = vsel %vm1684, %v3045, %v3046
        %v3140 = vsel %vm1684, %v3044, %v3045
        %v3141 = vsel %vm1684, %v3043, %v3044
        %v3142 = vsel %vm1684, %v3042, %v3043
        %v3143 = vsel %vm1684, %v3041, %v3042
        %v3144 = vsel %vm1684, %v3040, %v3041
        %v3145 = vsel %vm1684, %v3039, %v3040
        %v3146 = vsel %vm1684, %v3038, %v3039
        %v3147 = vsel %vm1684, %v3037, %v3038
        %v3148 = vsel %vm1684, %v3036, %v3037
        %v3149 = vsel %vm1684, %v3035, %v3036
        %v3150 = vsel %vm1684, %v3034, %v3035
        %v3151 = vsel %vm1684, %v3033, %v3034
        %v3152 = vsel %vm1684, %v3032, %v3033
        %v3153 = vsel %vm1684, %v3031, %v3032
        %v3154 = vsel %vm1684, %v3030, %v3031
        %v3155 = vsel %vm1684, %v3029, %v3030
        %v3156 = vsel %vm1684, %v3028, %v3029
        %v3157 = vsel %vm1684, %v3027, %v3028
        %v3158 = vsel %vm1684, %v3092, %v3027
        %v3159 = vlaneseq
        %v3160 = vshrl.u32 %v3159, 7
        %v3161 = vsub.s32 0, %v3160
        %v3162 = vrot.slane %v2939, %v3161
        %v3163 = vmul.f32 %v3158, %v3162
        %v3164 = vmul.f32 %v3157, %v3162
        %v3165 = vmul.f32 %v3156, %v3162
        %v3166 = vmul.f32 %v3155, %v3162
        %v3167 = vmul.f32 %v3154, %v3162
        %v3168 = vmul.f32 %v3153, %v3162
        %v3169 = vmul.f32 %v3152, %v3162
        %v3170 = vmul.f32 %v3151, %v3162
        %v3171 = vmul.f32 %v3150, %v3162
        %v3172 = vmul.f32 %v3149, %v3162
        %v3173 = vmul.f32 %v3148, %v3162
        %v3174 = vmul.f32 %v3147, %v3162
        %v3175 = vmul.f32 %v3146, %v3162
        %v3176 = vmul.f32 %v3145, %v3162
        %v3177 = vmul.f32 %v3144, %v3162
        %v3178 = vmul.f32 %v3143, %v3162
        %v3179 = vmul.f32 %v3142, %v3162
        %v3180 = vmul.f32 %v3141, %v3162
        %v3181 = vmul.f32 %v3140, %v3162
        %v3182 = vmul.f32 %v3139, %v3162
        %v3183 = vmul.f32 %v3138, %v3162
        %v3184 = vmul.f32 %v3137, %v3162
        %v3185 = vmul.f32 %v3136, %v3162
        %v3186 = vmul.f32 %v3135, %v3162
        %v3187 = vmul.f32 %v3134, %v3162
        %v3188 = vmul.f32 %v3133, %v3162
        %v3189 = vmul.f32 %v3132, %v3162
        %v3190 = vmul.f32 %v3131, %v3162
        %v3191 = vmul.f32 %v3130, %v3162
        %v3192 = vmul.f32 %v3129, %v3162
        %v3193 = vmul.f32 %v3128, %v3162
        %v3194 = vmul.f32 %v3127, %v3162
        %v3195 = vmul.f32 %v3126, %v3162
        %v3196 = vmul.f32 %v3125, %v3162
        %v3197 = vmul.f32 %v3124, %v3162
        %v3198 = vmul.f32 %v3123, %v3162
        %v3199 = vmul.f32 %v3122, %v3162
        %v3200 = vmul.f32 %v3121, %v3162
        %v3201 = vmul.f32 %v3120, %v3162
        %v3202 = vmul.f32 %v3119, %v3162
        %v3203 = vmul.f32 %v3118, %v3162
        %v3204 = vmul.f32 %v3117, %v3162
        %v3205 = vmul.f32 %v3116, %v3162
        %v3206 = vmul.f32 %v3115, %v3162
        %v3207 = vmul.f32 %v3114, %v3162
        %v3208 = vmul.f32 %v3113, %v3162
        %v3209 = vmul.f32 %v3112, %v3162
        %v3210 = vmul.f32 %v3111, %v3162
        %v3211 = vmul.f32 %v3110, %v3162
        %v3212 = vmul.f32 %v3109, %v3162
        %v3213 = vmul.f32 %v3108, %v3162
        %v3214 = vmul.f32 %v3107, %v3162
        %v3215 = vmul.f32 %v3106, %v3162
        %v3216 = vmul.f32 %v3105, %v3162
        %v3217 = vmul.f32 %v3104, %v3162
        %v3218 = vmul.f32 %v3103, %v3162
        %v3219 = vmul.f32 %v3102, %v3162
        %v3220 = vmul.f32 %v3101, %v3162
        %v3221 = vmul.f32 %v3100, %v3162
        %v3222 = vmul.f32 %v3099, %v3162
        %v3223 = vmul.f32 %v3098, %v3162
        %v3224 = vmul.f32 %v3097, %v3162
        %v3225 = vmul.f32 %v3096, %v3162
        %v3226 = vmul.f32 %v3095, %v3162
        %v3227 = vmul.f32 %v3094, %v3162
        %v3228 = vmul.f32 %v3093, %v3162
        %v3229 = vadd.f32 %v2961, %v3163
        %v3230 = vadd.f32 %v2962, %v3164
        %v3231 = vadd.f32 %v2963, %v3165
        %v3232 = vadd.f32 %v2964, %v3166
        %v3233 = vadd.f32 %v2965, %v3167
        %v3234 = vadd.f32 %v2966, %v3168
        %v3235 = vadd.f32 %v2967, %v3169
        %v3236 = vadd.f32 %v2968, %v3170
        %v3237 = vadd.f32 %v2969, %v3171
        %v3238 = vadd.f32 %v2970, %v3172
        %v3239 = vadd.f32 %v2971, %v3173
        %v3240 = vadd.f32 %v2972, %v3174
        %v3241 = vadd.f32 %v2973, %v3175
        %v3242 = vadd.f32 %v2974, %v3176
        %v3243 = vadd.f32 %v2975, %v3177
        %v3244 = vadd.f32 %v2976, %v3178
        %v3245 = vadd.f32 %v2977, %v3179
        %v3246 = vadd.f32 %v2978, %v3180
        %v3247 = vadd.f32 %v2979, %v3181
        %v3248 = vadd.f32 %v2980, %v3182
        %v3249 = vadd.f32 %v2981, %v3183
        %v3250 = vadd.f32 %v2982, %v3184
        %v3251 = vadd.f32 %v2983, %v3185
        %v3252 = vadd.f32 %v2984, %v3186
        %v3253 = vadd.f32 %v2985, %v3187
        %v3254 = vadd.f32 %v2986, %v3188
        %v3255 = vadd.f32 %v2987, %v3189
        %v3256 = vadd.f32 %v2988, %v3190
        %v3257 = vadd.f32 %v2989, %v3191
        %v3258 = vadd.f32 %v2990, %v3192
        %v3259 = vadd.f32 %v2991, %v3193
        %v3260 = vadd.f32 %v2992, %v3194
        %v3261 = vadd.f32 %v2993, %v3195
        %v3262 = vadd.f32 %v2994, %v3196
        %v3263 = vadd.f32 %v2995, %v3197
        %v3264 = vadd.f32 %v2996, %v3198
        %v3265 = vadd.f32 %v2997, %v3199
        %v3266 = vadd.f32 %v2998, %v3200
        %v3267 = vadd.f32 %v2999, %v3201
        %v3268 = vadd.f32 %v3000, %v3202
        %v3269 = vadd.f32 %v3001, %v3203
        %v3270 = vadd.f32 %v3002, %v3204
        %v3271 = vadd.f32 %v3003, %v3205
        %v3272 = vadd.f32 %v3004, %v3206
        %v3273 = vadd.f32 %v3005, %v3207
        %v3274 = vadd.f32 %v3006, %v3208
        %v3275 = vadd.f32 %v3007, %v3209
        %v3276 = vadd.f32 %v3008, %v3210
        %v3277 = vadd.f32 %v3009, %v3211
        %v3278 = vadd.f32 %v3010, %v3212
        %v3279 = vadd.f32 %v3011, %v3213
        %v3280 = vadd.f32 %v3012, %v3214
        %v3281 = vadd.f32 %v3013, %v3215
        %v3282 = vadd.f32 %v3014, %v3216
        %v3283 = vadd.f32 %v3015, %v3217
        %v3284 = vadd.f32 %v3016, %v3218
        %v3285 = vadd.f32 %v3017, %v3219
        %v3286 = vadd.f32 %v3018, %v3220
        %v3287 = vadd.f32 %v3019, %v3221
        %v3288 = vadd.f32 %v3020, %v3222
        %v3289 = vadd.f32 %v3021, %v3223
        %v3290 = vadd.f32 %v3022, %v3224
        %v3291 = vadd.f32 %v3023, %v3225
        %v3292 = vadd.f32 %v3024, %v3226
        %v3293 = vadd.f32 %v3025, %v3227
        %v3294 = vadd.f32 %v3026, %v3228
        %v3295 = vrot.slane %v2873, 1
        %v3296 = vrot.slane %v2874, 1
        %v3297 = vrot.slane %v2875, 1
        %v3298 = vrot.slane %v2876, 1
        %v3299 = vrot.slane %v2877, 1
        %v3300 = vrot.slane %v2878, 1
        %v3301 = vrot.slane %v2879, 1
        %v3302 = vrot.slane %v2880, 1
        %v3303 = vrot.slane %v2881, 1
        %v3304 = vrot.slane %v2882, 1
        %v3305 = vrot.slane %v2883, 1
        %v3306 = vrot.slane %v2884, 1
        %v3307 = vrot.slane %v2885, 1
        %v3308 = vrot.slane %v2886, 1
        %v3309 = vrot.slane %v2887, 1
        %v3310 = vrot.slane %v2888, 1
        %v3311 = vrot.slane %v2889, 1
        %v3312 = vrot.slane %v2890, 1
        %v3313 = vrot.slane %v2891, 1
        %v3314 = vrot.slane %v2892, 1
        %v3315 = vrot.slane %v2893, 1
        %v3316 = vrot.slane %v2894, 1
        %v3317 = vrot.slane %v2895, 1
        %v3318 = vrot.slane %v2896, 1
        %v3319 = vrot.slane %v2897, 1
        %v3320 = vrot.slane %v2898, 1
        %v3321 = vrot.slane %v2899, 1
        %v3322 = vrot.slane %v2900, 1
        %v3323 = vrot.slane %v2901, 1
        %v3324 = vrot.slane %v2902, 1
        %v3325 = vrot.slane %v2903, 1
        %v3326 = vrot.slane %v2904, 1
        %v3327 = vrot.slane %v2905, 1
        %v3328 = vrot.slane %v2906, 1
        %v3329 = vrot.slane %v2907, 1
        %v3330 = vrot.slane %v2908, 1
        %v3331 = vrot.slane %v2909, 1
        %v3332 = vrot.slane %v2910, 1
        %v3333 = vrot.slane %v2911, 1
        %v3334 = vrot.slane %v2912, 1
        %v3335 = vrot.slane %v2913, 1
        %v3336 = vrot.slane %v2914, 1
        %v3337 = vrot.slane %v2915, 1
        %v3338 = vrot.slane %v2916, 1
        %v3339 = vrot.slane %v2917, 1
        %v3340 = vrot.slane %v2918, 1
        %v3341 = vrot.slane %v2919, 1
        %v3342 = vrot.slane %v2920, 1
        %v3343 = vrot.slane %v2921, 1
        %v3344 = vrot.slane %v2922, 1
        %v3345 = vrot.slane %v2923, 1
        %v3346 = vrot.slane %v2924, 1
        %v3347 = vrot.slane %v2925, 1
        %v3348 = vrot.slane %v2926, 1
        %v3349 = vrot.slane %v2927, 1
        %v3350 = vrot.slane %v2928, 1
        %v3351 = vrot.slane %v2929, 1
        %v3352 = vrot.slane %v2930, 1
        %v3353 = vrot.slane %v2931, 1
        %v3354 = vrot.slane %v2932, 1
        %v3355 = vrot.slane %v2933, 1
        %v3356 = vrot.slane %v2934, 1
        %v3357 = vrot.slane %v2935, 1
        %v3358 = vrot.slane %v2936, 1
        %v3359 = vrot.slane %v2937, 1
        %v3360 = vrot.slane %v2938, 1
        %v3361 = vsel %vm1953, %v3359, %v3360
        %v3362 = vsel %vm1953, %v3358, %v3359
        %v3363 = vsel %vm1953, %v3357, %v3358
        %v3364 = vsel %vm1953, %v3356, %v3357
        %v3365 = vsel %vm1953, %v3355, %v3356
        %v3366 = vsel %vm1953, %v3354, %v3355
        %v3367 = vsel %vm1953, %v3353, %v3354
        %v3368 = vsel %vm1953, %v3352, %v3353
        %v3369 = vsel %vm1953, %v3351, %v3352
        %v3370 = vsel %vm1953, %v3350, %v3351
        %v3371 = vsel %vm1953, %v3349, %v3350
        %v3372 = vsel %vm1953, %v3348, %v3349
        %v3373 = vsel %vm1953, %v3347, %v3348
        %v3374 = vsel %vm1953, %v3346, %v3347
        %v3375 = vsel %vm1953, %v3345, %v3346
        %v3376 = vsel %vm1953, %v3344, %v3345
        %v3377 = vsel %vm1953, %v3343, %v3344
        %v3378 = vsel %vm1953, %v3342, %v3343
        %v3379 = vsel %vm1953, %v3341, %v3342
        %v3380 = vsel %vm1953, %v3340, %v3341
        %v3381 = vsel %vm1953, %v3339, %v3340
        %v3382 = vsel %vm1953, %v3338, %v3339
        %v3383 = vsel %vm1953, %v3337, %v3338
        %v3384 = vsel %vm1953, %v3336, %v3337
        %v3385 = vsel %vm1953, %v3335, %v3336
        %v3386 = vsel %vm1953, %v3334, %v3335
        %v3387 = vsel %vm1953, %v3333, %v3334
        %v3388 = vsel %vm1953, %v3332, %v3333
        %v3389 = vsel %vm1953, %v3331, %v3332
        %v3390 = vsel %vm1953, %v3330, %v3331
        %v3391 = vsel %vm1953, %v3329, %v3330
        %v3392 = vsel %vm1953, %v3328, %v3329
        %v3393 = vsel %vm1953, %v3327, %v3328
        %v3394 = vsel %vm1953, %v3326, %v3327
        %v3395 = vsel %vm1953, %v3325, %v3326
        %v3396 = vsel %vm1953, %v3324, %v3325
        %v3397 = vsel %vm1953, %v3323, %v3324
        %v3398 = vsel %vm1953, %v3322, %v3323
        %v3399 = vsel %vm1953, %v3321, %v3322
        %v3400 = vsel %vm1953, %v3320, %v3321
        %v3401 = vsel %vm1953, %v3319, %v3320
        %v3402 = vsel %vm1953, %v3318, %v3319
        %v3403 = vsel %vm1953, %v3317, %v3318
        %v3404 = vsel %vm1953, %v3316, %v3317
        %v3405 = vsel %vm1953, %v3315, %v3316
        %v3406 = vsel %vm1953, %v3314, %v3315
        %v3407 = vsel %vm1953, %v3313, %v3314
        %v3408 = vsel %vm1953, %v3312, %v3313
        %v3409 = vsel %vm1953, %v3311, %v3312
        %v3410 = vsel %vm1953, %v3310, %v3311
        %v3411 = vsel %vm1953, %v3309, %v3310
        %v3412 = vsel %vm1953, %v3308, %v3309
        %v3413 = vsel %vm1953, %v3307, %v3308
        %v3414 = vsel %vm1953, %v3306, %v3307
        %v3415 = vsel %vm1953, %v3305, %v3306
        %v3416 = vsel %vm1953, %v3304, %v3305
        %v3417 = vsel %vm1953, %v3303, %v3304
        %v3418 = vsel %vm1953, %v3302, %v3303
        %v3419 = vsel %vm1953, %v3301, %v3302
        %v3420 = vsel %vm1953, %v3300, %v3301
        %v3421 = vsel %vm1953, %v3299, %v3300
        %v3422 = vsel %vm1953, %v3298, %v3299
        %v3423 = vsel %vm1953, %v3297, %v3298
        %v3424 = vsel %vm1953, %v3296, %v3297
        %v3425 = vsel %vm1953, %v3295, %v3296
        %v3426 = vsel %vm1953, %v3360, %v3295
        %v3427 = vlaneseq
        %v3428 = vshrl.u32 %v3427, 7
        %v3429 = vsub.s32 2, %v3428
        %v3430 = vrot.slane %v2939, %v3429
        %v3431 = vmul.f32 %v3425, %v3430
        %v3432 = vmul.f32 %v3424, %v3430
        %v3433 = vmul.f32 %v3423, %v3430
        %v3434 = vmul.f32 %v3422, %v3430
        %v3435 = vmul.f32 %v3421, %v3430
        %v3436 = vmul.f32 %v3420, %v3430
        %v3437 = vmul.f32 %v3419, %v3430
        %v3438 = vmul.f32 %v3418, %v3430
        %v3439 = vmul.f32 %v3417, %v3430
        %v3440 = vmul.f32 %v3416, %v3430
        %v3441 = vmul.f32 %v3415, %v3430
        %v3442 = vmul.f32 %v3414, %v3430
        %v3443 = vmul.f32 %v3413, %v3430
        %v3444 = vmul.f32 %v3412, %v3430
        %v3445 = vmul.f32 %v3411, %v3430
        %v3446 = vmul.f32 %v3410, %v3430
        %v3447 = vmul.f32 %v3409, %v3430
        %v3448 = vmul.f32 %v3408, %v3430
        %v3449 = vmul.f32 %v3407, %v3430
        %v3450 = vmul.f32 %v3406, %v3430
        %v3451 = vmul.f32 %v3405, %v3430
        %v3452 = vmul.f32 %v3404, %v3430
        %v3453 = vmul.f32 %v3403, %v3430
        %v3454 = vmul.f32 %v3402, %v3430
        %v3455 = vmul.f32 %v3401, %v3430
        %v3456 = vmul.f32 %v3400, %v3430
        %v3457 = vmul.f32 %v3399, %v3430
        %v3458 = vmul.f32 %v3398, %v3430
        %v3459 = vmul.f32 %v3397, %v3430
        %v3460 = vmul.f32 %v3396, %v3430
        %v3461 = vmul.f32 %v3395, %v3430
        %v3462 = vmul.f32 %v3394, %v3430
        %v3463 = vmul.f32 %v3393, %v3430
        %v3464 = vmul.f32 %v3392, %v3430
        %v3465 = vmul.f32 %v3391, %v3430
        %v3466 = vmul.f32 %v3390, %v3430
        %v3467 = vmul.f32 %v3389, %v3430
        %v3468 = vmul.f32 %v3388, %v3430
        %v3469 = vmul.f32 %v3387, %v3430
        %v3470 = vmul.f32 %v3386, %v3430
        %v3471 = vmul.f32 %v3385, %v3430
        %v3472 = vmul.f32 %v3384, %v3430
        %v3473 = vmul.f32 %v3383, %v3430
        %v3474 = vmul.f32 %v3382, %v3430
        %v3475 = vmul.f32 %v3381, %v3430
        %v3476 = vmul.f32 %v3380, %v3430
        %v3477 = vmul.f32 %v3379, %v3430
        %v3478 = vmul.f32 %v3378, %v3430
        %v3479 = vmul.f32 %v3377, %v3430
        %v3480 = vmul.f32 %v3376, %v3430
        %v3481 = vmul.f32 %v3375, %v3430
        %v3482 = vmul.f32 %v3374, %v3430
        %v3483 = vmul.f32 %v3373, %v3430
        %v3484 = vmul.f32 %v3372, %v3430
        %v3485 = vmul.f32 %v3371, %v3430
        %v3486 = vmul.f32 %v3370, %v3430
        %v3487 = vmul.f32 %v3369, %v3430
        %v3488 = vmul.f32 %v3368, %v3430
        %v3489 = vmul.f32 %v3367, %v3430
        %v3490 = vmul.f32 %v3366, %v3430
        %v3491 = vmul.f32 %v3365, %v3430
        %v3492 = vmul.f32 %v3364, %v3430
        %v3493 = vmul.f32 %v3363, %v3430
        %v3494 = vmul.f32 %v3362, %v3430
        %v3495 = vmul.f32 %v3361, %v3430
        %v3496 = vmul.f32 %v3426, %v3430
        %v3497 = vadd.f32 %v3229, %v3431
        %v3498 = vadd.f32 %v3230, %v3432
        %v3499 = vadd.f32 %v3231, %v3433
        %v3500 = vadd.f32 %v3232, %v3434
        %v3501 = vadd.f32 %v3233, %v3435
        %v3502 = vadd.f32 %v3234, %v3436
        %v3503 = vadd.f32 %v3235, %v3437
        %v3504 = vadd.f32 %v3236, %v3438
        %v3505 = vadd.f32 %v3237, %v3439
        %v3506 = vadd.f32 %v3238, %v3440
        %v3507 = vadd.f32 %v3239, %v3441
        %v3508 = vadd.f32 %v3240, %v3442
        %v3509 = vadd.f32 %v3241, %v3443
        %v3510 = vadd.f32 %v3242, %v3444
        %v3511 = vadd.f32 %v3243, %v3445
        %v3512 = vadd.f32 %v3244, %v3446
        %v3513 = vadd.f32 %v3245, %v3447
        %v3514 = vadd.f32 %v3246, %v3448
        %v3515 = vadd.f32 %v3247, %v3449
        %v3516 = vadd.f32 %v3248, %v3450
        %v3517 = vadd.f32 %v3249, %v3451
        %v3518 = vadd.f32 %v3250, %v3452
        %v3519 = vadd.f32 %v3251, %v3453
        %v3520 = vadd.f32 %v3252, %v3454
        %v3521 = vadd.f32 %v3253, %v3455
        %v3522 = vadd.f32 %v3254, %v3456
        %v3523 = vadd.f32 %v3255, %v3457
        %v3524 = vadd.f32 %v3256, %v3458
        %v3525 = vadd.f32 %v3257, %v3459
        %v3526 = vadd.f32 %v3258, %v3460
        %v3527 = vadd.f32 %v3259, %v3461
        %v3528 = vadd.f32 %v3260, %v3462
        %v3529 = vadd.f32 %v3261, %v3463
        %v3530 = vadd.f32 %v3262, %v3464
        %v3531 = vadd.f32 %v3263, %v3465
        %v3532 = vadd.f32 %v3264, %v3466
        %v3533 = vadd.f32 %v3265, %v3467
        %v3534 = vadd.f32 %v3266, %v3468
        %v3535 = vadd.f32 %v3267, %v3469
        %v3536 = vadd.f32 %v3268, %v3470
        %v3537 = vadd.f32 %v3269, %v3471
        %v3538 = vadd.f32 %v3270, %v3472
        %v3539 = vadd.f32 %v3271, %v3473
        %v3540 = vadd.f32 %v3272, %v3474
        %v3541 = vadd.f32 %v3273, %v3475
        %v3542 = vadd.f32 %v3274, %v3476
        %v3543 = vadd.f32 %v3275, %v3477
        %v3544 = vadd.f32 %v3276, %v3478
        %v3545 = vadd.f32 %v3277, %v3479
        %v3546 = vadd.f32 %v3278, %v3480
        %v3547 = vadd.f32 %v3279, %v3481
        %v3548 = vadd.f32 %v3280, %v3482
        %v3549 = vadd.f32 %v3281, %v3483
        %v3550 = vadd.f32 %v3282, %v3484
        %v3551 = vadd.f32 %v3283, %v3485
        %v3552 = vadd.f32 %v3284, %v3486
        %v3553 = vadd.f32 %v3285, %v3487
        %v3554 = vadd.f32 %v3286, %v3488
        %v3555 = vadd.f32 %v3287, %v3489
        %v3556 = vadd.f32 %v3288, %v3490
        %v3557 = vadd.f32 %v3289, %v3491
        %v3558 = vadd.f32 %v3290, %v3492
        %v3559 = vadd.f32 %v3291, %v3493
        %v3560 = vadd.f32 %v3292, %v3494
        %v3561 = vadd.f32 %v3293, %v3495
        %v3562 = vadd.f32 %v3294, %v3496
        %v3563 = vpack.c.bf16 %v3498, %v3497
        %v3564 = vpack.c.bf16 %v3500, %v3499
        %v3565 = vpack.c.bf16 %v3502, %v3501
        %v3566 = vpack.c.bf16 %v3504, %v3503
        %v3567 = vpack.c.bf16 %v3506, %v3505
        %v3568 = vpack.c.bf16 %v3508, %v3507
        %v3569 = vpack.c.bf16 %v3510, %v3509
        %v3570 = vpack.c.bf16 %v3512, %v3511
        %v3571 = vpack.c.bf16 %v3514, %v3513
        %v3572 = vpack.c.bf16 %v3516, %v3515
        %v3573 = vpack.c.bf16 %v3518, %v3517
        %v3574 = vpack.c.bf16 %v3520, %v3519
        %v3575 = vpack.c.bf16 %v3522, %v3521
        %v3576 = vpack.c.bf16 %v3524, %v3523
        %v3577 = vpack.c.bf16 %v3526, %v3525
        %v3578 = vpack.c.bf16 %v3528, %v3527
        %v3579 = vpack.c.bf16 %v3530, %v3529
        %v3580 = vpack.c.bf16 %v3532, %v3531
        %v3581 = vpack.c.bf16 %v3534, %v3533
        %v3582 = vpack.c.bf16 %v3536, %v3535
        %v3583 = vpack.c.bf16 %v3538, %v3537
        %v3584 = vpack.c.bf16 %v3540, %v3539
        %v3585 = vpack.c.bf16 %v3542, %v3541
        %v3586 = vpack.c.bf16 %v3544, %v3543
        %v3587 = vpack.c.bf16 %v3546, %v3545
        %v3588 = vpack.c.bf16 %v3548, %v3547
        %v3589 = vpack.c.bf16 %v3550, %v3549
        %v3590 = vpack.c.bf16 %v3552, %v3551
        %v3591 = vpack.c.bf16 %v3554, %v3553
        %v3592 = vpack.c.bf16 %v3556, %v3555
        %v3593 = vpack.c.bf16 %v3558, %v3557
        %v3594 = vpack.c.bf16 %v3560, %v3559
        %v3595 = vpack.c.bf16 %v3562, %v3561
        %v3597 = vlaneseq
        %v3598 = vshrl.u32 %v3597, 7
        %v3599 = vsub.s32 0, %v3598
        %v3600 = vrot.slane %v2956, %v3599
        %v3618 = vunpack.c.l.b16 %v2940
        %v3619 = vunpack.c.l.b16 %v2941
        %v3620 = vunpack.c.l.b16 %v2942
        %v3621 = vunpack.c.l.b16 %v2943
        %v3622 = vunpack.c.l.b16 %v2944
        %v3623 = vunpack.c.l.b16 %v2945
        %v3624 = vunpack.c.l.b16 %v2946
        %v3625 = vunpack.c.l.b16 %v2947
        %v3626 = vunpack.c.l.b16 %v2948
        %v3627 = vunpack.c.l.b16 %v2949
        %v3628 = vunpack.c.l.b16 %v2950
        %v3629 = vunpack.c.l.b16 %v2951
        %v3630 = vunpack.c.l.b16 %v2952
        %v3631 = vunpack.c.l.b16 %v2953
        %v3632 = vunpack.c.l.b16 %v2954
        %v3633 = vunpack.c.l.b16 %v2955
        %v3634 = vpack.c.b16 %v3619, %v3618
        %v3635 = vpack.c.b16 %v3621, %v3620
        %v3636 = vpack.c.b16 %v3623, %v3622
        %v3637 = vpack.c.b16 %v3625, %v3624
        %v3638 = vpack.c.b16 %v3627, %v3626
        %v3639 = vpack.c.b16 %v3629, %v3628
        %v3640 = vpack.c.b16 %v3631, %v3630
        %v3641 = vpack.c.b16 %v3633, %v3632
        %3650 = vmatprep.subr.bf16.mxu0 0
        %3651 = vmatpush1.bf16.msra.mxu0 %v3634
        %3652 = vmatprep.subr.bf16.mxu0 0
        %3653 = vmatpush1.bf16.msra.mxu0 %v3635
        %3654 = vmatprep.subr.bf16.mxu0 0
        %3655 = vmatpush1.bf16.msra.mxu0 %v3636
        %3656 = vmatprep.subr.bf16.mxu0 0
        %3657 = vmatpush1.bf16.msra.mxu0 %v3637
        %3658 = vmatprep.subr.bf16.mxu0 0
        %3659 = vmatpush1.bf16.msra.mxu0 %v3638
        %3660 = vmatprep.subr.bf16.mxu0 0
        %3661 = vmatpush1.bf16.msra.mxu0 %v3639
        %3662 = vmatprep.subr.bf16.mxu0 0
        %3663 = vmatpush1.bf16.msra.mxu0 %v3640
        %3664 = vmatprep.subr.bf16.mxu0 0
        %3665 = vmatpush1.bf16.msra.mxu0 %v3641
        %3666 = vmatprep.subr.bf16.mxu0 0
        %3667 = vmatpush1.bf16.msra.mxu0 0
        %3668 = vmatprep.subr.bf16.mxu0 0
        %3669 = vmatpush1.bf16.msra.mxu0 0
        %3670 = vmatprep.subr.bf16.mxu0 0
        %3671 = vmatpush1.bf16.msra.mxu0 0
        %3672 = vmatprep.subr.bf16.mxu0 0
        %3673 = vmatpush1.bf16.msra.mxu0 0
        %3674 = vmatprep.subr.bf16.mxu0 0
        %3675 = vmatpush1.bf16.msra.mxu0 0
        %3676 = vmatprep.subr.bf16.mxu0 0
        %3677 = vmatpush1.bf16.msra.mxu0 0
        %3678 = vmatprep.subr.bf16.mxu0 0
        %3679 = vmatpush1.bf16.msra.mxu0 0
        %3680 = vmatprep.subr.bf16.mxu0 0
        %3681 = vmatpush1.bf16.msra.mxu0 0
        %3682 = vmatprep.mubr.bf16.mxu0 0
        %3683 = vmatmul.mubr.bf16.gmra.mrb[0].mxu0 %v3563
        %v3684 = vpop.f32.mrb[0].mxu0
        %v3685 = vadd.f32 %v3600, %v3684
        %v3686 = vpop.f32.mrb[0].mxu0
        %v3687 = vpop.f32.mrb[0].mxu0
        %v3688 = vadd.f32 %v3600, %v3687
        %v3689 = vpop.f32.mrb[0].mxu0
        %3690 = vmatprep.mubr.bf16.mxu0 0
        %3691 = vmatmul.mubr.bf16.gmra.mrb[0].mxu0 %v3564
        %v3692 = vpop.f32.mrb[0].mxu0
        %v3693 = vadd.f32 %v3600, %v3692
        %v3694 = vpop.f32.mrb[0].mxu0
        %v3695 = vpop.f32.mrb[0].mxu0
        %v3696 = vadd.f32 %v3600, %v3695
        %v3697 = vpop.f32.mrb[0].mxu0
        %3698 = vmatprep.mubr.bf16.mxu0 0
        %3699 = vmatmul.mubr.bf16.gmra.mrb[0].mxu0 %v3565
        %v3700 = vpop.f32.mrb[0].mxu0
        %v3701 = vadd.f32 %v3600, %v3700
        %v3702 = vpop.f32.mrb[0].mxu0
        %v3703 = vpop.f32.mrb[0].mxu0
        %v3704 = vadd.f32 %v3600, %v3703
        %v3705 = vpop.f32.mrb[0].mxu0
        %3706 = vmatprep.mubr.bf16.mxu0 0
        %3707 = vmatmul.mubr.bf16.gmra.mrb[0].mxu0 %v3566
        %v3708 = vpop.f32.mrb[0].mxu0
        %v3709 = vadd.f32 %v3600, %v3708
        %v3710 = vpop.f32.mrb[0].mxu0
        %v3711 = vpop.f32.mrb[0].mxu0
        %v3712 = vadd.f32 %v3600, %v3711
        %v3713 = vpop.f32.mrb[0].mxu0
        %3714 = vmatprep.mubr.bf16.mxu0 0
        %3715 = vmatmul.mubr.bf16.gmra.mrb[0].mxu0 %v3567
        %v3716 = vpop.f32.mrb[0].mxu0
        %v3717 = vadd.f32 %v3600, %v3716
        %v3718 = vpop.f32.mrb[0].mxu0
        %v3719 = vpop.f32.mrb[0].mxu0
        %v3720 = vadd.f32 %v3600, %v3719
        %v3721 = vpop.f32.mrb[0].mxu0
        %3722 = vmatprep.mubr.bf16.mxu0 0
        %3723 = vmatmul.mubr.bf16.gmra.mrb[0].mxu0 %v3568
        %v3724 = vpop.f32.mrb[0].mxu0
        %v3725 = vadd.f32 %v3600, %v3724
        %v3726 = vpop.f32.mrb[0].mxu0
        %v3727 = vpop.f32.mrb[0].mxu0
        %v3728 = vadd.f32 %v3600, %v3727
        %v3729 = vpop.f32.mrb[0].mxu0
        %3730 = vmatprep.mubr.bf16.mxu0 0
        %3731 = vmatmul.mubr.bf16.gmra.mrb[0].mxu0 %v3569
        %v3732 = vpop.f32.mrb[0].mxu0
        %v3733 = vadd.f32 %v3600, %v3732
        %v3734 = vpop.f32.mrb[0].mxu0
        %v3735 = vpop.f32.mrb[0].mxu0
        %v3736 = vadd.f32 %v3600, %v3735
        %v3737 = vpop.f32.mrb[0].mxu0
        %3738 = vmatprep.mubr.bf16.mxu0 0
        %3739 = vmatmul.mubr.bf16.gmra.mrb[0].mxu0 %v3570
        %v3740 = vpop.f32.mrb[0].mxu0
        %v3741 = vadd.f32 %v3600, %v3740
        %v3742 = vpop.f32.mrb[0].mxu0
        %v3743 = vpop.f32.mrb[0].mxu0
        %v3744 = vadd.f32 %v3600, %v3743
        %v3745 = vpop.f32.mrb[0].mxu0
        %3746 = vmatprep.mubr.bf16.mxu0 0
        %3747 = vmatmul.mubr.bf16.gmra.mrb[0].mxu0 %v3571
        %v3748 = vpop.f32.mrb[0].mxu0
        %v3749 = vadd.f32 %v3600, %v3748
        %v3750 = vpop.f32.mrb[0].mxu0
        %v3751 = vpop.f32.mrb[0].mxu0
        %v3752 = vadd.f32 %v3600, %v3751
        %v3753 = vpop.f32.mrb[0].mxu0
        %3754 = vmatprep.mubr.bf16.mxu0 0
        %3755 = vmatmul.mubr.bf16.gmra.mrb[0].mxu0 %v3572
        %v3756 = vpop.f32.mrb[0].mxu0
        %v3757 = vadd.f32 %v3600, %v3756
        %v3758 = vpop.f32.mrb[0].mxu0
        %v3759 = vpop.f32.mrb[0].mxu0
        %v3760 = vadd.f32 %v3600, %v3759
        %v3761 = vpop.f32.mrb[0].mxu0
        %3762 = vmatprep.mubr.bf16.mxu0 0
        %3763 = vmatmul.mubr.bf16.gmra.mrb[0].mxu0 %v3573
        %v3764 = vpop.f32.mrb[0].mxu0
        %v3765 = vadd.f32 %v3600, %v3764
        %v3766 = vpop.f32.mrb[0].mxu0
        %v3767 = vpop.f32.mrb[0].mxu0
        %v3768 = vadd.f32 %v3600, %v3767
        %v3769 = vpop.f32.mrb[0].mxu0
        %3770 = vmatprep.mubr.bf16.mxu0 0
        %3771 = vmatmul.mubr.bf16.gmra.mrb[0].mxu0 %v3574
        %v3772 = vpop.f32.mrb[0].mxu0
        %v3773 = vadd.f32 %v3600, %v3772
        %v3774 = vpop.f32.mrb[0].mxu0
        %v3775 = vpop.f32.mrb[0].mxu0
        %v3776 = vadd.f32 %v3600, %v3775
        %v3777 = vpop.f32.mrb[0].mxu0
        %3778 = vmatprep.mubr.bf16.mxu0 0
        %3779 = vmatmul.mubr.bf16.gmra.mrb[0].mxu0 %v3575
        %v3780 = vpop.f32.mrb[0].mxu0
        %v3781 = vadd.f32 %v3600, %v3780
        %v3782 = vpop.f32.mrb[0].mxu0
        %v3783 = vpop.f32.mrb[0].mxu0
        %v3784 = vadd.f32 %v3600, %v3783
        %v3785 = vpop.f32.mrb[0].mxu0
        %3786 = vmatprep.mubr.bf16.mxu0 0
        %3787 = vmatmul.mubr.bf16.gmra.mrb[0].mxu0 %v3576
        %v3788 = vpop.f32.mrb[0].mxu0
        %v3789 = vadd.f32 %v3600, %v3788
        %v3790 = vpop.f32.mrb[0].mxu0
        %v3791 = vpop.f32.mrb[0].mxu0
        %v3792 = vadd.f32 %v3600, %v3791
        %v3793 = vpop.f32.mrb[0].mxu0
        %3794 = vmatprep.mubr.bf16.mxu0 0
        %3795 = vmatmul.mubr.bf16.gmra.mrb[0].mxu0 %v3577
        %v3796 = vpop.f32.mrb[0].mxu0
        %v3797 = vadd.f32 %v3600, %v3796
        %v3798 = vpop.f32.mrb[0].mxu0
        %v3799 = vpop.f32.mrb[0].mxu0
        %v3800 = vadd.f32 %v3600, %v3799
        %v3801 = vpop.f32.mrb[0].mxu0
        %3802 = vmatprep.mubr.bf16.mxu0 0
        %3803 = vmatmul.mubr.bf16.gmra.mrb[0].mxu0 %v3578
        %v3804 = vpop.f32.mrb[0].mxu0
        %v3805 = vadd.f32 %v3600, %v3804
        %v3806 = vpop.f32.mrb[0].mxu0
        %v3807 = vpop.f32.mrb[0].mxu0
        %v3808 = vadd.f32 %v3600, %v3807
        %v3809 = vpop.f32.mrb[0].mxu0
        %3810 = vmatprep.mubr.bf16.mxu0 0
        %3811 = vmatmul.mubr.bf16.gmra.mrb[0].mxu0 %v3579
        %v3812 = vpop.f32.mrb[0].mxu0
        %v3813 = vadd.f32 %v3600, %v3812
        %v3814 = vpop.f32.mrb[0].mxu0
        %v3815 = vpop.f32.mrb[0].mxu0
        %v3816 = vadd.f32 %v3600, %v3815
        %v3817 = vpop.f32.mrb[0].mxu0
        %3818 = vmatprep.mubr.bf16.mxu0 0
        %3819 = vmatmul.mubr.bf16.gmra.mrb[0].mxu0 %v3580
        %v3820 = vpop.f32.mrb[0].mxu0
        %v3821 = vadd.f32 %v3600, %v3820
        %v3822 = vpop.f32.mrb[0].mxu0
        %v3823 = vpop.f32.mrb[0].mxu0
        %v3824 = vadd.f32 %v3600, %v3823
        %v3825 = vpop.f32.mrb[0].mxu0
        %3826 = vmatprep.mubr.bf16.mxu0 0
        %3827 = vmatmul.mubr.bf16.gmra.mrb[0].mxu0 %v3581
        %v3828 = vpop.f32.mrb[0].mxu0
        %v3829 = vadd.f32 %v3600, %v3828
        %v3830 = vpop.f32.mrb[0].mxu0
        %v3831 = vpop.f32.mrb[0].mxu0
        %v3832 = vadd.f32 %v3600, %v3831
        %v3833 = vpop.f32.mrb[0].mxu0
        %3834 = vmatprep.mubr.bf16.mxu0 0
        %3835 = vmatmul.mubr.bf16.gmra.mrb[0].mxu0 %v3582
        %v3836 = vpop.f32.mrb[0].mxu0
        %v3837 = vadd.f32 %v3600, %v3836
        %v3838 = vpop.f32.mrb[0].mxu0
        %v3839 = vpop.f32.mrb[0].mxu0
        %v3840 = vadd.f32 %v3600, %v3839
        %v3841 = vpop.f32.mrb[0].mxu0
        %3842 = vmatprep.mubr.bf16.mxu0 0
        %3843 = vmatmul.mubr.bf16.gmra.mrb[0].mxu0 %v3583
        %v3844 = vpop.f32.mrb[0].mxu0
        %v3845 = vadd.f32 %v3600, %v3844
        %v3846 = vpop.f32.mrb[0].mxu0
        %v3847 = vpop.f32.mrb[0].mxu0
        %v3848 = vadd.f32 %v3600, %v3847
        %v3849 = vpop.f32.mrb[0].mxu0
        %3850 = vmatprep.mubr.bf16.mxu0 0
        %3851 = vmatmul.mubr.bf16.gmra.mrb[0].mxu0 %v3584
        %v3852 = vpop.f32.mrb[0].mxu0
        %v3853 = vadd.f32 %v3600, %v3852
        %v3854 = vpop.f32.mrb[0].mxu0
        %v3855 = vpop.f32.mrb[0].mxu0
        %v3856 = vadd.f32 %v3600, %v3855
        %v3857 = vpop.f32.mrb[0].mxu0
        %3858 = vmatprep.mubr.bf16.mxu0 0
        %3859 = vmatmul.mubr.bf16.gmra.mrb[0].mxu0 %v3585
        %v3860 = vpop.f32.mrb[0].mxu0
        %v3861 = vadd.f32 %v3600, %v3860
        %v3862 = vpop.f32.mrb[0].mxu0
        %v3863 = vpop.f32.mrb[0].mxu0
        %v3864 = vadd.f32 %v3600, %v3863
        %v3865 = vpop.f32.mrb[0].mxu0
        %3866 = vmatprep.mubr.bf16.mxu0 0
        %3867 = vmatmul.mubr.bf16.gmra.mrb[0].mxu0 %v3586
        %v3868 = vpop.f32.mrb[0].mxu0
        %v3869 = vadd.f32 %v3600, %v3868
        %v3870 = vpop.f32.mrb[0].mxu0
        %v3871 = vpop.f32.mrb[0].mxu0
        %v3872 = vadd.f32 %v3600, %v3871
        %v3873 = vpop.f32.mrb[0].mxu0
        %3874 = vmatprep.mubr.bf16.mxu0 0
        %3875 = vmatmul.mubr.bf16.gmra.mrb[0].mxu0 %v3587
        %v3876 = vpop.f32.mrb[0].mxu0
        %v3877 = vadd.f32 %v3600, %v3876
        %v3878 = vpop.f32.mrb[0].mxu0
        %v3879 = vpop.f32.mrb[0].mxu0
        %v3880 = vadd.f32 %v3600, %v3879
        %v3881 = vpop.f32.mrb[0].mxu0
        %3882 = vmatprep.mubr.bf16.mxu0 0
        %3883 = vmatmul.mubr.bf16.gmra.mrb[0].mxu0 %v3588
        %v3884 = vpop.f32.mrb[0].mxu0
        %v3885 = vadd.f32 %v3600, %v3884
        %v3886 = vpop.f32.mrb[0].mxu0
        %v3887 = vpop.f32.mrb[0].mxu0
        %v3888 = vadd.f32 %v3600, %v3887
        %v3889 = vpop.f32.mrb[0].mxu0
        %3890 = vmatprep.mubr.bf16.mxu0 0
        %3891 = vmatmul.mubr.bf16.gmra.mrb[0].mxu0 %v3589
        %v3892 = vpop.f32.mrb[0].mxu0
        %v3893 = vadd.f32 %v3600, %v3892
        %v3894 = vpop.f32.mrb[0].mxu0
        %v3895 = vpop.f32.mrb[0].mxu0
        %v3896 = vadd.f32 %v3600, %v3895
        %v3897 = vpop.f32.mrb[0].mxu0
        %3898 = vmatprep.mubr.bf16.mxu0 0
        %3899 = vmatmul.mubr.bf16.gmra.mrb[0].mxu0 %v3590
        %v3900 = vpop.f32.mrb[0].mxu0
        %v3901 = vadd.f32 %v3600, %v3900
        %v3902 = vpop.f32.mrb[0].mxu0
        %v3903 = vpop.f32.mrb[0].mxu0
        %v3904 = vadd.f32 %v3600, %v3903
        %v3905 = vpop.f32.mrb[0].mxu0
        %3906 = vmatprep.mubr.bf16.mxu0 0
        %3907 = vmatmul.mubr.bf16.gmra.mrb[0].mxu0 %v3591
        %v3908 = vpop.f32.mrb[0].mxu0
        %v3909 = vadd.f32 %v3600, %v3908
        %v3910 = vpop.f32.mrb[0].mxu0
        %v3911 = vpop.f32.mrb[0].mxu0
        %v3912 = vadd.f32 %v3600, %v3911
        %v3913 = vpop.f32.mrb[0].mxu0
        %3914 = vmatprep.mubr.bf16.mxu0 0
        %3915 = vmatmul.mubr.bf16.gmra.mrb[0].mxu0 %v3592
        %v3916 = vpop.f32.mrb[0].mxu0
        %v3917 = vadd.f32 %v3600, %v3916
        %v3918 = vpop.f32.mrb[0].mxu0
        %v3919 = vpop.f32.mrb[0].mxu0
        %v3920 = vadd.f32 %v3600, %v3919
        %v3921 = vpop.f32.mrb[0].mxu0
        %3922 = vmatprep.mubr.bf16.mxu0 0
        %3923 = vmatmul.mubr.bf16.gmra.mrb[0].mxu0 %v3593
        %v3924 = vpop.f32.mrb[0].mxu0
        %v3925 = vadd.f32 %v3600, %v3924
        %v3926 = vpop.f32.mrb[0].mxu0
        %v3927 = vpop.f32.mrb[0].mxu0
        %v3928 = vadd.f32 %v3600, %v3927
        %v3929 = vpop.f32.mrb[0].mxu0
        %3930 = vmatprep.mubr.bf16.mxu0 0
        %3931 = vmatmul.mubr.bf16.gmra.mrb[0].mxu0 %v3594
        %v3932 = vpop.f32.mrb[0].mxu0
        %v3933 = vadd.f32 %v3600, %v3932
        %v3934 = vpop.f32.mrb[0].mxu0
        %v3935 = vpop.f32.mrb[0].mxu0
        %v3936 = vadd.f32 %v3600, %v3935
        %v3937 = vpop.f32.mrb[0].mxu0
        %3938 = vmatprep.mubr.bf16.mxu0 0
        %3939 = vmatmul.mubr.bf16.gmra.mrb[0].mxu0 %v3595
        %v3940 = vpop.f32.mrb[0].mxu0
        %v3941 = vadd.f32 %v3600, %v3940
        %v3942 = vpop.f32.mrb[0].mxu0
        %v3943 = vpop.f32.mrb[0].mxu0
        %v3944 = vadd.f32 %v3600, %v3943
        %v3945 = vpop.f32.mrb[0].mxu0
        %3946 = vdwg.mxu0
        %v3947 = vmax.f32 %v3685, 0.0
        %v3948 = vmax.f32 %v3688, 0.0
        %v3949 = vmax.f32 %v3693, 0.0
        %v3950 = vmax.f32 %v3696, 0.0
        %v3951 = vmax.f32 %v3701, 0.0
        %v3952 = vmax.f32 %v3704, 0.0
        %v3953 = vmax.f32 %v3709, 0.0
        %v3954 = vmax.f32 %v3712, 0.0
        %v3955 = vmax.f32 %v3717, 0.0
        %v3956 = vmax.f32 %v3720, 0.0
        %v3957 = vmax.f32 %v3725, 0.0
        %v3958 = vmax.f32 %v3728, 0.0
        %v3959 = vmax.f32 %v3733, 0.0
        %v3960 = vmax.f32 %v3736, 0.0
        %v3961 = vmax.f32 %v3741, 0.0
        %v3962 = vmax.f32 %v3744, 0.0
        %v3963 = vmax.f32 %v3749, 0.0
        %v3964 = vmax.f32 %v3752, 0.0
        %v3965 = vmax.f32 %v3757, 0.0
        %v3966 = vmax.f32 %v3760, 0.0
        %v3967 = vmax.f32 %v3765, 0.0
        %v3968 = vmax.f32 %v3768, 0.0
        %v3969 = vmax.f32 %v3773, 0.0
        %v3970 = vmax.f32 %v3776, 0.0
        %v3971 = vmax.f32 %v3781, 0.0
        %v3972 = vmax.f32 %v3784, 0.0
        %v3973 = vmax.f32 %v3789, 0.0
        %v3974 = vmax.f32 %v3792, 0.0
        %v3975 = vmax.f32 %v3797, 0.0
        %v3976 = vmax.f32 %v3800, 0.0
        %v3977 = vmax.f32 %v3805, 0.0
        %v3978 = vmax.f32 %v3808, 0.0
        %v3979 = vmax.f32 %v3813, 0.0
        %v3980 = vmax.f32 %v3816, 0.0
        %v3981 = vmax.f32 %v3821, 0.0
        %v3982 = vmax.f32 %v3824, 0.0
        %v3983 = vmax.f32 %v3829, 0.0
        %v3984 = vmax.f32 %v3832, 0.0
        %v3985 = vmax.f32 %v3837, 0.0
        %v3986 = vmax.f32 %v3840, 0.0
        %v3987 = vmax.f32 %v3845, 0.0
        %v3988 = vmax.f32 %v3848, 0.0
        %v3989 = vmax.f32 %v3853, 0.0
        %v3990 = vmax.f32 %v3856, 0.0
        %v3991 = vmax.f32 %v3861, 0.0
        %v3992 = vmax.f32 %v3864, 0.0
        %v3993 = vmax.f32 %v3869, 0.0
        %v3994 = vmax.f32 %v3872, 0.0
        %v3995 = vmax.f32 %v3877, 0.0
        %v3996 = vmax.f32 %v3880, 0.0
        %v3997 = vmax.f32 %v3885, 0.0
        %v3998 = vmax.f32 %v3888, 0.0
        %v3999 = vmax.f32 %v3893, 0.0
        %v4000 = vmax.f32 %v3896, 0.0
        %v4001 = vmax.f32 %v3901, 0.0
        %v4002 = vmax.f32 %v3904, 0.0
        %v4003 = vmax.f32 %v3909, 0.0
        %v4004 = vmax.f32 %v3912, 0.0
        %v4005 = vmax.f32 %v3917, 0.0
        %v4006 = vmax.f32 %v3920, 0.0
        %v4007 = vmax.f32 %v3925, 0.0
        %v4008 = vmax.f32 %v3928, 0.0
        %v4009 = vmax.f32 %v3933, 0.0
        %v4010 = vmax.f32 %v3936, 0.0
        %v4011 = vmax.f32 %v3941, 0.0
        %v4012 = vmax.f32 %v3944, 0.0
        %4013 = vst [vmem:[#allocation2] sm:$0xff] %v3947
        %4014 = vst [vmem:[#allocation2 + $0x8] sm:$0xff] %v3948
        %4015 = vst [vmem:[#allocation2 + $0x10] sm:$0xff] %v3949
        %4016 = vst [vmem:[#allocation2 + $0x18] sm:$0xff] %v3950
        %4017 = vst [vmem:[#allocation2 + $0x20] sm:$0xff] %v3951
        %4018 = vst [vmem:[#allocation2 + $0x28] sm:$0xff] %v3952
        %4019 = vst [vmem:[#allocation2 + $0x30] sm:$0xff] %v3953
        %4020 = vst [vmem:[#allocation2 + $0x38] sm:$0xff] %v3954
        %4021 = vst [vmem:[#allocation2 + $0x40] sm:$0xff] %v3955
        %4022 = vst [vmem:[#allocation2 + $0x48] sm:$0xff] %v3956
        %4023 = vst [vmem:[#allocation2 + $0x50] sm:$0xff] %v3957
        %4024 = vst [vmem:[#allocation2 + $0x58] sm:$0xff] %v3958
        %4025 = vst [vmem:[#allocation2 + $0x60] sm:$0xff] %v3959
        %4026 = vst [vmem:[#allocation2 + $0x68] sm:$0xff] %v3960
        %4027 = vst [vmem:[#allocation2 + $0x70] sm:$0xff] %v3961
        %4028 = vst [vmem:[#allocation2 + $0x78] sm:$0xff] %v3962
        %4029 = vst [vmem:[#allocation2 + $0x80] sm:$0xff] %v3963
        %4030 = vst [vmem:[#allocation2 + $0x88] sm:$0xff] %v3964
        %4031 = vst [vmem:[#allocation2 + $0x90] sm:$0xff] %v3965
        %4032 = vst [vmem:[#allocation2 + $0x98] sm:$0xff] %v3966
        %4033 = vst [vmem:[#allocation2 + $0xa0] sm:$0xff] %v3967
        %4034 = vst [vmem:[#allocation2 + $0xa8] sm:$0xff] %v3968
        %4035 = vst [vmem:[#allocation2 + $0xb0] sm:$0xff] %v3969
        %4036 = vst [vmem:[#allocation2 + $0xb8] sm:$0xff] %v3970
        %4037 = vst [vmem:[#allocation2 + $0xc0] sm:$0xff] %v3971
        %4038 = vst [vmem:[#allocation2 + $0xc8] sm:$0xff] %v3972
        %4039 = vst [vmem:[#allocation2 + $0xd0] sm:$0xff] %v3973
        %4040 = vst [vmem:[#allocation2 + $0xd8] sm:$0xff] %v3974
        %4041 = vst [vmem:[#allocation2 + $0xe0] sm:$0xff] %v3975
        %4042 = vst [vmem:[#allocation2 + $0xe8] sm:$0xff] %v3976
        %4043 = vst [vmem:[#allocation2 + $0xf0] sm:$0xff] %v3977
        %4044 = vst [vmem:[#allocation2 + $0xf8] sm:$0xff] %v3978
        %4045 = vst [vmem:[#allocation2 + $0x100] sm:$0xff] %v3979
        %4046 = vst [vmem:[#allocation2 + $0x108] sm:$0xff] %v3980
        %4047 = vst [vmem:[#allocation2 + $0x110] sm:$0xff] %v3981
        %4048 = vst [vmem:[#allocation2 + $0x118] sm:$0xff] %v3982
        %4049 = vst [vmem:[#allocation2 + $0x120] sm:$0xff] %v3983
        %4050 = vst [vmem:[#allocation2 + $0x128] sm:$0xff] %v3984
        %4051 = vst [vmem:[#allocation2 + $0x130] sm:$0xff] %v3985
        %4052 = vst [vmem:[#allocation2 + $0x138] sm:$0xff] %v3986
        %4053 = vst [vmem:[#allocation2 + $0x140] sm:$0xff] %v3987
        %4054 = vst [vmem:[#allocation2 + $0x148] sm:$0xff] %v3988
        %4055 = vst [vmem:[#allocation2 + $0x150] sm:$0xff] %v3989
        %4056 = vst [vmem:[#allocation2 + $0x158] sm:$0xff] %v3990
        %4057 = vst [vmem:[#allocation2 + $0x160] sm:$0xff] %v3991
        %4058 = vst [vmem:[#allocation2 + $0x168] sm:$0xff] %v3992
        %4059 = vst [vmem:[#allocation2 + $0x170] sm:$0xff] %v3993
        %4060 = vst [vmem:[#allocation2 + $0x178] sm:$0xff] %v3994
        %4061 = vst [vmem:[#allocation2 + $0x180] sm:$0xff] %v3995
        %4062 = vst [vmem:[#allocation2 + $0x188] sm:$0xff] %v3996
        %4063 = vst [vmem:[#allocation2 + $0x190] sm:$0xff] %v3997
        %4064 = vst [vmem:[#allocation2 + $0x198] sm:$0xff] %v3998
        %4065 = vst [vmem:[#allocation2 + $0x1a0] sm:$0xff] %v3999
        %4066 = vst [vmem:[#allocation2 + $0x1a8] sm:$0xff] %v4000
        %4067 = vst [vmem:[#allocation2 + $0x1b0] sm:$0xff] %v4001
        %4068 = vst [vmem:[#allocation2 + $0x1b8] sm:$0xff] %v4002
        %4069 = vst [vmem:[#allocation2 + $0x1c0] sm:$0xff] %v4003
        %4070 = vst [vmem:[#allocation2 + $0x1c8] sm:$0xff] %v4004
        %4071 = vst [vmem:[#allocation2 + $0x1d0] sm:$0xff] %v4005
        %4072 = vst [vmem:[#allocation2 + $0x1d8] sm:$0xff] %v4006
        %4073 = vst [vmem:[#allocation2 + $0x1e0] sm:$0xff] %v4007
        %4074 = vst [vmem:[#allocation2 + $0x1e8] sm:$0xff] %v4008
        %4075 = vst [vmem:[#allocation2 + $0x1f0] sm:$0xff] %v4009
        %4076 = vst [vmem:[#allocation2 + $0x1f8] sm:$0xff] %v4010
        %4077 = vst [vmem:[#allocation2 + $0x200] sm:$0xff] %v4011
        %4078 = vst [vmem:[#allocation2 + $0x208] sm:$0xff] %v4012
        // Predicated region
        $region101: #{tpu_custom_call.1} parent=63 // pred_check
          %p4079 = pneg %p600
        $region102: #{tpu_custom_call.1} parent=63 // pred_check_branch
          %4081 = sbr.rel (%p4079) target = $region104
        $region103: #{tpu_custom_call.1} parent=63 // pred_region
          %v4082 = vld [vmem:[#allocation2] sm:$0xff]
          %v4083 = vld [vmem:[#allocation2 + $0x8] sm:$0xff]
          %v4084 = vld [vmem:[#allocation2 + $0x10] sm:$0xff]
          %v4085 = vld [vmem:[#allocation2 + $0x18] sm:$0xff]
          %v4086 = vld [vmem:[#allocation2 + $0x20] sm:$0xff]
          %v4087 = vld [vmem:[#allocation2 + $0x28] sm:$0xff]
          %v4088 = vld [vmem:[#allocation2 + $0x30] sm:$0xff]
          %v4089 = vld [vmem:[#allocation2 + $0x38] sm:$0xff]
          %v4090 = vld [vmem:[#allocation2 + $0x40] sm:$0xff]
          %v4091 = vld [vmem:[#allocation2 + $0x48] sm:$0xff]
          %v4092 = vld [vmem:[#allocation2 + $0x50] sm:$0xff]
          %v4093 = vld [vmem:[#allocation2 + $0x58] sm:$0xff]
          %v4094 = vld [vmem:[#allocation2 + $0x60] sm:$0xff]
          %v4095 = vld [vmem:[#allocation2 + $0x68] sm:$0xff]
          %v4096 = vld [vmem:[#allocation2 + $0x70] sm:$0xff]
          %v4097 = vld [vmem:[#allocation2 + $0x78] sm:$0xff]
          %v4098 = vld [vmem:[#allocation2 + $0x80] sm:$0xff]
          %v4099 = vld [vmem:[#allocation2 + $0x88] sm:$0xff]
          %v4100 = vld [vmem:[#allocation2 + $0x90] sm:$0xff]
          %v4101 = vld [vmem:[#allocation2 + $0x98] sm:$0xff]
          %v4102 = vld [vmem:[#allocation2 + $0xa0] sm:$0xff]
          %v4103 = vld [vmem:[#allocation2 + $0xa8] sm:$0xff]
          %v4104 = vld [vmem:[#allocation2 + $0xb0] sm:$0xff]
          %v4105 = vld [vmem:[#allocation2 + $0xb8] sm:$0xff]
          %v4106 = vld [vmem:[#allocation2 + $0xc0] sm:$0xff]
          %v4107 = vld [vmem:[#allocation2 + $0xc8] sm:$0xff]
          %v4108 = vld [vmem:[#allocation2 + $0xd0] sm:$0xff]
          %v4109 = vld [vmem:[#allocation2 + $0xd8] sm:$0xff]
          %v4110 = vld [vmem:[#allocation2 + $0xe0] sm:$0xff]
          %v4111 = vld [vmem:[#allocation2 + $0xe8] sm:$0xff]
          %v4112 = vld [vmem:[#allocation2 + $0xf0] sm:$0xff]
          %v4113 = vld [vmem:[#allocation2 + $0xf8] sm:$0xff]
          %v4114 = vld [vmem:[#allocation2 + $0x100] sm:$0xff]
          %v4115 = vld [vmem:[#allocation2 + $0x108] sm:$0xff]
          %v4116 = vld [vmem:[#allocation2 + $0x110] sm:$0xff]
          %v4117 = vld [vmem:[#allocation2 + $0x118] sm:$0xff]
          %v4118 = vld [vmem:[#allocation2 + $0x120] sm:$0xff]
          %v4119 = vld [vmem:[#allocation2 + $0x128] sm:$0xff]
          %v4120 = vld [vmem:[#allocation2 + $0x130] sm:$0xff]
          %v4121 = vld [vmem:[#allocation2 + $0x138] sm:$0xff]
          %v4122 = vld [vmem:[#allocation2 + $0x140] sm:$0xff]
          %v4123 = vld [vmem:[#allocation2 + $0x148] sm:$0xff]
          %v4124 = vld [vmem:[#allocation2 + $0x150] sm:$0xff]
          %v4125 = vld [vmem:[#allocation2 + $0x158] sm:$0xff]
          %v4126 = vld [vmem:[#allocation2 + $0x160] sm:$0xff]
          %v4127 = vld [vmem:[#allocation2 + $0x168] sm:$0xff]
          %v4128 = vld [vmem:[#allocation2 + $0x170] sm:$0xff]
          %v4129 = vld [vmem:[#allocation2 + $0x178] sm:$0xff]
          %v4130 = vld [vmem:[#allocation2 + $0x180] sm:$0xff]
          %v4131 = vld [vmem:[#allocation2 + $0x188] sm:$0xff]
          %v4132 = vld [vmem:[#allocation2 + $0x190] sm:$0xff]
          %v4133 = vld [vmem:[#allocation2 + $0x198] sm:$0xff]
          %v4134 = vld [vmem:[#allocation2 + $0x1a0] sm:$0xff]
          %v4135 = vld [vmem:[#allocation2 + $0x1a8] sm:$0xff]
          %v4136 = vld [vmem:[#allocation2 + $0x1b0] sm:$0xff]
          %v4137 = vld [vmem:[#allocation2 + $0x1b8] sm:$0xff]
          %v4138 = vld [vmem:[#allocation2 + $0x1c0] sm:$0xff]
          %v4139 = vld [vmem:[#allocation2 + $0x1c8] sm:$0xff]
          %v4140 = vld [vmem:[#allocation2 + $0x1d0] sm:$0xff]
          %v4141 = vld [vmem:[#allocation2 + $0x1d8] sm:$0xff]
          %v4142 = vld [vmem:[#allocation2 + $0x1e0] sm:$0xff]
          %v4143 = vld [vmem:[#allocation2 + $0x1e8] sm:$0xff]
          %v4144 = vld [vmem:[#allocation2 + $0x1f0] sm:$0xff]
          %v4145 = vld [vmem:[#allocation2 + $0x1f8] sm:$0xff]
          %v4146 = vld [vmem:[#allocation2 + $0x200] sm:$0xff]
          %v4147 = vld [vmem:[#allocation2 + $0x208] sm:$0xff]
          %v4148 = vmul.f32 %v4082, %v999
          %v4149 = vmul.f32 %v4083, %v1000
          %v4150 = vmul.f32 %v4084, %v1001
          %v4151 = vmul.f32 %v4085, %v1002
          %v4152 = vmul.f32 %v4086, %v1003
          %v4153 = vmul.f32 %v4087, %v1004
          %v4154 = vmul.f32 %v4088, %v1005
          %v4155 = vmul.f32 %v4089, %v1006
          %v4156 = vmul.f32 %v4090, %v1007
          %v4157 = vmul.f32 %v4091, %v1008
          %v4158 = vmul.f32 %v4092, %v1009
          %v4159 = vmul.f32 %v4093, %v1010
          %v4160 = vmul.f32 %v4094, %v1011
          %v4161 = vmul.f32 %v4095, %v1012
          %v4162 = vmul.f32 %v4096, %v1013
          %v4163 = vmul.f32 %v4097, %v1014
          %v4164 = vmul.f32 %v4098, %v1015
          %v4165 = vmul.f32 %v4099, %v1016
          %v4166 = vmul.f32 %v4100, %v1017
          %v4167 = vmul.f32 %v4101, %v1018
          %v4168 = vmul.f32 %v4102, %v1019
          %v4169 = vmul.f32 %v4103, %v1020
          %v4170 = vmul.f32 %v4104, %v1021
          %v4171 = vmul.f32 %v4105, %v1022
          %v4172 = vmul.f32 %v4106, %v1023
          %v4173 = vmul.f32 %v4107, %v1024
          %v4174 = vmul.f32 %v4108, %v1025
          %v4175 = vmul.f32 %v4109, %v1026
          %v4176 = vmul.f32 %v4110, %v1027
          %v4177 = vmul.f32 %v4111, %v1028
          %v4178 = vmul.f32 %v4112, %v1029
          %v4179 = vmul.f32 %v4113, %v1030
          %v4180 = vmul.f32 %v4114, %v1031
          %v4181 = vmul.f32 %v4115, %v1032
          %v4182 = vmul.f32 %v4116, %v1033
          %v4183 = vmul.f32 %v4117, %v1034
          %v4184 = vmul.f32 %v4118, %v1035
          %v4185 = vmul.f32 %v4119, %v1036
          %v4186 = vmul.f32 %v4120, %v1037
          %v4187 = vmul.f32 %v4121, %v1038
          %v4188 = vmul.f32 %v4122, %v1039
          %v4189 = vmul.f32 %v4123, %v1040
          %v4190 = vmul.f32 %v4124, %v1041
          %v4191 = vmul.f32 %v4125, %v1042
          %v4192 = vmul.f32 %v4126, %v1043
          %v4193 = vmul.f32 %v4127, %v1044
          %v4194 = vmul.f32 %v4128, %v1045
          %v4195 = vmul.f32 %v4129, %v1046
          %v4196 = vmul.f32 %v4130, %v1047
          %v4197 = vmul.f32 %v4131, %v1048
          %v4198 = vmul.f32 %v4132, %v1049
          %v4199 = vmul.f32 %v4133, %v1050
          %v4200 = vmul.f32 %v4134, %v1051
          %v4201 = vmul.f32 %v4135, %v1052
          %v4202 = vmul.f32 %v4136, %v1053
          %v4203 = vmul.f32 %v4137, %v1054
          %v4204 = vmul.f32 %v4138, %v1055
          %v4205 = vmul.f32 %v4139, %v1056
          %v4206 = vmul.f32 %v4140, %v1057
          %v4207 = vmul.f32 %v4141, %v1058
          %v4208 = vmul.f32 %v4142, %v1059
          %v4209 = vmul.f32 %v4143, %v1060
          %v4210 = vmul.f32 %v4144, %v1061
          %v4211 = vmul.f32 %v4145, %v1062
          %v4212 = vmul.f32 %v4146, %v1063
          %v4213 = vmul.f32 %v4147, %v1064
          %4214 = vst [vmem:[#allocation2] sm:$0xff] %v4148
          %4215 = vst [vmem:[#allocation2 + $0x8] sm:$0xff] %v4149
          %4216 = vst [vmem:[#allocation2 + $0x10] sm:$0xff] %v4150
          %4217 = vst [vmem:[#allocation2 + $0x18] sm:$0xff] %v4151
          %4218 = vst [vmem:[#allocation2 + $0x20] sm:$0xff] %v4152
          %4219 = vst [vmem:[#allocation2 + $0x28] sm:$0xff] %v4153
          %4220 = vst [vmem:[#allocation2 + $0x30] sm:$0xff] %v4154
          %4221 = vst [vmem:[#allocation2 + $0x38] sm:$0xff] %v4155
          %4222 = vst [vmem:[#allocation2 + $0x40] sm:$0xff] %v4156
          %4223 = vst [vmem:[#allocation2 + $0x48] sm:$0xff] %v4157
          %4224 = vst [vmem:[#allocation2 + $0x50] sm:$0xff] %v4158
          %4225 = vst [vmem:[#allocation2 + $0x58] sm:$0xff] %v4159
          %4226 = vst [vmem:[#allocation2 + $0x60] sm:$0xff] %v4160
          %4227 = vst [vmem:[#allocation2 + $0x68] sm:$0xff] %v4161
          %4228 = vst [vmem:[#allocation2 + $0x70] sm:$0xff] %v4162
          %4229 = vst [vmem:[#allocation2 + $0x78] sm:$0xff] %v4163
          %4230 = vst [vmem:[#allocation2 + $0x80] sm:$0xff] %v4164
          %4231 = vst [vmem:[#allocation2 + $0x88] sm:$0xff] %v4165
          %4232 = vst [vmem:[#allocation2 + $0x90] sm:$0xff] %v4166
          %4233 = vst [vmem:[#allocation2 + $0x98] sm:$0xff] %v4167
          %4234 = vst [vmem:[#allocation2 + $0xa0] sm:$0xff] %v4168
          %4235 = vst [vmem:[#allocation2 + $0xa8] sm:$0xff] %v4169
          %4236 = vst [vmem:[#allocation2 + $0xb0] sm:$0xff] %v4170
          %4237 = vst [vmem:[#allocation2 + $0xb8] sm:$0xff] %v4171
          %4238 = vst [vmem:[#allocation2 + $0xc0] sm:$0xff] %v4172
          %4239 = vst [vmem:[#allocation2 + $0xc8] sm:$0xff] %v4173
          %4240 = vst [vmem:[#allocation2 + $0xd0] sm:$0xff] %v4174
          %4241 = vst [vmem:[#allocation2 + $0xd8] sm:$0xff] %v4175
          %4242 = vst [vmem:[#allocation2 + $0xe0] sm:$0xff] %v4176
          %4243 = vst [vmem:[#allocation2 + $0xe8] sm:$0xff] %v4177
          %4244 = vst [vmem:[#allocation2 + $0xf0] sm:$0xff] %v4178
          %4245 = vst [vmem:[#allocation2 + $0xf8] sm:$0xff] %v4179
          %4246 = vst [vmem:[#allocation2 + $0x100] sm:$0xff] %v4180
          %4247 = vst [vmem:[#allocation2 + $0x108] sm:$0xff] %v4181
          %4248 = vst [vmem:[#allocation2 + $0x110] sm:$0xff] %v4182
          %4249 = vst [vmem:[#allocation2 + $0x118] sm:$0xff] %v4183
          %4250 = vst [vmem:[#allocation2 + $0x120] sm:$0xff] %v4184
          %4251 = vst [vmem:[#allocation2 + $0x128] sm:$0xff] %v4185
          %4252 = vst [vmem:[#allocation2 + $0x130] sm:$0xff] %v4186
          %4253 = vst [vmem:[#allocation2 + $0x138] sm:$0xff] %v4187
          %4254 = vst [vmem:[#allocation2 + $0x140] sm:$0xff] %v4188
          %4255 = vst [vmem:[#allocation2 + $0x148] sm:$0xff] %v4189
          %4256 = vst [vmem:[#allocation2 + $0x150] sm:$0xff] %v4190
          %4257 = vst [vmem:[#allocation2 + $0x158] sm:$0xff] %v4191
          %4258 = vst [vmem:[#allocation2 + $0x160] sm:$0xff] %v4192
          %4259 = vst [vmem:[#allocation2 + $0x168] sm:$0xff] %v4193
          %4260 = vst [vmem:[#allocation2 + $0x170] sm:$0xff] %v4194
          %4261 = vst [vmem:[#allocation2 + $0x178] sm:$0xff] %v4195
          %4262 = vst [vmem:[#allocation2 + $0x180] sm:$0xff] %v4196
          %4263 = vst [vmem:[#allocation2 + $0x188] sm:$0xff] %v4197
          %4264 = vst [vmem:[#allocation2 + $0x190] sm:$0xff] %v4198
          %4265 = vst [vmem:[#allocation2 + $0x198] sm:$0xff] %v4199
          %4266 = vst [vmem:[#allocation2 + $0x1a0] sm:$0xff] %v4200
          %4267 = vst [vmem:[#allocation2 + $0x1a8] sm:$0xff] %v4201
          %4268 = vst [vmem:[#allocation2 + $0x1b0] sm:$0xff] %v4202
          %4269 = vst [vmem:[#allocation2 + $0x1b8] sm:$0xff] %v4203
          %4270 = vst [vmem:[#allocation2 + $0x1c0] sm:$0xff] %v4204
          %4271 = vst [vmem:[#allocation2 + $0x1c8] sm:$0xff] %v4205
          %4272 = vst [vmem:[#allocation2 + $0x1d0] sm:$0xff] %v4206
          %4273 = vst [vmem:[#allocation2 + $0x1d8] sm:$0xff] %v4207
          %4274 = vst [vmem:[#allocation2 + $0x1e0] sm:$0xff] %v4208
          %4275 = vst [vmem:[#allocation2 + $0x1e8] sm:$0xff] %v4209
          %4276 = vst [vmem:[#allocation2 + $0x1f0] sm:$0xff] %v4210
          %4277 = vst [vmem:[#allocation2 + $0x1f8] sm:$0xff] %v4211
          %4278 = vst [vmem:[#allocation2 + $0x200] sm:$0xff] %v4212
          %4279 = vst [vmem:[#allocation2 + $0x208] sm:$0xff] %v4213
        $region104: #{tpu_custom_call.1} parent=63 // pred_fallthru
          _
        %v4280 = vld [vmem:[#allocation2] sm:$0xff]
        %v4281 = vld [vmem:[#allocation2 + $0x8] sm:$0xff]
        %v4282 = vld [vmem:[#allocation2 + $0x10] sm:$0xff]
        %v4283 = vld [vmem:[#allocation2 + $0x18] sm:$0xff]
        %v4284 = vld [vmem:[#allocation2 + $0x20] sm:$0xff]
        %v4285 = vld [vmem:[#allocation2 + $0x28] sm:$0xff]
        %v4286 = vld [vmem:[#allocation2 + $0x30] sm:$0xff]
        %v4287 = vld [vmem:[#allocation2 + $0x38] sm:$0xff]
        %v4288 = vld [vmem:[#allocation2 + $0x40] sm:$0xff]
        %v4289 = vld [vmem:[#allocation2 + $0x48] sm:$0xff]
        %v4290 = vld [vmem:[#allocation2 + $0x50] sm:$0xff]
        %v4291 = vld [vmem:[#allocation2 + $0x58] sm:$0xff]
        %v4292 = vld [vmem:[#allocation2 + $0x60] sm:$0xff]
        %v4293 = vld [vmem:[#allocation2 + $0x68] sm:$0xff]
        %v4294 = vld [vmem:[#allocation2 + $0x70] sm:$0xff]
        %v4295 = vld [vmem:[#allocation2 + $0x78] sm:$0xff]
        %v4296 = vld [vmem:[#allocation2 + $0x80] sm:$0xff]
        %v4297 = vld [vmem:[#allocation2 + $0x88] sm:$0xff]
        %v4298 = vld [vmem:[#allocation2 + $0x90] sm:$0xff]
        %v4299 = vld [vmem:[#allocation2 + $0x98] sm:$0xff]
        %v4300 = vld [vmem:[#allocation2 + $0xa0] sm:$0xff]
        %v4301 = vld [vmem:[#allocation2 + $0xa8] sm:$0xff]
        %v4302 = vld [vmem:[#allocation2 + $0xb0] sm:$0xff]
        %v4303 = vld [vmem:[#allocation2 + $0xb8] sm:$0xff]
        %v4304 = vld [vmem:[#allocation2 + $0xc0] sm:$0xff]
        %v4305 = vld [vmem:[#allocation2 + $0xc8] sm:$0xff]
        %v4306 = vld [vmem:[#allocation2 + $0xd0] sm:$0xff]
        %v4307 = vld [vmem:[#allocation2 + $0xd8] sm:$0xff]
        %v4308 = vld [vmem:[#allocation2 + $0xe0] sm:$0xff]
        %v4309 = vld [vmem:[#allocation2 + $0xe8] sm:$0xff]
        %v4310 = vld [vmem:[#allocation2 + $0xf0] sm:$0xff]
        %v4311 = vld [vmem:[#allocation2 + $0xf8] sm:$0xff]
        %v4312 = vld [vmem:[#allocation2 + $0x100] sm:$0xff]
        %v4313 = vld [vmem:[#allocation2 + $0x108] sm:$0xff]
        %v4314 = vld [vmem:[#allocation2 + $0x110] sm:$0xff]
        %v4315 = vld [vmem:[#allocation2 + $0x118] sm:$0xff]
        %v4316 = vld [vmem:[#allocation2 + $0x120] sm:$0xff]
        %v4317 = vld [vmem:[#allocation2 + $0x128] sm:$0xff]
        %v4318 = vld [vmem:[#allocation2 + $0x130] sm:$0xff]
        %v4319 = vld [vmem:[#allocation2 + $0x138] sm:$0xff]
        %v4320 = vld [vmem:[#allocation2 + $0x140] sm:$0xff]
        %v4321 = vld [vmem:[#allocation2 + $0x148] sm:$0xff]
        %v4322 = vld [vmem:[#allocation2 + $0x150] sm:$0xff]
        %v4323 = vld [vmem:[#allocation2 + $0x158] sm:$0xff]
        %v4324 = vld [vmem:[#allocation2 + $0x160] sm:$0xff]
        %v4325 = vld [vmem:[#allocation2 + $0x168] sm:$0xff]
        %v4326 = vld [vmem:[#allocation2 + $0x170] sm:$0xff]
        %v4327 = vld [vmem:[#allocation2 + $0x178] sm:$0xff]
        %v4328 = vld [vmem:[#allocation2 + $0x180] sm:$0xff]
        %v4329 = vld [vmem:[#allocation2 + $0x188] sm:$0xff]
        %v4330 = vld [vmem:[#allocation2 + $0x190] sm:$0xff]
        %v4331 = vld [vmem:[#allocation2 + $0x198] sm:$0xff]
        %v4332 = vld [vmem:[#allocation2 + $0x1a0] sm:$0xff]
        %v4333 = vld [vmem:[#allocation2 + $0x1a8] sm:$0xff]
        %v4334 = vld [vmem:[#allocation2 + $0x1b0] sm:$0xff]
        %v4335 = vld [vmem:[#allocation2 + $0x1b8] sm:$0xff]
        %v4336 = vld [vmem:[#allocation2 + $0x1c0] sm:$0xff]
        %v4337 = vld [vmem:[#allocation2 + $0x1c8] sm:$0xff]
        %v4338 = vld [vmem:[#allocation2 + $0x1d0] sm:$0xff]
        %v4339 = vld [vmem:[#allocation2 + $0x1d8] sm:$0xff]
        %v4340 = vld [vmem:[#allocation2 + $0x1e0] sm:$0xff]
        %v4341 = vld [vmem:[#allocation2 + $0x1e8] sm:$0xff]
        %v4342 = vld [vmem:[#allocation2 + $0x1f0] sm:$0xff]
        %v4343 = vld [vmem:[#allocation2 + $0x1f8] sm:$0xff]
        %v4344 = vld [vmem:[#allocation2 + $0x200] sm:$0xff]
        %v4345 = vld [vmem:[#allocation2 + $0x208] sm:$0xff]
        %s4346 = scalar_lea.vmem [#allocation11], 8
        %v4347 = vld [vmem:[%s4346] sm:$0xff]
        %s4348 = scalar_lea.vmem [#allocation12], 64
        %v4349 = vld [vmem:[%s4348] sm:$0xf]
        %v4350 = vld [vmem:[%s4348 + $0x4] sm:$0xf]
        %v4351 = vld [vmem:[%s4348 + $0x8] sm:$0xf]
        %v4352 = vld [vmem:[%s4348 + $0xc] sm:$0xf]
        %v4353 = vld [vmem:[%s4348 + $0x10] sm:$0xf]
        %v4354 = vld [vmem:[%s4348 + $0x14] sm:$0xf]
        %v4355 = vld [vmem:[%s4348 + $0x18] sm:$0xf]
        %v4356 = vld [vmem:[%s4348 + $0x1c] sm:$0xf]
        %v4357 = vld [vmem:[%s4348 + $0x20] sm:$0xf]
        %v4358 = vld [vmem:[%s4348 + $0x24] sm:$0xf]
        %v4359 = vld [vmem:[%s4348 + $0x28] sm:$0xf]
        %v4360 = vld [vmem:[%s4348 + $0x2c] sm:$0xf]
        %v4361 = vld [vmem:[%s4348 + $0x30] sm:$0xf]
        %v4362 = vld [vmem:[%s4348 + $0x34] sm:$0xf]
        %v4363 = vld [vmem:[%s4348 + $0x38] sm:$0xf]
        %v4364 = vld [vmem:[%s4348 + $0x3c] sm:$0xf]
        %s4365 = scalar_lea.vmem %s8, 1
        %v4366 = vld [vmem:[%s4365] sm:$0x1]
        %v4367 = vlaneseq
        %v4368 = vshrl.u32 %v4367, 7
        %v4369 = vsub.s32 1, %v4368
        %v4370 = vrot.slane %v4347, %v4369
        %v4371 = vmul.f32 %v4280, %v4370
        %v4372 = vmul.f32 %v4281, %v4370
        %v4373 = vmul.f32 %v4282, %v4370
        %v4374 = vmul.f32 %v4283, %v4370
        %v4375 = vmul.f32 %v4284, %v4370
        %v4376 = vmul.f32 %v4285, %v4370
        %v4377 = vmul.f32 %v4286, %v4370
        %v4378 = vmul.f32 %v4287, %v4370
        %v4379 = vmul.f32 %v4288, %v4370
        %v4380 = vmul.f32 %v4289, %v4370
        %v4381 = vmul.f32 %v4290, %v4370
        %v4382 = vmul.f32 %v4291, %v4370
        %v4383 = vmul.f32 %v4292, %v4370
        %v4384 = vmul.f32 %v4293, %v4370
        %v4385 = vmul.f32 %v4294, %v4370
        %v4386 = vmul.f32 %v4295, %v4370
        %v4387 = vmul.f32 %v4296, %v4370
        %v4388 = vmul.f32 %v4297, %v4370
        %v4389 = vmul.f32 %v4298, %v4370
        %v4390 = vmul.f32 %v4299, %v4370
        %v4391 = vmul.f32 %v4300, %v4370
        %v4392 = vmul.f32 %v4301, %v4370
        %v4393 = vmul.f32 %v4302, %v4370
        %v4394 = vmul.f32 %v4303, %v4370
        %v4395 = vmul.f32 %v4304, %v4370
        %v4396 = vmul.f32 %v4305, %v4370
        %v4397 = vmul.f32 %v4306, %v4370
        %v4398 = vmul.f32 %v4307, %v4370
        %v4399 = vmul.f32 %v4308, %v4370
        %v4400 = vmul.f32 %v4309, %v4370
        %v4401 = vmul.f32 %v4310, %v4370
        %v4402 = vmul.f32 %v4311, %v4370
        %v4403 = vmul.f32 %v4312, %v4370
        %v4404 = vmul.f32 %v4313, %v4370
        %v4405 = vmul.f32 %v4314, %v4370
        %v4406 = vmul.f32 %v4315, %v4370
        %v4407 = vmul.f32 %v4316, %v4370
        %v4408 = vmul.f32 %v4317, %v4370
        %v4409 = vmul.f32 %v4318, %v4370
        %v4410 = vmul.f32 %v4319, %v4370
        %v4411 = vmul.f32 %v4320, %v4370
        %v4412 = vmul.f32 %v4321, %v4370
        %v4413 = vmul.f32 %v4322, %v4370
        %v4414 = vmul.f32 %v4323, %v4370
        %v4415 = vmul.f32 %v4324, %v4370
        %v4416 = vmul.f32 %v4325, %v4370
        %v4417 = vmul.f32 %v4326, %v4370
        %v4418 = vmul.f32 %v4327, %v4370
        %v4419 = vmul.f32 %v4328, %v4370
        %v4420 = vmul.f32 %v4329, %v4370
        %v4421 = vmul.f32 %v4330, %v4370
        %v4422 = vmul.f32 %v4331, %v4370
        %v4423 = vmul.f32 %v4332, %v4370
        %v4424 = vmul.f32 %v4333, %v4370
        %v4425 = vmul.f32 %v4334, %v4370
        %v4426 = vmul.f32 %v4335, %v4370
        %v4427 = vmul.f32 %v4336, %v4370
        %v4428 = vmul.f32 %v4337, %v4370
        %v4429 = vmul.f32 %v4338, %v4370
        %v4430 = vmul.f32 %v4339, %v4370
        %v4431 = vmul.f32 %v4340, %v4370
        %v4432 = vmul.f32 %v4341, %v4370
        %v4433 = vmul.f32 %v4342, %v4370
        %v4434 = vmul.f32 %v4343, %v4370
        %v4435 = vmul.f32 %v4344, %v4370
        %v4436 = vmul.f32 %v4345, %v4370
        %v4437 = vrot.slane %v4280, 7
        %v4438 = vrot.slane %v4281, 7
        %v4439 = vrot.slane %v4282, 7
        %v4440 = vrot.slane %v4283, 7
        %v4441 = vrot.slane %v4284, 7
        %v4442 = vrot.slane %v4285, 7
        %v4443 = vrot.slane %v4286, 7
        %v4444 = vrot.slane %v4287, 7
        %v4445 = vrot.slane %v4288, 7
        %v4446 = vrot.slane %v4289, 7
        %v4447 = vrot.slane %v4290, 7
        %v4448 = vrot.slane %v4291, 7
        %v4449 = vrot.slane %v4292, 7
        %v4450 = vrot.slane %v4293, 7
        %v4451 = vrot.slane %v4294, 7
        %v4452 = vrot.slane %v4295, 7
        %v4453 = vrot.slane %v4296, 7
        %v4454 = vrot.slane %v4297, 7
        %v4455 = vrot.slane %v4298, 7
        %v4456 = vrot.slane %v4299, 7
        %v4457 = vrot.slane %v4300, 7
        %v4458 = vrot.slane %v4301, 7
        %v4459 = vrot.slane %v4302, 7
        %v4460 = vrot.slane %v4303, 7
        %v4461 = vrot.slane %v4304, 7
        %v4462 = vrot.slane %v4305, 7
        %v4463 = vrot.slane %v4306, 7
        %v4464 = vrot.slane %v4307, 7
        %v4465 = vrot.slane %v4308, 7
        %v4466 = vrot.slane %v4309, 7
        %v4467 = vrot.slane %v4310, 7
        %v4468 = vrot.slane %v4311, 7
        %v4469 = vrot.slane %v4312, 7
        %v4470 = vrot.slane %v4313, 7
        %v4471 = vrot.slane %v4314, 7
        %v4472 = vrot.slane %v4315, 7
        %v4473 = vrot.slane %v4316, 7
        %v4474 = vrot.slane %v4317, 7
        %v4475 = vrot.slane %v4318, 7
        %v4476 = vrot.slane %v4319, 7
        %v4477 = vrot.slane %v4320, 7
        %v4478 = vrot.slane %v4321, 7
        %v4479 = vrot.slane %v4322, 7
        %v4480 = vrot.slane %v4323, 7
        %v4481 = vrot.slane %v4324, 7
        %v4482 = vrot.slane %v4325, 7
        %v4483 = vrot.slane %v4326, 7
        %v4484 = vrot.slane %v4327, 7
        %v4485 = vrot.slane %v4328, 7
        %v4486 = vrot.slane %v4329, 7
        %v4487 = vrot.slane %v4330, 7
        %v4488 = vrot.slane %v4331, 7
        %v4489 = vrot.slane %v4332, 7
        %v4490 = vrot.slane %v4333, 7
        %v4491 = vrot.slane %v4334, 7
        %v4492 = vrot.slane %v4335, 7
        %v4493 = vrot.slane %v4336, 7
        %v4494 = vrot.slane %v4337, 7
        %v4495 = vrot.slane %v4338, 7
        %v4496 = vrot.slane %v4339, 7
        %v4497 = vrot.slane %v4340, 7
        %v4498 = vrot.slane %v4341, 7
        %v4499 = vrot.slane %v4342, 7
        %v4500 = vrot.slane %v4343, 7
        %v4501 = vrot.slane %v4344, 7
        %v4502 = vrot.slane %v4345, 7
        %v4503 = vsel %vm1684, %v4501, %v4502
        %v4504 = vsel %vm1684, %v4500, %v4501
        %v4505 = vsel %vm1684, %v4499, %v4500
        %v4506 = vsel %vm1684, %v4498, %v4499
        %v4507 = vsel %vm1684, %v4497, %v4498
        %v4508 = vsel %vm1684, %v4496, %v4497
        %v4509 = vsel %vm1684, %v4495, %v4496
        %v4510 = vsel %vm1684, %v4494, %v4495
        %v4511 = vsel %vm1684, %v4493, %v4494
        %v4512 = vsel %vm1684, %v4492, %v4493
        %v4513 = vsel %vm1684, %v4491, %v4492
        %v4514 = vsel %vm1684, %v4490, %v4491
        %v4515 = vsel %vm1684, %v4489, %v4490
        %v4516 = vsel %vm1684, %v4488, %v4489
        %v4517 = vsel %vm1684, %v4487, %v4488
        %v4518 = vsel %vm1684, %v4486, %v4487
        %v4519 = vsel %vm1684, %v4485, %v4486
        %v4520 = vsel %vm1684, %v4484, %v4485
        %v4521 = vsel %vm1684, %v4483, %v4484
        %v4522 = vsel %vm1684, %v4482, %v4483
        %v4523 = vsel %vm1684, %v4481, %v4482
        %v4524 = vsel %vm1684, %v4480, %v4481
        %v4525 = vsel %vm1684, %v4479, %v4480
        %v4526 = vsel %vm1684, %v4478, %v4479
        %v4527 = vsel %vm1684, %v4477, %v4478
        %v4528 = vsel %vm1684, %v4476, %v4477
        %v4529 = vsel %vm1684, %v4475, %v4476
        %v4530 = vsel %vm1684, %v4474, %v4475
        %v4531 = vsel %vm1684, %v4473, %v4474
        %v4532 = vsel %vm1684, %v4472, %v4473
        %v4533 = vsel %vm1684, %v4471, %v4472
        %v4534 = vsel %vm1684, %v4470, %v4471
        %v4535 = vsel %vm1684, %v4469, %v4470
        %v4536 = vsel %vm1684, %v4468, %v4469
        %v4537 = vsel %vm1684, %v4467, %v4468
        %v4538 = vsel %vm1684, %v4466, %v4467
        %v4539 = vsel %vm1684, %v4465, %v4466
        %v4540 = vsel %vm1684, %v4464, %v4465
        %v4541 = vsel %vm1684, %v4463, %v4464
        %v4542 = vsel %vm1684, %v4462, %v4463
        %v4543 = vsel %vm1684, %v4461, %v4462
        %v4544 = vsel %vm1684, %v4460, %v4461
        %v4545 = vsel %vm1684, %v4459, %v4460
        %v4546 = vsel %vm1684, %v4458, %v4459
        %v4547 = vsel %vm1684, %v4457, %v4458
        %v4548 = vsel %vm1684, %v4456, %v4457
        %v4549 = vsel %vm1684, %v4455, %v4456
        %v4550 = vsel %vm1684, %v4454, %v4455
        %v4551 = vsel %vm1684, %v4453, %v4454
        %v4552 = vsel %vm1684, %v4452, %v4453
        %v4553 = vsel %vm1684, %v4451, %v4452
        %v4554 = vsel %vm1684, %v4450, %v4451
        %v4555 = vsel %vm1684, %v4449, %v4450
        %v4556 = vsel %vm1684, %v4448, %v4449
        %v4557 = vsel %vm1684, %v4447, %v4448
        %v4558 = vsel %vm1684, %v4446, %v4447
        %v4559 = vsel %vm1684, %v4445, %v4446
        %v4560 = vsel %vm1684, %v4444, %v4445
        %v4561 = vsel %vm1684, %v4443, %v4444
        %v4562 = vsel %vm1684, %v4442, %v4443
        %v4563 = vsel %vm1684, %v4441, %v4442
        %v4564 = vsel %vm1684, %v4440, %v4441
        %v4565 = vsel %vm1684, %v4439, %v4440
        %v4566 = vsel %vm1684, %v4438, %v4439
        %v4567 = vsel %vm1684, %v4437, %v4438
        %v4568 = vsel %vm1684, %v4502, %v4437
        %v4569 = vlaneseq
        %v4570 = vshrl.u32 %v4569, 7
        %v4571 = vsub.s32 0, %v4570
        %v4572 = vrot.slane %v4347, %v4571
        %v4573 = vmul.f32 %v4568, %v4572
        %v4574 = vmul.f32 %v4567, %v4572
        %v4575 = vmul.f32 %v4566, %v4572
        %v4576 = vmul.f32 %v4565, %v4572
        %v4577 = vmul.f32 %v4564, %v4572
        %v4578 = vmul.f32 %v4563, %v4572
        %v4579 = vmul.f32 %v4562, %v4572
        %v4580 = vmul.f32 %v4561, %v4572
        %v4581 = vmul.f32 %v4560, %v4572
        %v4582 = vmul.f32 %v4559, %v4572
        %v4583 = vmul.f32 %v4558, %v4572
        %v4584 = vmul.f32 %v4557, %v4572
        %v4585 = vmul.f32 %v4556, %v4572
        %v4586 = vmul.f32 %v4555, %v4572
        %v4587 = vmul.f32 %v4554, %v4572
        %v4588 = vmul.f32 %v4553, %v4572
        %v4589 = vmul.f32 %v4552, %v4572
        %v4590 = vmul.f32 %v4551, %v4572
        %v4591 = vmul.f32 %v4550, %v4572
        %v4592 = vmul.f32 %v4549, %v4572
        %v4593 = vmul.f32 %v4548, %v4572
        %v4594 = vmul.f32 %v4547, %v4572
        %v4595 = vmul.f32 %v4546, %v4572
        %v4596 = vmul.f32 %v4545, %v4572
        %v4597 = vmul.f32 %v4544, %v4572
        %v4598 = vmul.f32 %v4543, %v4572
        %v4599 = vmul.f32 %v4542, %v4572
        %v4600 = vmul.f32 %v4541, %v4572
        %v4601 = vmul.f32 %v4540, %v4572
        %v4602 = vmul.f32 %v4539, %v4572
        %v4603 = vmul.f32 %v4538, %v4572
        %v4604 = vmul.f32 %v4537, %v4572
        %v4605 = vmul.f32 %v4536, %v4572
        %v4606 = vmul.f32 %v4535, %v4572
        %v4607 = vmul.f32 %v4534, %v4572
        %v4608 = vmul.f32 %v4533, %v4572
        %v4609 = vmul.f32 %v4532, %v4572
        %v4610 = vmul.f32 %v4531, %v4572
        %v4611 = vmul.f32 %v4530, %v4572
        %v4612 = vmul.f32 %v4529, %v4572
        %v4613 = vmul.f32 %v4528, %v4572
        %v4614 = vmul.f32 %v4527, %v4572
        %v4615 = vmul.f32 %v4526, %v4572
        %v4616 = vmul.f32 %v4525, %v4572
        %v4617 = vmul.f32 %v4524, %v4572
        %v4618 = vmul.f32 %v4523, %v4572
        %v4619 = vmul.f32 %v4522, %v4572
        %v4620 = vmul.f32 %v4521, %v4572
        %v4621 = vmul.f32 %v4520, %v4572
        %v4622 = vmul.f32 %v4519, %v4572
        %v4623 = vmul.f32 %v4518, %v4572
        %v4624 = vmul.f32 %v4517, %v4572
        %v4625 = vmul.f32 %v4516, %v4572
        %v4626 = vmul.f32 %v4515, %v4572
        %v4627 = vmul.f32 %v4514, %v4572
        %v4628 = vmul.f32 %v4513, %v4572
        %v4629 = vmul.f32 %v4512, %v4572
        %v4630 = vmul.f32 %v4511, %v4572
        %v4631 = vmul.f32 %v4510, %v4572
        %v4632 = vmul.f32 %v4509, %v4572
        %v4633 = vmul.f32 %v4508, %v4572
        %v4634 = vmul.f32 %v4507, %v4572
        %v4635 = vmul.f32 %v4506, %v4572
        %v4636 = vmul.f32 %v4505, %v4572
        %v4637 = vmul.f32 %v4504, %v4572
        %v4638 = vmul.f32 %v4503, %v4572
        %v4639 = vadd.f32 %v4371, %v4573
        %v4640 = vadd.f32 %v4372, %v4574
        %v4641 = vadd.f32 %v4373, %v4575
        %v4642 = vadd.f32 %v4374, %v4576
        %v4643 = vadd.f32 %v4375, %v4577
        %v4644 = vadd.f32 %v4376, %v4578
        %v4645 = vadd.f32 %v4377, %v4579
        %v4646 = vadd.f32 %v4378, %v4580
        %v4647 = vadd.f32 %v4379, %v4581
        %v4648 = vadd.f32 %v4380, %v4582
        %v4649 = vadd.f32 %v4381, %v4583
        %v4650 = vadd.f32 %v4382, %v4584
        %v4651 = vadd.f32 %v4383, %v4585
        %v4652 = vadd.f32 %v4384, %v4586
        %v4653 = vadd.f32 %v4385, %v4587
        %v4654 = vadd.f32 %v4386, %v4588
        %v4655 = vadd.f32 %v4387, %v4589
        %v4656 = vadd.f32 %v4388, %v4590
        %v4657 = vadd.f32 %v4389, %v4591
        %v4658 = vadd.f32 %v4390, %v4592
        %v4659 = vadd.f32 %v4391, %v4593
        %v4660 = vadd.f32 %v4392, %v4594
        %v4661 = vadd.f32 %v4393, %v4595
        %v4662 = vadd.f32 %v4394, %v4596
        %v4663 = vadd.f32 %v4395, %v4597
        %v4664 = vadd.f32 %v4396, %v4598
        %v4665 = vadd.f32 %v4397, %v4599
        %v4666 = vadd.f32 %v4398, %v4600
        %v4667 = vadd.f32 %v4399, %v4601
        %v4668 = vadd.f32 %v4400, %v4602
        %v4669 = vadd.f32 %v4401, %v4603
        %v4670 = vadd.f32 %v4402, %v4604
        %v4671 = vadd.f32 %v4403, %v4605
        %v4672 = vadd.f32 %v4404, %v4606
        %v4673 = vadd.f32 %v4405, %v4607
        %v4674 = vadd.f32 %v4406, %v4608
        %v4675 = vadd.f32 %v4407, %v4609
        %v4676 = vadd.f32 %v4408, %v4610
        %v4677 = vadd.f32 %v4409, %v4611
        %v4678 = vadd.f32 %v4410, %v4612
        %v4679 = vadd.f32 %v4411, %v4613
        %v4680 = vadd.f32 %v4412, %v4614
        %v4681 = vadd.f32 %v4413, %v4615
        %v4682 = vadd.f32 %v4414, %v4616
        %v4683 = vadd.f32 %v4415, %v4617
        %v4684 = vadd.f32 %v4416, %v4618
        %v4685 = vadd.f32 %v4417, %v4619
        %v4686 = vadd.f32 %v4418, %v4620
        %v4687 = vadd.f32 %v4419, %v4621
        %v4688 = vadd.f32 %v4420, %v4622
        %v4689 = vadd.f32 %v4421, %v4623
        %v4690 = vadd.f32 %v4422, %v4624
        %v4691 = vadd.f32 %v4423, %v4625
        %v4692 = vadd.f32 %v4424, %v4626
        %v4693 = vadd.f32 %v4425, %v4627
        %v4694 = vadd.f32 %v4426, %v4628
        %v4695 = vadd.f32 %v4427, %v4629
        %v4696 = vadd.f32 %v4428, %v4630
        %v4697 = vadd.f32 %v4429, %v4631
        %v4698 = vadd.f32 %v4430, %v4632
        %v4699 = vadd.f32 %v4431, %v4633
        %v4700 = vadd.f32 %v4432, %v4634
        %v4701 = vadd.f32 %v4433, %v4635
        %v4702 = vadd.f32 %v4434, %v4636
        %v4703 = vadd.f32 %v4435, %v4637
        %v4704 = vadd.f32 %v4436, %v4638
        %v4705 = vrot.slane %v4280, 1
        %v4706 = vrot.slane %v4281, 1
        %v4707 = vrot.slane %v4282, 1
        %v4708 = vrot.slane %v4283, 1
        %v4709 = vrot.slane %v4284, 1
        %v4710 = vrot.slane %v4285, 1
        %v4711 = vrot.slane %v4286, 1
        %v4712 = vrot.slane %v4287, 1
        %v4713 = vrot.slane %v4288, 1
        %v4714 = vrot.slane %v4289, 1
        %v4715 = vrot.slane %v4290, 1
        %v4716 = vrot.slane %v4291, 1
        %v4717 = vrot.slane %v4292, 1
        %v4718 = vrot.slane %v4293, 1
        %v4719 = vrot.slane %v4294, 1
        %v4720 = vrot.slane %v4295, 1
        %v4721 = vrot.slane %v4296, 1
        %v4722 = vrot.slane %v4297, 1
        %v4723 = vrot.slane %v4298, 1
        %v4724 = vrot.slane %v4299, 1
        %v4725 = vrot.slane %v4300, 1
        %v4726 = vrot.slane %v4301, 1
        %v4727 = vrot.slane %v4302, 1
        %v4728 = vrot.slane %v4303, 1
        %v4729 = vrot.slane %v4304, 1
        %v4730 = vrot.slane %v4305, 1
        %v4731 = vrot.slane %v4306, 1
        %v4732 = vrot.slane %v4307, 1
        %v4733 = vrot.slane %v4308, 1
        %v4734 = vrot.slane %v4309, 1
        %v4735 = vrot.slane %v4310, 1
        %v4736 = vrot.slane %v4311, 1
        %v4737 = vrot.slane %v4312, 1
        %v4738 = vrot.slane %v4313, 1
        %v4739 = vrot.slane %v4314, 1
        %v4740 = vrot.slane %v4315, 1
        %v4741 = vrot.slane %v4316, 1
        %v4742 = vrot.slane %v4317, 1
        %v4743 = vrot.slane %v4318, 1
        %v4744 = vrot.slane %v4319, 1
        %v4745 = vrot.slane %v4320, 1
        %v4746 = vrot.slane %v4321, 1
        %v4747 = vrot.slane %v4322, 1
        %v4748 = vrot.slane %v4323, 1
        %v4749 = vrot.slane %v4324, 1
        %v4750 = vrot.slane %v4325, 1
        %v4751 = vrot.slane %v4326, 1
        %v4752 = vrot.slane %v4327, 1
        %v4753 = vrot.slane %v4328, 1
        %v4754 = vrot.slane %v4329, 1
        %v4755 = vrot.slane %v4330, 1
        %v4756 = vrot.slane %v4331, 1
        %v4757 = vrot.slane %v4332, 1
        %v4758 = vrot.slane %v4333, 1
        %v4759 = vrot.slane %v4334, 1
        %v4760 = vrot.slane %v4335, 1
        %v4761 = vrot.slane %v4336, 1
        %v4762 = vrot.slane %v4337, 1
        %v4763 = vrot.slane %v4338, 1
        %v4764 = vrot.slane %v4339, 1
        %v4765 = vrot.slane %v4340, 1
        %v4766 = vrot.slane %v4341, 1
        %v4767 = vrot.slane %v4342, 1
        %v4768 = vrot.slane %v4343, 1
        %v4769 = vrot.slane %v4344, 1
        %v4770 = vrot.slane %v4345, 1
        %v4771 = vsel %vm1953, %v4769, %v4770
        %v4772 = vsel %vm1953, %v4768, %v4769
        %v4773 = vsel %vm1953, %v4767, %v4768
        %v4774 = vsel %vm1953, %v4766, %v4767
        %v4775 = vsel %vm1953, %v4765, %v4766
        %v4776 = vsel %vm1953, %v4764, %v4765
        %v4777 = vsel %vm1953, %v4763, %v4764
        %v4778 = vsel %vm1953, %v4762, %v4763
        %v4779 = vsel %vm1953, %v4761, %v4762
        %v4780 = vsel %vm1953, %v4760, %v4761
        %v4781 = vsel %vm1953, %v4759, %v4760
        %v4782 = vsel %vm1953, %v4758, %v4759
        %v4783 = vsel %vm1953, %v4757, %v4758
        %v4784 = vsel %vm1953, %v4756, %v4757
        %v4785 = vsel %vm1953, %v4755, %v4756
        %v4786 = vsel %vm1953, %v4754, %v4755
        %v4787 = vsel %vm1953, %v4753, %v4754
        %v4788 = vsel %vm1953, %v4752, %v4753
        %v4789 = vsel %vm1953, %v4751, %v4752
        %v4790 = vsel %vm1953, %v4750, %v4751
        %v4791 = vsel %vm1953, %v4749, %v4750
        %v4792 = vsel %vm1953, %v4748, %v4749
        %v4793 = vsel %vm1953, %v4747, %v4748
        %v4794 = vsel %vm1953, %v4746, %v4747
        %v4795 = vsel %vm1953, %v4745, %v4746
        %v4796 = vsel %vm1953, %v4744, %v4745
        %v4797 = vsel %vm1953, %v4743, %v4744
        %v4798 = vsel %vm1953, %v4742, %v4743
        %v4799 = vsel %vm1953, %v4741, %v4742
        %v4800 = vsel %vm1953, %v4740, %v4741
        %v4801 = vsel %vm1953, %v4739, %v4740
        %v4802 = vsel %vm1953, %v4738, %v4739
        %v4803 = vsel %vm1953, %v4737, %v4738
        %v4804 = vsel %vm1953, %v4736, %v4737
        %v4805 = vsel %vm1953, %v4735, %v4736
        %v4806 = vsel %vm1953, %v4734, %v4735
        %v4807 = vsel %vm1953, %v4733, %v4734
        %v4808 = vsel %vm1953, %v4732, %v4733
        %v4809 = vsel %vm1953, %v4731, %v4732
        %v4810 = vsel %vm1953, %v4730, %v4731
        %v4811 = vsel %vm1953, %v4729, %v4730
        %v4812 = vsel %vm1953, %v4728, %v4729
        %v4813 = vsel %vm1953, %v4727, %v4728
        %v4814 = vsel %vm1953, %v4726, %v4727
        %v4815 = vsel %vm1953, %v4725, %v4726
        %v4816 = vsel %vm1953, %v4724, %v4725
        %v4817 = vsel %vm1953, %v4723, %v4724
        %v4818 = vsel %vm1953, %v4722, %v4723
        %v4819 = vsel %vm1953, %v4721, %v4722
        %v4820 = vsel %vm1953, %v4720, %v4721
        %v4821 = vsel %vm1953, %v4719, %v4720
        %v4822 = vsel %vm1953, %v4718, %v4719
        %v4823 = vsel %vm1953, %v4717, %v4718
        %v4824 = vsel %vm1953, %v4716, %v4717
        %v4825 = vsel %vm1953, %v4715, %v4716
        %v4826 = vsel %vm1953, %v4714, %v4715
        %v4827 = vsel %vm1953, %v4713, %v4714
        %v4828 = vsel %vm1953, %v4712, %v4713
        %v4829 = vsel %vm1953, %v4711, %v4712
        %v4830 = vsel %vm1953, %v4710, %v4711
        %v4831 = vsel %vm1953, %v4709, %v4710
        %v4832 = vsel %vm1953, %v4708, %v4709
        %v4833 = vsel %vm1953, %v4707, %v4708
        %v4834 = vsel %vm1953, %v4706, %v4707
        %v4835 = vsel %vm1953, %v4705, %v4706
        %v4836 = vsel %vm1953, %v4770, %v4705
        %v4837 = vlaneseq
        %v4838 = vshrl.u32 %v4837, 7
        %v4839 = vsub.s32 2, %v4838
        %v4840 = vrot.slane %v4347, %v4839
        %v4841 = vmul.f32 %v4835, %v4840
        %v4842 = vmul.f32 %v4834, %v4840
        %v4843 = vmul.f32 %v4833, %v4840
        %v4844 = vmul.f32 %v4832, %v4840
        %v4845 = vmul.f32 %v4831, %v4840
        %v4846 = vmul.f32 %v4830, %v4840
        %v4847 = vmul.f32 %v4829, %v4840
        %v4848 = vmul.f32 %v4828, %v4840
        %v4849 = vmul.f32 %v4827, %v4840
        %v4850 = vmul.f32 %v4826, %v4840
        %v4851 = vmul.f32 %v4825, %v4840
        %v4852 = vmul.f32 %v4824, %v4840
        %v4853 = vmul.f32 %v4823, %v4840
        %v4854 = vmul.f32 %v4822, %v4840
        %v4855 = vmul.f32 %v4821, %v4840
        %v4856 = vmul.f32 %v4820, %v4840
        %v4857 = vmul.f32 %v4819, %v4840
        %v4858 = vmul.f32 %v4818, %v4840
        %v4859 = vmul.f32 %v4817, %v4840
        %v4860 = vmul.f32 %v4816, %v4840
        %v4861 = vmul.f32 %v4815, %v4840
        %v4862 = vmul.f32 %v4814, %v4840
        %v4863 = vmul.f32 %v4813, %v4840
        %v4864 = vmul.f32 %v4812, %v4840
        %v4865 = vmul.f32 %v4811, %v4840
        %v4866 = vmul.f32 %v4810, %v4840
        %v4867 = vmul.f32 %v4809, %v4840
        %v4868 = vmul.f32 %v4808, %v4840
        %v4869 = vmul.f32 %v4807, %v4840
        %v4870 = vmul.f32 %v4806, %v4840
        %v4871 = vmul.f32 %v4805, %v4840
        %v4872 = vmul.f32 %v4804, %v4840
        %v4873 = vmul.f32 %v4803, %v4840
        %v4874 = vmul.f32 %v4802, %v4840
        %v4875 = vmul.f32 %v4801, %v4840
        %v4876 = vmul.f32 %v4800, %v4840
        %v4877 = vmul.f32 %v4799, %v4840
        %v4878 = vmul.f32 %v4798, %v4840
        %v4879 = vmul.f32 %v4797, %v4840
        %v4880 = vmul.f32 %v4796, %v4840
        %v4881 = vmul.f32 %v4795, %v4840
        %v4882 = vmul.f32 %v4794, %v4840
        %v4883 = vmul.f32 %v4793, %v4840
        %v4884 = vmul.f32 %v4792, %v4840
        %v4885 = vmul.f32 %v4791, %v4840
        %v4886 = vmul.f32 %v4790, %v4840
        %v4887 = vmul.f32 %v4789, %v4840
        %v4888 = vmul.f32 %v4788, %v4840
        %v4889 = vmul.f32 %v4787, %v4840
        %v4890 = vmul.f32 %v4786, %v4840
        %v4891 = vmul.f32 %v4785, %v4840
        %v4892 = vmul.f32 %v4784, %v4840
        %v4893 = vmul.f32 %v4783, %v4840
        %v4894 = vmul.f32 %v4782, %v4840
        %v4895 = vmul.f32 %v4781, %v4840
        %v4896 = vmul.f32 %v4780, %v4840
        %v4897 = vmul.f32 %v4779, %v4840
        %v4898 = vmul.f32 %v4778, %v4840
        %v4899 = vmul.f32 %v4777, %v4840
        %v4900 = vmul.f32 %v4776, %v4840
        %v4901 = vmul.f32 %v4775, %v4840
        %v4902 = vmul.f32 %v4774, %v4840
        %v4903 = vmul.f32 %v4773, %v4840
        %v4904 = vmul.f32 %v4772, %v4840
        %v4905 = vmul.f32 %v4771, %v4840
        %v4906 = vmul.f32 %v4836, %v4840
        %v4907 = vadd.f32 %v4639, %v4841
        %v4908 = vadd.f32 %v4640, %v4842
        %v4909 = vadd.f32 %v4641, %v4843
        %v4910 = vadd.f32 %v4642, %v4844
        %v4911 = vadd.f32 %v4643, %v4845
        %v4912 = vadd.f32 %v4644, %v4846
        %v4913 = vadd.f32 %v4645, %v4847
        %v4914 = vadd.f32 %v4646, %v4848
        %v4915 = vadd.f32 %v4647, %v4849
        %v4916 = vadd.f32 %v4648, %v4850
        %v4917 = vadd.f32 %v4649, %v4851
        %v4918 = vadd.f32 %v4650, %v4852
        %v4919 = vadd.f32 %v4651, %v4853
        %v4920 = vadd.f32 %v4652, %v4854
        %v4921 = vadd.f32 %v4653, %v4855
        %v4922 = vadd.f32 %v4654, %v4856
        %v4923 = vadd.f32 %v4655, %v4857
        %v4924 = vadd.f32 %v4656, %v4858
        %v4925 = vadd.f32 %v4657, %v4859
        %v4926 = vadd.f32 %v4658, %v4860
        %v4927 = vadd.f32 %v4659, %v4861
        %v4928 = vadd.f32 %v4660, %v4862
        %v4929 = vadd.f32 %v4661, %v4863
        %v4930 = vadd.f32 %v4662, %v4864
        %v4931 = vadd.f32 %v4663, %v4865
        %v4932 = vadd.f32 %v4664, %v4866
        %v4933 = vadd.f32 %v4665, %v4867
        %v4934 = vadd.f32 %v4666, %v4868
        %v4935 = vadd.f32 %v4667, %v4869
        %v4936 = vadd.f32 %v4668, %v4870
        %v4937 = vadd.f32 %v4669, %v4871
        %v4938 = vadd.f32 %v4670, %v4872
        %v4939 = vadd.f32 %v4671, %v4873
        %v4940 = vadd.f32 %v4672, %v4874
        %v4941 = vadd.f32 %v4673, %v4875
        %v4942 = vadd.f32 %v4674, %v4876
        %v4943 = vadd.f32 %v4675, %v4877
        %v4944 = vadd.f32 %v4676, %v4878
        %v4945 = vadd.f32 %v4677, %v4879
        %v4946 = vadd.f32 %v4678, %v4880
        %v4947 = vadd.f32 %v4679, %v4881
        %v4948 = vadd.f32 %v4680, %v4882
        %v4949 = vadd.f32 %v4681, %v4883
        %v4950 = vadd.f32 %v4682, %v4884
        %v4951 = vadd.f32 %v4683, %v4885
        %v4952 = vadd.f32 %v4684, %v4886
        %v4953 = vadd.f32 %v4685, %v4887
        %v4954 = vadd.f32 %v4686, %v4888
        %v4955 = vadd.f32 %v4687, %v4889
        %v4956 = vadd.f32 %v4688, %v4890
        %v4957 = vadd.f32 %v4689, %v4891
        %v4958 = vadd.f32 %v4690, %v4892
        %v4959 = vadd.f32 %v4691, %v4893
        %v4960 = vadd.f32 %v4692, %v4894
        %v4961 = vadd.f32 %v4693, %v4895
        %v4962 = vadd.f32 %v4694, %v4896
        %v4963 = vadd.f32 %v4695, %v4897
        %v4964 = vadd.f32 %v4696, %v4898
        %v4965 = vadd.f32 %v4697, %v4899
        %v4966 = vadd.f32 %v4698, %v4900
        %v4967 = vadd.f32 %v4699, %v4901
        %v4968 = vadd.f32 %v4700, %v4902
        %v4969 = vadd.f32 %v4701, %v4903
        %v4970 = vadd.f32 %v4702, %v4904
        %v4971 = vadd.f32 %v4703, %v4905
        %v4972 = vadd.f32 %v4704, %v4906
        %v4973 = vpack.c.bf16 %v4908, %v4907
        %v4974 = vpack.c.bf16 %v4910, %v4909
        %v4975 = vpack.c.bf16 %v4912, %v4911
        %v4976 = vpack.c.bf16 %v4914, %v4913
        %v4977 = vpack.c.bf16 %v4916, %v4915
        %v4978 = vpack.c.bf16 %v4918, %v4917
        %v4979 = vpack.c.bf16 %v4920, %v4919
        %v4980 = vpack.c.bf16 %v4922, %v4921
        %v4981 = vpack.c.bf16 %v4924, %v4923
        %v4982 = vpack.c.bf16 %v4926, %v4925
        %v4983 = vpack.c.bf16 %v4928, %v4927
        %v4984 = vpack.c.bf16 %v4930, %v4929
        %v4985 = vpack.c.bf16 %v4932, %v4931
        %v4986 = vpack.c.bf16 %v4934, %v4933
        %v4987 = vpack.c.bf16 %v4936, %v4935
        %v4988 = vpack.c.bf16 %v4938, %v4937
        %v4989 = vpack.c.bf16 %v4940, %v4939
        %v4990 = vpack.c.bf16 %v4942, %v4941
        %v4991 = vpack.c.bf16 %v4944, %v4943
        %v4992 = vpack.c.bf16 %v4946, %v4945
        %v4993 = vpack.c.bf16 %v4948, %v4947
        %v4994 = vpack.c.bf16 %v4950, %v4949
        %v4995 = vpack.c.bf16 %v4952, %v4951
        %v4996 = vpack.c.bf16 %v4954, %v4953
        %v4997 = vpack.c.bf16 %v4956, %v4955
        %v4998 = vpack.c.bf16 %v4958, %v4957
        %v4999 = vpack.c.bf16 %v4960, %v4959
        %v5000 = vpack.c.bf16 %v4962, %v4961
        %v5001 = vpack.c.bf16 %v4964, %v4963
        %v5002 = vpack.c.bf16 %v4966, %v4965
        %v5003 = vpack.c.bf16 %v4968, %v4967
        %v5004 = vpack.c.bf16 %v4970, %v4969
        %v5005 = vpack.c.bf16 %v4972, %v4971
        %v5007 = vlaneseq
        %v5008 = vshrl.u32 %v5007, 7
        %v5009 = vsub.s32 0, %v5008
        %v5010 = vrot.slane %v4366, %v5009
        %v5028 = vunpack.c.l.b16 %v4349
        %v5029 = vunpack.c.l.b16 %v4350
        %v5030 = vunpack.c.l.b16 %v4351
        %v5031 = vunpack.c.l.b16 %v4352
        %v5032 = vunpack.c.l.b16 %v4353
        %v5033 = vunpack.c.l.b16 %v4354
        %v5034 = vunpack.c.l.b16 %v4355
        %v5035 = vunpack.c.l.b16 %v4356
        %v5036 = vunpack.c.l.b16 %v4357
        %v5037 = vunpack.c.l.b16 %v4358
        %v5038 = vunpack.c.l.b16 %v4359
        %v5039 = vunpack.c.l.b16 %v4360
        %v5040 = vunpack.c.l.b16 %v4361
        %v5041 = vunpack.c.l.b16 %v4362
        %v5042 = vunpack.c.l.b16 %v4363
        %v5043 = vunpack.c.l.b16 %v4364
        %v5044 = vpack.c.b16 %v5029, %v5028
        %v5045 = vpack.c.b16 %v5031, %v5030
        %v5046 = vpack.c.b16 %v5033, %v5032
        %v5047 = vpack.c.b16 %v5035, %v5034
        %v5048 = vpack.c.b16 %v5037, %v5036
        %v5049 = vpack.c.b16 %v5039, %v5038
        %v5050 = vpack.c.b16 %v5041, %v5040
        %v5051 = vpack.c.b16 %v5043, %v5042
        %5060 = vmatprep.subr.bf16.mxu0 0
        %5061 = vmatpush1.bf16.msra.mxu0 %v5044
        %5062 = vmatprep.subr.bf16.mxu0 0
        %5063 = vmatpush1.bf16.msra.mxu0 %v5045
        %5064 = vmatprep.subr.bf16.mxu0 0
        %5065 = vmatpush1.bf16.msra.mxu0 %v5046
        %5066 = vmatprep.subr.bf16.mxu0 0
        %5067 = vmatpush1.bf16.msra.mxu0 %v5047
        %5068 = vmatprep.subr.bf16.mxu0 0
        %5069 = vmatpush1.bf16.msra.mxu0 %v5048
        %5070 = vmatprep.subr.bf16.mxu0 0
        %5071 = vmatpush1.bf16.msra.mxu0 %v5049
        %5072 = vmatprep.subr.bf16.mxu0 0
        %5073 = vmatpush1.bf16.msra.mxu0 %v5050
        %5074 = vmatprep.subr.bf16.mxu0 0
        %5075 = vmatpush1.bf16.msra.mxu0 %v5051
        %5076 = vmatprep.subr.bf16.mxu0 0
        %5077 = vmatpush1.bf16.msra.mxu0 0
        %5078 = vmatprep.subr.bf16.mxu0 0
        %5079 = vmatpush1.bf16.msra.mxu0 0
        %5080 = vmatprep.subr.bf16.mxu0 0
        %5081 = vmatpush1.bf16.msra.mxu0 0
        %5082 = vmatprep.subr.bf16.mxu0 0
        %5083 = vmatpush1.bf16.msra.mxu0 0
        %5084 = vmatprep.subr.bf16.mxu0 0
        %5085 = vmatpush1.bf16.msra.mxu0 0
        %5086 = vmatprep.subr.bf16.mxu0 0
        %5087 = vmatpush1.bf16.msra.mxu0 0
        %5088 = vmatprep.subr.bf16.mxu0 0
        %5089 = vmatpush1.bf16.msra.mxu0 0
        %5090 = vmatprep.subr.bf16.mxu0 0
        %5091 = vmatpush1.bf16.msra.mxu0 0
        %5092 = vmatprep.mubr.bf16.mxu0 0
        %5093 = vmatmul.mubr.bf16.gmra.mrb[0].mxu0 %v4973
        %v5094 = vpop.f32.mrb[0].mxu0
        %v5095 = vadd.f32 %v5010, %v5094
        %v5096 = vpop.f32.mrb[0].mxu0
        %v5097 = vpop.f32.mrb[0].mxu0
        %v5098 = vadd.f32 %v5010, %v5097
        %v5099 = vpop.f32.mrb[0].mxu0
        %5100 = vmatprep.mubr.bf16.mxu0 0
        %5101 = vmatmul.mubr.bf16.gmra.mrb[0].mxu0 %v4974
        %v5102 = vpop.f32.mrb[0].mxu0
        %v5103 = vadd.f32 %v5010, %v5102
        %v5104 = vpop.f32.mrb[0].mxu0
        %v5105 = vpop.f32.mrb[0].mxu0
        %v5106 = vadd.f32 %v5010, %v5105
        %v5107 = vpop.f32.mrb[0].mxu0
        %5108 = vmatprep.mubr.bf16.mxu0 0
        %5109 = vmatmul.mubr.bf16.gmra.mrb[0].mxu0 %v4975
        %v5110 = vpop.f32.mrb[0].mxu0
        %v5111 = vadd.f32 %v5010, %v5110
        %v5112 = vpop.f32.mrb[0].mxu0
        %v5113 = vpop.f32.mrb[0].mxu0
        %v5114 = vadd.f32 %v5010, %v5113
        %v5115 = vpop.f32.mrb[0].mxu0
        %5116 = vmatprep.mubr.bf16.mxu0 0
        %5117 = vmatmul.mubr.bf16.gmra.mrb[0].mxu0 %v4976
        %v5118 = vpop.f32.mrb[0].mxu0
        %v5119 = vadd.f32 %v5010, %v5118
        %v5120 = vpop.f32.mrb[0].mxu0
        %v5121 = vpop.f32.mrb[0].mxu0
        %v5122 = vadd.f32 %v5010, %v5121
        %v5123 = vpop.f32.mrb[0].mxu0
        %5124 = vmatprep.mubr.bf16.mxu0 0
        %5125 = vmatmul.mubr.bf16.gmra.mrb[0].mxu0 %v4977
        %v5126 = vpop.f32.mrb[0].mxu0
        %v5127 = vadd.f32 %v5010, %v5126
        %v5128 = vpop.f32.mrb[0].mxu0
        %v5129 = vpop.f32.mrb[0].mxu0
        %v5130 = vadd.f32 %v5010, %v5129
        %v5131 = vpop.f32.mrb[0].mxu0
        %5132 = vmatprep.mubr.bf16.mxu0 0
        %5133 = vmatmul.mubr.bf16.gmra.mrb[0].mxu0 %v4978
        %v5134 = vpop.f32.mrb[0].mxu0
        %v5135 = vadd.f32 %v5010, %v5134
        %v5136 = vpop.f32.mrb[0].mxu0
        %v5137 = vpop.f32.mrb[0].mxu0
        %v5138 = vadd.f32 %v5010, %v5137
        %v5139 = vpop.f32.mrb[0].mxu0
        %5140 = vmatprep.mubr.bf16.mxu0 0
        %5141 = vmatmul.mubr.bf16.gmra.mrb[0].mxu0 %v4979
        %v5142 = vpop.f32.mrb[0].mxu0
        %v5143 = vadd.f32 %v5010, %v5142
        %v5144 = vpop.f32.mrb[0].mxu0
        %v5145 = vpop.f32.mrb[0].mxu0
        %v5146 = vadd.f32 %v5010, %v5145
        %v5147 = vpop.f32.mrb[0].mxu0
        %5148 = vmatprep.mubr.bf16.mxu0 0
        %5149 = vmatmul.mubr.bf16.gmra.mrb[0].mxu0 %v4980
        %v5150 = vpop.f32.mrb[0].mxu0
        %v5151 = vadd.f32 %v5010, %v5150
        %v5152 = vpop.f32.mrb[0].mxu0
        %v5153 = vpop.f32.mrb[0].mxu0
        %v5154 = vadd.f32 %v5010, %v5153
        %v5155 = vpop.f32.mrb[0].mxu0
        %5156 = vmatprep.mubr.bf16.mxu0 0
        %5157 = vmatmul.mubr.bf16.gmra.mrb[0].mxu0 %v4981
        %v5158 = vpop.f32.mrb[0].mxu0
        %v5159 = vadd.f32 %v5010, %v5158
        %v5160 = vpop.f32.mrb[0].mxu0
        %v5161 = vpop.f32.mrb[0].mxu0
        %v5162 = vadd.f32 %v5010, %v5161
        %v5163 = vpop.f32.mrb[0].mxu0
        %5164 = vmatprep.mubr.bf16.mxu0 0
        %5165 = vmatmul.mubr.bf16.gmra.mrb[0].mxu0 %v4982
        %v5166 = vpop.f32.mrb[0].mxu0
        %v5167 = vadd.f32 %v5010, %v5166
        %v5168 = vpop.f32.mrb[0].mxu0
        %v5169 = vpop.f32.mrb[0].mxu0
        %v5170 = vadd.f32 %v5010, %v5169
        %v5171 = vpop.f32.mrb[0].mxu0
        %5172 = vmatprep.mubr.bf16.mxu0 0
        %5173 = vmatmul.mubr.bf16.gmra.mrb[0].mxu0 %v4983
        %v5174 = vpop.f32.mrb[0].mxu0
        %v5175 = vadd.f32 %v5010, %v5174
        %v5176 = vpop.f32.mrb[0].mxu0
        %v5177 = vpop.f32.mrb[0].mxu0
        %v5178 = vadd.f32 %v5010, %v5177
        %v5179 = vpop.f32.mrb[0].mxu0
        %5180 = vmatprep.mubr.bf16.mxu0 0
        %5181 = vmatmul.mubr.bf16.gmra.mrb[0].mxu0 %v4984
        %v5182 = vpop.f32.mrb[0].mxu0
        %v5183 = vadd.f32 %v5010, %v5182
        %v5184 = vpop.f32.mrb[0].mxu0
        %v5185 = vpop.f32.mrb[0].mxu0
        %v5186 = vadd.f32 %v5010, %v5185
        %v5187 = vpop.f32.mrb[0].mxu0
        %5188 = vmatprep.mubr.bf16.mxu0 0
        %5189 = vmatmul.mubr.bf16.gmra.mrb[0].mxu0 %v4985
        %v5190 = vpop.f32.mrb[0].mxu0
        %v5191 = vadd.f32 %v5010, %v5190
        %v5192 = vpop.f32.mrb[0].mxu0
        %v5193 = vpop.f32.mrb[0].mxu0
        %v5194 = vadd.f32 %v5010, %v5193
        %v5195 = vpop.f32.mrb[0].mxu0
        %5196 = vmatprep.mubr.bf16.mxu0 0
        %5197 = vmatmul.mubr.bf16.gmra.mrb[0].mxu0 %v4986
        %v5198 = vpop.f32.mrb[0].mxu0
        %v5199 = vadd.f32 %v5010, %v5198
        %v5200 = vpop.f32.mrb[0].mxu0
        %v5201 = vpop.f32.mrb[0].mxu0
        %v5202 = vadd.f32 %v5010, %v5201
        %v5203 = vpop.f32.mrb[0].mxu0
        %5204 = vmatprep.mubr.bf16.mxu0 0
        %5205 = vmatmul.mubr.bf16.gmra.mrb[0].mxu0 %v4987
        %v5206 = vpop.f32.mrb[0].mxu0
        %v5207 = vadd.f32 %v5010, %v5206
        %v5208 = vpop.f32.mrb[0].mxu0
        %v5209 = vpop.f32.mrb[0].mxu0
        %v5210 = vadd.f32 %v5010, %v5209
        %v5211 = vpop.f32.mrb[0].mxu0
        %5212 = vmatprep.mubr.bf16.mxu0 0
        %5213 = vmatmul.mubr.bf16.gmra.mrb[0].mxu0 %v4988
        %v5214 = vpop.f32.mrb[0].mxu0
        %v5215 = vadd.f32 %v5010, %v5214
        %v5216 = vpop.f32.mrb[0].mxu0
        %v5217 = vpop.f32.mrb[0].mxu0
        %v5218 = vadd.f32 %v5010, %v5217
        %v5219 = vpop.f32.mrb[0].mxu0
        %5220 = vmatprep.mubr.bf16.mxu0 0
        %5221 = vmatmul.mubr.bf16.gmra.mrb[0].mxu0 %v4989
        %v5222 = vpop.f32.mrb[0].mxu0
        %v5223 = vadd.f32 %v5010, %v5222
        %v5224 = vpop.f32.mrb[0].mxu0
        %v5225 = vpop.f32.mrb[0].mxu0
        %v5226 = vadd.f32 %v5010, %v5225
        %v5227 = vpop.f32.mrb[0].mxu0
        %5228 = vmatprep.mubr.bf16.mxu0 0
        %5229 = vmatmul.mubr.bf16.gmra.mrb[0].mxu0 %v4990
        %v5230 = vpop.f32.mrb[0].mxu0
        %v5231 = vadd.f32 %v5010, %v5230
        %v5232 = vpop.f32.mrb[0].mxu0
        %v5233 = vpop.f32.mrb[0].mxu0
        %v5234 = vadd.f32 %v5010, %v5233
        %v5235 = vpop.f32.mrb[0].mxu0
        %5236 = vmatprep.mubr.bf16.mxu0 0
        %5237 = vmatmul.mubr.bf16.gmra.mrb[0].mxu0 %v4991
        %v5238 = vpop.f32.mrb[0].mxu0
        %v5239 = vadd.f32 %v5010, %v5238
        %v5240 = vpop.f32.mrb[0].mxu0
        %v5241 = vpop.f32.mrb[0].mxu0
        %v5242 = vadd.f32 %v5010, %v5241
        %v5243 = vpop.f32.mrb[0].mxu0
        %5244 = vmatprep.mubr.bf16.mxu0 0
        %5245 = vmatmul.mubr.bf16.gmra.mrb[0].mxu0 %v4992
        %v5246 = vpop.f32.mrb[0].mxu0
        %v5247 = vadd.f32 %v5010, %v5246
        %v5248 = vpop.f32.mrb[0].mxu0
        %v5249 = vpop.f32.mrb[0].mxu0
        %v5250 = vadd.f32 %v5010, %v5249
        %v5251 = vpop.f32.mrb[0].mxu0
        %5252 = vmatprep.mubr.bf16.mxu0 0
        %5253 = vmatmul.mubr.bf16.gmra.mrb[0].mxu0 %v4993
        %v5254 = vpop.f32.mrb[0].mxu0
        %v5255 = vadd.f32 %v5010, %v5254
        %v5256 = vpop.f32.mrb[0].mxu0
        %v5257 = vpop.f32.mrb[0].mxu0
        %v5258 = vadd.f32 %v5010, %v5257
        %v5259 = vpop.f32.mrb[0].mxu0
        %5260 = vmatprep.mubr.bf16.mxu0 0
        %5261 = vmatmul.mubr.bf16.gmra.mrb[0].mxu0 %v4994
        %v5262 = vpop.f32.mrb[0].mxu0
        %v5263 = vadd.f32 %v5010, %v5262
        %v5264 = vpop.f32.mrb[0].mxu0
        %v5265 = vpop.f32.mrb[0].mxu0
        %v5266 = vadd.f32 %v5010, %v5265
        %v5267 = vpop.f32.mrb[0].mxu0
        %5268 = vmatprep.mubr.bf16.mxu0 0
        %5269 = vmatmul.mubr.bf16.gmra.mrb[0].mxu0 %v4995
        %v5270 = vpop.f32.mrb[0].mxu0
        %v5271 = vadd.f32 %v5010, %v5270
        %v5272 = vpop.f32.mrb[0].mxu0
        %v5273 = vpop.f32.mrb[0].mxu0
        %v5274 = vadd.f32 %v5010, %v5273
        %v5275 = vpop.f32.mrb[0].mxu0
        %5276 = vmatprep.mubr.bf16.mxu0 0
        %5277 = vmatmul.mubr.bf16.gmra.mrb[0].mxu0 %v4996
        %v5278 = vpop.f32.mrb[0].mxu0
        %v5279 = vadd.f32 %v5010, %v5278
        %v5280 = vpop.f32.mrb[0].mxu0
        %v5281 = vpop.f32.mrb[0].mxu0
        %v5282 = vadd.f32 %v5010, %v5281
        %v5283 = vpop.f32.mrb[0].mxu0
        %5284 = vmatprep.mubr.bf16.mxu0 0
        %5285 = vmatmul.mubr.bf16.gmra.mrb[0].mxu0 %v4997
        %v5286 = vpop.f32.mrb[0].mxu0
        %v5287 = vadd.f32 %v5010, %v5286
        %v5288 = vpop.f32.mrb[0].mxu0
        %v5289 = vpop.f32.mrb[0].mxu0
        %v5290 = vadd.f32 %v5010, %v5289
        %v5291 = vpop.f32.mrb[0].mxu0
        %5292 = vmatprep.mubr.bf16.mxu0 0
        %5293 = vmatmul.mubr.bf16.gmra.mrb[0].mxu0 %v4998
        %v5294 = vpop.f32.mrb[0].mxu0
        %v5295 = vadd.f32 %v5010, %v5294
        %v5296 = vpop.f32.mrb[0].mxu0
        %v5297 = vpop.f32.mrb[0].mxu0
        %v5298 = vadd.f32 %v5010, %v5297
        %v5299 = vpop.f32.mrb[0].mxu0
        %5300 = vmatprep.mubr.bf16.mxu0 0
        %5301 = vmatmul.mubr.bf16.gmra.mrb[0].mxu0 %v4999
        %v5302 = vpop.f32.mrb[0].mxu0
        %v5303 = vadd.f32 %v5010, %v5302
        %v5304 = vpop.f32.mrb[0].mxu0
        %v5305 = vpop.f32.mrb[0].mxu0
        %v5306 = vadd.f32 %v5010, %v5305
        %v5307 = vpop.f32.mrb[0].mxu0
        %5308 = vmatprep.mubr.bf16.mxu0 0
        %5309 = vmatmul.mubr.bf16.gmra.mrb[0].mxu0 %v5000
        %v5310 = vpop.f32.mrb[0].mxu0
        %v5311 = vadd.f32 %v5010, %v5310
        %v5312 = vpop.f32.mrb[0].mxu0
        %v5313 = vpop.f32.mrb[0].mxu0
        %v5314 = vadd.f32 %v5010, %v5313
        %v5315 = vpop.f32.mrb[0].mxu0
        %5316 = vmatprep.mubr.bf16.mxu0 0
        %5317 = vmatmul.mubr.bf16.gmra.mrb[0].mxu0 %v5001
        %v5318 = vpop.f32.mrb[0].mxu0
        %v5319 = vadd.f32 %v5010, %v5318
        %v5320 = vpop.f32.mrb[0].mxu0
        %v5321 = vpop.f32.mrb[0].mxu0
        %v5322 = vadd.f32 %v5010, %v5321
        %v5323 = vpop.f32.mrb[0].mxu0
        %5324 = vmatprep.mubr.bf16.mxu0 0
        %5325 = vmatmul.mubr.bf16.gmra.mrb[0].mxu0 %v5002
        %v5326 = vpop.f32.mrb[0].mxu0
        %v5327 = vadd.f32 %v5010, %v5326
        %v5328 = vpop.f32.mrb[0].mxu0
        %v5329 = vpop.f32.mrb[0].mxu0
        %v5330 = vadd.f32 %v5010, %v5329
        %v5331 = vpop.f32.mrb[0].mxu0
        %5332 = vmatprep.mubr.bf16.mxu0 0
        %5333 = vmatmul.mubr.bf16.gmra.mrb[0].mxu0 %v5003
        %v5334 = vpop.f32.mrb[0].mxu0
        %v5335 = vadd.f32 %v5010, %v5334
        %v5336 = vpop.f32.mrb[0].mxu0
        %v5337 = vpop.f32.mrb[0].mxu0
        %v5338 = vadd.f32 %v5010, %v5337
        %v5339 = vpop.f32.mrb[0].mxu0
        %5340 = vmatprep.mubr.bf16.mxu0 0
        %5341 = vmatmul.mubr.bf16.gmra.mrb[0].mxu0 %v5004
        %v5342 = vpop.f32.mrb[0].mxu0
        %v5343 = vadd.f32 %v5010, %v5342
        %v5344 = vpop.f32.mrb[0].mxu0
        %v5345 = vpop.f32.mrb[0].mxu0
        %v5346 = vadd.f32 %v5010, %v5345
        %v5347 = vpop.f32.mrb[0].mxu0
        %5348 = vmatprep.mubr.bf16.mxu0 0
        %5349 = vmatmul.mubr.bf16.gmra.mrb[0].mxu0 %v5005
        %v5350 = vpop.f32.mrb[0].mxu0
        %v5351 = vadd.f32 %v5010, %v5350
        %v5352 = vpop.f32.mrb[0].mxu0
        %v5353 = vpop.f32.mrb[0].mxu0
        %v5354 = vadd.f32 %v5010, %v5353
        %v5355 = vpop.f32.mrb[0].mxu0
        %5356 = vdwg.mxu0
        %v5357 = vmax.f32 %v5095, 0.0
        %v5358 = vmax.f32 %v5098, 0.0
        %v5359 = vmax.f32 %v5103, 0.0
        %v5360 = vmax.f32 %v5106, 0.0
        %v5361 = vmax.f32 %v5111, 0.0
        %v5362 = vmax.f32 %v5114, 0.0
        %v5363 = vmax.f32 %v5119, 0.0
        %v5364 = vmax.f32 %v5122, 0.0
        %v5365 = vmax.f32 %v5127, 0.0
        %v5366 = vmax.f32 %v5130, 0.0
        %v5367 = vmax.f32 %v5135, 0.0
        %v5368 = vmax.f32 %v5138, 0.0
        %v5369 = vmax.f32 %v5143, 0.0
        %v5370 = vmax.f32 %v5146, 0.0
        %v5371 = vmax.f32 %v5151, 0.0
        %v5372 = vmax.f32 %v5154, 0.0
        %v5373 = vmax.f32 %v5159, 0.0
        %v5374 = vmax.f32 %v5162, 0.0
        %v5375 = vmax.f32 %v5167, 0.0
        %v5376 = vmax.f32 %v5170, 0.0
        %v5377 = vmax.f32 %v5175, 0.0
        %v5378 = vmax.f32 %v5178, 0.0
        %v5379 = vmax.f32 %v5183, 0.0
        %v5380 = vmax.f32 %v5186, 0.0
        %v5381 = vmax.f32 %v5191, 0.0
        %v5382 = vmax.f32 %v5194, 0.0
        %v5383 = vmax.f32 %v5199, 0.0
        %v5384 = vmax.f32 %v5202, 0.0
        %v5385 = vmax.f32 %v5207, 0.0
        %v5386 = vmax.f32 %v5210, 0.0
        %v5387 = vmax.f32 %v5215, 0.0
        %v5388 = vmax.f32 %v5218, 0.0
        %v5389 = vmax.f32 %v5223, 0.0
        %v5390 = vmax.f32 %v5226, 0.0
        %v5391 = vmax.f32 %v5231, 0.0
        %v5392 = vmax.f32 %v5234, 0.0
        %v5393 = vmax.f32 %v5239, 0.0
        %v5394 = vmax.f32 %v5242, 0.0
        %v5395 = vmax.f32 %v5247, 0.0
        %v5396 = vmax.f32 %v5250, 0.0
        %v5397 = vmax.f32 %v5255, 0.0
        %v5398 = vmax.f32 %v5258, 0.0
        %v5399 = vmax.f32 %v5263, 0.0
        %v5400 = vmax.f32 %v5266, 0.0
        %v5401 = vmax.f32 %v5271, 0.0
        %v5402 = vmax.f32 %v5274, 0.0
        %v5403 = vmax.f32 %v5279, 0.0
        %v5404 = vmax.f32 %v5282, 0.0
        %v5405 = vmax.f32 %v5287, 0.0
        %v5406 = vmax.f32 %v5290, 0.0
        %v5407 = vmax.f32 %v5295, 0.0
        %v5408 = vmax.f32 %v5298, 0.0
        %v5409 = vmax.f32 %v5303, 0.0
        %v5410 = vmax.f32 %v5306, 0.0
        %v5411 = vmax.f32 %v5311, 0.0
        %v5412 = vmax.f32 %v5314, 0.0
        %v5413 = vmax.f32 %v5319, 0.0
        %v5414 = vmax.f32 %v5322, 0.0
        %v5415 = vmax.f32 %v5327, 0.0
        %v5416 = vmax.f32 %v5330, 0.0
        %v5417 = vmax.f32 %v5335, 0.0
        %v5418 = vmax.f32 %v5338, 0.0
        %v5419 = vmax.f32 %v5343, 0.0
        %v5420 = vmax.f32 %v5346, 0.0
        %v5421 = vmax.f32 %v5351, 0.0
        %v5422 = vmax.f32 %v5354, 0.0
        %5423 = vst [vmem:[#allocation2] sm:$0xff] %v5357
        %5424 = vst [vmem:[#allocation2 + $0x8] sm:$0xff] %v5358
        %5425 = vst [vmem:[#allocation2 + $0x10] sm:$0xff] %v5359
        %5426 = vst [vmem:[#allocation2 + $0x18] sm:$0xff] %v5360
        %5427 = vst [vmem:[#allocation2 + $0x20] sm:$0xff] %v5361
        %5428 = vst [vmem:[#allocation2 + $0x28] sm:$0xff] %v5362
        %5429 = vst [vmem:[#allocation2 + $0x30] sm:$0xff] %v5363
        %5430 = vst [vmem:[#allocation2 + $0x38] sm:$0xff] %v5364
        %5431 = vst [vmem:[#allocation2 + $0x40] sm:$0xff] %v5365
        %5432 = vst [vmem:[#allocation2 + $0x48] sm:$0xff] %v5366
        %5433 = vst [vmem:[#allocation2 + $0x50] sm:$0xff] %v5367
        %5434 = vst [vmem:[#allocation2 + $0x58] sm:$0xff] %v5368
        %5435 = vst [vmem:[#allocation2 + $0x60] sm:$0xff] %v5369
        %5436 = vst [vmem:[#allocation2 + $0x68] sm:$0xff] %v5370
        %5437 = vst [vmem:[#allocation2 + $0x70] sm:$0xff] %v5371
        %5438 = vst [vmem:[#allocation2 + $0x78] sm:$0xff] %v5372
        %5439 = vst [vmem:[#allocation2 + $0x80] sm:$0xff] %v5373
        %5440 = vst [vmem:[#allocation2 + $0x88] sm:$0xff] %v5374
        %5441 = vst [vmem:[#allocation2 + $0x90] sm:$0xff] %v5375
        %5442 = vst [vmem:[#allocation2 + $0x98] sm:$0xff] %v5376
        %5443 = vst [vmem:[#allocation2 + $0xa0] sm:$0xff] %v5377
        %5444 = vst [vmem:[#allocation2 + $0xa8] sm:$0xff] %v5378
        %5445 = vst [vmem:[#allocation2 + $0xb0] sm:$0xff] %v5379
        %5446 = vst [vmem:[#allocation2 + $0xb8] sm:$0xff] %v5380
        %5447 = vst [vmem:[#allocation2 + $0xc0] sm:$0xff] %v5381
        %5448 = vst [vmem:[#allocation2 + $0xc8] sm:$0xff] %v5382
        %5449 = vst [vmem:[#allocation2 + $0xd0] sm:$0xff] %v5383
        %5450 = vst [vmem:[#allocation2 + $0xd8] sm:$0xff] %v5384
        %5451 = vst [vmem:[#allocation2 + $0xe0] sm:$0xff] %v5385
        %5452 = vst [vmem:[#allocation2 + $0xe8] sm:$0xff] %v5386
        %5453 = vst [vmem:[#allocation2 + $0xf0] sm:$0xff] %v5387
        %5454 = vst [vmem:[#allocation2 + $0xf8] sm:$0xff] %v5388
        %5455 = vst [vmem:[#allocation2 + $0x100] sm:$0xff] %v5389
        %5456 = vst [vmem:[#allocation2 + $0x108] sm:$0xff] %v5390
        %5457 = vst [vmem:[#allocation2 + $0x110] sm:$0xff] %v5391
        %5458 = vst [vmem:[#allocation2 + $0x118] sm:$0xff] %v5392
        %5459 = vst [vmem:[#allocation2 + $0x120] sm:$0xff] %v5393
        %5460 = vst [vmem:[#allocation2 + $0x128] sm:$0xff] %v5394
        %5461 = vst [vmem:[#allocation2 + $0x130] sm:$0xff] %v5395
        %5462 = vst [vmem:[#allocation2 + $0x138] sm:$0xff] %v5396
        %5463 = vst [vmem:[#allocation2 + $0x140] sm:$0xff] %v5397
        %5464 = vst [vmem:[#allocation2 + $0x148] sm:$0xff] %v5398
        %5465 = vst [vmem:[#allocation2 + $0x150] sm:$0xff] %v5399
        %5466 = vst [vmem:[#allocation2 + $0x158] sm:$0xff] %v5400
        %5467 = vst [vmem:[#allocation2 + $0x160] sm:$0xff] %v5401
        %5468 = vst [vmem:[#allocation2 + $0x168] sm:$0xff] %v5402
        %5469 = vst [vmem:[#allocation2 + $0x170] sm:$0xff] %v5403
        %5470 = vst [vmem:[#allocation2 + $0x178] sm:$0xff] %v5404
        %5471 = vst [vmem:[#allocation2 + $0x180] sm:$0xff] %v5405
        %5472 = vst [vmem:[#allocation2 + $0x188] sm:$0xff] %v5406
        %5473 = vst [vmem:[#allocation2 + $0x190] sm:$0xff] %v5407
        %5474 = vst [vmem:[#allocation2 + $0x198] sm:$0xff] %v5408
        %5475 = vst [vmem:[#allocation2 + $0x1a0] sm:$0xff] %v5409
        %5476 = vst [vmem:[#allocation2 + $0x1a8] sm:$0xff] %v5410
        %5477 = vst [vmem:[#allocation2 + $0x1b0] sm:$0xff] %v5411
        %5478 = vst [vmem:[#allocation2 + $0x1b8] sm:$0xff] %v5412
        %5479 = vst [vmem:[#allocation2 + $0x1c0] sm:$0xff] %v5413
        %5480 = vst [vmem:[#allocation2 + $0x1c8] sm:$0xff] %v5414
        %5481 = vst [vmem:[#allocation2 + $0x1d0] sm:$0xff] %v5415
        %5482 = vst [vmem:[#allocation2 + $0x1d8] sm:$0xff] %v5416
        %5483 = vst [vmem:[#allocation2 + $0x1e0] sm:$0xff] %v5417
        %5484 = vst [vmem:[#allocation2 + $0x1e8] sm:$0xff] %v5418
        %5485 = vst [vmem:[#allocation2 + $0x1f0] sm:$0xff] %v5419
        %5486 = vst [vmem:[#allocation2 + $0x1f8] sm:$0xff] %v5420
        %5487 = vst [vmem:[#allocation2 + $0x200] sm:$0xff] %v5421
        %5488 = vst [vmem:[#allocation2 + $0x208] sm:$0xff] %v5422
        // Predicated region
        $region105: #{tpu_custom_call.1} parent=63 // pred_check
          %p5489 = pneg %p600
        $region106: #{tpu_custom_call.1} parent=63 // pred_check_branch
          %5491 = sbr.rel (%p5489) target = $region108
        $region107: #{tpu_custom_call.1} parent=63 // pred_region
          %v5492 = vld [vmem:[#allocation2] sm:$0xff]
          %v5493 = vld [vmem:[#allocation2 + $0x8] sm:$0xff]
          %v5494 = vld [vmem:[#allocation2 + $0x10] sm:$0xff]
          %v5495 = vld [vmem:[#allocation2 + $0x18] sm:$0xff]
          %v5496 = vld [vmem:[#allocation2 + $0x20] sm:$0xff]
          %v5497 = vld [vmem:[#allocation2 + $0x28] sm:$0xff]
          %v5498 = vld [vmem:[#allocation2 + $0x30] sm:$0xff]
          %v5499 = vld [vmem:[#allocation2 + $0x38] sm:$0xff]
          %v5500 = vld [vmem:[#allocation2 + $0x40] sm:$0xff]
          %v5501 = vld [vmem:[#allocation2 + $0x48] sm:$0xff]
          %v5502 = vld [vmem:[#allocation2 + $0x50] sm:$0xff]
          %v5503 = vld [vmem:[#allocation2 + $0x58] sm:$0xff]
          %v5504 = vld [vmem:[#allocation2 + $0x60] sm:$0xff]
          %v5505 = vld [vmem:[#allocation2 + $0x68] sm:$0xff]
          %v5506 = vld [vmem:[#allocation2 + $0x70] sm:$0xff]
          %v5507 = vld [vmem:[#allocation2 + $0x78] sm:$0xff]
          %v5508 = vld [vmem:[#allocation2 + $0x80] sm:$0xff]
          %v5509 = vld [vmem:[#allocation2 + $0x88] sm:$0xff]
          %v5510 = vld [vmem:[#allocation2 + $0x90] sm:$0xff]
          %v5511 = vld [vmem:[#allocation2 + $0x98] sm:$0xff]
          %v5512 = vld [vmem:[#allocation2 + $0xa0] sm:$0xff]
          %v5513 = vld [vmem:[#allocation2 + $0xa8] sm:$0xff]
          %v5514 = vld [vmem:[#allocation2 + $0xb0] sm:$0xff]
          %v5515 = vld [vmem:[#allocation2 + $0xb8] sm:$0xff]
          %v5516 = vld [vmem:[#allocation2 + $0xc0] sm:$0xff]
          %v5517 = vld [vmem:[#allocation2 + $0xc8] sm:$0xff]
          %v5518 = vld [vmem:[#allocation2 + $0xd0] sm:$0xff]
          %v5519 = vld [vmem:[#allocation2 + $0xd8] sm:$0xff]
          %v5520 = vld [vmem:[#allocation2 + $0xe0] sm:$0xff]
          %v5521 = vld [vmem:[#allocation2 + $0xe8] sm:$0xff]
          %v5522 = vld [vmem:[#allocation2 + $0xf0] sm:$0xff]
          %v5523 = vld [vmem:[#allocation2 + $0xf8] sm:$0xff]
          %v5524 = vld [vmem:[#allocation2 + $0x100] sm:$0xff]
          %v5525 = vld [vmem:[#allocation2 + $0x108] sm:$0xff]
          %v5526 = vld [vmem:[#allocation2 + $0x110] sm:$0xff]
          %v5527 = vld [vmem:[#allocation2 + $0x118] sm:$0xff]
          %v5528 = vld [vmem:[#allocation2 + $0x120] sm:$0xff]
          %v5529 = vld [vmem:[#allocation2 + $0x128] sm:$0xff]
          %v5530 = vld [vmem:[#allocation2 + $0x130] sm:$0xff]
          %v5531 = vld [vmem:[#allocation2 + $0x138] sm:$0xff]
          %v5532 = vld [vmem:[#allocation2 + $0x140] sm:$0xff]
          %v5533 = vld [vmem:[#allocation2 + $0x148] sm:$0xff]
          %v5534 = vld [vmem:[#allocation2 + $0x150] sm:$0xff]
          %v5535 = vld [vmem:[#allocation2 + $0x158] sm:$0xff]
          %v5536 = vld [vmem:[#allocation2 + $0x160] sm:$0xff]
          %v5537 = vld [vmem:[#allocation2 + $0x168] sm:$0xff]
          %v5538 = vld [vmem:[#allocation2 + $0x170] sm:$0xff]
          %v5539 = vld [vmem:[#allocation2 + $0x178] sm:$0xff]
          %v5540 = vld [vmem:[#allocation2 + $0x180] sm:$0xff]
          %v5541 = vld [vmem:[#allocation2 + $0x188] sm:$0xff]
          %v5542 = vld [vmem:[#allocation2 + $0x190] sm:$0xff]
          %v5543 = vld [vmem:[#allocation2 + $0x198] sm:$0xff]
          %v5544 = vld [vmem:[#allocation2 + $0x1a0] sm:$0xff]
          %v5545 = vld [vmem:[#allocation2 + $0x1a8] sm:$0xff]
          %v5546 = vld [vmem:[#allocation2 + $0x1b0] sm:$0xff]
          %v5547 = vld [vmem:[#allocation2 + $0x1b8] sm:$0xff]
          %v5548 = vld [vmem:[#allocation2 + $0x1c0] sm:$0xff]
          %v5549 = vld [vmem:[#allocation2 + $0x1c8] sm:$0xff]
          %v5550 = vld [vmem:[#allocation2 + $0x1d0] sm:$0xff]
          %v5551 = vld [vmem:[#allocation2 + $0x1d8] sm:$0xff]
          %v5552 = vld [vmem:[#allocation2 + $0x1e0] sm:$0xff]
          %v5553 = vld [vmem:[#allocation2 + $0x1e8] sm:$0xff]
          %v5554 = vld [vmem:[#allocation2 + $0x1f0] sm:$0xff]
          %v5555 = vld [vmem:[#allocation2 + $0x1f8] sm:$0xff]
          %v5556 = vld [vmem:[#allocation2 + $0x200] sm:$0xff]
          %v5557 = vld [vmem:[#allocation2 + $0x208] sm:$0xff]
          %v5558 = vmul.f32 %v5492, %v999
          %v5559 = vmul.f32 %v5493, %v1000
          %v5560 = vmul.f32 %v5494, %v1001
          %v5561 = vmul.f32 %v5495, %v1002
          %v5562 = vmul.f32 %v5496, %v1003
          %v5563 = vmul.f32 %v5497, %v1004
          %v5564 = vmul.f32 %v5498, %v1005
          %v5565 = vmul.f32 %v5499, %v1006
          %v5566 = vmul.f32 %v5500, %v1007
          %v5567 = vmul.f32 %v5501, %v1008
          %v5568 = vmul.f32 %v5502, %v1009
          %v5569 = vmul.f32 %v5503, %v1010
          %v5570 = vmul.f32 %v5504, %v1011
          %v5571 = vmul.f32 %v5505, %v1012
          %v5572 = vmul.f32 %v5506, %v1013
          %v5573 = vmul.f32 %v5507, %v1014
          %v5574 = vmul.f32 %v5508, %v1015
          %v5575 = vmul.f32 %v5509, %v1016
          %v5576 = vmul.f32 %v5510, %v1017
          %v5577 = vmul.f32 %v5511, %v1018
          %v5578 = vmul.f32 %v5512, %v1019
          %v5579 = vmul.f32 %v5513, %v1020
          %v5580 = vmul.f32 %v5514, %v1021
          %v5581 = vmul.f32 %v5515, %v1022
          %v5582 = vmul.f32 %v5516, %v1023
          %v5583 = vmul.f32 %v5517, %v1024
          %v5584 = vmul.f32 %v5518, %v1025
          %v5585 = vmul.f32 %v5519, %v1026
          %v5586 = vmul.f32 %v5520, %v1027
          %v5587 = vmul.f32 %v5521, %v1028
          %v5588 = vmul.f32 %v5522, %v1029
          %v5589 = vmul.f32 %v5523, %v1030
          %v5590 = vmul.f32 %v5524, %v1031
          %v5591 = vmul.f32 %v5525, %v1032
          %v5592 = vmul.f32 %v5526, %v1033
          %v5593 = vmul.f32 %v5527, %v1034
          %v5594 = vmul.f32 %v5528, %v1035
          %v5595 = vmul.f32 %v5529, %v1036
          %v5596 = vmul.f32 %v5530, %v1037
          %v5597 = vmul.f32 %v5531, %v1038
          %v5598 = vmul.f32 %v5532, %v1039
          %v5599 = vmul.f32 %v5533, %v1040
          %v5600 = vmul.f32 %v5534, %v1041
          %v5601 = vmul.f32 %v5535, %v1042
          %v5602 = vmul.f32 %v5536, %v1043
          %v5603 = vmul.f32 %v5537, %v1044
          %v5604 = vmul.f32 %v5538, %v1045
          %v5605 = vmul.f32 %v5539, %v1046
          %v5606 = vmul.f32 %v5540, %v1047
          %v5607 = vmul.f32 %v5541, %v1048
          %v5608 = vmul.f32 %v5542, %v1049
          %v5609 = vmul.f32 %v5543, %v1050
          %v5610 = vmul.f32 %v5544, %v1051
          %v5611 = vmul.f32 %v5545, %v1052
          %v5612 = vmul.f32 %v5546, %v1053
          %v5613 = vmul.f32 %v5547, %v1054
          %v5614 = vmul.f32 %v5548, %v1055
          %v5615 = vmul.f32 %v5549, %v1056
          %v5616 = vmul.f32 %v5550, %v1057
          %v5617 = vmul.f32 %v5551, %v1058
          %v5618 = vmul.f32 %v5552, %v1059
          %v5619 = vmul.f32 %v5553, %v1060
          %v5620 = vmul.f32 %v5554, %v1061
          %v5621 = vmul.f32 %v5555, %v1062
          %v5622 = vmul.f32 %v5556, %v1063
          %v5623 = vmul.f32 %v5557, %v1064
          %5624 = vst [vmem:[#allocation2] sm:$0xff] %v5558
          %5625 = vst [vmem:[#allocation2 + $0x8] sm:$0xff] %v5559
          %5626 = vst [vmem:[#allocation2 + $0x10] sm:$0xff] %v5560
          %5627 = vst [vmem:[#allocation2 + $0x18] sm:$0xff] %v5561
          %5628 = vst [vmem:[#allocation2 + $0x20] sm:$0xff] %v5562
          %5629 = vst [vmem:[#allocation2 + $0x28] sm:$0xff] %v5563
          %5630 = vst [vmem:[#allocation2 + $0x30] sm:$0xff] %v5564
          %5631 = vst [vmem:[#allocation2 + $0x38] sm:$0xff] %v5565
          %5632 = vst [vmem:[#allocation2 + $0x40] sm:$0xff] %v5566
          %5633 = vst [vmem:[#allocation2 + $0x48] sm:$0xff] %v5567
          %5634 = vst [vmem:[#allocation2 + $0x50] sm:$0xff] %v5568
          %5635 = vst [vmem:[#allocation2 + $0x58] sm:$0xff] %v5569
          %5636 = vst [vmem:[#allocation2 + $0x60] sm:$0xff] %v5570
          %5637 = vst [vmem:[#allocation2 + $0x68] sm:$0xff] %v5571
          %5638 = vst [vmem:[#allocation2 + $0x70] sm:$0xff] %v5572
          %5639 = vst [vmem:[#allocation2 + $0x78] sm:$0xff] %v5573
          %5640 = vst [vmem:[#allocation2 + $0x80] sm:$0xff] %v5574
          %5641 = vst [vmem:[#allocation2 + $0x88] sm:$0xff] %v5575
          %5642 = vst [vmem:[#allocation2 + $0x90] sm:$0xff] %v5576
          %5643 = vst [vmem:[#allocation2 + $0x98] sm:$0xff] %v5577
          %5644 = vst [vmem:[#allocation2 + $0xa0] sm:$0xff] %v5578
          %5645 = vst [vmem:[#allocation2 + $0xa8] sm:$0xff] %v5579
          %5646 = vst [vmem:[#allocation2 + $0xb0] sm:$0xff] %v5580
          %5647 = vst [vmem:[#allocation2 + $0xb8] sm:$0xff] %v5581
          %5648 = vst [vmem:[#allocation2 + $0xc0] sm:$0xff] %v5582
          %5649 = vst [vmem:[#allocation2 + $0xc8] sm:$0xff] %v5583
          %5650 = vst [vmem:[#allocation2 + $0xd0] sm:$0xff] %v5584
          %5651 = vst [vmem:[#allocation2 + $0xd8] sm:$0xff] %v5585
          %5652 = vst [vmem:[#allocation2 + $0xe0] sm:$0xff] %v5586
          %5653 = vst [vmem:[#allocation2 + $0xe8] sm:$0xff] %v5587
          %5654 = vst [vmem:[#allocation2 + $0xf0] sm:$0xff] %v5588
          %5655 = vst [vmem:[#allocation2 + $0xf8] sm:$0xff] %v5589
          %5656 = vst [vmem:[#allocation2 + $0x100] sm:$0xff] %v5590
          %5657 = vst [vmem:[#allocation2 + $0x108] sm:$0xff] %v5591
          %5658 = vst [vmem:[#allocation2 + $0x110] sm:$0xff] %v5592
          %5659 = vst [vmem:[#allocation2 + $0x118] sm:$0xff] %v5593
          %5660 = vst [vmem:[#allocation2 + $0x120] sm:$0xff] %v5594
          %5661 = vst [vmem:[#allocation2 + $0x128] sm:$0xff] %v5595
          %5662 = vst [vmem:[#allocation2 + $0x130] sm:$0xff] %v5596
          %5663 = vst [vmem:[#allocation2 + $0x138] sm:$0xff] %v5597
          %5664 = vst [vmem:[#allocation2 + $0x140] sm:$0xff] %v5598
          %5665 = vst [vmem:[#allocation2 + $0x148] sm:$0xff] %v5599
          %5666 = vst [vmem:[#allocation2 + $0x150] sm:$0xff] %v5600
          %5667 = vst [vmem:[#allocation2 + $0x158] sm:$0xff] %v5601
          %5668 = vst [vmem:[#allocation2 + $0x160] sm:$0xff] %v5602
          %5669 = vst [vmem:[#allocation2 + $0x168] sm:$0xff] %v5603
          %5670 = vst [vmem:[#allocation2 + $0x170] sm:$0xff] %v5604
          %5671 = vst [vmem:[#allocation2 + $0x178] sm:$0xff] %v5605
          %5672 = vst [vmem:[#allocation2 + $0x180] sm:$0xff] %v5606
          %5673 = vst [vmem:[#allocation2 + $0x188] sm:$0xff] %v5607
          %5674 = vst [vmem:[#allocation2 + $0x190] sm:$0xff] %v5608
          %5675 = vst [vmem:[#allocation2 + $0x198] sm:$0xff] %v5609
          %5676 = vst [vmem:[#allocation2 + $0x1a0] sm:$0xff] %v5610
          %5677 = vst [vmem:[#allocation2 + $0x1a8] sm:$0xff] %v5611
          %5678 = vst [vmem:[#allocation2 + $0x1b0] sm:$0xff] %v5612
          %5679 = vst [vmem:[#allocation2 + $0x1b8] sm:$0xff] %v5613
          %5680 = vst [vmem:[#allocation2 + $0x1c0] sm:$0xff] %v5614
          %5681 = vst [vmem:[#allocation2 + $0x1c8] sm:$0xff] %v5615
          %5682 = vst [vmem:[#allocation2 + $0x1d0] sm:$0xff] %v5616
          %5683 = vst [vmem:[#allocation2 + $0x1d8] sm:$0xff] %v5617
          %5684 = vst [vmem:[#allocation2 + $0x1e0] sm:$0xff] %v5618
          %5685 = vst [vmem:[#allocation2 + $0x1e8] sm:$0xff] %v5619
          %5686 = vst [vmem:[#allocation2 + $0x1f0] sm:$0xff] %v5620
          %5687 = vst [vmem:[#allocation2 + $0x1f8] sm:$0xff] %v5621
          %5688 = vst [vmem:[#allocation2 + $0x200] sm:$0xff] %v5622
          %5689 = vst [vmem:[#allocation2 + $0x208] sm:$0xff] %v5623
        $region108: #{tpu_custom_call.1} parent=63 // pred_fallthru
          _
        %v5690 = vld [vmem:[#allocation2] sm:$0xff]
        %v5691 = vld [vmem:[#allocation2 + $0x8] sm:$0xff]
        %v5692 = vld [vmem:[#allocation2 + $0x10] sm:$0xff]
        %v5693 = vld [vmem:[#allocation2 + $0x18] sm:$0xff]
        %v5694 = vld [vmem:[#allocation2 + $0x20] sm:$0xff]
        %v5695 = vld [vmem:[#allocation2 + $0x28] sm:$0xff]
        %v5696 = vld [vmem:[#allocation2 + $0x30] sm:$0xff]
        %v5697 = vld [vmem:[#allocation2 + $0x38] sm:$0xff]
        %v5698 = vld [vmem:[#allocation2 + $0x40] sm:$0xff]
        %v5699 = vld [vmem:[#allocation2 + $0x48] sm:$0xff]
        %v5700 = vld [vmem:[#allocation2 + $0x50] sm:$0xff]
        %v5701 = vld [vmem:[#allocation2 + $0x58] sm:$0xff]
        %v5702 = vld [vmem:[#allocation2 + $0x60] sm:$0xff]
        %v5703 = vld [vmem:[#allocation2 + $0x68] sm:$0xff]
        %v5704 = vld [vmem:[#allocation2 + $0x70] sm:$0xff]
        %v5705 = vld [vmem:[#allocation2 + $0x78] sm:$0xff]
        %v5706 = vld [vmem:[#allocation2 + $0x80] sm:$0xff]
        %v5707 = vld [vmem:[#allocation2 + $0x88] sm:$0xff]
        %v5708 = vld [vmem:[#allocation2 + $0x90] sm:$0xff]
        %v5709 = vld [vmem:[#allocation2 + $0x98] sm:$0xff]
        %v5710 = vld [vmem:[#allocation2 + $0xa0] sm:$0xff]
        %v5711 = vld [vmem:[#allocation2 + $0xa8] sm:$0xff]
        %v5712 = vld [vmem:[#allocation2 + $0xb0] sm:$0xff]
        %v5713 = vld [vmem:[#allocation2 + $0xb8] sm:$0xff]
        %v5714 = vld [vmem:[#allocation2 + $0xc0] sm:$0xff]
        %v5715 = vld [vmem:[#allocation2 + $0xc8] sm:$0xff]
        %v5716 = vld [vmem:[#allocation2 + $0xd0] sm:$0xff]
        %v5717 = vld [vmem:[#allocation2 + $0xd8] sm:$0xff]
        %v5718 = vld [vmem:[#allocation2 + $0xe0] sm:$0xff]
        %v5719 = vld [vmem:[#allocation2 + $0xe8] sm:$0xff]
        %v5720 = vld [vmem:[#allocation2 + $0xf0] sm:$0xff]
        %v5721 = vld [vmem:[#allocation2 + $0xf8] sm:$0xff]
        %v5722 = vld [vmem:[#allocation2 + $0x100] sm:$0xff]
        %v5723 = vld [vmem:[#allocation2 + $0x108] sm:$0xff]
        %v5724 = vld [vmem:[#allocation2 + $0x110] sm:$0xff]
        %v5725 = vld [vmem:[#allocation2 + $0x118] sm:$0xff]
        %v5726 = vld [vmem:[#allocation2 + $0x120] sm:$0xff]
        %v5727 = vld [vmem:[#allocation2 + $0x128] sm:$0xff]
        %v5728 = vld [vmem:[#allocation2 + $0x130] sm:$0xff]
        %v5729 = vld [vmem:[#allocation2 + $0x138] sm:$0xff]
        %v5730 = vld [vmem:[#allocation2 + $0x140] sm:$0xff]
        %v5731 = vld [vmem:[#allocation2 + $0x148] sm:$0xff]
        %v5732 = vld [vmem:[#allocation2 + $0x150] sm:$0xff]
        %v5733 = vld [vmem:[#allocation2 + $0x158] sm:$0xff]
        %v5734 = vld [vmem:[#allocation2 + $0x160] sm:$0xff]
        %v5735 = vld [vmem:[#allocation2 + $0x168] sm:$0xff]
        %v5736 = vld [vmem:[#allocation2 + $0x170] sm:$0xff]
        %v5737 = vld [vmem:[#allocation2 + $0x178] sm:$0xff]
        %v5738 = vld [vmem:[#allocation2 + $0x180] sm:$0xff]
        %v5739 = vld [vmem:[#allocation2 + $0x188] sm:$0xff]
        %v5740 = vld [vmem:[#allocation2 + $0x190] sm:$0xff]
        %v5741 = vld [vmem:[#allocation2 + $0x198] sm:$0xff]
        %v5742 = vld [vmem:[#allocation2 + $0x1a0] sm:$0xff]
        %v5743 = vld [vmem:[#allocation2 + $0x1a8] sm:$0xff]
        %v5744 = vld [vmem:[#allocation2 + $0x1b0] sm:$0xff]
        %v5745 = vld [vmem:[#allocation2 + $0x1b8] sm:$0xff]
        %v5746 = vld [vmem:[#allocation2 + $0x1c0] sm:$0xff]
        %v5747 = vld [vmem:[#allocation2 + $0x1c8] sm:$0xff]
        %v5748 = vld [vmem:[#allocation2 + $0x1d0] sm:$0xff]
        %v5749 = vld [vmem:[#allocation2 + $0x1d8] sm:$0xff]
        %v5750 = vld [vmem:[#allocation2 + $0x1e0] sm:$0xff]
        %v5751 = vld [vmem:[#allocation2 + $0x1e8] sm:$0xff]
        %v5752 = vld [vmem:[#allocation2 + $0x1f0] sm:$0xff]
        %v5753 = vld [vmem:[#allocation2 + $0x1f8] sm:$0xff]
        %v5754 = vld [vmem:[#allocation2 + $0x200] sm:$0xff]
        %v5755 = vld [vmem:[#allocation2 + $0x208] sm:$0xff]
        %s5756 = scalar_lea.vmem [#allocation11], 16
        %v5757 = vld [vmem:[%s5756] sm:$0xff]
        %s5758 = scalar_lea.vmem [#allocation12], 128
        %v5759 = vld [vmem:[%s5758] sm:$0xf]
        %v5760 = vld [vmem:[%s5758 + $0x4] sm:$0xf]
        %v5761 = vld [vmem:[%s5758 + $0x8] sm:$0xf]
        %v5762 = vld [vmem:[%s5758 + $0xc] sm:$0xf]
        %v5763 = vld [vmem:[%s5758 + $0x10] sm:$0xf]
        %v5764 = vld [vmem:[%s5758 + $0x14] sm:$0xf]
        %v5765 = vld [vmem:[%s5758 + $0x18] sm:$0xf]
        %v5766 = vld [vmem:[%s5758 + $0x1c] sm:$0xf]
        %v5767 = vld [vmem:[%s5758 + $0x20] sm:$0xf]
        %v5768 = vld [vmem:[%s5758 + $0x24] sm:$0xf]
        %v5769 = vld [vmem:[%s5758 + $0x28] sm:$0xf]
        %v5770 = vld [vmem:[%s5758 + $0x2c] sm:$0xf]
        %v5771 = vld [vmem:[%s5758 + $0x30] sm:$0xf]
        %v5772 = vld [vmem:[%s5758 + $0x34] sm:$0xf]
        %v5773 = vld [vmem:[%s5758 + $0x38] sm:$0xf]
        %v5774 = vld [vmem:[%s5758 + $0x3c] sm:$0xf]
        %s5775 = scalar_lea.vmem %s8, 2
        %v5776 = vld [vmem:[%s5775] sm:$0x1]
        %v5777 = vlaneseq
        %v5778 = vshrl.u32 %v5777, 7
        %v5779 = vsub.s32 1, %v5778
        %v5780 = vrot.slane %v5757, %v5779
        %v5781 = vmul.f32 %v5690, %v5780
        %v5782 = vmul.f32 %v5691, %v5780
        %v5783 = vmul.f32 %v5692, %v5780
        %v5784 = vmul.f32 %v5693, %v5780
        %v5785 = vmul.f32 %v5694, %v5780
        %v5786 = vmul.f32 %v5695, %v5780
        %v5787 = vmul.f32 %v5696, %v5780
        %v5788 = vmul.f32 %v5697, %v5780
        %v5789 = vmul.f32 %v5698, %v5780
        %v5790 = vmul.f32 %v5699, %v5780
        %v5791 = vmul.f32 %v5700, %v5780
        %v5792 = vmul.f32 %v5701, %v5780
        %v5793 = vmul.f32 %v5702, %v5780
        %v5794 = vmul.f32 %v5703, %v5780
        %v5795 = vmul.f32 %v5704, %v5780
        %v5796 = vmul.f32 %v5705, %v5780
        %v5797 = vmul.f32 %v5706, %v5780
        %v5798 = vmul.f32 %v5707, %v5780
        %v5799 = vmul.f32 %v5708, %v5780
        %v5800 = vmul.f32 %v5709, %v5780
        %v5801 = vmul.f32 %v5710, %v5780
        %v5802 = vmul.f32 %v5711, %v5780
        %v5803 = vmul.f32 %v5712, %v5780
        %v5804 = vmul.f32 %v5713, %v5780
        %v5805 = vmul.f32 %v5714, %v5780
        %v5806 = vmul.f32 %v5715, %v5780
        %v5807 = vmul.f32 %v5716, %v5780
        %v5808 = vmul.f32 %v5717, %v5780
        %v5809 = vmul.f32 %v5718, %v5780
        %v5810 = vmul.f32 %v5719, %v5780
        %v5811 = vmul.f32 %v5720, %v5780
        %v5812 = vmul.f32 %v5721, %v5780
        %v5813 = vmul.f32 %v5722, %v5780
        %v5814 = vmul.f32 %v5723, %v5780
        %v5815 = vmul.f32 %v5724, %v5780
        %v5816 = vmul.f32 %v5725, %v5780
        %v5817 = vmul.f32 %v5726, %v5780
        %v5818 = vmul.f32 %v5727, %v5780
        %v5819 = vmul.f32 %v5728, %v5780
        %v5820 = vmul.f32 %v5729, %v5780
        %v5821 = vmul.f32 %v5730, %v5780
        %v5822 = vmul.f32 %v5731, %v5780
        %v5823 = vmul.f32 %v5732, %v5780
        %v5824 = vmul.f32 %v5733, %v5780
        %v5825 = vmul.f32 %v5734, %v5780
        %v5826 = vmul.f32 %v5735, %v5780
        %v5827 = vmul.f32 %v5736, %v5780
        %v5828 = vmul.f32 %v5737, %v5780
        %v5829 = vmul.f32 %v5738, %v5780
        %v5830 = vmul.f32 %v5739, %v5780
        %v5831 = vmul.f32 %v5740, %v5780
        %v5832 = vmul.f32 %v5741, %v5780
        %v5833 = vmul.f32 %v5742, %v5780
        %v5834 = vmul.f32 %v5743, %v5780
        %v5835 = vmul.f32 %v5744, %v5780
        %v5836 = vmul.f32 %v5745, %v5780
        %v5837 = vmul.f32 %v5746, %v5780
        %v5838 = vmul.f32 %v5747, %v5780
        %v5839 = vmul.f32 %v5748, %v5780
        %v5840 = vmul.f32 %v5749, %v5780
        %v5841 = vmul.f32 %v5750, %v5780
        %v5842 = vmul.f32 %v5751, %v5780
        %v5843 = vmul.f32 %v5752, %v5780
        %v5844 = vmul.f32 %v5753, %v5780
        %v5845 = vmul.f32 %v5754, %v5780
        %v5846 = vmul.f32 %v5755, %v5780
        %v5847 = vrot.slane %v5690, 7
        %v5848 = vrot.slane %v5691, 7
        %v5849 = vrot.slane %v5692, 7
        %v5850 = vrot.slane %v5693, 7
        %v5851 = vrot.slane %v5694, 7
        %v5852 = vrot.slane %v5695, 7
        %v5853 = vrot.slane %v5696, 7
        %v5854 = vrot.slane %v5697, 7
        %v5855 = vrot.slane %v5698, 7
        %v5856 = vrot.slane %v5699, 7
        %v5857 = vrot.slane %v5700, 7
        %v5858 = vrot.slane %v5701, 7
        %v5859 = vrot.slane %v5702, 7
        %v5860 = vrot.slane %v5703, 7
        %v5861 = vrot.slane %v5704, 7
        %v5862 = vrot.slane %v5705, 7
        %v5863 = vrot.slane %v5706, 7
        %v5864 = vrot.slane %v5707, 7
        %v5865 = vrot.slane %v5708, 7
        %v5866 = vrot.slane %v5709, 7
        %v5867 = vrot.slane %v5710, 7
        %v5868 = vrot.slane %v5711, 7
        %v5869 = vrot.slane %v5712, 7
        %v5870 = vrot.slane %v5713, 7
        %v5871 = vrot.slane %v5714, 7
        %v5872 = vrot.slane %v5715, 7
        %v5873 = vrot.slane %v5716, 7
        %v5874 = vrot.slane %v5717, 7
        %v5875 = vrot.slane %v5718, 7
        %v5876 = vrot.slane %v5719, 7
        %v5877 = vrot.slane %v5720, 7
        %v5878 = vrot.slane %v5721, 7
        %v5879 = vrot.slane %v5722, 7
        %v5880 = vrot.slane %v5723, 7
        %v5881 = vrot.slane %v5724, 7
        %v5882 = vrot.slane %v5725, 7
        %v5883 = vrot.slane %v5726, 7
        %v5884 = vrot.slane %v5727, 7
        %v5885 = vrot.slane %v5728, 7
        %v5886 = vrot.slane %v5729, 7
        %v5887 = vrot.slane %v5730, 7
        %v5888 = vrot.slane %v5731, 7
        %v5889 = vrot.slane %v5732, 7
        %v5890 = vrot.slane %v5733, 7
        %v5891 = vrot.slane %v5734, 7
        %v5892 = vrot.slane %v5735, 7
        %v5893 = vrot.slane %v5736, 7
        %v5894 = vrot.slane %v5737, 7
        %v5895 = vrot.slane %v5738, 7
        %v5896 = vrot.slane %v5739, 7
        %v5897 = vrot.slane %v5740, 7
        %v5898 = vrot.slane %v5741, 7
        %v5899 = vrot.slane %v5742, 7
        %v5900 = vrot.slane %v5743, 7
        %v5901 = vrot.slane %v5744, 7
        %v5902 = vrot.slane %v5745, 7
        %v5903 = vrot.slane %v5746, 7
        %v5904 = vrot.slane %v5747, 7
        %v5905 = vrot.slane %v5748, 7
        %v5906 = vrot.slane %v5749, 7
        %v5907 = vrot.slane %v5750, 7
        %v5908 = vrot.slane %v5751, 7
        %v5909 = vrot.slane %v5752, 7
        %v5910 = vrot.slane %v5753, 7
        %v5911 = vrot.slane %v5754, 7
        %v5912 = vrot.slane %v5755, 7
        %v5913 = vsel %vm1684, %v5911, %v5912
        %v5914 = vsel %vm1684, %v5910, %v5911
        %v5915 = vsel %vm1684, %v5909, %v5910
        %v5916 = vsel %vm1684, %v5908, %v5909
        %v5917 = vsel %vm1684, %v5907, %v5908
        %v5918 = vsel %vm1684, %v5906, %v5907
        %v5919 = vsel %vm1684, %v5905, %v5906
        %v5920 = vsel %vm1684, %v5904, %v5905
        %v5921 = vsel %vm1684, %v5903, %v5904
        %v5922 = vsel %vm1684, %v5902, %v5903
        %v5923 = vsel %vm1684, %v5901, %v5902
        %v5924 = vsel %vm1684, %v5900, %v5901
        %v5925 = vsel %vm1684, %v5899, %v5900
        %v5926 = vsel %vm1684, %v5898, %v5899
        %v5927 = vsel %vm1684, %v5897, %v5898
        %v5928 = vsel %vm1684, %v5896, %v5897
        %v5929 = vsel %vm1684, %v5895, %v5896
        %v5930 = vsel %vm1684, %v5894, %v5895
        %v5931 = vsel %vm1684, %v5893, %v5894
        %v5932 = vsel %vm1684, %v5892, %v5893
        %v5933 = vsel %vm1684, %v5891, %v5892
        %v5934 = vsel %vm1684, %v5890, %v5891
        %v5935 = vsel %vm1684, %v5889, %v5890
        %v5936 = vsel %vm1684, %v5888, %v5889
        %v5937 = vsel %vm1684, %v5887, %v5888
        %v5938 = vsel %vm1684, %v5886, %v5887
        %v5939 = vsel %vm1684, %v5885, %v5886
        %v5940 = vsel %vm1684, %v5884, %v5885
        %v5941 = vsel %vm1684, %v5883, %v5884
        %v5942 = vsel %vm1684, %v5882, %v5883
        %v5943 = vsel %vm1684, %v5881, %v5882
        %v5944 = vsel %vm1684, %v5880, %v5881
        %v5945 = vsel %vm1684, %v5879, %v5880
        %v5946 = vsel %vm1684, %v5878, %v5879
        %v5947 = vsel %vm1684, %v5877, %v5878
        %v5948 = vsel %vm1684, %v5876, %v5877
        %v5949 = vsel %vm1684, %v5875, %v5876
        %v5950 = vsel %vm1684, %v5874, %v5875
        %v5951 = vsel %vm1684, %v5873, %v5874
        %v5952 = vsel %vm1684, %v5872, %v5873
        %v5953 = vsel %vm1684, %v5871, %v5872
        %v5954 = vsel %vm1684, %v5870, %v5871
        %v5955 = vsel %vm1684, %v5869, %v5870
        %v5956 = vsel %vm1684, %v5868, %v5869
        %v5957 = vsel %vm1684, %v5867, %v5868
        %v5958 = vsel %vm1684, %v5866, %v5867
        %v5959 = vsel %vm1684, %v5865, %v5866
        %v5960 = vsel %vm1684, %v5864, %v5865
        %v5961 = vsel %vm1684, %v5863, %v5864
        %v5962 = vsel %vm1684, %v5862, %v5863
        %v5963 = vsel %vm1684, %v5861, %v5862
        %v5964 = vsel %vm1684, %v5860, %v5861
        %v5965 = vsel %vm1684, %v5859, %v5860
        %v5966 = vsel %vm1684, %v5858, %v5859
        %v5967 = vsel %vm1684, %v5857, %v5858
        %v5968 = vsel %vm1684, %v5856, %v5857
        %v5969 = vsel %vm1684, %v5855, %v5856
        %v5970 = vsel %vm1684, %v5854, %v5855
        %v5971 = vsel %vm1684, %v5853, %v5854
        %v5972 = vsel %vm1684, %v5852, %v5853
        %v5973 = vsel %vm1684, %v5851, %v5852
        %v5974 = vsel %vm1684, %v5850, %v5851
        %v5975 = vsel %vm1684, %v5849, %v5850
        %v5976 = vsel %vm1684, %v5848, %v5849
        %v5977 = vsel %vm1684, %v5847, %v5848
        %v5978 = vsel %vm1684, %v5912, %v5847
        %v5979 = vlaneseq
        %v5980 = vshrl.u32 %v5979, 7
        %v5981 = vsub.s32 0, %v5980
        %v5982 = vrot.slane %v5757, %v5981
        %v5983 = vmul.f32 %v5978, %v5982
        %v5984 = vmul.f32 %v5977, %v5982
        %v5985 = vmul.f32 %v5976, %v5982
        %v5986 = vmul.f32 %v5975, %v5982
        %v5987 = vmul.f32 %v5974, %v5982
        %v5988 = vmul.f32 %v5973, %v5982
        %v5989 = vmul.f32 %v5972, %v5982
        %v5990 = vmul.f32 %v5971, %v5982
        %v5991 = vmul.f32 %v5970, %v5982
        %v5992 = vmul.f32 %v5969, %v5982
        %v5993 = vmul.f32 %v5968, %v5982
        %v5994 = vmul.f32 %v5967, %v5982
        %v5995 = vmul.f32 %v5966, %v5982
        %v5996 = vmul.f32 %v5965, %v5982
        %v5997 = vmul.f32 %v5964, %v5982
        %v5998 = vmul.f32 %v5963, %v5982
        %v5999 = vmul.f32 %v5962, %v5982
        %v6000 = vmul.f32 %v5961, %v5982
        %v6001 = vmul.f32 %v5960, %v5982
        %v6002 = vmul.f32 %v5959, %v5982
        %v6003 = vmul.f32 %v5958, %v5982
        %v6004 = vmul.f32 %v5957, %v5982
        %v6005 = vmul.f32 %v5956, %v5982
        %v6006 = vmul.f32 %v5955, %v5982
        %v6007 = vmul.f32 %v5954, %v5982
        %v6008 = vmul.f32 %v5953, %v5982
        %v6009 = vmul.f32 %v5952, %v5982
        %v6010 = vmul.f32 %v5951, %v5982
        %v6011 = vmul.f32 %v5950, %v5982
        %v6012 = vmul.f32 %v5949, %v5982
        %v6013 = vmul.f32 %v5948, %v5982
        %v6014 = vmul.f32 %v5947, %v5982
        %v6015 = vmul.f32 %v5946, %v5982
        %v6016 = vmul.f32 %v5945, %v5982
        %v6017 = vmul.f32 %v5944, %v5982
        %v6018 = vmul.f32 %v5943, %v5982
        %v6019 = vmul.f32 %v5942, %v5982
        %v6020 = vmul.f32 %v5941, %v5982
        %v6021 = vmul.f32 %v5940, %v5982
        %v6022 = vmul.f32 %v5939, %v5982
        %v6023 = vmul.f32 %v5938, %v5982
        %v6024 = vmul.f32 %v5937, %v5982
        %v6025 = vmul.f32 %v5936, %v5982
        %v6026 = vmul.f32 %v5935, %v5982
        %v6027 = vmul.f32 %v5934, %v5982
        %v6028 = vmul.f32 %v5933, %v5982
        %v6029 = vmul.f32 %v5932, %v5982
        %v6030 = vmul.f32 %v5931, %v5982
        %v6031 = vmul.f32 %v5930, %v5982
        %v6032 = vmul.f32 %v5929, %v5982
        %v6033 = vmul.f32 %v5928, %v5982
        %v6034 = vmul.f32 %v5927, %v5982
        %v6035 = vmul.f32 %v5926, %v5982
        %v6036 = vmul.f32 %v5925, %v5982
        %v6037 = vmul.f32 %v5924, %v5982
        %v6038 = vmul.f32 %v5923, %v5982
        %v6039 = vmul.f32 %v5922, %v5982
        %v6040 = vmul.f32 %v5921, %v5982
        %v6041 = vmul.f32 %v5920, %v5982
        %v6042 = vmul.f32 %v5919, %v5982
        %v6043 = vmul.f32 %v5918, %v5982
        %v6044 = vmul.f32 %v5917, %v5982
        %v6045 = vmul.f32 %v5916, %v5982
        %v6046 = vmul.f32 %v5915, %v5982
        %v6047 = vmul.f32 %v5914, %v5982
        %v6048 = vmul.f32 %v5913, %v5982
        %v6049 = vadd.f32 %v5781, %v5983
        %v6050 = vadd.f32 %v5782, %v5984
        %v6051 = vadd.f32 %v5783, %v5985
        %v6052 = vadd.f32 %v5784, %v5986
        %v6053 = vadd.f32 %v5785, %v5987
        %v6054 = vadd.f32 %v5786, %v5988
        %v6055 = vadd.f32 %v5787, %v5989
        %v6056 = vadd.f32 %v5788, %v5990
        %v6057 = vadd.f32 %v5789, %v5991
        %v6058 = vadd.f32 %v5790, %v5992
        %v6059 = vadd.f32 %v5791, %v5993
        %v6060 = vadd.f32 %v5792, %v5994
        %v6061 = vadd.f32 %v5793, %v5995
        %v6062 = vadd.f32 %v5794, %v5996
        %v6063 = vadd.f32 %v5795, %v5997
        %v6064 = vadd.f32 %v5796, %v5998
        %v6065 = vadd.f32 %v5797, %v5999
        %v6066 = vadd.f32 %v5798, %v6000
        %v6067 = vadd.f32 %v5799, %v6001
        %v6068 = vadd.f32 %v5800, %v6002
        %v6069 = vadd.f32 %v5801, %v6003
        %v6070 = vadd.f32 %v5802, %v6004
        %v6071 = vadd.f32 %v5803, %v6005
        %v6072 = vadd.f32 %v5804, %v6006
        %v6073 = vadd.f32 %v5805, %v6007
        %v6074 = vadd.f32 %v5806, %v6008
        %v6075 = vadd.f32 %v5807, %v6009
        %v6076 = vadd.f32 %v5808, %v6010
        %v6077 = vadd.f32 %v5809, %v6011
        %v6078 = vadd.f32 %v5810, %v6012
        %v6079 = vadd.f32 %v5811, %v6013
        %v6080 = vadd.f32 %v5812, %v6014
        %v6081 = vadd.f32 %v5813, %v6015
        %v6082 = vadd.f32 %v5814, %v6016
        %v6083 = vadd.f32 %v5815, %v6017
        %v6084 = vadd.f32 %v5816, %v6018
        %v6085 = vadd.f32 %v5817, %v6019
        %v6086 = vadd.f32 %v5818, %v6020
        %v6087 = vadd.f32 %v5819, %v6021
        %v6088 = vadd.f32 %v5820, %v6022
        %v6089 = vadd.f32 %v5821, %v6023
        %v6090 = vadd.f32 %v5822, %v6024
        %v6091 = vadd.f32 %v5823, %v6025
        %v6092 = vadd.f32 %v5824, %v6026
        %v6093 = vadd.f32 %v5825, %v6027
        %v6094 = vadd.f32 %v5826, %v6028
        %v6095 = vadd.f32 %v5827, %v6029
        %v6096 = vadd.f32 %v5828, %v6030
        %v6097 = vadd.f32 %v5829, %v6031
        %v6098 = vadd.f32 %v5830, %v6032
        %v6099 = vadd.f32 %v5831, %v6033
        %v6100 = vadd.f32 %v5832, %v6034
        %v6101 = vadd.f32 %v5833, %v6035
        %v6102 = vadd.f32 %v5834, %v6036
        %v6103 = vadd.f32 %v5835, %v6037
        %v6104 = vadd.f32 %v5836, %v6038
        %v6105 = vadd.f32 %v5837, %v6039
        %v6106 = vadd.f32 %v5838, %v6040
        %v6107 = vadd.f32 %v5839, %v6041
        %v6108 = vadd.f32 %v5840, %v6042
        %v6109 = vadd.f32 %v5841, %v6043
        %v6110 = vadd.f32 %v5842, %v6044
        %v6111 = vadd.f32 %v5843, %v6045
        %v6112 = vadd.f32 %v5844, %v6046
        %v6113 = vadd.f32 %v5845, %v6047
        %v6114 = vadd.f32 %v5846, %v6048
        %v6115 = vrot.slane %v5690, 1
        %v6116 = vrot.slane %v5691, 1
        %v6117 = vrot.slane %v5692, 1
        %v6118 = vrot.slane %v5693, 1
        %v6119 = vrot.slane %v5694, 1
        %v6120 = vrot.slane %v5695, 1
        %v6121 = vrot.slane %v5696, 1
        %v6122 = vrot.slane %v5697, 1
        %v6123 = vrot.slane %v5698, 1
        %v6124 = vrot.slane %v5699, 1
        %v6125 = vrot.slane %v5700, 1
        %v6126 = vrot.slane %v5701, 1
        %v6127 = vrot.slane %v5702, 1
        %v6128 = vrot.slane %v5703, 1
        %v6129 = vrot.slane %v5704, 1
        %v6130 = vrot.slane %v5705, 1
        %v6131 = vrot.slane %v5706, 1
        %v6132 = vrot.slane %v5707, 1
        %v6133 = vrot.slane %v5708, 1
        %v6134 = vrot.slane %v5709, 1
        %v6135 = vrot.slane %v5710, 1
        %v6136 = vrot.slane %v5711, 1
        %v6137 = vrot.slane %v5712, 1
        %v6138 = vrot.slane %v5713, 1
        %v6139 = vrot.slane %v5714, 1
        %v6140 = vrot.slane %v5715, 1
        %v6141 = vrot.slane %v5716, 1
        %v6142 = vrot.slane %v5717, 1
        %v6143 = vrot.slane %v5718, 1
        %v6144 = vrot.slane %v5719, 1
        %v6145 = vrot.slane %v5720, 1
        %v6146 = vrot.slane %v5721, 1
        %v6147 = vrot.slane %v5722, 1
        %v6148 = vrot.slane %v5723, 1
        %v6149 = vrot.slane %v5724, 1
        %v6150 = vrot.slane %v5725, 1
        %v6151 = vrot.slane %v5726, 1
        %v6152 = vrot.slane %v5727, 1
        %v6153 = vrot.slane %v5728, 1
        %v6154 = vrot.slane %v5729, 1
        %v6155 = vrot.slane %v5730, 1
        %v6156 = vrot.slane %v5731, 1
        %v6157 = vrot.slane %v5732, 1
        %v6158 = vrot.slane %v5733, 1
        %v6159 = vrot.slane %v5734, 1
        %v6160 = vrot.slane %v5735, 1
        %v6161 = vrot.slane %v5736, 1
        %v6162 = vrot.slane %v5737, 1
        %v6163 = vrot.slane %v5738, 1
        %v6164 = vrot.slane %v5739, 1
        %v6165 = vrot.slane %v5740, 1
        %v6166 = vrot.slane %v5741, 1
        %v6167 = vrot.slane %v5742, 1
        %v6168 = vrot.slane %v5743, 1
        %v6169 = vrot.slane %v5744, 1
        %v6170 = vrot.slane %v5745, 1
        %v6171 = vrot.slane %v5746, 1
        %v6172 = vrot.slane %v5747, 1
        %v6173 = vrot.slane %v5748, 1
        %v6174 = vrot.slane %v5749, 1
        %v6175 = vrot.slane %v5750, 1
        %v6176 = vrot.slane %v5751, 1
        %v6177 = vrot.slane %v5752, 1
        %v6178 = vrot.slane %v5753, 1
        %v6179 = vrot.slane %v5754, 1
        %v6180 = vrot.slane %v5755, 1
        %v6181 = vsel %vm1953, %v6179, %v6180
        %v6182 = vsel %vm1953, %v6178, %v6179
        %v6183 = vsel %vm1953, %v6177, %v6178
        %v6184 = vsel %vm1953, %v6176, %v6177
        %v6185 = vsel %vm1953, %v6175, %v6176
        %v6186 = vsel %vm1953, %v6174, %v6175
        %v6187 = vsel %vm1953, %v6173, %v6174
        %v6188 = vsel %vm1953, %v6172, %v6173
        %v6189 = vsel %vm1953, %v6171, %v6172
        %v6190 = vsel %vm1953, %v6170, %v6171
        %v6191 = vsel %vm1953, %v6169, %v6170
        %v6192 = vsel %vm1953, %v6168, %v6169
        %v6193 = vsel %vm1953, %v6167, %v6168
        %v6194 = vsel %vm1953, %v6166, %v6167
        %v6195 = vsel %vm1953, %v6165, %v6166
        %v6196 = vsel %vm1953, %v6164, %v6165
        %v6197 = vsel %vm1953, %v6163, %v6164
        %v6198 = vsel %vm1953, %v6162, %v6163
        %v6199 = vsel %vm1953, %v6161, %v6162
        %v6200 = vsel %vm1953, %v6160, %v6161
        %v6201 = vsel %vm1953, %v6159, %v6160
        %v6202 = vsel %vm1953, %v6158, %v6159
        %v6203 = vsel %vm1953, %v6157, %v6158
        %v6204 = vsel %vm1953, %v6156, %v6157
        %v6205 = vsel %vm1953, %v6155, %v6156
        %v6206 = vsel %vm1953, %v6154, %v6155
        %v6207 = vsel %vm1953, %v6153, %v6154
        %v6208 = vsel %vm1953, %v6152, %v6153
        %v6209 = vsel %vm1953, %v6151, %v6152
        %v6210 = vsel %vm1953, %v6150, %v6151
        %v6211 = vsel %vm1953, %v6149, %v6150
        %v6212 = vsel %vm1953, %v6148, %v6149
        %v6213 = vsel %vm1953, %v6147, %v6148
        %v6214 = vsel %vm1953, %v6146, %v6147
        %v6215 = vsel %vm1953, %v6145, %v6146
        %v6216 = vsel %vm1953, %v6144, %v6145
        %v6217 = vsel %vm1953, %v6143, %v6144
        %v6218 = vsel %vm1953, %v6142, %v6143
        %v6219 = vsel %vm1953, %v6141, %v6142
        %v6220 = vsel %vm1953, %v6140, %v6141
        %v6221 = vsel %vm1953, %v6139, %v6140
        %v6222 = vsel %vm1953, %v6138, %v6139
        %v6223 = vsel %vm1953, %v6137, %v6138
        %v6224 = vsel %vm1953, %v6136, %v6137
        %v6225 = vsel %vm1953, %v6135, %v6136
        %v6226 = vsel %vm1953, %v6134, %v6135
        %v6227 = vsel %vm1953, %v6133, %v6134
        %v6228 = vsel %vm1953, %v6132, %v6133
        %v6229 = vsel %vm1953, %v6131, %v6132
        %v6230 = vsel %vm1953, %v6130, %v6131
        %v6231 = vsel %vm1953, %v6129, %v6130
        %v6232 = vsel %vm1953, %v6128, %v6129
        %v6233 = vsel %vm1953, %v6127, %v6128
        %v6234 = vsel %vm1953, %v6126, %v6127
        %v6235 = vsel %vm1953, %v6125, %v6126
        %v6236 = vsel %vm1953, %v6124, %v6125
        %v6237 = vsel %vm1953, %v6123, %v6124
        %v6238 = vsel %vm1953, %v6122, %v6123
        %v6239 = vsel %vm1953, %v6121, %v6122
        %v6240 = vsel %vm1953, %v6120, %v6121
        %v6241 = vsel %vm1953, %v6119, %v6120
        %v6242 = vsel %vm1953, %v6118, %v6119
        %v6243 = vsel %vm1953, %v6117, %v6118
        %v6244 = vsel %vm1953, %v6116, %v6117
        %v6245 = vsel %vm1953, %v6115, %v6116
        %v6246 = vsel %vm1953, %v6180, %v6115
        %v6247 = vlaneseq
        %v6248 = vshrl.u32 %v6247, 7
        %v6249 = vsub.s32 2, %v6248
        %v6250 = vrot.slane %v5757, %v6249
        %v6251 = vmul.f32 %v6245, %v6250
        %v6252 = vmul.f32 %v6244, %v6250
        %v6253 = vmul.f32 %v6243, %v6250
        %v6254 = vmul.f32 %v6242, %v6250
        %v6255 = vmul.f32 %v6241, %v6250
        %v6256 = vmul.f32 %v6240, %v6250
        %v6257 = vmul.f32 %v6239, %v6250
        %v6258 = vmul.f32 %v6238, %v6250
        %v6259 = vmul.f32 %v6237, %v6250
        %v6260 = vmul.f32 %v6236, %v6250
        %v6261 = vmul.f32 %v6235, %v6250
        %v6262 = vmul.f32 %v6234, %v6250
        %v6263 = vmul.f32 %v6233, %v6250
        %v6264 = vmul.f32 %v6232, %v6250
        %v6265 = vmul.f32 %v6231, %v6250
        %v6266 = vmul.f32 %v6230, %v6250
        %v6267 = vmul.f32 %v6229, %v6250
        %v6268 = vmul.f32 %v6228, %v6250
        %v6269 = vmul.f32 %v6227, %v6250
        %v6270 = vmul.f32 %v6226, %v6250
        %v6271 = vmul.f32 %v6225, %v6250
        %v6272 = vmul.f32 %v6224, %v6250
        %v6273 = vmul.f32 %v6223, %v6250
        %v6274 = vmul.f32 %v6222, %v6250
        %v6275 = vmul.f32 %v6221, %v6250
        %v6276 = vmul.f32 %v6220, %v6250
        %v6277 = vmul.f32 %v6219, %v6250
        %v6278 = vmul.f32 %v6218, %v6250
        %v6279 = vmul.f32 %v6217, %v6250
        %v6280 = vmul.f32 %v6216, %v6250
        %v6281 = vmul.f32 %v6215, %v6250
        %v6282 = vmul.f32 %v6214, %v6250
        %v6283 = vmul.f32 %v6213, %v6250
        %v6284 = vmul.f32 %v6212, %v6250
        %v6285 = vmul.f32 %v6211, %v6250
        %v6286 = vmul.f32 %v6210, %v6250
        %v6287 = vmul.f32 %v6209, %v6250
        %v6288 = vmul.f32 %v6208, %v6250
        %v6289 = vmul.f32 %v6207, %v6250
        %v6290 = vmul.f32 %v6206, %v6250
        %v6291 = vmul.f32 %v6205, %v6250
        %v6292 = vmul.f32 %v6204, %v6250
        %v6293 = vmul.f32 %v6203, %v6250
        %v6294 = vmul.f32 %v6202, %v6250
        %v6295 = vmul.f32 %v6201, %v6250
        %v6296 = vmul.f32 %v6200, %v6250
        %v6297 = vmul.f32 %v6199, %v6250
        %v6298 = vmul.f32 %v6198, %v6250
        %v6299 = vmul.f32 %v6197, %v6250
        %v6300 = vmul.f32 %v6196, %v6250
        %v6301 = vmul.f32 %v6195, %v6250
        %v6302 = vmul.f32 %v6194, %v6250
        %v6303 = vmul.f32 %v6193, %v6250
        %v6304 = vmul.f32 %v6192, %v6250
        %v6305 = vmul.f32 %v6191, %v6250
        %v6306 = vmul.f32 %v6190, %v6250
        %v6307 = vmul.f32 %v6189, %v6250
        %v6308 = vmul.f32 %v6188, %v6250
        %v6309 = vmul.f32 %v6187, %v6250
        %v6310 = vmul.f32 %v6186, %v6250
        %v6311 = vmul.f32 %v6185, %v6250
        %v6312 = vmul.f32 %v6184, %v6250
        %v6313 = vmul.f32 %v6183, %v6250
        %v6314 = vmul.f32 %v6182, %v6250
        %v6315 = vmul.f32 %v6181, %v6250
        %v6316 = vmul.f32 %v6246, %v6250
        %v6317 = vadd.f32 %v6049, %v6251
        %v6318 = vadd.f32 %v6050, %v6252
        %v6319 = vadd.f32 %v6051, %v6253
        %v6320 = vadd.f32 %v6052, %v6254
        %v6321 = vadd.f32 %v6053, %v6255
        %v6322 = vadd.f32 %v6054, %v6256
        %v6323 = vadd.f32 %v6055, %v6257
        %v6324 = vadd.f32 %v6056, %v6258
        %v6325 = vadd.f32 %v6057, %v6259
        %v6326 = vadd.f32 %v6058, %v6260
        %v6327 = vadd.f32 %v6059, %v6261
        %v6328 = vadd.f32 %v6060, %v6262
        %v6329 = vadd.f32 %v6061, %v6263
        %v6330 = vadd.f32 %v6062, %v6264
        %v6331 = vadd.f32 %v6063, %v6265
        %v6332 = vadd.f32 %v6064, %v6266
        %v6333 = vadd.f32 %v6065, %v6267
        %v6334 = vadd.f32 %v6066, %v6268
        %v6335 = vadd.f32 %v6067, %v6269
        %v6336 = vadd.f32 %v6068, %v6270
        %v6337 = vadd.f32 %v6069, %v6271
        %v6338 = vadd.f32 %v6070, %v6272
        %v6339 = vadd.f32 %v6071, %v6273
        %v6340 = vadd.f32 %v6072, %v6274
        %v6341 = vadd.f32 %v6073, %v6275
        %v6342 = vadd.f32 %v6074, %v6276
        %v6343 = vadd.f32 %v6075, %v6277
        %v6344 = vadd.f32 %v6076, %v6278
        %v6345 = vadd.f32 %v6077, %v6279
        %v6346 = vadd.f32 %v6078, %v6280
        %v6347 = vadd.f32 %v6079, %v6281
        %v6348 = vadd.f32 %v6080, %v6282
        %v6349 = vadd.f32 %v6081, %v6283
        %v6350 = vadd.f32 %v6082, %v6284
        %v6351 = vadd.f32 %v6083, %v6285
        %v6352 = vadd.f32 %v6084, %v6286
        %v6353 = vadd.f32 %v6085, %v6287
        %v6354 = vadd.f32 %v6086, %v6288
        %v6355 = vadd.f32 %v6087, %v6289
        %v6356 = vadd.f32 %v6088, %v6290
        %v6357 = vadd.f32 %v6089, %v6291
        %v6358 = vadd.f32 %v6090, %v6292
        %v6359 = vadd.f32 %v6091, %v6293
        %v6360 = vadd.f32 %v6092, %v6294
        %v6361 = vadd.f32 %v6093, %v6295
        %v6362 = vadd.f32 %v6094, %v6296
        %v6363 = vadd.f32 %v6095, %v6297
        %v6364 = vadd.f32 %v6096, %v6298
        %v6365 = vadd.f32 %v6097, %v6299
        %v6366 = vadd.f32 %v6098, %v6300
        %v6367 = vadd.f32 %v6099, %v6301
        %v6368 = vadd.f32 %v6100, %v6302
        %v6369 = vadd.f32 %v6101, %v6303
        %v6370 = vadd.f32 %v6102, %v6304
        %v6371 = vadd.f32 %v6103, %v6305
        %v6372 = vadd.f32 %v6104, %v6306
        %v6373 = vadd.f32 %v6105, %v6307
        %v6374 = vadd.f32 %v6106, %v6308
        %v6375 = vadd.f32 %v6107, %v6309
        %v6376 = vadd.f32 %v6108, %v6310
        %v6377 = vadd.f32 %v6109, %v6311
        %v6378 = vadd.f32 %v6110, %v6312
        %v6379 = vadd.f32 %v6111, %v6313
        %v6380 = vadd.f32 %v6112, %v6314
        %v6381 = vadd.f32 %v6113, %v6315
        %v6382 = vadd.f32 %v6114, %v6316
        %v6383 = vpack.c.bf16 %v6318, %v6317
        %v6384 = vpack.c.bf16 %v6320, %v6319
        %v6385 = vpack.c.bf16 %v6322, %v6321
        %v6386 = vpack.c.bf16 %v6324, %v6323
        %v6387 = vpack.c.bf16 %v6326, %v6325
        %v6388 = vpack.c.bf16 %v6328, %v6327
        %v6389 = vpack.c.bf16 %v6330, %v6329
        %v6390 = vpack.c.bf16 %v6332, %v6331
        %v6391 = vpack.c.bf16 %v6334, %v6333
        %v6392 = vpack.c.bf16 %v6336, %v6335
        %v6393 = vpack.c.bf16 %v6338, %v6337
        %v6394 = vpack.c.bf16 %v6340, %v6339
        %v6395 = vpack.c.bf16 %v6342, %v6341
        %v6396 = vpack.c.bf16 %v6344, %v6343
        %v6397 = vpack.c.bf16 %v6346, %v6345
        %v6398 = vpack.c.bf16 %v6348, %v6347
        %v6399 = vpack.c.bf16 %v6350, %v6349
        %v6400 = vpack.c.bf16 %v6352, %v6351
        %v6401 = vpack.c.bf16 %v6354, %v6353
        %v6402 = vpack.c.bf16 %v6356, %v6355
        %v6403 = vpack.c.bf16 %v6358, %v6357
        %v6404 = vpack.c.bf16 %v6360, %v6359
        %v6405 = vpack.c.bf16 %v6362, %v6361
        %v6406 = vpack.c.bf16 %v6364, %v6363
        %v6407 = vpack.c.bf16 %v6366, %v6365
        %v6408 = vpack.c.bf16 %v6368, %v6367
        %v6409 = vpack.c.bf16 %v6370, %v6369
        %v6410 = vpack.c.bf16 %v6372, %v6371
        %v6411 = vpack.c.bf16 %v6374, %v6373
        %v6412 = vpack.c.bf16 %v6376, %v6375
        %v6413 = vpack.c.bf16 %v6378, %v6377
        %v6414 = vpack.c.bf16 %v6380, %v6379
        %v6415 = vpack.c.bf16 %v6382, %v6381
        %v6417 = vlaneseq
        %v6418 = vshrl.u32 %v6417, 7
        %v6419 = vsub.s32 0, %v6418
        %v6420 = vrot.slane %v5776, %v6419
        %v6438 = vunpack.c.l.b16 %v5759
        %v6439 = vunpack.c.l.b16 %v5760
        %v6440 = vunpack.c.l.b16 %v5761
        %v6441 = vunpack.c.l.b16 %v5762
        %v6442 = vunpack.c.l.b16 %v5763
        %v6443 = vunpack.c.l.b16 %v5764
        %v6444 = vunpack.c.l.b16 %v5765
        %v6445 = vunpack.c.l.b16 %v5766
        %v6446 = vunpack.c.l.b16 %v5767
        %v6447 = vunpack.c.l.b16 %v5768
        %v6448 = vunpack.c.l.b16 %v5769
        %v6449 = vunpack.c.l.b16 %v5770
        %v6450 = vunpack.c.l.b16 %v5771
        %v6451 = vunpack.c.l.b16 %v5772
        %v6452 = vunpack.c.l.b16 %v5773
        %v6453 = vunpack.c.l.b16 %v5774
        %v6454 = vpack.c.b16 %v6439, %v6438
        %v6455 = vpack.c.b16 %v6441, %v6440
        %v6456 = vpack.c.b16 %v6443, %v6442
        %v6457 = vpack.c.b16 %v6445, %v6444
        %v6458 = vpack.c.b16 %v6447, %v6446
        %v6459 = vpack.c.b16 %v6449, %v6448
        %v6460 = vpack.c.b16 %v6451, %v6450
        %v6461 = vpack.c.b16 %v6453, %v6452
        %6470 = vmatprep.subr.bf16.mxu0 0
        %6471 = vmatpush1.bf16.msra.mxu0 %v6454
        %6472 = vmatprep.subr.bf16.mxu0 0
        %6473 = vmatpush1.bf16.msra.mxu0 %v6455
        %6474 = vmatprep.subr.bf16.mxu0 0
        %6475 = vmatpush1.bf16.msra.mxu0 %v6456
        %6476 = vmatprep.subr.bf16.mxu0 0
        %6477 = vmatpush1.bf16.msra.mxu0 %v6457
        %6478 = vmatprep.subr.bf16.mxu0 0
        %6479 = vmatpush1.bf16.msra.mxu0 %v6458
        %6480 = vmatprep.subr.bf16.mxu0 0
        %6481 = vmatpush1.bf16.msra.mxu0 %v6459
        %6482 = vmatprep.subr.bf16.mxu0 0
        %6483 = vmatpush1.bf16.msra.mxu0 %v6460
        %6484 = vmatprep.subr.bf16.mxu0 0
        %6485 = vmatpush1.bf16.msra.mxu0 %v6461
        %6486 = vmatprep.subr.bf16.mxu0 0
        %6487 = vmatpush1.bf16.msra.mxu0 0
        %6488 = vmatprep.subr.bf16.mxu0 0
        %6489 = vmatpush1.bf16.msra.mxu0 0
        %6490 = vmatprep.subr.bf16.mxu0 0
        %6491 = vmatpush1.bf16.msra.mxu0 0
        %6492 = vmatprep.subr.bf16.mxu0 0
        %6493 = vmatpush1.bf16.msra.mxu0 0
        %6494 = vmatprep.subr.bf16.mxu0 0
        %6495 = vmatpush1.bf16.msra.mxu0 0
        %6496 = vmatprep.subr.bf16.mxu0 0
        %6497 = vmatpush1.bf16.msra.mxu0 0
        %6498 = vmatprep.subr.bf16.mxu0 0
        %6499 = vmatpush1.bf16.msra.mxu0 0
        %6500 = vmatprep.subr.bf16.mxu0 0
        %6501 = vmatpush1.bf16.msra.mxu0 0
        %6502 = vmatprep.mubr.bf16.mxu0 0
        %6503 = vmatmul.mubr.bf16.gmra.mrb[0].mxu0 %v6383
        %v6504 = vpop.f32.mrb[0].mxu0
        %v6505 = vadd.f32 %v6420, %v6504
        %v6506 = vpop.f32.mrb[0].mxu0
        %v6507 = vpop.f32.mrb[0].mxu0
        %v6508 = vadd.f32 %v6420, %v6507
        %v6509 = vpop.f32.mrb[0].mxu0
        %6510 = vmatprep.mubr.bf16.mxu0 0
        %6511 = vmatmul.mubr.bf16.gmra.mrb[0].mxu0 %v6384
        %v6512 = vpop.f32.mrb[0].mxu0
        %v6513 = vadd.f32 %v6420, %v6512
        %v6514 = vpop.f32.mrb[0].mxu0
        %v6515 = vpop.f32.mrb[0].mxu0
        %v6516 = vadd.f32 %v6420, %v6515
        %v6517 = vpop.f32.mrb[0].mxu0
        %6518 = vmatprep.mubr.bf16.mxu0 0
        %6519 = vmatmul.mubr.bf16.gmra.mrb[0].mxu0 %v6385
        %v6520 = vpop.f32.mrb[0].mxu0
        %v6521 = vadd.f32 %v6420, %v6520
        %v6522 = vpop.f32.mrb[0].mxu0
        %v6523 = vpop.f32.mrb[0].mxu0
        %v6524 = vadd.f32 %v6420, %v6523
        %v6525 = vpop.f32.mrb[0].mxu0
        %6526 = vmatprep.mubr.bf16.mxu0 0
        %6527 = vmatmul.mubr.bf16.gmra.mrb[0].mxu0 %v6386
        %v6528 = vpop.f32.mrb[0].mxu0
        %v6529 = vadd.f32 %v6420, %v6528
        %v6530 = vpop.f32.mrb[0].mxu0
        %v6531 = vpop.f32.mrb[0].mxu0
        %v6532 = vadd.f32 %v6420, %v6531
        %v6533 = vpop.f32.mrb[0].mxu0
        %6534 = vmatprep.mubr.bf16.mxu0 0
        %6535 = vmatmul.mubr.bf16.gmra.mrb[0].mxu0 %v6387
        %v6536 = vpop.f32.mrb[0].mxu0
        %v6537 = vadd.f32 %v6420, %v6536
        %v6538 = vpop.f32.mrb[0].mxu0
        %v6539 = vpop.f32.mrb[0].mxu0
        %v6540 = vadd.f32 %v6420, %v6539
        %v6541 = vpop.f32.mrb[0].mxu0
        %6542 = vmatprep.mubr.bf16.mxu0 0
        %6543 = vmatmul.mubr.bf16.gmra.mrb[0].mxu0 %v6388
        %v6544 = vpop.f32.mrb[0].mxu0
        %v6545 = vadd.f32 %v6420, %v6544
        %v6546 = vpop.f32.mrb[0].mxu0
        %v6547 = vpop.f32.mrb[0].mxu0
        %v6548 = vadd.f32 %v6420, %v6547
        %v6549 = vpop.f32.mrb[0].mxu0
        %6550 = vmatprep.mubr.bf16.mxu0 0
        %6551 = vmatmul.mubr.bf16.gmra.mrb[0].mxu0 %v6389
        %v6552 = vpop.f32.mrb[0].mxu0
        %v6553 = vadd.f32 %v6420, %v6552
        %v6554 = vpop.f32.mrb[0].mxu0
        %v6555 = vpop.f32.mrb[0].mxu0
        %v6556 = vadd.f32 %v6420, %v6555
        %v6557 = vpop.f32.mrb[0].mxu0
        %6558 = vmatprep.mubr.bf16.mxu0 0
        %6559 = vmatmul.mubr.bf16.gmra.mrb[0].mxu0 %v6390
        %v6560 = vpop.f32.mrb[0].mxu0
        %v6561 = vadd.f32 %v6420, %v6560
        %v6562 = vpop.f32.mrb[0].mxu0
        %v6563 = vpop.f32.mrb[0].mxu0
        %v6564 = vadd.f32 %v6420, %v6563
        %v6565 = vpop.f32.mrb[0].mxu0
        %6566 = vmatprep.mubr.bf16.mxu0 0
        %6567 = vmatmul.mubr.bf16.gmra.mrb[0].mxu0 %v6391
        %v6568 = vpop.f32.mrb[0].mxu0
        %v6569 = vadd.f32 %v6420, %v6568
        %v6570 = vpop.f32.mrb[0].mxu0
        %v6571 = vpop.f32.mrb[0].mxu0
        %v6572 = vadd.f32 %v6420, %v6571
        %v6573 = vpop.f32.mrb[0].mxu0
        %6574 = vmatprep.mubr.bf16.mxu0 0
        %6575 = vmatmul.mubr.bf16.gmra.mrb[0].mxu0 %v6392
        %v6576 = vpop.f32.mrb[0].mxu0
        %v6577 = vadd.f32 %v6420, %v6576
        %v6578 = vpop.f32.mrb[0].mxu0
        %v6579 = vpop.f32.mrb[0].mxu0
        %v6580 = vadd.f32 %v6420, %v6579
        %v6581 = vpop.f32.mrb[0].mxu0
        %6582 = vmatprep.mubr.bf16.mxu0 0
        %6583 = vmatmul.mubr.bf16.gmra.mrb[0].mxu0 %v6393
        %v6584 = vpop.f32.mrb[0].mxu0
        %v6585 = vadd.f32 %v6420, %v6584
        %v6586 = vpop.f32.mrb[0].mxu0
        %v6587 = vpop.f32.mrb[0].mxu0
        %v6588 = vadd.f32 %v6420, %v6587
        %v6589 = vpop.f32.mrb[0].mxu0
        %6590 = vmatprep.mubr.bf16.mxu0 0
        %6591 = vmatmul.mubr.bf16.gmra.mrb[0].mxu0 %v6394
        %v6592 = vpop.f32.mrb[0].mxu0
        %v6593 = vadd.f32 %v6420, %v6592
        %v6594 = vpop.f32.mrb[0].mxu0
        %v6595 = vpop.f32.mrb[0].mxu0
        %v6596 = vadd.f32 %v6420, %v6595
        %v6597 = vpop.f32.mrb[0].mxu0
        %6598 = vmatprep.mubr.bf16.mxu0 0
        %6599 = vmatmul.mubr.bf16.gmra.mrb[0].mxu0 %v6395
        %v6600 = vpop.f32.mrb[0].mxu0
        %v6601 = vadd.f32 %v6420, %v6600
        %v6602 = vpop.f32.mrb[0].mxu0
        %v6603 = vpop.f32.mrb[0].mxu0
        %v6604 = vadd.f32 %v6420, %v6603
        %v6605 = vpop.f32.mrb[0].mxu0
        %6606 = vmatprep.mubr.bf16.mxu0 0
        %6607 = vmatmul.mubr.bf16.gmra.mrb[0].mxu0 %v6396
        %v6608 = vpop.f32.mrb[0].mxu0
        %v6609 = vadd.f32 %v6420, %v6608
        %v6610 = vpop.f32.mrb[0].mxu0
        %v6611 = vpop.f32.mrb[0].mxu0
        %v6612 = vadd.f32 %v6420, %v6611
        %v6613 = vpop.f32.mrb[0].mxu0
        %6614 = vmatprep.mubr.bf16.mxu0 0
        %6615 = vmatmul.mubr.bf16.gmra.mrb[0].mxu0 %v6397
        %v6616 = vpop.f32.mrb[0].mxu0
        %v6617 = vadd.f32 %v6420, %v6616
        %v6618 = vpop.f32.mrb[0].mxu0
        %v6619 = vpop.f32.mrb[0].mxu0
        %v6620 = vadd.f32 %v6420, %v6619
        %v6621 = vpop.f32.mrb[0].mxu0
        %6622 = vmatprep.mubr.bf16.mxu0 0
        %6623 = vmatmul.mubr.bf16.gmra.mrb[0].mxu0 %v6398
        %v6624 = vpop.f32.mrb[0].mxu0
        %v6625 = vadd.f32 %v6420, %v6624
        %v6626 = vpop.f32.mrb[0].mxu0
        %v6627 = vpop.f32.mrb[0].mxu0
        %v6628 = vadd.f32 %v6420, %v6627
        %v6629 = vpop.f32.mrb[0].mxu0
        %6630 = vmatprep.mubr.bf16.mxu0 0
        %6631 = vmatmul.mubr.bf16.gmra.mrb[0].mxu0 %v6399
        %v6632 = vpop.f32.mrb[0].mxu0
        %v6633 = vadd.f32 %v6420, %v6632
        %v6634 = vpop.f32.mrb[0].mxu0
        %v6635 = vpop.f32.mrb[0].mxu0
        %v6636 = vadd.f32 %v6420, %v6635
        %v6637 = vpop.f32.mrb[0].mxu0
        %6638 = vmatprep.mubr.bf16.mxu0 0
        %6639 = vmatmul.mubr.bf16.gmra.mrb[0].mxu0 %v6400
        %v6640 = vpop.f32.mrb[0].mxu0
        %v6641 = vadd.f32 %v6420, %v6640
        %v6642 = vpop.f32.mrb[0].mxu0
        %v6643 = vpop.f32.mrb[0].mxu0
        %v6644 = vadd.f32 %v6420, %v6643
        %v6645 = vpop.f32.mrb[0].mxu0
        %6646 = vmatprep.mubr.bf16.mxu0 0
        %6647 = vmatmul.mubr.bf16.gmra.mrb[0].mxu0 %v6401
        %v6648 = vpop.f32.mrb[0].mxu0
        %v6649 = vadd.f32 %v6420, %v6648
        %v6650 = vpop.f32.mrb[0].mxu0
        %v6651 = vpop.f32.mrb[0].mxu0
        %v6652 = vadd.f32 %v6420, %v6651
        %v6653 = vpop.f32.mrb[0].mxu0
        %6654 = vmatprep.mubr.bf16.mxu0 0
        %6655 = vmatmul.mubr.bf16.gmra.mrb[0].mxu0 %v6402
        %v6656 = vpop.f32.mrb[0].mxu0
        %v6657 = vadd.f32 %v6420, %v6656
        %v6658 = vpop.f32.mrb[0].mxu0
        %v6659 = vpop.f32.mrb[0].mxu0
        %v6660 = vadd.f32 %v6420, %v6659
        %v6661 = vpop.f32.mrb[0].mxu0
        %6662 = vmatprep.mubr.bf16.mxu0 0
        %6663 = vmatmul.mubr.bf16.gmra.mrb[0].mxu0 %v6403
        %v6664 = vpop.f32.mrb[0].mxu0
        %v6665 = vadd.f32 %v6420, %v6664
        %v6666 = vpop.f32.mrb[0].mxu0
        %v6667 = vpop.f32.mrb[0].mxu0
        %v6668 = vadd.f32 %v6420, %v6667
        %v6669 = vpop.f32.mrb[0].mxu0
        %6670 = vmatprep.mubr.bf16.mxu0 0
        %6671 = vmatmul.mubr.bf16.gmra.mrb[0].mxu0 %v6404
        %v6672 = vpop.f32.mrb[0].mxu0
        %v6673 = vadd.f32 %v6420, %v6672
        %v6674 = vpop.f32.mrb[0].mxu0
        %v6675 = vpop.f32.mrb[0].mxu0
        %v6676 = vadd.f32 %v6420, %v6675
        %v6677 = vpop.f32.mrb[0].mxu0
        %6678 = vmatprep.mubr.bf16.mxu0 0
        %6679 = vmatmul.mubr.bf16.gmra.mrb[0].mxu0 %v6405
        %v6680 = vpop.f32.mrb[0].mxu0
        %v6681 = vadd.f32 %v6420, %v6680
        %v6682 = vpop.f32.mrb[0].mxu0
        %v6683 = vpop.f32.mrb[0].mxu0
        %v6684 = vadd.f32 %v6420, %v6683
        %v6685 = vpop.f32.mrb[0].mxu0
        %6686 = vmatprep.mubr.bf16.mxu0 0
        %6687 = vmatmul.mubr.bf16.gmra.mrb[0].mxu0 %v6406
        %v6688 = vpop.f32.mrb[0].mxu0
        %v6689 = vadd.f32 %v6420, %v6688
        %v6690 = vpop.f32.mrb[0].mxu0
        %v6691 = vpop.f32.mrb[0].mxu0
        %v6692 = vadd.f32 %v6420, %v6691
        %v6693 = vpop.f32.mrb[0].mxu0
        %6694 = vmatprep.mubr.bf16.mxu0 0
        %6695 = vmatmul.mubr.bf16.gmra.mrb[0].mxu0 %v6407
        %v6696 = vpop.f32.mrb[0].mxu0
        %v6697 = vadd.f32 %v6420, %v6696
        %v6698 = vpop.f32.mrb[0].mxu0
        %v6699 = vpop.f32.mrb[0].mxu0
        %v6700 = vadd.f32 %v6420, %v6699
        %v6701 = vpop.f32.mrb[0].mxu0
        %6702 = vmatprep.mubr.bf16.mxu0 0
        %6703 = vmatmul.mubr.bf16.gmra.mrb[0].mxu0 %v6408
        %v6704 = vpop.f32.mrb[0].mxu0
        %v6705 = vadd.f32 %v6420, %v6704
        %v6706 = vpop.f32.mrb[0].mxu0
        %v6707 = vpop.f32.mrb[0].mxu0
        %v6708 = vadd.f32 %v6420, %v6707
        %v6709 = vpop.f32.mrb[0].mxu0
        %6710 = vmatprep.mubr.bf16.mxu0 0
        %6711 = vmatmul.mubr.bf16.gmra.mrb[0].mxu0 %v6409
        %v6712 = vpop.f32.mrb[0].mxu0
        %v6713 = vadd.f32 %v6420, %v6712
        %v6714 = vpop.f32.mrb[0].mxu0
        %v6715 = vpop.f32.mrb[0].mxu0
        %v6716 = vadd.f32 %v6420, %v6715
        %v6717 = vpop.f32.mrb[0].mxu0
        %6718 = vmatprep.mubr.bf16.mxu0 0
        %6719 = vmatmul.mubr.bf16.gmra.mrb[0].mxu0 %v6410
        %v6720 = vpop.f32.mrb[0].mxu0
        %v6721 = vadd.f32 %v6420, %v6720
        %v6722 = vpop.f32.mrb[0].mxu0
        %v6723 = vpop.f32.mrb[0].mxu0
        %v6724 = vadd.f32 %v6420, %v6723
        %v6725 = vpop.f32.mrb[0].mxu0
        %6726 = vmatprep.mubr.bf16.mxu0 0
        %6727 = vmatmul.mubr.bf16.gmra.mrb[0].mxu0 %v6411
        %v6728 = vpop.f32.mrb[0].mxu0
        %v6729 = vadd.f32 %v6420, %v6728
        %v6730 = vpop.f32.mrb[0].mxu0
        %v6731 = vpop.f32.mrb[0].mxu0
        %v6732 = vadd.f32 %v6420, %v6731
        %v6733 = vpop.f32.mrb[0].mxu0
        %6734 = vmatprep.mubr.bf16.mxu0 0
        %6735 = vmatmul.mubr.bf16.gmra.mrb[0].mxu0 %v6412
        %v6736 = vpop.f32.mrb[0].mxu0
        %v6737 = vadd.f32 %v6420, %v6736
        %v6738 = vpop.f32.mrb[0].mxu0
        %v6739 = vpop.f32.mrb[0].mxu0
        %v6740 = vadd.f32 %v6420, %v6739
        %v6741 = vpop.f32.mrb[0].mxu0
        %6742 = vmatprep.mubr.bf16.mxu0 0
        %6743 = vmatmul.mubr.bf16.gmra.mrb[0].mxu0 %v6413
        %v6744 = vpop.f32.mrb[0].mxu0
        %v6745 = vadd.f32 %v6420, %v6744
        %v6746 = vpop.f32.mrb[0].mxu0
        %v6747 = vpop.f32.mrb[0].mxu0
        %v6748 = vadd.f32 %v6420, %v6747
        %v6749 = vpop.f32.mrb[0].mxu0
        %6750 = vmatprep.mubr.bf16.mxu0 0
        %6751 = vmatmul.mubr.bf16.gmra.mrb[0].mxu0 %v6414
        %v6752 = vpop.f32.mrb[0].mxu0
        %v6753 = vadd.f32 %v6420, %v6752
        %v6754 = vpop.f32.mrb[0].mxu0
        %v6755 = vpop.f32.mrb[0].mxu0
        %v6756 = vadd.f32 %v6420, %v6755
        %v6757 = vpop.f32.mrb[0].mxu0
        %6758 = vmatprep.mubr.bf16.mxu0 0
        %6759 = vmatmul.mubr.bf16.gmra.mrb[0].mxu0 %v6415
        %v6760 = vpop.f32.mrb[0].mxu0
        %v6761 = vadd.f32 %v6420, %v6760
        %v6762 = vpop.f32.mrb[0].mxu0
        %v6763 = vpop.f32.mrb[0].mxu0
        %v6764 = vadd.f32 %v6420, %v6763
        %v6765 = vpop.f32.mrb[0].mxu0
        %6766 = vdwg.mxu0
        %v6767 = vmax.f32 %v6505, 0.0
        %v6768 = vmax.f32 %v6508, 0.0
        %v6769 = vmax.f32 %v6513, 0.0
        %v6770 = vmax.f32 %v6516, 0.0
        %v6771 = vmax.f32 %v6521, 0.0
        %v6772 = vmax.f32 %v6524, 0.0
        %v6773 = vmax.f32 %v6529, 0.0
        %v6774 = vmax.f32 %v6532, 0.0
        %v6775 = vmax.f32 %v6537, 0.0
        %v6776 = vmax.f32 %v6540, 0.0
        %v6777 = vmax.f32 %v6545, 0.0
        %v6778 = vmax.f32 %v6548, 0.0
        %v6779 = vmax.f32 %v6553, 0.0
        %v6780 = vmax.f32 %v6556, 0.0
        %v6781 = vmax.f32 %v6561, 0.0
        %v6782 = vmax.f32 %v6564, 0.0
        %v6783 = vmax.f32 %v6569, 0.0
        %v6784 = vmax.f32 %v6572, 0.0
        %v6785 = vmax.f32 %v6577, 0.0
        %v6786 = vmax.f32 %v6580, 0.0
        %v6787 = vmax.f32 %v6585, 0.0
        %v6788 = vmax.f32 %v6588, 0.0
        %v6789 = vmax.f32 %v6593, 0.0
        %v6790 = vmax.f32 %v6596, 0.0
        %v6791 = vmax.f32 %v6601, 0.0
        %v6792 = vmax.f32 %v6604, 0.0
        %v6793 = vmax.f32 %v6609, 0.0
        %v6794 = vmax.f32 %v6612, 0.0
        %v6795 = vmax.f32 %v6617, 0.0
        %v6796 = vmax.f32 %v6620, 0.0
        %v6797 = vmax.f32 %v6625, 0.0
        %v6798 = vmax.f32 %v6628, 0.0
        %v6799 = vmax.f32 %v6633, 0.0
        %v6800 = vmax.f32 %v6636, 0.0
        %v6801 = vmax.f32 %v6641, 0.0
        %v6802 = vmax.f32 %v6644, 0.0
        %v6803 = vmax.f32 %v6649, 0.0
        %v6804 = vmax.f32 %v6652, 0.0
        %v6805 = vmax.f32 %v6657, 0.0
        %v6806 = vmax.f32 %v6660, 0.0
        %v6807 = vmax.f32 %v6665, 0.0
        %v6808 = vmax.f32 %v6668, 0.0
        %v6809 = vmax.f32 %v6673, 0.0
        %v6810 = vmax.f32 %v6676, 0.0
        %v6811 = vmax.f32 %v6681, 0.0
        %v6812 = vmax.f32 %v6684, 0.0
        %v6813 = vmax.f32 %v6689, 0.0
        %v6814 = vmax.f32 %v6692, 0.0
        %v6815 = vmax.f32 %v6697, 0.0
        %v6816 = vmax.f32 %v6700, 0.0
        %v6817 = vmax.f32 %v6705, 0.0
        %v6818 = vmax.f32 %v6708, 0.0
        %v6819 = vmax.f32 %v6713, 0.0
        %v6820 = vmax.f32 %v6716, 0.0
        %v6821 = vmax.f32 %v6721, 0.0
        %v6822 = vmax.f32 %v6724, 0.0
        %v6823 = vmax.f32 %v6729, 0.0
        %v6824 = vmax.f32 %v6732, 0.0
        %v6825 = vmax.f32 %v6737, 0.0
        %v6826 = vmax.f32 %v6740, 0.0
        %v6827 = vmax.f32 %v6745, 0.0
        %v6828 = vmax.f32 %v6748, 0.0
        %v6829 = vmax.f32 %v6753, 0.0
        %v6830 = vmax.f32 %v6756, 0.0
        %v6831 = vmax.f32 %v6761, 0.0
        %v6832 = vmax.f32 %v6764, 0.0
        %6833 = vst [vmem:[#allocation2] sm:$0xff] %v6767
        %6834 = vst [vmem:[#allocation2 + $0x8] sm:$0xff] %v6768
        %6835 = vst [vmem:[#allocation2 + $0x10] sm:$0xff] %v6769
        %6836 = vst [vmem:[#allocation2 + $0x18] sm:$0xff] %v6770
        %6837 = vst [vmem:[#allocation2 + $0x20] sm:$0xff] %v6771
        %6838 = vst [vmem:[#allocation2 + $0x28] sm:$0xff] %v6772
        %6839 = vst [vmem:[#allocation2 + $0x30] sm:$0xff] %v6773
        %6840 = vst [vmem:[#allocation2 + $0x38] sm:$0xff] %v6774
        %6841 = vst [vmem:[#allocation2 + $0x40] sm:$0xff] %v6775
        %6842 = vst [vmem:[#allocation2 + $0x48] sm:$0xff] %v6776
        %6843 = vst [vmem:[#allocation2 + $0x50] sm:$0xff] %v6777
        %6844 = vst [vmem:[#allocation2 + $0x58] sm:$0xff] %v6778
        %6845 = vst [vmem:[#allocation2 + $0x60] sm:$0xff] %v6779
        %6846 = vst [vmem:[#allocation2 + $0x68] sm:$0xff] %v6780
        %6847 = vst [vmem:[#allocation2 + $0x70] sm:$0xff] %v6781
        %6848 = vst [vmem:[#allocation2 + $0x78] sm:$0xff] %v6782
        %6849 = vst [vmem:[#allocation2 + $0x80] sm:$0xff] %v6783
        %6850 = vst [vmem:[#allocation2 + $0x88] sm:$0xff] %v6784
        %6851 = vst [vmem:[#allocation2 + $0x90] sm:$0xff] %v6785
        %6852 = vst [vmem:[#allocation2 + $0x98] sm:$0xff] %v6786
        %6853 = vst [vmem:[#allocation2 + $0xa0] sm:$0xff] %v6787
        %6854 = vst [vmem:[#allocation2 + $0xa8] sm:$0xff] %v6788
        %6855 = vst [vmem:[#allocation2 + $0xb0] sm:$0xff] %v6789
        %6856 = vst [vmem:[#allocation2 + $0xb8] sm:$0xff] %v6790
        %6857 = vst [vmem:[#allocation2 + $0xc0] sm:$0xff] %v6791
        %6858 = vst [vmem:[#allocation2 + $0xc8] sm:$0xff] %v6792
        %6859 = vst [vmem:[#allocation2 + $0xd0] sm:$0xff] %v6793
        %6860 = vst [vmem:[#allocation2 + $0xd8] sm:$0xff] %v6794
        %6861 = vst [vmem:[#allocation2 + $0xe0] sm:$0xff] %v6795
        %6862 = vst [vmem:[#allocation2 + $0xe8] sm:$0xff] %v6796
        %6863 = vst [vmem:[#allocation2 + $0xf0] sm:$0xff] %v6797
        %6864 = vst [vmem:[#allocation2 + $0xf8] sm:$0xff] %v6798
        %6865 = vst [vmem:[#allocation2 + $0x100] sm:$0xff] %v6799
        %6866 = vst [vmem:[#allocation2 + $0x108] sm:$0xff] %v6800
        %6867 = vst [vmem:[#allocation2 + $0x110] sm:$0xff] %v6801
        %6868 = vst [vmem:[#allocation2 + $0x118] sm:$0xff] %v6802
        %6869 = vst [vmem:[#allocation2 + $0x120] sm:$0xff] %v6803
        %6870 = vst [vmem:[#allocation2 + $0x128] sm:$0xff] %v6804
        %6871 = vst [vmem:[#allocation2 + $0x130] sm:$0xff] %v6805
        %6872 = vst [vmem:[#allocation2 + $0x138] sm:$0xff] %v6806
        %6873 = vst [vmem:[#allocation2 + $0x140] sm:$0xff] %v6807
        %6874 = vst [vmem:[#allocation2 + $0x148] sm:$0xff] %v6808
        %6875 = vst [vmem:[#allocation2 + $0x150] sm:$0xff] %v6809
        %6876 = vst [vmem:[#allocation2 + $0x158] sm:$0xff] %v6810
        %6877 = vst [vmem:[#allocation2 + $0x160] sm:$0xff] %v6811
        %6878 = vst [vmem:[#allocation2 + $0x168] sm:$0xff] %v6812
        %6879 = vst [vmem:[#allocation2 + $0x170] sm:$0xff] %v6813
        %6880 = vst [vmem:[#allocation2 + $0x178] sm:$0xff] %v6814
        %6881 = vst [vmem:[#allocation2 + $0x180] sm:$0xff] %v6815
        %6882 = vst [vmem:[#allocation2 + $0x188] sm:$0xff] %v6816
        %6883 = vst [vmem:[#allocation2 + $0x190] sm:$0xff] %v6817
        %6884 = vst [vmem:[#allocation2 + $0x198] sm:$0xff] %v6818
        %6885 = vst [vmem:[#allocation2 + $0x1a0] sm:$0xff] %v6819
        %6886 = vst [vmem:[#allocation2 + $0x1a8] sm:$0xff] %v6820
        %6887 = vst [vmem:[#allocation2 + $0x1b0] sm:$0xff] %v6821
        %6888 = vst [vmem:[#allocation2 + $0x1b8] sm:$0xff] %v6822
        %6889 = vst [vmem:[#allocation2 + $0x1c0] sm:$0xff] %v6823
        %6890 = vst [vmem:[#allocation2 + $0x1c8] sm:$0xff] %v6824
        %6891 = vst [vmem:[#allocation2 + $0x1d0] sm:$0xff] %v6825
        %6892 = vst [vmem:[#allocation2 + $0x1d8] sm:$0xff] %v6826
        %6893 = vst [vmem:[#allocation2 + $0x1e0] sm:$0xff] %v6827
        %6894 = vst [vmem:[#allocation2 + $0x1e8] sm:$0xff] %v6828
        %6895 = vst [vmem:[#allocation2 + $0x1f0] sm:$0xff] %v6829
        %6896 = vst [vmem:[#allocation2 + $0x1f8] sm:$0xff] %v6830
        %6897 = vst [vmem:[#allocation2 + $0x200] sm:$0xff] %v6831
        %6898 = vst [vmem:[#allocation2 + $0x208] sm:$0xff] %v6832
        // Predicated region
        $region109: #{tpu_custom_call.1} parent=63 // pred_check
          %p6899 = pneg %p600
        $region110: #{tpu_custom_call.1} parent=63 // pred_check_branch
          %6901 = sbr.rel (%p6899) target = $region112
        $region111: #{tpu_custom_call.1} parent=63 // pred_region
          %v6902 = vld [vmem:[#allocation2] sm:$0xff]
          %v6903 = vld [vmem:[#allocation2 + $0x8] sm:$0xff]
          %v6904 = vld [vmem:[#allocation2 + $0x10] sm:$0xff]
          %v6905 = vld [vmem:[#allocation2 + $0x18] sm:$0xff]
          %v6906 = vld [vmem:[#allocation2 + $0x20] sm:$0xff]
          %v6907 = vld [vmem:[#allocation2 + $0x28] sm:$0xff]
          %v6908 = vld [vmem:[#allocation2 + $0x30] sm:$0xff]
          %v6909 = vld [vmem:[#allocation2 + $0x38] sm:$0xff]
          %v6910 = vld [vmem:[#allocation2 + $0x40] sm:$0xff]
          %v6911 = vld [vmem:[#allocation2 + $0x48] sm:$0xff]
          %v6912 = vld [vmem:[#allocation2 + $0x50] sm:$0xff]
          %v6913 = vld [vmem:[#allocation2 + $0x58] sm:$0xff]
          %v6914 = vld [vmem:[#allocation2 + $0x60] sm:$0xff]
          %v6915 = vld [vmem:[#allocation2 + $0x68] sm:$0xff]
          %v6916 = vld [vmem:[#allocation2 + $0x70] sm:$0xff]
          %v6917 = vld [vmem:[#allocation2 + $0x78] sm:$0xff]
          %v6918 = vld [vmem:[#allocation2 + $0x80] sm:$0xff]
          %v6919 = vld [vmem:[#allocation2 + $0x88] sm:$0xff]
          %v6920 = vld [vmem:[#allocation2 + $0x90] sm:$0xff]
          %v6921 = vld [vmem:[#allocation2 + $0x98] sm:$0xff]
          %v6922 = vld [vmem:[#allocation2 + $0xa0] sm:$0xff]
          %v6923 = vld [vmem:[#allocation2 + $0xa8] sm:$0xff]
          %v6924 = vld [vmem:[#allocation2 + $0xb0] sm:$0xff]
          %v6925 = vld [vmem:[#allocation2 + $0xb8] sm:$0xff]
          %v6926 = vld [vmem:[#allocation2 + $0xc0] sm:$0xff]
          %v6927 = vld [vmem:[#allocation2 + $0xc8] sm:$0xff]
          %v6928 = vld [vmem:[#allocation2 + $0xd0] sm:$0xff]
          %v6929 = vld [vmem:[#allocation2 + $0xd8] sm:$0xff]
          %v6930 = vld [vmem:[#allocation2 + $0xe0] sm:$0xff]
          %v6931 = vld [vmem:[#allocation2 + $0xe8] sm:$0xff]
          %v6932 = vld [vmem:[#allocation2 + $0xf0] sm:$0xff]
          %v6933 = vld [vmem:[#allocation2 + $0xf8] sm:$0xff]
          %v6934 = vld [vmem:[#allocation2 + $0x100] sm:$0xff]
          %v6935 = vld [vmem:[#allocation2 + $0x108] sm:$0xff]
          %v6936 = vld [vmem:[#allocation2 + $0x110] sm:$0xff]
          %v6937 = vld [vmem:[#allocation2 + $0x118] sm:$0xff]
          %v6938 = vld [vmem:[#allocation2 + $0x120] sm:$0xff]
          %v6939 = vld [vmem:[#allocation2 + $0x128] sm:$0xff]
          %v6940 = vld [vmem:[#allocation2 + $0x130] sm:$0xff]
          %v6941 = vld [vmem:[#allocation2 + $0x138] sm:$0xff]
          %v6942 = vld [vmem:[#allocation2 + $0x140] sm:$0xff]
          %v6943 = vld [vmem:[#allocation2 + $0x148] sm:$0xff]
          %v6944 = vld [vmem:[#allocation2 + $0x150] sm:$0xff]
          %v6945 = vld [vmem:[#allocation2 + $0x158] sm:$0xff]
          %v6946 = vld [vmem:[#allocation2 + $0x160] sm:$0xff]
          %v6947 = vld [vmem:[#allocation2 + $0x168] sm:$0xff]
          %v6948 = vld [vmem:[#allocation2 + $0x170] sm:$0xff]
          %v6949 = vld [vmem:[#allocation2 + $0x178] sm:$0xff]
          %v6950 = vld [vmem:[#allocation2 + $0x180] sm:$0xff]
          %v6951 = vld [vmem:[#allocation2 + $0x188] sm:$0xff]
          %v6952 = vld [vmem:[#allocation2 + $0x190] sm:$0xff]
          %v6953 = vld [vmem:[#allocation2 + $0x198] sm:$0xff]
          %v6954 = vld [vmem:[#allocation2 + $0x1a0] sm:$0xff]
          %v6955 = vld [vmem:[#allocation2 + $0x1a8] sm:$0xff]
          %v6956 = vld [vmem:[#allocation2 + $0x1b0] sm:$0xff]
          %v6957 = vld [vmem:[#allocation2 + $0x1b8] sm:$0xff]
          %v6958 = vld [vmem:[#allocation2 + $0x1c0] sm:$0xff]
          %v6959 = vld [vmem:[#allocation2 + $0x1c8] sm:$0xff]
          %v6960 = vld [vmem:[#allocation2 + $0x1d0] sm:$0xff]
          %v6961 = vld [vmem:[#allocation2 + $0x1d8] sm:$0xff]
          %v6962 = vld [vmem:[#allocation2 + $0x1e0] sm:$0xff]
          %v6963 = vld [vmem:[#allocation2 + $0x1e8] sm:$0xff]
          %v6964 = vld [vmem:[#allocation2 + $0x1f0] sm:$0xff]
          %v6965 = vld [vmem:[#allocation2 + $0x1f8] sm:$0xff]
          %v6966 = vld [vmem:[#allocation2 + $0x200] sm:$0xff]
          %v6967 = vld [vmem:[#allocation2 + $0x208] sm:$0xff]
          %v6968 = vmul.f32 %v6902, %v999
          %v6969 = vmul.f32 %v6903, %v1000
          %v6970 = vmul.f32 %v6904, %v1001
          %v6971 = vmul.f32 %v6905, %v1002
          %v6972 = vmul.f32 %v6906, %v1003
          %v6973 = vmul.f32 %v6907, %v1004
          %v6974 = vmul.f32 %v6908, %v1005
          %v6975 = vmul.f32 %v6909, %v1006
          %v6976 = vmul.f32 %v6910, %v1007
          %v6977 = vmul.f32 %v6911, %v1008
          %v6978 = vmul.f32 %v6912, %v1009
          %v6979 = vmul.f32 %v6913, %v1010
          %v6980 = vmul.f32 %v6914, %v1011
          %v6981 = vmul.f32 %v6915, %v1012
          %v6982 = vmul.f32 %v6916, %v1013
          %v6983 = vmul.f32 %v6917, %v1014
          %v6984 = vmul.f32 %v6918, %v1015
          %v6985 = vmul.f32 %v6919, %v1016
          %v6986 = vmul.f32 %v6920, %v1017
          %v6987 = vmul.f32 %v6921, %v1018
          %v6988 = vmul.f32 %v6922, %v1019
          %v6989 = vmul.f32 %v6923, %v1020
          %v6990 = vmul.f32 %v6924, %v1021
          %v6991 = vmul.f32 %v6925, %v1022
          %v6992 = vmul.f32 %v6926, %v1023
          %v6993 = vmul.f32 %v6927, %v1024
          %v6994 = vmul.f32 %v6928, %v1025
          %v6995 = vmul.f32 %v6929, %v1026
          %v6996 = vmul.f32 %v6930, %v1027
          %v6997 = vmul.f32 %v6931, %v1028
          %v6998 = vmul.f32 %v6932, %v1029
          %v6999 = vmul.f32 %v6933, %v1030
          %v7000 = vmul.f32 %v6934, %v1031
          %v7001 = vmul.f32 %v6935, %v1032
          %v7002 = vmul.f32 %v6936, %v1033
          %v7003 = vmul.f32 %v6937, %v1034
          %v7004 = vmul.f32 %v6938, %v1035
          %v7005 = vmul.f32 %v6939, %v1036
          %v7006 = vmul.f32 %v6940, %v1037
          %v7007 = vmul.f32 %v6941, %v1038
          %v7008 = vmul.f32 %v6942, %v1039
          %v7009 = vmul.f32 %v6943, %v1040
          %v7010 = vmul.f32 %v6944, %v1041
          %v7011 = vmul.f32 %v6945, %v1042
          %v7012 = vmul.f32 %v6946, %v1043
          %v7013 = vmul.f32 %v6947, %v1044
          %v7014 = vmul.f32 %v6948, %v1045
          %v7015 = vmul.f32 %v6949, %v1046
          %v7016 = vmul.f32 %v6950, %v1047
          %v7017 = vmul.f32 %v6951, %v1048
          %v7018 = vmul.f32 %v6952, %v1049
          %v7019 = vmul.f32 %v6953, %v1050
          %v7020 = vmul.f32 %v6954, %v1051
          %v7021 = vmul.f32 %v6955, %v1052
          %v7022 = vmul.f32 %v6956, %v1053
          %v7023 = vmul.f32 %v6957, %v1054
          %v7024 = vmul.f32 %v6958, %v1055
          %v7025 = vmul.f32 %v6959, %v1056
          %v7026 = vmul.f32 %v6960, %v1057
          %v7027 = vmul.f32 %v6961, %v1058
          %v7028 = vmul.f32 %v6962, %v1059
          %v7029 = vmul.f32 %v6963, %v1060
          %v7030 = vmul.f32 %v6964, %v1061
          %v7031 = vmul.f32 %v6965, %v1062
          %v7032 = vmul.f32 %v6966, %v1063
          %v7033 = vmul.f32 %v6967, %v1064
          %7034 = vst [vmem:[#allocation2] sm:$0xff] %v6968
          %7035 = vst [vmem:[#allocation2 + $0x8] sm:$0xff] %v6969
          %7036 = vst [vmem:[#allocation2 + $0x10] sm:$0xff] %v6970
          %7037 = vst [vmem:[#allocation2 + $0x18] sm:$0xff] %v6971
          %7038 = vst [vmem:[#allocation2 + $0x20] sm:$0xff] %v6972
          %7039 = vst [vmem:[#allocation2 + $0x28] sm:$0xff] %v6973
          %7040 = vst [vmem:[#allocation2 + $0x30] sm:$0xff] %v6974
          %7041 = vst [vmem:[#allocation2 + $0x38] sm:$0xff] %v6975
          %7042 = vst [vmem:[#allocation2 + $0x40] sm:$0xff] %v6976
          %7043 = vst [vmem:[#allocation2 + $0x48] sm:$0xff] %v6977
          %7044 = vst [vmem:[#allocation2 + $0x50] sm:$0xff] %v6978
          %7045 = vst [vmem:[#allocation2 + $0x58] sm:$0xff] %v6979
          %7046 = vst [vmem:[#allocation2 + $0x60] sm:$0xff] %v6980
          %7047 = vst [vmem:[#allocation2 + $0x68] sm:$0xff] %v6981
          %7048 = vst [vmem:[#allocation2 + $0x70] sm:$0xff] %v6982
          %7049 = vst [vmem:[#allocation2 + $0x78] sm:$0xff] %v6983
          %7050 = vst [vmem:[#allocation2 + $0x80] sm:$0xff] %v6984
          %7051 = vst [vmem:[#allocation2 + $0x88] sm:$0xff] %v6985
          %7052 = vst [vmem:[#allocation2 + $0x90] sm:$0xff] %v6986
          %7053 = vst [vmem:[#allocation2 + $0x98] sm:$0xff] %v6987
          %7054 = vst [vmem:[#allocation2 + $0xa0] sm:$0xff] %v6988
          %7055 = vst [vmem:[#allocation2 + $0xa8] sm:$0xff] %v6989
          %7056 = vst [vmem:[#allocation2 + $0xb0] sm:$0xff] %v6990
          %7057 = vst [vmem:[#allocation2 + $0xb8] sm:$0xff] %v6991
          %7058 = vst [vmem:[#allocation2 + $0xc0] sm:$0xff] %v6992
          %7059 = vst [vmem:[#allocation2 + $0xc8] sm:$0xff] %v6993
          %7060 = vst [vmem:[#allocation2 + $0xd0] sm:$0xff] %v6994
          %7061 = vst [vmem:[#allocation2 + $0xd8] sm:$0xff] %v6995
          %7062 = vst [vmem:[#allocation2 + $0xe0] sm:$0xff] %v6996
          %7063 = vst [vmem:[#allocation2 + $0xe8] sm:$0xff] %v6997
          %7064 = vst [vmem:[#allocation2 + $0xf0] sm:$0xff] %v6998
          %7065 = vst [vmem:[#allocation2 + $0xf8] sm:$0xff] %v6999
          %7066 = vst [vmem:[#allocation2 + $0x100] sm:$0xff] %v7000
          %7067 = vst [vmem:[#allocation2 + $0x108] sm:$0xff] %v7001
          %7068 = vst [vmem:[#allocation2 + $0x110] sm:$0xff] %v7002
          %7069 = vst [vmem:[#allocation2 + $0x118] sm:$0xff] %v7003
          %7070 = vst [vmem:[#allocation2 + $0x120] sm:$0xff] %v7004
          %7071 = vst [vmem:[#allocation2 + $0x128] sm:$0xff] %v7005
          %7072 = vst [vmem:[#allocation2 + $0x130] sm:$0xff] %v7006
          %7073 = vst [vmem:[#allocation2 + $0x138] sm:$0xff] %v7007
          %7074 = vst [vmem:[#allocation2 + $0x140] sm:$0xff] %v7008
          %7075 = vst [vmem:[#allocation2 + $0x148] sm:$0xff] %v7009
          %7076 = vst [vmem:[#allocation2 + $0x150] sm:$0xff] %v7010
          %7077 = vst [vmem:[#allocation2 + $0x158] sm:$0xff] %v7011
          %7078 = vst [vmem:[#allocation2 + $0x160] sm:$0xff] %v7012
          %7079 = vst [vmem:[#allocation2 + $0x168] sm:$0xff] %v7013
          %7080 = vst [vmem:[#allocation2 + $0x170] sm:$0xff] %v7014
          %7081 = vst [vmem:[#allocation2 + $0x178] sm:$0xff] %v7015
          %7082 = vst [vmem:[#allocation2 + $0x180] sm:$0xff] %v7016
          %7083 = vst [vmem:[#allocation2 + $0x188] sm:$0xff] %v7017
          %7084 = vst [vmem:[#allocation2 + $0x190] sm:$0xff] %v7018
          %7085 = vst [vmem:[#allocation2 + $0x198] sm:$0xff] %v7019
          %7086 = vst [vmem:[#allocation2 + $0x1a0] sm:$0xff] %v7020
          %7087 = vst [vmem:[#allocation2 + $0x1a8] sm:$0xff] %v7021
          %7088 = vst [vmem:[#allocation2 + $0x1b0] sm:$0xff] %v7022
          %7089 = vst [vmem:[#allocation2 + $0x1b8] sm:$0xff] %v7023
          %7090 = vst [vmem:[#allocation2 + $0x1c0] sm:$0xff] %v7024
          %7091 = vst [vmem:[#allocation2 + $0x1c8] sm:$0xff] %v7025
          %7092 = vst [vmem:[#allocation2 + $0x1d0] sm:$0xff] %v7026
          %7093 = vst [vmem:[#allocation2 + $0x1d8] sm:$0xff] %v7027
          %7094 = vst [vmem:[#allocation2 + $0x1e0] sm:$0xff] %v7028
          %7095 = vst [vmem:[#allocation2 + $0x1e8] sm:$0xff] %v7029
          %7096 = vst [vmem:[#allocation2 + $0x1f0] sm:$0xff] %v7030
          %7097 = vst [vmem:[#allocation2 + $0x1f8] sm:$0xff] %v7031
          %7098 = vst [vmem:[#allocation2 + $0x200] sm:$0xff] %v7032
          %7099 = vst [vmem:[#allocation2 + $0x208] sm:$0xff] %v7033
        $region112: #{tpu_custom_call.1} parent=63 // pred_fallthru
          _
        %v7100 = vld [vmem:[#allocation2] sm:$0xff]
        %v7101 = vld [vmem:[#allocation2 + $0x8] sm:$0xff]
        %v7102 = vld [vmem:[#allocation2 + $0x10] sm:$0xff]
        %v7103 = vld [vmem:[#allocation2 + $0x18] sm:$0xff]
        %v7104 = vld [vmem:[#allocation2 + $0x20] sm:$0xff]
        %v7105 = vld [vmem:[#allocation2 + $0x28] sm:$0xff]
        %v7106 = vld [vmem:[#allocation2 + $0x30] sm:$0xff]
        %v7107 = vld [vmem:[#allocation2 + $0x38] sm:$0xff]
        %v7108 = vld [vmem:[#allocation2 + $0x40] sm:$0xff]
        %v7109 = vld [vmem:[#allocation2 + $0x48] sm:$0xff]
        %v7110 = vld [vmem:[#allocation2 + $0x50] sm:$0xff]
        %v7111 = vld [vmem:[#allocation2 + $0x58] sm:$0xff]
        %v7112 = vld [vmem:[#allocation2 + $0x60] sm:$0xff]
        %v7113 = vld [vmem:[#allocation2 + $0x68] sm:$0xff]
        %v7114 = vld [vmem:[#allocation2 + $0x70] sm:$0xff]
        %v7115 = vld [vmem:[#allocation2 + $0x78] sm:$0xff]
        %v7116 = vld [vmem:[#allocation2 + $0x80] sm:$0xff]
        %v7117 = vld [vmem:[#allocation2 + $0x88] sm:$0xff]
        %v7118 = vld [vmem:[#allocation2 + $0x90] sm:$0xff]
        %v7119 = vld [vmem:[#allocation2 + $0x98] sm:$0xff]
        %v7120 = vld [vmem:[#allocation2 + $0xa0] sm:$0xff]
        %v7121 = vld [vmem:[#allocation2 + $0xa8] sm:$0xff]
        %v7122 = vld [vmem:[#allocation2 + $0xb0] sm:$0xff]
        %v7123 = vld [vmem:[#allocation2 + $0xb8] sm:$0xff]
        %v7124 = vld [vmem:[#allocation2 + $0xc0] sm:$0xff]
        %v7125 = vld [vmem:[#allocation2 + $0xc8] sm:$0xff]
        %v7126 = vld [vmem:[#allocation2 + $0xd0] sm:$0xff]
        %v7127 = vld [vmem:[#allocation2 + $0xd8] sm:$0xff]
        %v7128 = vld [vmem:[#allocation2 + $0xe0] sm:$0xff]
        %v7129 = vld [vmem:[#allocation2 + $0xe8] sm:$0xff]
        %v7130 = vld [vmem:[#allocation2 + $0xf0] sm:$0xff]
        %v7131 = vld [vmem:[#allocation2 + $0xf8] sm:$0xff]
        %v7132 = vld [vmem:[#allocation2 + $0x100] sm:$0xff]
        %v7133 = vld [vmem:[#allocation2 + $0x108] sm:$0xff]
        %v7134 = vld [vmem:[#allocation2 + $0x110] sm:$0xff]
        %v7135 = vld [vmem:[#allocation2 + $0x118] sm:$0xff]
        %v7136 = vld [vmem:[#allocation2 + $0x120] sm:$0xff]
        %v7137 = vld [vmem:[#allocation2 + $0x128] sm:$0xff]
        %v7138 = vld [vmem:[#allocation2 + $0x130] sm:$0xff]
        %v7139 = vld [vmem:[#allocation2 + $0x138] sm:$0xff]
        %v7140 = vld [vmem:[#allocation2 + $0x140] sm:$0xff]
        %v7141 = vld [vmem:[#allocation2 + $0x148] sm:$0xff]
        %v7142 = vld [vmem:[#allocation2 + $0x150] sm:$0xff]
        %v7143 = vld [vmem:[#allocation2 + $0x158] sm:$0xff]
        %v7144 = vld [vmem:[#allocation2 + $0x160] sm:$0xff]
        %v7145 = vld [vmem:[#allocation2 + $0x168] sm:$0xff]
        %v7146 = vld [vmem:[#allocation2 + $0x170] sm:$0xff]
        %v7147 = vld [vmem:[#allocation2 + $0x178] sm:$0xff]
        %v7148 = vld [vmem:[#allocation2 + $0x180] sm:$0xff]
        %v7149 = vld [vmem:[#allocation2 + $0x188] sm:$0xff]
        %v7150 = vld [vmem:[#allocation2 + $0x190] sm:$0xff]
        %v7151 = vld [vmem:[#allocation2 + $0x198] sm:$0xff]
        %v7152 = vld [vmem:[#allocation2 + $0x1a0] sm:$0xff]
        %v7153 = vld [vmem:[#allocation2 + $0x1a8] sm:$0xff]
        %v7154 = vld [vmem:[#allocation2 + $0x1b0] sm:$0xff]
        %v7155 = vld [vmem:[#allocation2 + $0x1b8] sm:$0xff]
        %v7156 = vld [vmem:[#allocation2 + $0x1c0] sm:$0xff]
        %v7157 = vld [vmem:[#allocation2 + $0x1c8] sm:$0xff]
        %v7158 = vld [vmem:[#allocation2 + $0x1d0] sm:$0xff]
        %v7159 = vld [vmem:[#allocation2 + $0x1d8] sm:$0xff]
        %v7160 = vld [vmem:[#allocation2 + $0x1e0] sm:$0xff]
        %v7161 = vld [vmem:[#allocation2 + $0x1e8] sm:$0xff]
        %v7162 = vld [vmem:[#allocation2 + $0x1f0] sm:$0xff]
        %v7163 = vld [vmem:[#allocation2 + $0x1f8] sm:$0xff]
        %v7164 = vld [vmem:[#allocation2 + $0x200] sm:$0xff]
        %v7165 = vld [vmem:[#allocation2 + $0x208] sm:$0xff]
        %s7166 = scalar_lea.vmem [#allocation11], 24
        %v7167 = vld [vmem:[%s7166] sm:$0xff]
        %s7168 = scalar_lea.vmem [#allocation12], 192
        %v7169 = vld [vmem:[%s7168] sm:$0xf]
        %v7170 = vld [vmem:[%s7168 + $0x4] sm:$0xf]
        %v7171 = vld [vmem:[%s7168 + $0x8] sm:$0xf]
        %v7172 = vld [vmem:[%s7168 + $0xc] sm:$0xf]
        %v7173 = vld [vmem:[%s7168 + $0x10] sm:$0xf]
        %v7174 = vld [vmem:[%s7168 + $0x14] sm:$0xf]
        %v7175 = vld [vmem:[%s7168 + $0x18] sm:$0xf]
        %v7176 = vld [vmem:[%s7168 + $0x1c] sm:$0xf]
        %v7177 = vld [vmem:[%s7168 + $0x20] sm:$0xf]
        %v7178 = vld [vmem:[%s7168 + $0x24] sm:$0xf]
        %v7179 = vld [vmem:[%s7168 + $0x28] sm:$0xf]
        %v7180 = vld [vmem:[%s7168 + $0x2c] sm:$0xf]
        %v7181 = vld [vmem:[%s7168 + $0x30] sm:$0xf]
        %v7182 = vld [vmem:[%s7168 + $0x34] sm:$0xf]
        %v7183 = vld [vmem:[%s7168 + $0x38] sm:$0xf]
        %v7184 = vld [vmem:[%s7168 + $0x3c] sm:$0xf]
        %s7185 = scalar_lea.vmem %s8, 3
        %v7186 = vld [vmem:[%s7185] sm:$0x1]
        %v7187 = vlaneseq
        %v7188 = vshrl.u32 %v7187, 7
        %v7189 = vsub.s32 1, %v7188
        %v7190 = vrot.slane %v7167, %v7189
        %v7191 = vmul.f32 %v7100, %v7190
        %v7192 = vmul.f32 %v7101, %v7190
        %v7193 = vmul.f32 %v7102, %v7190
        %v7194 = vmul.f32 %v7103, %v7190
        %v7195 = vmul.f32 %v7104, %v7190
        %v7196 = vmul.f32 %v7105, %v7190
        %v7197 = vmul.f32 %v7106, %v7190
        %v7198 = vmul.f32 %v7107, %v7190
        %v7199 = vmul.f32 %v7108, %v7190
        %v7200 = vmul.f32 %v7109, %v7190
        %v7201 = vmul.f32 %v7110, %v7190
        %v7202 = vmul.f32 %v7111, %v7190
        %v7203 = vmul.f32 %v7112, %v7190
        %v7204 = vmul.f32 %v7113, %v7190
        %v7205 = vmul.f32 %v7114, %v7190
        %v7206 = vmul.f32 %v7115, %v7190
        %v7207 = vmul.f32 %v7116, %v7190
        %v7208 = vmul.f32 %v7117, %v7190
        %v7209 = vmul.f32 %v7118, %v7190
        %v7210 = vmul.f32 %v7119, %v7190
        %v7211 = vmul.f32 %v7120, %v7190
        %v7212 = vmul.f32 %v7121, %v7190
        %v7213 = vmul.f32 %v7122, %v7190
        %v7214 = vmul.f32 %v7123, %v7190
        %v7215 = vmul.f32 %v7124, %v7190
        %v7216 = vmul.f32 %v7125, %v7190
        %v7217 = vmul.f32 %v7126, %v7190
        %v7218 = vmul.f32 %v7127, %v7190
        %v7219 = vmul.f32 %v7128, %v7190
        %v7220 = vmul.f32 %v7129, %v7190
        %v7221 = vmul.f32 %v7130, %v7190
        %v7222 = vmul.f32 %v7131, %v7190
        %v7223 = vmul.f32 %v7132, %v7190
        %v7224 = vmul.f32 %v7133, %v7190
        %v7225 = vmul.f32 %v7134, %v7190
        %v7226 = vmul.f32 %v7135, %v7190
        %v7227 = vmul.f32 %v7136, %v7190
        %v7228 = vmul.f32 %v7137, %v7190
        %v7229 = vmul.f32 %v7138, %v7190
        %v7230 = vmul.f32 %v7139, %v7190
        %v7231 = vmul.f32 %v7140, %v7190
        %v7232 = vmul.f32 %v7141, %v7190
        %v7233 = vmul.f32 %v7142, %v7190
        %v7234 = vmul.f32 %v7143, %v7190
        %v7235 = vmul.f32 %v7144, %v7190
        %v7236 = vmul.f32 %v7145, %v7190
        %v7237 = vmul.f32 %v7146, %v7190
        %v7238 = vmul.f32 %v7147, %v7190
        %v7239 = vmul.f32 %v7148, %v7190
        %v7240 = vmul.f32 %v7149, %v7190
        %v7241 = vmul.f32 %v7150, %v7190
        %v7242 = vmul.f32 %v7151, %v7190
        %v7243 = vmul.f32 %v7152, %v7190
        %v7244 = vmul.f32 %v7153, %v7190
        %v7245 = vmul.f32 %v7154, %v7190
        %v7246 = vmul.f32 %v7155, %v7190
        %v7247 = vmul.f32 %v7156, %v7190
        %v7248 = vmul.f32 %v7157, %v7190
        %v7249 = vmul.f32 %v7158, %v7190
        %v7250 = vmul.f32 %v7159, %v7190
        %v7251 = vmul.f32 %v7160, %v7190
        %v7252 = vmul.f32 %v7161, %v7190
        %v7253 = vmul.f32 %v7162, %v7190
        %v7254 = vmul.f32 %v7163, %v7190
        %v7255 = vmul.f32 %v7164, %v7190
        %v7256 = vmul.f32 %v7165, %v7190
        %v7257 = vrot.slane %v7100, 7
        %v7258 = vrot.slane %v7101, 7
        %v7259 = vrot.slane %v7102, 7
        %v7260 = vrot.slane %v7103, 7
        %v7261 = vrot.slane %v7104, 7
        %v7262 = vrot.slane %v7105, 7
        %v7263 = vrot.slane %v7106, 7
        %v7264 = vrot.slane %v7107, 7
        %v7265 = vrot.slane %v7108, 7
        %v7266 = vrot.slane %v7109, 7
        %v7267 = vrot.slane %v7110, 7
        %v7268 = vrot.slane %v7111, 7
        %v7269 = vrot.slane %v7112, 7
        %v7270 = vrot.slane %v7113, 7
        %v7271 = vrot.slane %v7114, 7
        %v7272 = vrot.slane %v7115, 7
        %v7273 = vrot.slane %v7116, 7
        %v7274 = vrot.slane %v7117, 7
        %v7275 = vrot.slane %v7118, 7
        %v7276 = vrot.slane %v7119, 7
        %v7277 = vrot.slane %v7120, 7
        %v7278 = vrot.slane %v7121, 7
        %v7279 = vrot.slane %v7122, 7
        %v7280 = vrot.slane %v7123, 7
        %v7281 = vrot.slane %v7124, 7
        %v7282 = vrot.slane %v7125, 7
        %v7283 = vrot.slane %v7126, 7
        %v7284 = vrot.slane %v7127, 7
        %v7285 = vrot.slane %v7128, 7
        %v7286 = vrot.slane %v7129, 7
        %v7287 = vrot.slane %v7130, 7
        %v7288 = vrot.slane %v7131, 7
        %v7289 = vrot.slane %v7132, 7
        %v7290 = vrot.slane %v7133, 7
        %v7291 = vrot.slane %v7134, 7
        %v7292 = vrot.slane %v7135, 7
        %v7293 = vrot.slane %v7136, 7
        %v7294 = vrot.slane %v7137, 7
        %v7295 = vrot.slane %v7138, 7
        %v7296 = vrot.slane %v7139, 7
        %v7297 = vrot.slane %v7140, 7
        %v7298 = vrot.slane %v7141, 7
        %v7299 = vrot.slane %v7142, 7
        %v7300 = vrot.slane %v7143, 7
        %v7301 = vrot.slane %v7144, 7
        %v7302 = vrot.slane %v7145, 7
        %v7303 = vrot.slane %v7146, 7
        %v7304 = vrot.slane %v7147, 7
        %v7305 = vrot.slane %v7148, 7
        %v7306 = vrot.slane %v7149, 7
        %v7307 = vrot.slane %v7150, 7
        %v7308 = vrot.slane %v7151, 7
        %v7309 = vrot.slane %v7152, 7
        %v7310 = vrot.slane %v7153, 7
        %v7311 = vrot.slane %v7154, 7
        %v7312 = vrot.slane %v7155, 7
        %v7313 = vrot.slane %v7156, 7
        %v7314 = vrot.slane %v7157, 7
        %v7315 = vrot.slane %v7158, 7
        %v7316 = vrot.slane %v7159, 7
        %v7317 = vrot.slane %v7160, 7
        %v7318 = vrot.slane %v7161, 7
        %v7319 = vrot.slane %v7162, 7
        %v7320 = vrot.slane %v7163, 7
        %v7321 = vrot.slane %v7164, 7
        %v7322 = vrot.slane %v7165, 7
        %v7323 = vsel %vm1684, %v7321, %v7322
        %v7324 = vsel %vm1684, %v7320, %v7321
        %v7325 = vsel %vm1684, %v7319, %v7320
        %v7326 = vsel %vm1684, %v7318, %v7319
        %v7327 = vsel %vm1684, %v7317, %v7318
        %v7328 = vsel %vm1684, %v7316, %v7317
        %v7329 = vsel %vm1684, %v7315, %v7316
        %v7330 = vsel %vm1684, %v7314, %v7315
        %v7331 = vsel %vm1684, %v7313, %v7314
        %v7332 = vsel %vm1684, %v7312, %v7313
        %v7333 = vsel %vm1684, %v7311, %v7312
        %v7334 = vsel %vm1684, %v7310, %v7311
        %v7335 = vsel %vm1684, %v7309, %v7310
        %v7336 = vsel %vm1684, %v7308, %v7309
        %v7337 = vsel %vm1684, %v7307, %v7308
        %v7338 = vsel %vm1684, %v7306, %v7307
        %v7339 = vsel %vm1684, %v7305, %v7306
        %v7340 = vsel %vm1684, %v7304, %v7305
        %v7341 = vsel %vm1684, %v7303, %v7304
        %v7342 = vsel %vm1684, %v7302, %v7303
        %v7343 = vsel %vm1684, %v7301, %v7302
        %v7344 = vsel %vm1684, %v7300, %v7301
        %v7345 = vsel %vm1684, %v7299, %v7300
        %v7346 = vsel %vm1684, %v7298, %v7299
        %v7347 = vsel %vm1684, %v7297, %v7298
        %v7348 = vsel %vm1684, %v7296, %v7297
        %v7349 = vsel %vm1684, %v7295, %v7296
        %v7350 = vsel %vm1684, %v7294, %v7295
        %v7351 = vsel %vm1684, %v7293, %v7294
        %v7352 = vsel %vm1684, %v7292, %v7293
        %v7353 = vsel %vm1684, %v7291, %v7292
        %v7354 = vsel %vm1684, %v7290, %v7291
        %v7355 = vsel %vm1684, %v7289, %v7290
        %v7356 = vsel %vm1684, %v7288, %v7289
        %v7357 = vsel %vm1684, %v7287, %v7288
        %v7358 = vsel %vm1684, %v7286, %v7287
        %v7359 = vsel %vm1684, %v7285, %v7286
        %v7360 = vsel %vm1684, %v7284, %v7285
        %v7361 = vsel %vm1684, %v7283, %v7284
        %v7362 = vsel %vm1684, %v7282, %v7283
        %v7363 = vsel %vm1684, %v7281, %v7282
        %v7364 = vsel %vm1684, %v7280, %v7281
        %v7365 = vsel %vm1684, %v7279, %v7280
        %v7366 = vsel %vm1684, %v7278, %v7279
        %v7367 = vsel %vm1684, %v7277, %v7278
        %v7368 = vsel %vm1684, %v7276, %v7277
        %v7369 = vsel %vm1684, %v7275, %v7276
        %v7370 = vsel %vm1684, %v7274, %v7275
        %v7371 = vsel %vm1684, %v7273, %v7274
        %v7372 = vsel %vm1684, %v7272, %v7273
        %v7373 = vsel %vm1684, %v7271, %v7272
        %v7374 = vsel %vm1684, %v7270, %v7271
        %v7375 = vsel %vm1684, %v7269, %v7270
        %v7376 = vsel %vm1684, %v7268, %v7269
        %v7377 = vsel %vm1684, %v7267, %v7268
        %v7378 = vsel %vm1684, %v7266, %v7267
        %v7379 = vsel %vm1684, %v7265, %v7266
        %v7380 = vsel %vm1684, %v7264, %v7265
        %v7381 = vsel %vm1684, %v7263, %v7264
        %v7382 = vsel %vm1684, %v7262, %v7263
        %v7383 = vsel %vm1684, %v7261, %v7262
        %v7384 = vsel %vm1684, %v7260, %v7261
        %v7385 = vsel %vm1684, %v7259, %v7260
        %v7386 = vsel %vm1684, %v7258, %v7259
        %v7387 = vsel %vm1684, %v7257, %v7258
        %v7388 = vsel %vm1684, %v7322, %v7257
        %v7389 = vlaneseq
        %v7390 = vshrl.u32 %v7389, 7
        %v7391 = vsub.s32 0, %v7390
        %v7392 = vrot.slane %v7167, %v7391
        %v7393 = vmul.f32 %v7388, %v7392
        %v7394 = vmul.f32 %v7387, %v7392
        %v7395 = vmul.f32 %v7386, %v7392
        %v7396 = vmul.f32 %v7385, %v7392
        %v7397 = vmul.f32 %v7384, %v7392
        %v7398 = vmul.f32 %v7383, %v7392
        %v7399 = vmul.f32 %v7382, %v7392
        %v7400 = vmul.f32 %v7381, %v7392
        %v7401 = vmul.f32 %v7380, %v7392
        %v7402 = vmul.f32 %v7379, %v7392
        %v7403 = vmul.f32 %v7378, %v7392
        %v7404 = vmul.f32 %v7377, %v7392
        %v7405 = vmul.f32 %v7376, %v7392
        %v7406 = vmul.f32 %v7375, %v7392
        %v7407 = vmul.f32 %v7374, %v7392
        %v7408 = vmul.f32 %v7373, %v7392
        %v7409 = vmul.f32 %v7372, %v7392
        %v7410 = vmul.f32 %v7371, %v7392
        %v7411 = vmul.f32 %v7370, %v7392
        %v7412 = vmul.f32 %v7369, %v7392
        %v7413 = vmul.f32 %v7368, %v7392
        %v7414 = vmul.f32 %v7367, %v7392
        %v7415 = vmul.f32 %v7366, %v7392
        %v7416 = vmul.f32 %v7365, %v7392
        %v7417 = vmul.f32 %v7364, %v7392
        %v7418 = vmul.f32 %v7363, %v7392
        %v7419 = vmul.f32 %v7362, %v7392
        %v7420 = vmul.f32 %v7361, %v7392
        %v7421 = vmul.f32 %v7360, %v7392
        %v7422 = vmul.f32 %v7359, %v7392
        %v7423 = vmul.f32 %v7358, %v7392
        %v7424 = vmul.f32 %v7357, %v7392
        %v7425 = vmul.f32 %v7356, %v7392
        %v7426 = vmul.f32 %v7355, %v7392
        %v7427 = vmul.f32 %v7354, %v7392
        %v7428 = vmul.f32 %v7353, %v7392
        %v7429 = vmul.f32 %v7352, %v7392
        %v7430 = vmul.f32 %v7351, %v7392
        %v7431 = vmul.f32 %v7350, %v7392
        %v7432 = vmul.f32 %v7349, %v7392
        %v7433 = vmul.f32 %v7348, %v7392
        %v7434 = vmul.f32 %v7347, %v7392
        %v7435 = vmul.f32 %v7346, %v7392
        %v7436 = vmul.f32 %v7345, %v7392
        %v7437 = vmul.f32 %v7344, %v7392
        %v7438 = vmul.f32 %v7343, %v7392
        %v7439 = vmul.f32 %v7342, %v7392
        %v7440 = vmul.f32 %v7341, %v7392
        %v7441 = vmul.f32 %v7340, %v7392
        %v7442 = vmul.f32 %v7339, %v7392
        %v7443 = vmul.f32 %v7338, %v7392
        %v7444 = vmul.f32 %v7337, %v7392
        %v7445 = vmul.f32 %v7336, %v7392
        %v7446 = vmul.f32 %v7335, %v7392
        %v7447 = vmul.f32 %v7334, %v7392
        %v7448 = vmul.f32 %v7333, %v7392
        %v7449 = vmul.f32 %v7332, %v7392
        %v7450 = vmul.f32 %v7331, %v7392
        %v7451 = vmul.f32 %v7330, %v7392
        %v7452 = vmul.f32 %v7329, %v7392
        %v7453 = vmul.f32 %v7328, %v7392
        %v7454 = vmul.f32 %v7327, %v7392
        %v7455 = vmul.f32 %v7326, %v7392
        %v7456 = vmul.f32 %v7325, %v7392
        %v7457 = vmul.f32 %v7324, %v7392
        %v7458 = vmul.f32 %v7323, %v7392
        %v7459 = vadd.f32 %v7191, %v7393
        %v7460 = vadd.f32 %v7192, %v7394
        %v7461 = vadd.f32 %v7193, %v7395
        %v7462 = vadd.f32 %v7194, %v7396
        %v7463 = vadd.f32 %v7195, %v7397
        %v7464 = vadd.f32 %v7196, %v7398
        %v7465 = vadd.f32 %v7197, %v7399
        %v7466 = vadd.f32 %v7198, %v7400
        %v7467 = vadd.f32 %v7199, %v7401
        %v7468 = vadd.f32 %v7200, %v7402
        %v7469 = vadd.f32 %v7201, %v7403
        %v7470 = vadd.f32 %v7202, %v7404
        %v7471 = vadd.f32 %v7203, %v7405
        %v7472 = vadd.f32 %v7204, %v7406
        %v7473 = vadd.f32 %v7205, %v7407
        %v7474 = vadd.f32 %v7206, %v7408
        %v7475 = vadd.f32 %v7207, %v7409
        %v7476 = vadd.f32 %v7208, %v7410
        %v7477 = vadd.f32 %v7209, %v7411
        %v7478 = vadd.f32 %v7210, %v7412
        %v7479 = vadd.f32 %v7211, %v7413
        %v7480 = vadd.f32 %v7212, %v7414
        %v7481 = vadd.f32 %v7213, %v7415
        %v7482 = vadd.f32 %v7214, %v7416
        %v7483 = vadd.f32 %v7215, %v7417
        %v7484 = vadd.f32 %v7216, %v7418
        %v7485 = vadd.f32 %v7217, %v7419
        %v7486 = vadd.f32 %v7218, %v7420
        %v7487 = vadd.f32 %v7219, %v7421
        %v7488 = vadd.f32 %v7220, %v7422
        %v7489 = vadd.f32 %v7221, %v7423
        %v7490 = vadd.f32 %v7222, %v7424
        %v7491 = vadd.f32 %v7223, %v7425
        %v7492 = vadd.f32 %v7224, %v7426
        %v7493 = vadd.f32 %v7225, %v7427
        %v7494 = vadd.f32 %v7226, %v7428
        %v7495 = vadd.f32 %v7227, %v7429
        %v7496 = vadd.f32 %v7228, %v7430
        %v7497 = vadd.f32 %v7229, %v7431
        %v7498 = vadd.f32 %v7230, %v7432
        %v7499 = vadd.f32 %v7231, %v7433
        %v7500 = vadd.f32 %v7232, %v7434
        %v7501 = vadd.f32 %v7233, %v7435
        %v7502 = vadd.f32 %v7234, %v7436
        %v7503 = vadd.f32 %v7235, %v7437
        %v7504 = vadd.f32 %v7236, %v7438
        %v7505 = vadd.f32 %v7237, %v7439
        %v7506 = vadd.f32 %v7238, %v7440
        %v7507 = vadd.f32 %v7239, %v7441
        %v7508 = vadd.f32 %v7240, %v7442
        %v7509 = vadd.f32 %v7241, %v7443
        %v7510 = vadd.f32 %v7242, %v7444
        %v7511 = vadd.f32 %v7243, %v7445
        %v7512 = vadd.f32 %v7244, %v7446
        %v7513 = vadd.f32 %v7245, %v7447
        %v7514 = vadd.f32 %v7246, %v7448
        %v7515 = vadd.f32 %v7247, %v7449
        %v7516 = vadd.f32 %v7248, %v7450
        %v7517 = vadd.f32 %v7249, %v7451
        %v7518 = vadd.f32 %v7250, %v7452
        %v7519 = vadd.f32 %v7251, %v7453
        %v7520 = vadd.f32 %v7252, %v7454
        %v7521 = vadd.f32 %v7253, %v7455
        %v7522 = vadd.f32 %v7254, %v7456
        %v7523 = vadd.f32 %v7255, %v7457
        %v7524 = vadd.f32 %v7256, %v7458
        %v7525 = vrot.slane %v7100, 1
        %v7526 = vrot.slane %v7101, 1
        %v7527 = vrot.slane %v7102, 1
        %v7528 = vrot.slane %v7103, 1
        %v7529 = vrot.slane %v7104, 1
        %v7530 = vrot.slane %v7105, 1
        %v7531 = vrot.slane %v7106, 1
        %v7532 = vrot.slane %v7107, 1
        %v7533 = vrot.slane %v7108, 1
        %v7534 = vrot.slane %v7109, 1
        %v7535 = vrot.slane %v7110, 1
        %v7536 = vrot.slane %v7111, 1
        %v7537 = vrot.slane %v7112, 1
        %v7538 = vrot.slane %v7113, 1
        %v7539 = vrot.slane %v7114, 1
        %v7540 = vrot.slane %v7115, 1
        %v7541 = vrot.slane %v7116, 1
        %v7542 = vrot.slane %v7117, 1
        %v7543 = vrot.slane %v7118, 1
        %v7544 = vrot.slane %v7119, 1
        %v7545 = vrot.slane %v7120, 1
        %v7546 = vrot.slane %v7121, 1
        %v7547 = vrot.slane %v7122, 1
        %v7548 = vrot.slane %v7123, 1
        %v7549 = vrot.slane %v7124, 1
        %v7550 = vrot.slane %v7125, 1
        %v7551 = vrot.slane %v7126, 1
        %v7552 = vrot.slane %v7127, 1
        %v7553 = vrot.slane %v7128, 1
        %v7554 = vrot.slane %v7129, 1
        %v7555 = vrot.slane %v7130, 1
        %v7556 = vrot.slane %v7131, 1
        %v7557 = vrot.slane %v7132, 1
        %v7558 = vrot.slane %v7133, 1
        %v7559 = vrot.slane %v7134, 1
        %v7560 = vrot.slane %v7135, 1
        %v7561 = vrot.slane %v7136, 1
        %v7562 = vrot.slane %v7137, 1
        %v7563 = vrot.slane %v7138, 1
        %v7564 = vrot.slane %v7139, 1
        %v7565 = vrot.slane %v7140, 1
        %v7566 = vrot.slane %v7141, 1
        %v7567 = vrot.slane %v7142, 1
        %v7568 = vrot.slane %v7143, 1
        %v7569 = vrot.slane %v7144, 1
        %v7570 = vrot.slane %v7145, 1
        %v7571 = vrot.slane %v7146, 1
        %v7572 = vrot.slane %v7147, 1
        %v7573 = vrot.slane %v7148, 1
        %v7574 = vrot.slane %v7149, 1
        %v7575 = vrot.slane %v7150, 1
        %v7576 = vrot.slane %v7151, 1
        %v7577 = vrot.slane %v7152, 1
        %v7578 = vrot.slane %v7153, 1
        %v7579 = vrot.slane %v7154, 1
        %v7580 = vrot.slane %v7155, 1
        %v7581 = vrot.slane %v7156, 1
        %v7582 = vrot.slane %v7157, 1
        %v7583 = vrot.slane %v7158, 1
        %v7584 = vrot.slane %v7159, 1
        %v7585 = vrot.slane %v7160, 1
        %v7586 = vrot.slane %v7161, 1
        %v7587 = vrot.slane %v7162, 1
        %v7588 = vrot.slane %v7163, 1
        %v7589 = vrot.slane %v7164, 1
        %v7590 = vrot.slane %v7165, 1
        %v7591 = vsel %vm1953, %v7589, %v7590
        %v7592 = vsel %vm1953, %v7588, %v7589
        %v7593 = vsel %vm1953, %v7587, %v7588
        %v7594 = vsel %vm1953, %v7586, %v7587
        %v7595 = vsel %vm1953, %v7585, %v7586
        %v7596 = vsel %vm1953, %v7584, %v7585
        %v7597 = vsel %vm1953, %v7583, %v7584
        %v7598 = vsel %vm1953, %v7582, %v7583
        %v7599 = vsel %vm1953, %v7581, %v7582
        %v7600 = vsel %vm1953, %v7580, %v7581
        %v7601 = vsel %vm1953, %v7579, %v7580
        %v7602 = vsel %vm1953, %v7578, %v7579
        %v7603 = vsel %vm1953, %v7577, %v7578
        %v7604 = vsel %vm1953, %v7576, %v7577
        %v7605 = vsel %vm1953, %v7575, %v7576
        %v7606 = vsel %vm1953, %v7574, %v7575
        %v7607 = vsel %vm1953, %v7573, %v7574
        %v7608 = vsel %vm1953, %v7572, %v7573
        %v7609 = vsel %vm1953, %v7571, %v7572
        %v7610 = vsel %vm1953, %v7570, %v7571
        %v7611 = vsel %vm1953, %v7569, %v7570
        %v7612 = vsel %vm1953, %v7568, %v7569
        %v7613 = vsel %vm1953, %v7567, %v7568
        %v7614 = vsel %vm1953, %v7566, %v7567
        %v7615 = vsel %vm1953, %v7565, %v7566
        %v7616 = vsel %vm1953, %v7564, %v7565
        %v7617 = vsel %vm1953, %v7563, %v7564
        %v7618 = vsel %vm1953, %v7562, %v7563
        %v7619 = vsel %vm1953, %v7561, %v7562
        %v7620 = vsel %vm1953, %v7560, %v7561
        %v7621 = vsel %vm1953, %v7559, %v7560
        %v7622 = vsel %vm1953, %v7558, %v7559
        %v7623 = vsel %vm1953, %v7557, %v7558
        %v7624 = vsel %vm1953, %v7556, %v7557
        %v7625 = vsel %vm1953, %v7555, %v7556
        %v7626 = vsel %vm1953, %v7554, %v7555
        %v7627 = vsel %vm1953, %v7553, %v7554
        %v7628 = vsel %vm1953, %v7552, %v7553
        %v7629 = vsel %vm1953, %v7551, %v7552
        %v7630 = vsel %vm1953, %v7550, %v7551
        %v7631 = vsel %vm1953, %v7549, %v7550
        %v7632 = vsel %vm1953, %v7548, %v7549
        %v7633 = vsel %vm1953, %v7547, %v7548
        %v7634 = vsel %vm1953, %v7546, %v7547
        %v7635 = vsel %vm1953, %v7545, %v7546
        %v7636 = vsel %vm1953, %v7544, %v7545
        %v7637 = vsel %vm1953, %v7543, %v7544
        %v7638 = vsel %vm1953, %v7542, %v7543
        %v7639 = vsel %vm1953, %v7541, %v7542
        %v7640 = vsel %vm1953, %v7540, %v7541
        %v7641 = vsel %vm1953, %v7539, %v7540
        %v7642 = vsel %vm1953, %v7538, %v7539
        %v7643 = vsel %vm1953, %v7537, %v7538
        %v7644 = vsel %vm1953, %v7536, %v7537
        %v7645 = vsel %vm1953, %v7535, %v7536
        %v7646 = vsel %vm1953, %v7534, %v7535
        %v7647 = vsel %vm1953, %v7533, %v7534
        %v7648 = vsel %vm1953, %v7532, %v7533
        %v7649 = vsel %vm1953, %v7531, %v7532
        %v7650 = vsel %vm1953, %v7530, %v7531
        %v7651 = vsel %vm1953, %v7529, %v7530
        %v7652 = vsel %vm1953, %v7528, %v7529
        %v7653 = vsel %vm1953, %v7527, %v7528
        %v7654 = vsel %vm1953, %v7526, %v7527
        %v7655 = vsel %vm1953, %v7525, %v7526
        %v7656 = vsel %vm1953, %v7590, %v7525
        %v7657 = vlaneseq
        %v7658 = vshrl.u32 %v7657, 7
        %v7659 = vsub.s32 2, %v7658
        %v7660 = vrot.slane %v7167, %v7659
        %v7661 = vmul.f32 %v7655, %v7660
        %v7662 = vmul.f32 %v7654, %v7660
        %v7663 = vmul.f32 %v7653, %v7660
        %v7664 = vmul.f32 %v7652, %v7660
        %v7665 = vmul.f32 %v7651, %v7660
        %v7666 = vmul.f32 %v7650, %v7660
        %v7667 = vmul.f32 %v7649, %v7660
        %v7668 = vmul.f32 %v7648, %v7660
        %v7669 = vmul.f32 %v7647, %v7660
        %v7670 = vmul.f32 %v7646, %v7660
        %v7671 = vmul.f32 %v7645, %v7660
        %v7672 = vmul.f32 %v7644, %v7660
        %v7673 = vmul.f32 %v7643, %v7660
        %v7674 = vmul.f32 %v7642, %v7660
        %v7675 = vmul.f32 %v7641, %v7660
        %v7676 = vmul.f32 %v7640, %v7660
        %v7677 = vmul.f32 %v7639, %v7660
        %v7678 = vmul.f32 %v7638, %v7660
        %v7679 = vmul.f32 %v7637, %v7660
        %v7680 = vmul.f32 %v7636, %v7660
        %v7681 = vmul.f32 %v7635, %v7660
        %v7682 = vmul.f32 %v7634, %v7660
        %v7683 = vmul.f32 %v7633, %v7660
        %v7684 = vmul.f32 %v7632, %v7660
        %v7685 = vmul.f32 %v7631, %v7660
        %v7686 = vmul.f32 %v7630, %v7660
        %v7687 = vmul.f32 %v7629, %v7660
        %v7688 = vmul.f32 %v7628, %v7660
        %v7689 = vmul.f32 %v7627, %v7660
        %v7690 = vmul.f32 %v7626, %v7660
        %v7691 = vmul.f32 %v7625, %v7660
        %v7692 = vmul.f32 %v7624, %v7660
        %v7693 = vmul.f32 %v7623, %v7660
        %v7694 = vmul.f32 %v7622, %v7660
        %v7695 = vmul.f32 %v7621, %v7660
        %v7696 = vmul.f32 %v7620, %v7660
        %v7697 = vmul.f32 %v7619, %v7660
        %v7698 = vmul.f32 %v7618, %v7660
        %v7699 = vmul.f32 %v7617, %v7660
        %v7700 = vmul.f32 %v7616, %v7660
        %v7701 = vmul.f32 %v7615, %v7660
        %v7702 = vmul.f32 %v7614, %v7660
        %v7703 = vmul.f32 %v7613, %v7660
        %v7704 = vmul.f32 %v7612, %v7660
        %v7705 = vmul.f32 %v7611, %v7660
        %v7706 = vmul.f32 %v7610, %v7660
        %v7707 = vmul.f32 %v7609, %v7660
        %v7708 = vmul.f32 %v7608, %v7660
        %v7709 = vmul.f32 %v7607, %v7660
        %v7710 = vmul.f32 %v7606, %v7660
        %v7711 = vmul.f32 %v7605, %v7660
        %v7712 = vmul.f32 %v7604, %v7660
        %v7713 = vmul.f32 %v7603, %v7660
        %v7714 = vmul.f32 %v7602, %v7660
        %v7715 = vmul.f32 %v7601, %v7660
        %v7716 = vmul.f32 %v7600, %v7660
        %v7717 = vmul.f32 %v7599, %v7660
        %v7718 = vmul.f32 %v7598, %v7660
        %v7719 = vmul.f32 %v7597, %v7660
        %v7720 = vmul.f32 %v7596, %v7660
        %v7721 = vmul.f32 %v7595, %v7660
        %v7722 = vmul.f32 %v7594, %v7660
        %v7723 = vmul.f32 %v7593, %v7660
        %v7724 = vmul.f32 %v7592, %v7660
        %v7725 = vmul.f32 %v7591, %v7660
        %v7726 = vmul.f32 %v7656, %v7660
        %v7727 = vadd.f32 %v7459, %v7661
        %v7728 = vadd.f32 %v7460, %v7662
        %v7729 = vadd.f32 %v7461, %v7663
        %v7730 = vadd.f32 %v7462, %v7664
        %v7731 = vadd.f32 %v7463, %v7665
        %v7732 = vadd.f32 %v7464, %v7666
        %v7733 = vadd.f32 %v7465, %v7667
        %v7734 = vadd.f32 %v7466, %v7668
        %v7735 = vadd.f32 %v7467, %v7669
        %v7736 = vadd.f32 %v7468, %v7670
        %v7737 = vadd.f32 %v7469, %v7671
        %v7738 = vadd.f32 %v7470, %v7672
        %v7739 = vadd.f32 %v7471, %v7673
        %v7740 = vadd.f32 %v7472, %v7674
        %v7741 = vadd.f32 %v7473, %v7675
        %v7742 = vadd.f32 %v7474, %v7676
        %v7743 = vadd.f32 %v7475, %v7677
        %v7744 = vadd.f32 %v7476, %v7678
        %v7745 = vadd.f32 %v7477, %v7679
        %v7746 = vadd.f32 %v7478, %v7680
        %v7747 = vadd.f32 %v7479, %v7681
        %v7748 = vadd.f32 %v7480, %v7682
        %v7749 = vadd.f32 %v7481, %v7683
        %v7750 = vadd.f32 %v7482, %v7684
        %v7751 = vadd.f32 %v7483, %v7685
        %v7752 = vadd.f32 %v7484, %v7686
        %v7753 = vadd.f32 %v7485, %v7687
        %v7754 = vadd.f32 %v7486, %v7688
        %v7755 = vadd.f32 %v7487, %v7689
        %v7756 = vadd.f32 %v7488, %v7690
        %v7757 = vadd.f32 %v7489, %v7691
        %v7758 = vadd.f32 %v7490, %v7692
        %v7759 = vadd.f32 %v7491, %v7693
        %v7760 = vadd.f32 %v7492, %v7694
        %v7761 = vadd.f32 %v7493, %v7695
        %v7762 = vadd.f32 %v7494, %v7696
        %v7763 = vadd.f32 %v7495, %v7697
        %v7764 = vadd.f32 %v7496, %v7698
        %v7765 = vadd.f32 %v7497, %v7699
        %v7766 = vadd.f32 %v7498, %v7700
        %v7767 = vadd.f32 %v7499, %v7701
        %v7768 = vadd.f32 %v7500, %v7702
        %v7769 = vadd.f32 %v7501, %v7703
        %v7770 = vadd.f32 %v7502, %v7704
        %v7771 = vadd.f32 %v7503, %v7705
        %v7772 = vadd.f32 %v7504, %v7706
        %v7773 = vadd.f32 %v7505, %v7707
        %v7774 = vadd.f32 %v7506, %v7708
        %v7775 = vadd.f32 %v7507, %v7709
        %v7776 = vadd.f32 %v7508, %v7710
        %v7777 = vadd.f32 %v7509, %v7711
        %v7778 = vadd.f32 %v7510, %v7712
        %v7779 = vadd.f32 %v7511, %v7713
        %v7780 = vadd.f32 %v7512, %v7714
        %v7781 = vadd.f32 %v7513, %v7715
        %v7782 = vadd.f32 %v7514, %v7716
        %v7783 = vadd.f32 %v7515, %v7717
        %v7784 = vadd.f32 %v7516, %v7718
        %v7785 = vadd.f32 %v7517, %v7719
        %v7786 = vadd.f32 %v7518, %v7720
        %v7787 = vadd.f32 %v7519, %v7721
        %v7788 = vadd.f32 %v7520, %v7722
        %v7789 = vadd.f32 %v7521, %v7723
        %v7790 = vadd.f32 %v7522, %v7724
        %v7791 = vadd.f32 %v7523, %v7725
        %v7792 = vadd.f32 %v7524, %v7726
        %v7793 = vpack.c.bf16 %v7728, %v7727
        %v7794 = vpack.c.bf16 %v7730, %v7729
        %v7795 = vpack.c.bf16 %v7732, %v7731
        %v7796 = vpack.c.bf16 %v7734, %v7733
        %v7797 = vpack.c.bf16 %v7736, %v7735
        %v7798 = vpack.c.bf16 %v7738, %v7737
        %v7799 = vpack.c.bf16 %v7740, %v7739
        %v7800 = vpack.c.bf16 %v7742, %v7741
        %v7801 = vpack.c.bf16 %v7744, %v7743
        %v7802 = vpack.c.bf16 %v7746, %v7745
        %v7803 = vpack.c.bf16 %v7748, %v7747
        %v7804 = vpack.c.bf16 %v7750, %v7749
        %v7805 = vpack.c.bf16 %v7752, %v7751
        %v7806 = vpack.c.bf16 %v7754, %v7753
        %v7807 = vpack.c.bf16 %v7756, %v7755
        %v7808 = vpack.c.bf16 %v7758, %v7757
        %v7809 = vpack.c.bf16 %v7760, %v7759
        %v7810 = vpack.c.bf16 %v7762, %v7761
        %v7811 = vpack.c.bf16 %v7764, %v7763
        %v7812 = vpack.c.bf16 %v7766, %v7765
        %v7813 = vpack.c.bf16 %v7768, %v7767
        %v7814 = vpack.c.bf16 %v7770, %v7769
        %v7815 = vpack.c.bf16 %v7772, %v7771
        %v7816 = vpack.c.bf16 %v7774, %v7773
        %v7817 = vpack.c.bf16 %v7776, %v7775
        %v7818 = vpack.c.bf16 %v7778, %v7777
        %v7819 = vpack.c.bf16 %v7780, %v7779
        %v7820 = vpack.c.bf16 %v7782, %v7781
        %v7821 = vpack.c.bf16 %v7784, %v7783
        %v7822 = vpack.c.bf16 %v7786, %v7785
        %v7823 = vpack.c.bf16 %v7788, %v7787
        %v7824 = vpack.c.bf16 %v7790, %v7789
        %v7825 = vpack.c.bf16 %v7792, %v7791
        %v7827 = vlaneseq
        %v7828 = vshrl.u32 %v7827, 7
        %v7829 = vsub.s32 0, %v7828
        %v7830 = vrot.slane %v7186, %v7829
        %v7848 = vunpack.c.l.b16 %v7169
        %v7849 = vunpack.c.l.b16 %v7170
        %v7850 = vunpack.c.l.b16 %v7171
        %v7851 = vunpack.c.l.b16 %v7172
        %v7852 = vunpack.c.l.b16 %v7173
        %v7853 = vunpack.c.l.b16 %v7174
        %v7854 = vunpack.c.l.b16 %v7175
        %v7855 = vunpack.c.l.b16 %v7176
        %v7856 = vunpack.c.l.b16 %v7177
        %v7857 = vunpack.c.l.b16 %v7178
        %v7858 = vunpack.c.l.b16 %v7179
        %v7859 = vunpack.c.l.b16 %v7180
        %v7860 = vunpack.c.l.b16 %v7181
        %v7861 = vunpack.c.l.b16 %v7182
        %v7862 = vunpack.c.l.b16 %v7183
        %v7863 = vunpack.c.l.b16 %v7184
        %v7864 = vpack.c.b16 %v7849, %v7848
        %v7865 = vpack.c.b16 %v7851, %v7850
        %v7866 = vpack.c.b16 %v7853, %v7852
        %v7867 = vpack.c.b16 %v7855, %v7854
        %v7868 = vpack.c.b16 %v7857, %v7856
        %v7869 = vpack.c.b16 %v7859, %v7858
        %v7870 = vpack.c.b16 %v7861, %v7860
        %v7871 = vpack.c.b16 %v7863, %v7862
        %7880 = vmatprep.subr.bf16.mxu0 0
        %7881 = vmatpush1.bf16.msra.mxu0 %v7864
        %7882 = vmatprep.subr.bf16.mxu0 0
        %7883 = vmatpush1.bf16.msra.mxu0 %v7865
        %7884 = vmatprep.subr.bf16.mxu0 0
        %7885 = vmatpush1.bf16.msra.mxu0 %v7866
        %7886 = vmatprep.subr.bf16.mxu0 0
        %7887 = vmatpush1.bf16.msra.mxu0 %v7867
        %7888 = vmatprep.subr.bf16.mxu0 0
        %7889 = vmatpush1.bf16.msra.mxu0 %v7868
        %7890 = vmatprep.subr.bf16.mxu0 0
        %7891 = vmatpush1.bf16.msra.mxu0 %v7869
        %7892 = vmatprep.subr.bf16.mxu0 0
        %7893 = vmatpush1.bf16.msra.mxu0 %v7870
        %7894 = vmatprep.subr.bf16.mxu0 0
        %7895 = vmatpush1.bf16.msra.mxu0 %v7871
        %7896 = vmatprep.subr.bf16.mxu0 0
        %7897 = vmatpush1.bf16.msra.mxu0 0
        %7898 = vmatprep.subr.bf16.mxu0 0
        %7899 = vmatpush1.bf16.msra.mxu0 0
        %7900 = vmatprep.subr.bf16.mxu0 0
        %7901 = vmatpush1.bf16.msra.mxu0 0
        %7902 = vmatprep.subr.bf16.mxu0 0
        %7903 = vmatpush1.bf16.msra.mxu0 0
        %7904 = vmatprep.subr.bf16.mxu0 0
        %7905 = vmatpush1.bf16.msra.mxu0 0
        %7906 = vmatprep.subr.bf16.mxu0 0
        %7907 = vmatpush1.bf16.msra.mxu0 0
        %7908 = vmatprep.subr.bf16.mxu0 0
        %7909 = vmatpush1.bf16.msra.mxu0 0
        %7910 = vmatprep.subr.bf16.mxu0 0
        %7911 = vmatpush1.bf16.msra.mxu0 0
        %7912 = vmatprep.mubr.bf16.mxu0 0
        %7913 = vmatmul.mubr.bf16.gmra.mrb[0].mxu0 %v7793
        %v7914 = vpop.f32.mrb[0].mxu0
        %v7915 = vpop.f32.mrb[0].mxu0
        %v7916 = vpop.f32.mrb[0].mxu0
        %v7917 = vadd.f32 %v7830, %v7916
        %v7918 = vpop.f32.mrb[0].mxu0
        %7919 = vmatprep.mubr.bf16.mxu0 0
        %7920 = vmatmul.mubr.bf16.gmra.mrb[0].mxu0 %v7794
        %v7921 = vpop.f32.mrb[0].mxu0
        %v7922 = vadd.f32 %v7830, %v7921
        %v7923 = vpop.f32.mrb[0].mxu0
        %v7924 = vpop.f32.mrb[0].mxu0
        %v7925 = vadd.f32 %v7830, %v7924
        %v7926 = vpop.f32.mrb[0].mxu0
        %7927 = vmatprep.mubr.bf16.mxu0 0
        %7928 = vmatmul.mubr.bf16.gmra.mrb[0].mxu0 %v7795
        %v7929 = vpop.f32.mrb[0].mxu0
        %v7930 = vadd.f32 %v7830, %v7929
        %v7931 = vpop.f32.mrb[0].mxu0
        %v7932 = vpop.f32.mrb[0].mxu0
        %v7933 = vadd.f32 %v7830, %v7932
        %v7934 = vpop.f32.mrb[0].mxu0
        %7935 = vmatprep.mubr.bf16.mxu0 0
        %7936 = vmatmul.mubr.bf16.gmra.mrb[0].mxu0 %v7796
        %v7937 = vpop.f32.mrb[0].mxu0
        %v7938 = vadd.f32 %v7830, %v7937
        %v7939 = vpop.f32.mrb[0].mxu0
        %v7940 = vpop.f32.mrb[0].mxu0
        %v7941 = vadd.f32 %v7830, %v7940
        %v7942 = vpop.f32.mrb[0].mxu0
        %7943 = vmatprep.mubr.bf16.mxu0 0
        %7944 = vmatmul.mubr.bf16.gmra.mrb[0].mxu0 %v7797
        %v7945 = vpop.f32.mrb[0].mxu0
        %v7946 = vadd.f32 %v7830, %v7945
        %v7947 = vpop.f32.mrb[0].mxu0
        %v7948 = vpop.f32.mrb[0].mxu0
        %v7949 = vadd.f32 %v7830, %v7948
        %v7950 = vpop.f32.mrb[0].mxu0
        %7951 = vmatprep.mubr.bf16.mxu0 0
        %7952 = vmatmul.mubr.bf16.gmra.mrb[0].mxu0 %v7798
        %v7953 = vpop.f32.mrb[0].mxu0
        %v7954 = vadd.f32 %v7830, %v7953
        %v7955 = vpop.f32.mrb[0].mxu0
        %v7956 = vpop.f32.mrb[0].mxu0
        %v7957 = vadd.f32 %v7830, %v7956
        %v7958 = vpop.f32.mrb[0].mxu0
        %7959 = vmatprep.mubr.bf16.mxu0 0
        %7960 = vmatmul.mubr.bf16.gmra.mrb[0].mxu0 %v7799
        %v7961 = vpop.f32.mrb[0].mxu0
        %v7962 = vadd.f32 %v7830, %v7961
        %v7963 = vpop.f32.mrb[0].mxu0
        %v7964 = vpop.f32.mrb[0].mxu0
        %v7965 = vadd.f32 %v7830, %v7964
        %v7966 = vpop.f32.mrb[0].mxu0
        %7967 = vmatprep.mubr.bf16.mxu0 0
        %7968 = vmatmul.mubr.bf16.gmra.mrb[0].mxu0 %v7800
        %v7969 = vpop.f32.mrb[0].mxu0
        %v7970 = vadd.f32 %v7830, %v7969
        %v7971 = vpop.f32.mrb[0].mxu0
        %v7972 = vpop.f32.mrb[0].mxu0
        %v7973 = vadd.f32 %v7830, %v7972
        %v7974 = vpop.f32.mrb[0].mxu0
        %7975 = vmatprep.mubr.bf16.mxu0 0
        %7976 = vmatmul.mubr.bf16.gmra.mrb[0].mxu0 %v7801
        %v7977 = vpop.f32.mrb[0].mxu0
        %v7978 = vadd.f32 %v7830, %v7977
        %v7979 = vpop.f32.mrb[0].mxu0
        %v7980 = vpop.f32.mrb[0].mxu0
        %v7981 = vadd.f32 %v7830, %v7980
        %v7982 = vpop.f32.mrb[0].mxu0
        %7983 = vmatprep.mubr.bf16.mxu0 0
        %7984 = vmatmul.mubr.bf16.gmra.mrb[0].mxu0 %v7802
        %v7985 = vpop.f32.mrb[0].mxu0
        %v7986 = vadd.f32 %v7830, %v7985
        %v7987 = vpop.f32.mrb[0].mxu0
        %v7988 = vpop.f32.mrb[0].mxu0
        %v7989 = vadd.f32 %v7830, %v7988
        %v7990 = vpop.f32.mrb[0].mxu0
        %7991 = vmatprep.mubr.bf16.mxu0 0
        %7992 = vmatmul.mubr.bf16.gmra.mrb[0].mxu0 %v7803
        %v7993 = vpop.f32.mrb[0].mxu0
        %v7994 = vadd.f32 %v7830, %v7993
        %v7995 = vpop.f32.mrb[0].mxu0
        %v7996 = vpop.f32.mrb[0].mxu0
        %v7997 = vadd.f32 %v7830, %v7996
        %v7998 = vpop.f32.mrb[0].mxu0
        %7999 = vmatprep.mubr.bf16.mxu0 0
        %8000 = vmatmul.mubr.bf16.gmra.mrb[0].mxu0 %v7804
        %v8001 = vpop.f32.mrb[0].mxu0
        %v8002 = vadd.f32 %v7830, %v8001
        %v8003 = vpop.f32.mrb[0].mxu0
        %v8004 = vpop.f32.mrb[0].mxu0
        %v8005 = vadd.f32 %v7830, %v8004
        %v8006 = vpop.f32.mrb[0].mxu0
        %8007 = vmatprep.mubr.bf16.mxu0 0
        %8008 = vmatmul.mubr.bf16.gmra.mrb[0].mxu0 %v7805
        %v8009 = vpop.f32.mrb[0].mxu0
        %v8010 = vadd.f32 %v7830, %v8009
        %v8011 = vpop.f32.mrb[0].mxu0
        %v8012 = vpop.f32.mrb[0].mxu0
        %v8013 = vadd.f32 %v7830, %v8012
        %v8014 = vpop.f32.mrb[0].mxu0
        %8015 = vmatprep.mubr.bf16.mxu0 0
        %8016 = vmatmul.mubr.bf16.gmra.mrb[0].mxu0 %v7806
        %v8017 = vpop.f32.mrb[0].mxu0
        %v8018 = vadd.f32 %v7830, %v8017
        %v8019 = vpop.f32.mrb[0].mxu0
        %v8020 = vpop.f32.mrb[0].mxu0
        %v8021 = vadd.f32 %v7830, %v8020
        %v8022 = vpop.f32.mrb[0].mxu0
        %8023 = vmatprep.mubr.bf16.mxu0 0
        %8024 = vmatmul.mubr.bf16.gmra.mrb[0].mxu0 %v7807
        %v8025 = vpop.f32.mrb[0].mxu0
        %v8026 = vadd.f32 %v7830, %v8025
        %v8027 = vpop.f32.mrb[0].mxu0
        %v8028 = vpop.f32.mrb[0].mxu0
        %v8029 = vadd.f32 %v7830, %v8028
        %v8030 = vpop.f32.mrb[0].mxu0
        %8031 = vmatprep.mubr.bf16.mxu0 0
        %8032 = vmatmul.mubr.bf16.gmra.mrb[0].mxu0 %v7808
        %v8033 = vpop.f32.mrb[0].mxu0
        %v8034 = vadd.f32 %v7830, %v8033
        %v8035 = vpop.f32.mrb[0].mxu0
        %v8036 = vpop.f32.mrb[0].mxu0
        %v8037 = vadd.f32 %v7830, %v8036
        %v8038 = vpop.f32.mrb[0].mxu0
        %8039 = vmatprep.mubr.bf16.mxu0 0
        %8040 = vmatmul.mubr.bf16.gmra.mrb[0].mxu0 %v7809
        %v8041 = vpop.f32.mrb[0].mxu0
        %v8042 = vadd.f32 %v7830, %v8041
        %v8043 = vpop.f32.mrb[0].mxu0
        %v8044 = vpop.f32.mrb[0].mxu0
        %v8045 = vadd.f32 %v7830, %v8044
        %v8046 = vpop.f32.mrb[0].mxu0
        %8047 = vmatprep.mubr.bf16.mxu0 0
        %8048 = vmatmul.mubr.bf16.gmra.mrb[0].mxu0 %v7810
        %v8049 = vpop.f32.mrb[0].mxu0
        %v8050 = vadd.f32 %v7830, %v8049
        %v8051 = vpop.f32.mrb[0].mxu0
        %v8052 = vpop.f32.mrb[0].mxu0
        %v8053 = vadd.f32 %v7830, %v8052
        %v8054 = vpop.f32.mrb[0].mxu0
        %8055 = vmatprep.mubr.bf16.mxu0 0
        %8056 = vmatmul.mubr.bf16.gmra.mrb[0].mxu0 %v7811
        %v8057 = vpop.f32.mrb[0].mxu0
        %v8058 = vadd.f32 %v7830, %v8057
        %v8059 = vpop.f32.mrb[0].mxu0
        %v8060 = vpop.f32.mrb[0].mxu0
        %v8061 = vadd.f32 %v7830, %v8060
        %v8062 = vpop.f32.mrb[0].mxu0
        %8063 = vmatprep.mubr.bf16.mxu0 0
        %8064 = vmatmul.mubr.bf16.gmra.mrb[0].mxu0 %v7812
        %v8065 = vpop.f32.mrb[0].mxu0
        %v8066 = vadd.f32 %v7830, %v8065
        %v8067 = vpop.f32.mrb[0].mxu0
        %v8068 = vpop.f32.mrb[0].mxu0
        %v8069 = vadd.f32 %v7830, %v8068
        %v8070 = vpop.f32.mrb[0].mxu0
        %8071 = vmatprep.mubr.bf16.mxu0 0
        %8072 = vmatmul.mubr.bf16.gmra.mrb[0].mxu0 %v7813
        %v8073 = vpop.f32.mrb[0].mxu0
        %v8074 = vadd.f32 %v7830, %v8073
        %v8075 = vpop.f32.mrb[0].mxu0
        %v8076 = vpop.f32.mrb[0].mxu0
        %v8077 = vadd.f32 %v7830, %v8076
        %v8078 = vpop.f32.mrb[0].mxu0
        %8079 = vmatprep.mubr.bf16.mxu0 0
        %8080 = vmatmul.mubr.bf16.gmra.mrb[0].mxu0 %v7814
        %v8081 = vpop.f32.mrb[0].mxu0
        %v8082 = vadd.f32 %v7830, %v8081
        %v8083 = vpop.f32.mrb[0].mxu0
        %v8084 = vpop.f32.mrb[0].mxu0
        %v8085 = vadd.f32 %v7830, %v8084
        %v8086 = vpop.f32.mrb[0].mxu0
        %8087 = vmatprep.mubr.bf16.mxu0 0
        %8088 = vmatmul.mubr.bf16.gmra.mrb[0].mxu0 %v7815
        %v8089 = vpop.f32.mrb[0].mxu0
        %v8090 = vadd.f32 %v7830, %v8089
        %v8091 = vpop.f32.mrb[0].mxu0
        %v8092 = vpop.f32.mrb[0].mxu0
        %v8093 = vadd.f32 %v7830, %v8092
        %v8094 = vpop.f32.mrb[0].mxu0
        %8095 = vmatprep.mubr.bf16.mxu0 0
        %8096 = vmatmul.mubr.bf16.gmra.mrb[0].mxu0 %v7816
        %v8097 = vpop.f32.mrb[0].mxu0
        %v8098 = vadd.f32 %v7830, %v8097
        %v8099 = vpop.f32.mrb[0].mxu0
        %v8100 = vpop.f32.mrb[0].mxu0
        %v8101 = vadd.f32 %v7830, %v8100
        %v8102 = vpop.f32.mrb[0].mxu0
        %8103 = vmatprep.mubr.bf16.mxu0 0
        %8104 = vmatmul.mubr.bf16.gmra.mrb[0].mxu0 %v7817
        %v8105 = vpop.f32.mrb[0].mxu0
        %v8106 = vadd.f32 %v7830, %v8105
        %v8107 = vpop.f32.mrb[0].mxu0
        %v8108 = vpop.f32.mrb[0].mxu0
        %v8109 = vadd.f32 %v7830, %v8108
        %v8110 = vpop.f32.mrb[0].mxu0
        %8111 = vmatprep.mubr.bf16.mxu0 0
        %8112 = vmatmul.mubr.bf16.gmra.mrb[0].mxu0 %v7818
        %v8113 = vpop.f32.mrb[0].mxu0
        %v8114 = vadd.f32 %v7830, %v8113
        %v8115 = vpop.f32.mrb[0].mxu0
        %v8116 = vpop.f32.mrb[0].mxu0
        %v8117 = vadd.f32 %v7830, %v8116
        %v8118 = vpop.f32.mrb[0].mxu0
        %8119 = vmatprep.mubr.bf16.mxu0 0
        %8120 = vmatmul.mubr.bf16.gmra.mrb[0].mxu0 %v7819
        %v8121 = vpop.f32.mrb[0].mxu0
        %v8122 = vadd.f32 %v7830, %v8121
        %v8123 = vpop.f32.mrb[0].mxu0
        %v8124 = vpop.f32.mrb[0].mxu0
        %v8125 = vadd.f32 %v7830, %v8124
        %v8126 = vpop.f32.mrb[0].mxu0
        %8127 = vmatprep.mubr.bf16.mxu0 0
        %8128 = vmatmul.mubr.bf16.gmra.mrb[0].mxu0 %v7820
        %v8129 = vpop.f32.mrb[0].mxu0
        %v8130 = vadd.f32 %v7830, %v8129
        %v8131 = vpop.f32.mrb[0].mxu0
        %v8132 = vpop.f32.mrb[0].mxu0
        %v8133 = vadd.f32 %v7830, %v8132
        %v8134 = vpop.f32.mrb[0].mxu0
        %8135 = vmatprep.mubr.bf16.mxu0 0
        %8136 = vmatmul.mubr.bf16.gmra.mrb[0].mxu0 %v7821
        %v8137 = vpop.f32.mrb[0].mxu0
        %v8138 = vadd.f32 %v7830, %v8137
        %v8139 = vpop.f32.mrb[0].mxu0
        %v8140 = vpop.f32.mrb[0].mxu0
        %v8141 = vadd.f32 %v7830, %v8140
        %v8142 = vpop.f32.mrb[0].mxu0
        %8143 = vmatprep.mubr.bf16.mxu0 0
        %8144 = vmatmul.mubr.bf16.gmra.mrb[0].mxu0 %v7822
        %v8145 = vpop.f32.mrb[0].mxu0
        %v8146 = vadd.f32 %v7830, %v8145
        %v8147 = vpop.f32.mrb[0].mxu0
        %v8148 = vpop.f32.mrb[0].mxu0
        %v8149 = vadd.f32 %v7830, %v8148
        %v8150 = vpop.f32.mrb[0].mxu0
        %8151 = vmatprep.mubr.bf16.mxu0 0
        %8152 = vmatmul.mubr.bf16.gmra.mrb[0].mxu0 %v7823
        %v8153 = vpop.f32.mrb[0].mxu0
        %v8154 = vadd.f32 %v7830, %v8153
        %v8155 = vpop.f32.mrb[0].mxu0
        %v8156 = vpop.f32.mrb[0].mxu0
        %v8157 = vadd.f32 %v7830, %v8156
        %v8158 = vpop.f32.mrb[0].mxu0
        %8159 = vmatprep.mubr.bf16.mxu0 0
        %8160 = vmatmul.mubr.bf16.gmra.mrb[0].mxu0 %v7824
        %v8161 = vpop.f32.mrb[0].mxu0
        %v8162 = vadd.f32 %v7830, %v8161
        %v8163 = vpop.f32.mrb[0].mxu0
        %v8164 = vpop.f32.mrb[0].mxu0
        %v8165 = vadd.f32 %v7830, %v8164
        %v8166 = vpop.f32.mrb[0].mxu0
        %8167 = vmatprep.mubr.bf16.mxu0 0
        %8168 = vmatmul.mubr.bf16.gmra.mrb[0].mxu0 %v7825
        %v8169 = vpop.f32.mrb[0].mxu0
        %v8170 = vadd.f32 %v7830, %v8169
        %v8171 = vpop.f32.mrb[0].mxu0
        %v8172 = vpop.f32.mrb[0].mxu0
        %v8173 = vpop.f32.mrb[0].mxu0
        %8174 = vdwg.mxu0
        %v8175 = vld [vmem:[%s510] sm:$0xf]
        %v8176 = vld [vmem:[%s510 + $0x4] sm:$0xf]
        %v8177 = vld [vmem:[%s510 + $0x8] sm:$0xf]
        %v8178 = vld [vmem:[%s510 + $0xc] sm:$0xf]
        %v8179 = vld [vmem:[%s510 + $0x10] sm:$0xf]
        %v8180 = vld [vmem:[%s510 + $0x14] sm:$0xf]
        %v8181 = vld [vmem:[%s510 + $0x18] sm:$0xf]
        %v8182 = vld [vmem:[%s510 + $0x1c] sm:$0xf]
        %v8183 = vld [vmem:[%s510 + $0x20] sm:$0xf]
        %v8184 = vld [vmem:[%s510 + $0x24] sm:$0xf]
        %v8185 = vld [vmem:[%s510 + $0x28] sm:$0xf]
        %v8186 = vld [vmem:[%s510 + $0x2c] sm:$0xf]
        %v8187 = vld [vmem:[%s510 + $0x30] sm:$0xf]
        %v8188 = vld [vmem:[%s510 + $0x34] sm:$0xf]
        %v8189 = vld [vmem:[%s510 + $0x38] sm:$0xf]
        %v8190 = vld [vmem:[%s510 + $0x3c] sm:$0xf]
        %v8191 = vld [vmem:[%s510 + $0x40] sm:$0xf]
        %v8192 = vld [vmem:[%s510 + $0x44] sm:$0xf]
        %v8193 = vld [vmem:[%s510 + $0x48] sm:$0xf]
        %v8194 = vld [vmem:[%s510 + $0x4c] sm:$0xf]
        %v8195 = vld [vmem:[%s510 + $0x50] sm:$0xf]
        %v8196 = vld [vmem:[%s510 + $0x54] sm:$0xf]
        %v8197 = vld [vmem:[%s510 + $0x58] sm:$0xf]
        %v8198 = vld [vmem:[%s510 + $0x5c] sm:$0xf]
        %v8199 = vld [vmem:[%s510 + $0x60] sm:$0xf]
        %v8200 = vld [vmem:[%s510 + $0x64] sm:$0xf]
        %v8201 = vld [vmem:[%s510 + $0x68] sm:$0xf]
        %v8202 = vld [vmem:[%s510 + $0x6c] sm:$0xf]
        %v8203 = vld [vmem:[%s510 + $0x70] sm:$0xf]
        %v8204 = vld [vmem:[%s510 + $0x74] sm:$0xf]
        %v8205 = vld [vmem:[%s510 + $0x78] sm:$0xf]
        %v8206 = vld [vmem:[%s510 + $0x7c] sm:$0xf]
        %v8207 = vld [vmem:[%s510 + $0x80] sm:$0xf]
        %v8208 = vld [vmem:[%s510 + $0x84] sm:$0xf]
        %v8209 = vld [vmem:[%s510 + $0x88] sm:$0xf]
        %v8210 = vld [vmem:[%s510 + $0x8c] sm:$0xf]
        %v8211 = vld [vmem:[%s510 + $0x90] sm:$0xf]
        %v8212 = vld [vmem:[%s510 + $0x94] sm:$0xf]
        %v8213 = vld [vmem:[%s510 + $0x98] sm:$0xf]
        %v8214 = vld [vmem:[%s510 + $0x9c] sm:$0xf]
        %v8215 = vld [vmem:[%s510 + $0xa0] sm:$0xf]
        %v8216 = vld [vmem:[%s510 + $0xa4] sm:$0xf]
        %v8217 = vld [vmem:[%s510 + $0xa8] sm:$0xf]
        %v8218 = vld [vmem:[%s510 + $0xac] sm:$0xf]
        %v8219 = vld [vmem:[%s510 + $0xb0] sm:$0xf]
        %v8220 = vld [vmem:[%s510 + $0xb4] sm:$0xf]
        %v8221 = vld [vmem:[%s510 + $0xb8] sm:$0xf]
        %v8222 = vld [vmem:[%s510 + $0xbc] sm:$0xf]
        %v8223 = vld [vmem:[%s510 + $0xc0] sm:$0xf]
        %v8224 = vld [vmem:[%s510 + $0xc4] sm:$0xf]
        %v8225 = vld [vmem:[%s510 + $0xc8] sm:$0xf]
        %v8226 = vld [vmem:[%s510 + $0xcc] sm:$0xf]
        %v8227 = vld [vmem:[%s510 + $0xd0] sm:$0xf]
        %v8228 = vld [vmem:[%s510 + $0xd4] sm:$0xf]
        %v8229 = vld [vmem:[%s510 + $0xd8] sm:$0xf]
        %v8230 = vld [vmem:[%s510 + $0xdc] sm:$0xf]
        %v8231 = vld [vmem:[%s510 + $0xe0] sm:$0xf]
        %v8232 = vld [vmem:[%s510 + $0xe4] sm:$0xf]
        %v8233 = vld [vmem:[%s510 + $0xe8] sm:$0xf]
        %v8234 = vld [vmem:[%s510 + $0xec] sm:$0xf]
        %v8235 = vld [vmem:[%s510 + $0xf0] sm:$0xf]
        %v8236 = vld [vmem:[%s510 + $0xf4] sm:$0xf]
        %v8237 = vld [vmem:[%s510 + $0xf8] sm:$0xf]
        %v8238 = vld [vmem:[%s510 + $0xfc] sm:$0xf]
        %v8239 = vld [vmem:[#allocation14] sm:$0xf]
        %v8240 = vld [vmem:[#allocation14 + $0x4] sm:$0xf]
        %v8241 = vld [vmem:[#allocation14 + $0x8] sm:$0xf]
        %v8242 = vld [vmem:[#allocation14 + $0xc] sm:$0xf]
        %v8243 = vld [vmem:[#allocation14 + $0x10] sm:$0xf]
        %v8244 = vld [vmem:[#allocation14 + $0x14] sm:$0xf]
        %v8245 = vld [vmem:[#allocation14 + $0x18] sm:$0xf]
        %v8246 = vld [vmem:[#allocation14 + $0x1c] sm:$0xf]
        %v8247 = vld [vmem:[#allocation14 + $0x20] sm:$0xf]
        %v8248 = vld [vmem:[#allocation14 + $0x24] sm:$0xf]
        %v8249 = vld [vmem:[#allocation14 + $0x28] sm:$0xf]
        %v8250 = vld [vmem:[#allocation14 + $0x2c] sm:$0xf]
        %v8251 = vld [vmem:[#allocation14 + $0x30] sm:$0xf]
        %v8252 = vld [vmem:[#allocation14 + $0x34] sm:$0xf]
        %v8253 = vld [vmem:[#allocation14 + $0x38] sm:$0xf]
        %v8254 = vld [vmem:[#allocation14 + $0x3c] sm:$0xf]
        %v8255 = vld [vmem:[%s10] sm:$0x1]
        %v8257 = vlaneseq
        %v8258 = vshrl.u32 %v8257, 7
        %v8259 = vsub.s32 0, %v8258
        %v8260 = vrot.slane %v8255, %v8259
        %v8326 = vunpack.c.l.b16 %v8175
        %v8327 = vunpack.c.l.b16 %v8176
        %v8328 = vunpack.c.l.b16 %v8177
        %v8329 = vunpack.c.l.b16 %v8178
        %v8330 = vunpack.c.l.b16 %v8179
        %v8331 = vunpack.c.l.b16 %v8180
        %v8332 = vunpack.c.l.b16 %v8181
        %v8333 = vunpack.c.l.b16 %v8182
        %v8334 = vunpack.c.l.b16 %v8183
        %v8335 = vunpack.c.l.b16 %v8184
        %v8336 = vunpack.c.l.b16 %v8185
        %v8337 = vunpack.c.l.b16 %v8186
        %v8338 = vunpack.c.l.b16 %v8187
        %v8339 = vunpack.c.l.b16 %v8188
        %v8340 = vunpack.c.l.b16 %v8189
        %v8341 = vunpack.c.l.b16 %v8190
        %v8342 = vunpack.c.l.b16 %v8191
        %v8343 = vunpack.c.l.b16 %v8192
        %v8344 = vunpack.c.l.b16 %v8193
        %v8345 = vunpack.c.l.b16 %v8194
        %v8346 = vunpack.c.l.b16 %v8195
        %v8347 = vunpack.c.l.b16 %v8196
        %v8348 = vunpack.c.l.b16 %v8197
        %v8349 = vunpack.c.l.b16 %v8198
        %v8350 = vunpack.c.l.b16 %v8199
        %v8351 = vunpack.c.l.b16 %v8200
        %v8352 = vunpack.c.l.b16 %v8201
        %v8353 = vunpack.c.l.b16 %v8202
        %v8354 = vunpack.c.l.b16 %v8203
        %v8355 = vunpack.c.l.b16 %v8204
        %v8356 = vunpack.c.l.b16 %v8205
        %v8357 = vunpack.c.l.b16 %v8206
        %v8358 = vunpack.c.l.b16 %v8207
        %v8359 = vunpack.c.l.b16 %v8208
        %v8360 = vunpack.c.l.b16 %v8209
        %v8361 = vunpack.c.l.b16 %v8210
        %v8362 = vunpack.c.l.b16 %v8211
        %v8363 = vunpack.c.l.b16 %v8212
        %v8364 = vunpack.c.l.b16 %v8213
        %v8365 = vunpack.c.l.b16 %v8214
        %v8366 = vunpack.c.l.b16 %v8215
        %v8367 = vunpack.c.l.b16 %v8216
        %v8368 = vunpack.c.l.b16 %v8217
        %v8369 = vunpack.c.l.b16 %v8218
        %v8370 = vunpack.c.l.b16 %v8219
        %v8371 = vunpack.c.l.b16 %v8220
        %v8372 = vunpack.c.l.b16 %v8221
        %v8373 = vunpack.c.l.b16 %v8222
        %v8374 = vunpack.c.l.b16 %v8223
        %v8375 = vunpack.c.l.b16 %v8224
        %v8376 = vunpack.c.l.b16 %v8225
        %v8377 = vunpack.c.l.b16 %v8226
        %v8378 = vunpack.c.l.b16 %v8227
        %v8379 = vunpack.c.l.b16 %v8228
        %v8380 = vunpack.c.l.b16 %v8229
        %v8381 = vunpack.c.l.b16 %v8230
        %v8382 = vunpack.c.l.b16 %v8231
        %v8383 = vunpack.c.l.b16 %v8232
        %v8384 = vunpack.c.l.b16 %v8233
        %v8385 = vunpack.c.l.b16 %v8234
        %v8386 = vunpack.c.l.b16 %v8235
        %v8387 = vunpack.c.l.b16 %v8236
        %v8388 = vunpack.c.l.b16 %v8237
        %v8389 = vunpack.c.l.b16 %v8238
        %v8390 = vpack.c.b16 %v8327, %v8326
        %v8391 = vpack.c.b16 %v8329, %v8328
        %v8392 = vpack.c.b16 %v8331, %v8330
        %v8393 = vpack.c.b16 %v8333, %v8332
        %v8394 = vpack.c.b16 %v8335, %v8334
        %v8395 = vpack.c.b16 %v8337, %v8336
        %v8396 = vpack.c.b16 %v8339, %v8338
        %v8397 = vpack.c.b16 %v8341, %v8340
        %v8398 = vpack.c.b16 %v8343, %v8342
        %v8399 = vpack.c.b16 %v8345, %v8344
        %v8400 = vpack.c.b16 %v8347, %v8346
        %v8401 = vpack.c.b16 %v8349, %v8348
        %v8402 = vpack.c.b16 %v8351, %v8350
        %v8403 = vpack.c.b16 %v8353, %v8352
        %v8404 = vpack.c.b16 %v8355, %v8354
        %v8405 = vpack.c.b16 %v8357, %v8356
        %v8406 = vpack.c.b16 %v8359, %v8358
        %v8407 = vpack.c.b16 %v8361, %v8360
        %v8408 = vpack.c.b16 %v8363, %v8362
        %v8409 = vpack.c.b16 %v8365, %v8364
        %v8410 = vpack.c.b16 %v8367, %v8366
        %v8411 = vpack.c.b16 %v8369, %v8368
        %v8412 = vpack.c.b16 %v8371, %v8370
        %v8413 = vpack.c.b16 %v8373, %v8372
        %v8414 = vpack.c.b16 %v8375, %v8374
        %v8415 = vpack.c.b16 %v8377, %v8376
        %v8416 = vpack.c.b16 %v8379, %v8378
        %v8417 = vpack.c.b16 %v8381, %v8380
        %v8418 = vpack.c.b16 %v8383, %v8382
        %v8419 = vpack.c.b16 %v8385, %v8384
        %v8420 = vpack.c.b16 %v8387, %v8386
        %v8421 = vpack.c.b16 %v8389, %v8388
        %v8470 = vunpack.c.l.b16 %v8239
        %v8471 = vunpack.c.l.b16 %v8240
        %v8472 = vunpack.c.l.b16 %v8241
        %v8473 = vunpack.c.l.b16 %v8242
        %v8474 = vunpack.c.l.b16 %v8243
        %v8475 = vunpack.c.l.b16 %v8244
        %v8476 = vunpack.c.l.b16 %v8245
        %v8477 = vunpack.c.l.b16 %v8246
        %v8478 = vunpack.c.l.b16 %v8247
        %v8479 = vunpack.c.l.b16 %v8248
        %v8480 = vunpack.c.l.b16 %v8249
        %v8481 = vunpack.c.l.b16 %v8250
        %v8482 = vunpack.c.l.b16 %v8251
        %v8483 = vunpack.c.l.b16 %v8252
        %v8484 = vunpack.c.l.b16 %v8253
        %v8485 = vunpack.c.l.b16 %v8254
        %v8486 = vpack.c.b16 %v8471, %v8470
        %v8487 = vpack.c.b16 %v8473, %v8472
        %v8488 = vpack.c.b16 %v8475, %v8474
        %v8489 = vpack.c.b16 %v8477, %v8476
        %v8490 = vpack.c.b16 %v8479, %v8478
        %v8491 = vpack.c.b16 %v8481, %v8480
        %v8492 = vpack.c.b16 %v8483, %v8482
        %v8493 = vpack.c.b16 %v8485, %v8484
        %8502 = vmatprep.subr.bf16.mxu0 0
        %8503 = vmatpush1.bf16.msra.mxu0 %v8486
        %8504 = vmatprep.subr.bf16.mxu0 0
        %8505 = vmatpush1.bf16.msra.mxu0 %v8487
        %8506 = vmatprep.subr.bf16.mxu0 0
        %8507 = vmatpush1.bf16.msra.mxu0 %v8488
        %8508 = vmatprep.subr.bf16.mxu0 0
        %8509 = vmatpush1.bf16.msra.mxu0 %v8489
        %8510 = vmatprep.subr.bf16.mxu0 0
        %8511 = vmatpush1.bf16.msra.mxu0 %v8490
        %8512 = vmatprep.subr.bf16.mxu0 0
        %8513 = vmatpush1.bf16.msra.mxu0 %v8491
        %8514 = vmatprep.subr.bf16.mxu0 0
        %8515 = vmatpush1.bf16.msra.mxu0 %v8492
        %8516 = vmatprep.subr.bf16.mxu0 0
        %8517 = vmatpush1.bf16.msra.mxu0 %v8493
        %8518 = vmatprep.subr.bf16.mxu0 0
        %8519 = vmatpush1.bf16.msra.mxu0 0
        %8520 = vmatprep.subr.bf16.mxu0 0
        %8521 = vmatpush1.bf16.msra.mxu0 0
        %8522 = vmatprep.subr.bf16.mxu0 0
        %8523 = vmatpush1.bf16.msra.mxu0 0
        %8524 = vmatprep.subr.bf16.mxu0 0
        %8525 = vmatpush1.bf16.msra.mxu0 0
        %8526 = vmatprep.subr.bf16.mxu0 0
        %8527 = vmatpush1.bf16.msra.mxu0 0
        %8528 = vmatprep.subr.bf16.mxu0 0
        %8529 = vmatpush1.bf16.msra.mxu0 0
        %8530 = vmatprep.subr.bf16.mxu0 0
        %8531 = vmatpush1.bf16.msra.mxu0 0
        %8532 = vmatprep.subr.bf16.mxu0 0
        %8533 = vmatpush1.bf16.msra.mxu0 0
        %8534 = vmatprep.mubr.bf16.mxu0 0
        %8535 = vmatmul.mubr.bf16.gmra.mrb[0].mxu0 %v8390
        %v8536 = vpop.f32.mrb[0].mxu0
        %v8537 = vadd.f32 %v8260, %v8536
        %v8538 = vpop.f32.mrb[0].mxu0
        %v8539 = vpop.f32.mrb[0].mxu0
        %v8540 = vadd.f32 %v8260, %v8539
        %v8541 = vpop.f32.mrb[0].mxu0
        %8542 = vmatprep.mubr.bf16.mxu0 0
        %8543 = vmatmul.mubr.bf16.gmra.mrb[0].mxu0 %v8391
        %v8544 = vpop.f32.mrb[0].mxu0
        %v8545 = vadd.f32 %v8260, %v8544
        %v8546 = vpop.f32.mrb[0].mxu0
        %v8547 = vpop.f32.mrb[0].mxu0
        %v8548 = vadd.f32 %v8260, %v8547
        %v8549 = vpop.f32.mrb[0].mxu0
        %8550 = vmatprep.mubr.bf16.mxu0 0
        %8551 = vmatmul.mubr.bf16.gmra.mrb[0].mxu0 %v8392
        %v8552 = vpop.f32.mrb[0].mxu0
        %v8553 = vadd.f32 %v8260, %v8552
        %v8554 = vpop.f32.mrb[0].mxu0
        %v8555 = vpop.f32.mrb[0].mxu0
        %v8556 = vadd.f32 %v8260, %v8555
        %v8557 = vpop.f32.mrb[0].mxu0
        %8558 = vmatprep.mubr.bf16.mxu0 0
        %8559 = vmatmul.mubr.bf16.gmra.mrb[0].mxu0 %v8393
        %v8560 = vpop.f32.mrb[0].mxu0
        %v8561 = vadd.f32 %v8260, %v8560
        %v8562 = vpop.f32.mrb[0].mxu0
        %v8563 = vpop.f32.mrb[0].mxu0
        %v8564 = vadd.f32 %v8260, %v8563
        %v8565 = vpop.f32.mrb[0].mxu0
        %8566 = vmatprep.mubr.bf16.mxu0 0
        %8567 = vmatmul.mubr.bf16.gmra.mrb[0].mxu0 %v8394
        %v8568 = vpop.f32.mrb[0].mxu0
        %v8569 = vadd.f32 %v8260, %v8568
        %v8570 = vpop.f32.mrb[0].mxu0
        %v8571 = vpop.f32.mrb[0].mxu0
        %v8572 = vadd.f32 %v8260, %v8571
        %v8573 = vpop.f32.mrb[0].mxu0
        %8574 = vmatprep.mubr.bf16.mxu0 0
        %8575 = vmatmul.mubr.bf16.gmra.mrb[0].mxu0 %v8395
        %v8576 = vpop.f32.mrb[0].mxu0
        %v8577 = vadd.f32 %v8260, %v8576
        %v8578 = vpop.f32.mrb[0].mxu0
        %v8579 = vpop.f32.mrb[0].mxu0
        %v8580 = vadd.f32 %v8260, %v8579
        %v8581 = vpop.f32.mrb[0].mxu0
        %8582 = vmatprep.mubr.bf16.mxu0 0
        %8583 = vmatmul.mubr.bf16.gmra.mrb[0].mxu0 %v8396
        %v8584 = vpop.f32.mrb[0].mxu0
        %v8585 = vadd.f32 %v8260, %v8584
        %v8586 = vpop.f32.mrb[0].mxu0
        %v8587 = vpop.f32.mrb[0].mxu0
        %v8588 = vadd.f32 %v8260, %v8587
        %v8589 = vpop.f32.mrb[0].mxu0
        %8590 = vmatprep.mubr.bf16.mxu0 0
        %8591 = vmatmul.mubr.bf16.gmra.mrb[0].mxu0 %v8397
        %v8592 = vpop.f32.mrb[0].mxu0
        %v8593 = vadd.f32 %v8260, %v8592
        %v8594 = vpop.f32.mrb[0].mxu0
        %v8595 = vpop.f32.mrb[0].mxu0
        %v8596 = vadd.f32 %v8260, %v8595
        %v8597 = vpop.f32.mrb[0].mxu0
        %8598 = vmatprep.mubr.bf16.mxu0 0
        %8599 = vmatmul.mubr.bf16.gmra.mrb[0].mxu0 %v8398
        %v8600 = vpop.f32.mrb[0].mxu0
        %v8601 = vadd.f32 %v8260, %v8600
        %v8602 = vpop.f32.mrb[0].mxu0
        %v8603 = vpop.f32.mrb[0].mxu0
        %v8604 = vadd.f32 %v8260, %v8603
        %v8605 = vpop.f32.mrb[0].mxu0
        %8606 = vmatprep.mubr.bf16.mxu0 0
        %8607 = vmatmul.mubr.bf16.gmra.mrb[0].mxu0 %v8399
        %v8608 = vpop.f32.mrb[0].mxu0
        %v8609 = vadd.f32 %v8260, %v8608
        %v8610 = vpop.f32.mrb[0].mxu0
        %v8611 = vpop.f32.mrb[0].mxu0
        %v8612 = vadd.f32 %v8260, %v8611
        %v8613 = vpop.f32.mrb[0].mxu0
        %8614 = vmatprep.mubr.bf16.mxu0 0
        %8615 = vmatmul.mubr.bf16.gmra.mrb[0].mxu0 %v8400
        %v8616 = vpop.f32.mrb[0].mxu0
        %v8617 = vadd.f32 %v8260, %v8616
        %v8618 = vpop.f32.mrb[0].mxu0
        %v8619 = vpop.f32.mrb[0].mxu0
        %v8620 = vadd.f32 %v8260, %v8619
        %v8621 = vpop.f32.mrb[0].mxu0
        %8622 = vmatprep.mubr.bf16.mxu0 0
        %8623 = vmatmul.mubr.bf16.gmra.mrb[0].mxu0 %v8401
        %v8624 = vpop.f32.mrb[0].mxu0
        %v8625 = vadd.f32 %v8260, %v8624
        %v8626 = vpop.f32.mrb[0].mxu0
        %v8627 = vpop.f32.mrb[0].mxu0
        %v8628 = vadd.f32 %v8260, %v8627
        %v8629 = vpop.f32.mrb[0].mxu0
        %8630 = vmatprep.mubr.bf16.mxu0 0
        %8631 = vmatmul.mubr.bf16.gmra.mrb[0].mxu0 %v8402
        %v8632 = vpop.f32.mrb[0].mxu0
        %v8633 = vadd.f32 %v8260, %v8632
        %v8634 = vpop.f32.mrb[0].mxu0
        %v8635 = vpop.f32.mrb[0].mxu0
        %v8636 = vadd.f32 %v8260, %v8635
        %v8637 = vpop.f32.mrb[0].mxu0
        %8638 = vmatprep.mubr.bf16.mxu0 0
        %8639 = vmatmul.mubr.bf16.gmra.mrb[0].mxu0 %v8403
        %v8640 = vpop.f32.mrb[0].mxu0
        %v8641 = vadd.f32 %v8260, %v8640
        %v8642 = vpop.f32.mrb[0].mxu0
        %v8643 = vpop.f32.mrb[0].mxu0
        %v8644 = vadd.f32 %v8260, %v8643
        %v8645 = vpop.f32.mrb[0].mxu0
        %8646 = vmatprep.mubr.bf16.mxu0 0
        %8647 = vmatmul.mubr.bf16.gmra.mrb[0].mxu0 %v8404
        %v8648 = vpop.f32.mrb[0].mxu0
        %v8649 = vadd.f32 %v8260, %v8648
        %v8650 = vpop.f32.mrb[0].mxu0
        %v8651 = vpop.f32.mrb[0].mxu0
        %v8652 = vadd.f32 %v8260, %v8651
        %v8653 = vpop.f32.mrb[0].mxu0
        %8654 = vmatprep.mubr.bf16.mxu0 0
        %8655 = vmatmul.mubr.bf16.gmra.mrb[0].mxu0 %v8405
        %v8656 = vpop.f32.mrb[0].mxu0
        %v8657 = vadd.f32 %v8260, %v8656
        %v8658 = vpop.f32.mrb[0].mxu0
        %v8659 = vpop.f32.mrb[0].mxu0
        %v8660 = vadd.f32 %v8260, %v8659
        %v8661 = vpop.f32.mrb[0].mxu0
        %8662 = vmatprep.mubr.bf16.mxu0 0
        %8663 = vmatmul.mubr.bf16.gmra.mrb[0].mxu0 %v8406
        %v8664 = vpop.f32.mrb[0].mxu0
        %v8665 = vadd.f32 %v8260, %v8664
        %v8666 = vpop.f32.mrb[0].mxu0
        %v8667 = vpop.f32.mrb[0].mxu0
        %v8668 = vadd.f32 %v8260, %v8667
        %v8669 = vpop.f32.mrb[0].mxu0
        %8670 = vmatprep.mubr.bf16.mxu0 0
        %8671 = vmatmul.mubr.bf16.gmra.mrb[0].mxu0 %v8407
        %v8672 = vpop.f32.mrb[0].mxu0
        %v8673 = vadd.f32 %v8260, %v8672
        %v8674 = vpop.f32.mrb[0].mxu0
        %v8675 = vpop.f32.mrb[0].mxu0
        %v8676 = vadd.f32 %v8260, %v8675
        %v8677 = vpop.f32.mrb[0].mxu0
        %8678 = vmatprep.mubr.bf16.mxu0 0
        %8679 = vmatmul.mubr.bf16.gmra.mrb[0].mxu0 %v8408
        %v8680 = vpop.f32.mrb[0].mxu0
        %v8681 = vadd.f32 %v8260, %v8680
        %v8682 = vpop.f32.mrb[0].mxu0
        %v8683 = vpop.f32.mrb[0].mxu0
        %v8684 = vadd.f32 %v8260, %v8683
        %v8685 = vpop.f32.mrb[0].mxu0
        %8686 = vmatprep.mubr.bf16.mxu0 0
        %8687 = vmatmul.mubr.bf16.gmra.mrb[0].mxu0 %v8409
        %v8688 = vpop.f32.mrb[0].mxu0
        %v8689 = vadd.f32 %v8260, %v8688
        %v8690 = vpop.f32.mrb[0].mxu0
        %v8691 = vpop.f32.mrb[0].mxu0
        %v8692 = vadd.f32 %v8260, %v8691
        %v8693 = vpop.f32.mrb[0].mxu0
        %8694 = vmatprep.mubr.bf16.mxu0 0
        %8695 = vmatmul.mubr.bf16.gmra.mrb[0].mxu0 %v8410
        %v8696 = vpop.f32.mrb[0].mxu0
        %v8697 = vadd.f32 %v8260, %v8696
        %v8698 = vpop.f32.mrb[0].mxu0
        %v8699 = vpop.f32.mrb[0].mxu0
        %v8700 = vadd.f32 %v8260, %v8699
        %v8701 = vpop.f32.mrb[0].mxu0
        %8702 = vmatprep.mubr.bf16.mxu0 0
        %8703 = vmatmul.mubr.bf16.gmra.mrb[0].mxu0 %v8411
        %v8704 = vpop.f32.mrb[0].mxu0
        %v8705 = vadd.f32 %v8260, %v8704
        %v8706 = vpop.f32.mrb[0].mxu0
        %v8707 = vpop.f32.mrb[0].mxu0
        %v8708 = vadd.f32 %v8260, %v8707
        %v8709 = vpop.f32.mrb[0].mxu0
        %8710 = vmatprep.mubr.bf16.mxu0 0
        %8711 = vmatmul.mubr.bf16.gmra.mrb[0].mxu0 %v8412
        %v8712 = vpop.f32.mrb[0].mxu0
        %v8713 = vadd.f32 %v8260, %v8712
        %v8714 = vpop.f32.mrb[0].mxu0
        %v8715 = vpop.f32.mrb[0].mxu0
        %v8716 = vadd.f32 %v8260, %v8715
        %v8717 = vpop.f32.mrb[0].mxu0
        %8718 = vmatprep.mubr.bf16.mxu0 0
        %8719 = vmatmul.mubr.bf16.gmra.mrb[0].mxu0 %v8413
        %v8720 = vpop.f32.mrb[0].mxu0
        %v8721 = vadd.f32 %v8260, %v8720
        %v8722 = vpop.f32.mrb[0].mxu0
        %v8723 = vpop.f32.mrb[0].mxu0
        %v8724 = vadd.f32 %v8260, %v8723
        %v8725 = vpop.f32.mrb[0].mxu0
        %8726 = vmatprep.mubr.bf16.mxu0 0
        %8727 = vmatmul.mubr.bf16.gmra.mrb[0].mxu0 %v8414
        %v8728 = vpop.f32.mrb[0].mxu0
        %v8729 = vadd.f32 %v8260, %v8728
        %v8730 = vpop.f32.mrb[0].mxu0
        %v8731 = vpop.f32.mrb[0].mxu0
        %v8732 = vadd.f32 %v8260, %v8731
        %v8733 = vpop.f32.mrb[0].mxu0
        %8734 = vmatprep.mubr.bf16.mxu0 0
        %8735 = vmatmul.mubr.bf16.gmra.mrb[0].mxu0 %v8415
        %v8736 = vpop.f32.mrb[0].mxu0
        %v8737 = vadd.f32 %v8260, %v8736
        %v8738 = vpop.f32.mrb[0].mxu0
        %v8739 = vpop.f32.mrb[0].mxu0
        %v8740 = vadd.f32 %v8260, %v8739
        %v8741 = vpop.f32.mrb[0].mxu0
        %8742 = vmatprep.mubr.bf16.mxu0 0
        %8743 = vmatmul.mubr.bf16.gmra.mrb[0].mxu0 %v8416
        %v8744 = vpop.f32.mrb[0].mxu0
        %v8745 = vadd.f32 %v8260, %v8744
        %v8746 = vpop.f32.mrb[0].mxu0
        %v8747 = vpop.f32.mrb[0].mxu0
        %v8748 = vadd.f32 %v8260, %v8747
        %v8749 = vpop.f32.mrb[0].mxu0
        %8750 = vmatprep.mubr.bf16.mxu0 0
        %8751 = vmatmul.mubr.bf16.gmra.mrb[0].mxu0 %v8417
        %v8752 = vpop.f32.mrb[0].mxu0
        %v8753 = vadd.f32 %v8260, %v8752
        %v8754 = vpop.f32.mrb[0].mxu0
        %v8755 = vpop.f32.mrb[0].mxu0
        %v8756 = vadd.f32 %v8260, %v8755
        %v8757 = vpop.f32.mrb[0].mxu0
        %8758 = vmatprep.mubr.bf16.mxu0 0
        %8759 = vmatmul.mubr.bf16.gmra.mrb[0].mxu0 %v8418
        %v8760 = vpop.f32.mrb[0].mxu0
        %v8761 = vadd.f32 %v8260, %v8760
        %v8762 = vpop.f32.mrb[0].mxu0
        %v8763 = vpop.f32.mrb[0].mxu0
        %v8764 = vadd.f32 %v8260, %v8763
        %v8765 = vpop.f32.mrb[0].mxu0
        %8766 = vmatprep.mubr.bf16.mxu0 0
        %8767 = vmatmul.mubr.bf16.gmra.mrb[0].mxu0 %v8419
        %v8768 = vpop.f32.mrb[0].mxu0
        %v8769 = vadd.f32 %v8260, %v8768
        %v8770 = vpop.f32.mrb[0].mxu0
        %v8771 = vpop.f32.mrb[0].mxu0
        %v8772 = vadd.f32 %v8260, %v8771
        %v8773 = vpop.f32.mrb[0].mxu0
        %8774 = vmatprep.mubr.bf16.mxu0 0
        %8775 = vmatmul.mubr.bf16.gmra.mrb[0].mxu0 %v8420
        %v8776 = vpop.f32.mrb[0].mxu0
        %v8777 = vadd.f32 %v8260, %v8776
        %v8778 = vpop.f32.mrb[0].mxu0
        %v8779 = vpop.f32.mrb[0].mxu0
        %v8780 = vadd.f32 %v8260, %v8779
        %v8781 = vpop.f32.mrb[0].mxu0
        %8782 = vmatprep.mubr.bf16.mxu0 0
        %8783 = vmatmul.mubr.bf16.gmra.mrb[0].mxu0 %v8421
        %v8784 = vpop.f32.mrb[0].mxu0
        %v8785 = vadd.f32 %v8260, %v8784
        %v8786 = vpop.f32.mrb[0].mxu0
        %v8787 = vpop.f32.mrb[0].mxu0
        %v8788 = vadd.f32 %v8260, %v8787
        %v8789 = vpop.f32.mrb[0].mxu0
        %8790 = vdwg.mxu0
        %v8791 = vadd.f32 %v7917, %v8537
        %v8792 = vadd.f32 %v7922, %v8540
        %v8793 = vadd.f32 %v7925, %v8545
        %v8794 = vadd.f32 %v7930, %v8548
        %v8795 = vadd.f32 %v7933, %v8553
        %v8796 = vadd.f32 %v7938, %v8556
        %v8797 = vadd.f32 %v7941, %v8561
        %v8798 = vadd.f32 %v7946, %v8564
        %v8799 = vadd.f32 %v7949, %v8569
        %v8800 = vadd.f32 %v7954, %v8572
        %v8801 = vadd.f32 %v7957, %v8577
        %v8802 = vadd.f32 %v7962, %v8580
        %v8803 = vadd.f32 %v7965, %v8585
        %v8804 = vadd.f32 %v7970, %v8588
        %v8805 = vadd.f32 %v7973, %v8593
        %v8806 = vadd.f32 %v7978, %v8596
        %v8807 = vadd.f32 %v7981, %v8601
        %v8808 = vadd.f32 %v7986, %v8604
        %v8809 = vadd.f32 %v7989, %v8609
        %v8810 = vadd.f32 %v7994, %v8612
        %v8811 = vadd.f32 %v7997, %v8617
        %v8812 = vadd.f32 %v8002, %v8620
        %v8813 = vadd.f32 %v8005, %v8625
        %v8814 = vadd.f32 %v8010, %v8628
        %v8815 = vadd.f32 %v8013, %v8633
        %v8816 = vadd.f32 %v8018, %v8636
        %v8817 = vadd.f32 %v8021, %v8641
        %v8818 = vadd.f32 %v8026, %v8644
        %v8819 = vadd.f32 %v8029, %v8649
        %v8820 = vadd.f32 %v8034, %v8652
        %v8821 = vadd.f32 %v8037, %v8657
        %v8822 = vadd.f32 %v8042, %v8660
        %v8823 = vadd.f32 %v8045, %v8665
        %v8824 = vadd.f32 %v8050, %v8668
        %v8825 = vadd.f32 %v8053, %v8673
        %v8826 = vadd.f32 %v8058, %v8676
        %v8827 = vadd.f32 %v8061, %v8681
        %v8828 = vadd.f32 %v8066, %v8684
        %v8829 = vadd.f32 %v8069, %v8689
        %v8830 = vadd.f32 %v8074, %v8692
        %v8831 = vadd.f32 %v8077, %v8697
        %v8832 = vadd.f32 %v8082, %v8700
        %v8833 = vadd.f32 %v8085, %v8705
        %v8834 = vadd.f32 %v8090, %v8708
        %v8835 = vadd.f32 %v8093, %v8713
        %v8836 = vadd.f32 %v8098, %v8716
        %v8837 = vadd.f32 %v8101, %v8721
        %v8838 = vadd.f32 %v8106, %v8724
        %v8839 = vadd.f32 %v8109, %v8729
        %v8840 = vadd.f32 %v8114, %v8732
        %v8841 = vadd.f32 %v8117, %v8737
        %v8842 = vadd.f32 %v8122, %v8740
        %v8843 = vadd.f32 %v8125, %v8745
        %v8844 = vadd.f32 %v8130, %v8748
        %v8845 = vadd.f32 %v8133, %v8753
        %v8846 = vadd.f32 %v8138, %v8756
        %v8847 = vadd.f32 %v8141, %v8761
        %v8848 = vadd.f32 %v8146, %v8764
        %v8849 = vadd.f32 %v8149, %v8769
        %v8850 = vadd.f32 %v8154, %v8772
        %v8851 = vadd.f32 %v8157, %v8777
        %v8852 = vadd.f32 %v8162, %v8780
        %v8853 = vadd.f32 %v8165, %v8785
        %v8854 = vadd.f32 %v8170, %v8788
        %v8855 = vmax.f32 %v8791, 0.0
        %v8856 = vmax.f32 %v8792, 0.0
        %v8857 = vmax.f32 %v8793, 0.0
        %v8858 = vmax.f32 %v8794, 0.0
        %v8859 = vmax.f32 %v8795, 0.0
        %v8860 = vmax.f32 %v8796, 0.0
        %v8861 = vmax.f32 %v8797, 0.0
        %v8862 = vmax.f32 %v8798, 0.0
        %v8863 = vmax.f32 %v8799, 0.0
        %v8864 = vmax.f32 %v8800, 0.0
        %v8865 = vmax.f32 %v8801, 0.0
        %v8866 = vmax.f32 %v8802, 0.0
        %v8867 = vmax.f32 %v8803, 0.0
        %v8868 = vmax.f32 %v8804, 0.0
        %v8869 = vmax.f32 %v8805, 0.0
        %v8870 = vmax.f32 %v8806, 0.0
        %v8871 = vmax.f32 %v8807, 0.0
        %v8872 = vmax.f32 %v8808, 0.0
        %v8873 = vmax.f32 %v8809, 0.0
        %v8874 = vmax.f32 %v8810, 0.0
        %v8875 = vmax.f32 %v8811, 0.0
        %v8876 = vmax.f32 %v8812, 0.0
        %v8877 = vmax.f32 %v8813, 0.0
        %v8878 = vmax.f32 %v8814, 0.0
        %v8879 = vmax.f32 %v8815, 0.0
        %v8880 = vmax.f32 %v8816, 0.0
        %v8881 = vmax.f32 %v8817, 0.0
        %v8882 = vmax.f32 %v8818, 0.0
        %v8883 = vmax.f32 %v8819, 0.0
        %v8884 = vmax.f32 %v8820, 0.0
        %v8885 = vmax.f32 %v8821, 0.0
        %v8886 = vmax.f32 %v8822, 0.0
        %v8887 = vmax.f32 %v8823, 0.0
        %v8888 = vmax.f32 %v8824, 0.0
        %v8889 = vmax.f32 %v8825, 0.0
        %v8890 = vmax.f32 %v8826, 0.0
        %v8891 = vmax.f32 %v8827, 0.0
        %v8892 = vmax.f32 %v8828, 0.0
        %v8893 = vmax.f32 %v8829, 0.0
        %v8894 = vmax.f32 %v8830, 0.0
        %v8895 = vmax.f32 %v8831, 0.0
        %v8896 = vmax.f32 %v8832, 0.0
        %v8897 = vmax.f32 %v8833, 0.0
        %v8898 = vmax.f32 %v8834, 0.0
        %v8899 = vmax.f32 %v8835, 0.0
        %v8900 = vmax.f32 %v8836, 0.0
        %v8901 = vmax.f32 %v8837, 0.0
        %v8902 = vmax.f32 %v8838, 0.0
        %v8903 = vmax.f32 %v8839, 0.0
        %v8904 = vmax.f32 %v8840, 0.0
        %v8905 = vmax.f32 %v8841, 0.0
        %v8906 = vmax.f32 %v8842, 0.0
        %v8907 = vmax.f32 %v8843, 0.0
        %v8908 = vmax.f32 %v8844, 0.0
        %v8909 = vmax.f32 %v8845, 0.0
        %v8910 = vmax.f32 %v8846, 0.0
        %v8911 = vmax.f32 %v8847, 0.0
        %v8912 = vmax.f32 %v8848, 0.0
        %v8913 = vmax.f32 %v8849, 0.0
        %v8914 = vmax.f32 %v8850, 0.0
        %v8915 = vmax.f32 %v8851, 0.0
        %v8916 = vmax.f32 %v8852, 0.0
        %v8917 = vmax.f32 %v8853, 0.0
        %v8918 = vmax.f32 %v8854, 0.0
        %v8919 = vpack.c.bf16 %v8856, %v8855
        %v8920 = vpack.c.bf16 %v8858, %v8857
        %v8921 = vpack.c.bf16 %v8860, %v8859
        %v8922 = vpack.c.bf16 %v8862, %v8861
        %v8923 = vpack.c.bf16 %v8864, %v8863
        %v8924 = vpack.c.bf16 %v8866, %v8865
        %v8925 = vpack.c.bf16 %v8868, %v8867
        %v8926 = vpack.c.bf16 %v8870, %v8869
        %v8927 = vpack.c.bf16 %v8872, %v8871
        %v8928 = vpack.c.bf16 %v8874, %v8873
        %v8929 = vpack.c.bf16 %v8876, %v8875
        %v8930 = vpack.c.bf16 %v8878, %v8877
        %v8931 = vpack.c.bf16 %v8880, %v8879
        %v8932 = vpack.c.bf16 %v8882, %v8881
        %v8933 = vpack.c.bf16 %v8884, %v8883
        %v8934 = vpack.c.bf16 %v8886, %v8885
        %v8935 = vpack.c.bf16 %v8888, %v8887
        %v8936 = vpack.c.bf16 %v8890, %v8889
        %v8937 = vpack.c.bf16 %v8892, %v8891
        %v8938 = vpack.c.bf16 %v8894, %v8893
        %v8939 = vpack.c.bf16 %v8896, %v8895
        %v8940 = vpack.c.bf16 %v8898, %v8897
        %v8941 = vpack.c.bf16 %v8900, %v8899
        %v8942 = vpack.c.bf16 %v8902, %v8901
        %v8943 = vpack.c.bf16 %v8904, %v8903
        %v8944 = vpack.c.bf16 %v8906, %v8905
        %v8945 = vpack.c.bf16 %v8908, %v8907
        %v8946 = vpack.c.bf16 %v8910, %v8909
        %v8947 = vpack.c.bf16 %v8912, %v8911
        %v8948 = vpack.c.bf16 %v8914, %v8913
        %v8949 = vpack.c.bf16 %v8916, %v8915
        %v8950 = vpack.c.bf16 %v8918, %v8917
        %v8983 = vunpack.c.l.b16 %v8919
        %v8984 = vunpack.c.h.b16 %v8919
        %v8985 = vunpack.c.l.b16 %v8920
        %v8986 = vunpack.c.h.b16 %v8920
        %v8987 = vunpack.c.l.b16 %v8921
        %v8988 = vunpack.c.h.b16 %v8921
        %v8989 = vunpack.c.l.b16 %v8922
        %v8990 = vunpack.c.h.b16 %v8922
        %v8991 = vunpack.c.l.b16 %v8923
        %v8992 = vunpack.c.h.b16 %v8923
        %v8993 = vunpack.c.l.b16 %v8924
        %v8994 = vunpack.c.h.b16 %v8924
        %v8995 = vunpack.c.l.b16 %v8925
        %v8996 = vunpack.c.h.b16 %v8925
        %v8997 = vunpack.c.l.b16 %v8926
        %v8998 = vunpack.c.h.b16 %v8926
        %v8999 = vunpack.c.l.b16 %v8927
        %v9000 = vunpack.c.h.b16 %v8927
        %v9001 = vunpack.c.l.b16 %v8928
        %v9002 = vunpack.c.h.b16 %v8928
        %v9003 = vunpack.c.l.b16 %v8929
        %v9004 = vunpack.c.h.b16 %v8929
        %v9005 = vunpack.c.l.b16 %v8930
        %v9006 = vunpack.c.h.b16 %v8930
        %v9007 = vunpack.c.l.b16 %v8931
        %v9008 = vunpack.c.h.b16 %v8931
        %v9009 = vunpack.c.l.b16 %v8932
        %v9010 = vunpack.c.h.b16 %v8932
        %v9011 = vunpack.c.l.b16 %v8933
        %v9012 = vunpack.c.h.b16 %v8933
        %v9013 = vunpack.c.l.b16 %v8934
        %v9014 = vunpack.c.h.b16 %v8934
        %v9015 = vunpack.c.l.b16 %v8935
        %v9016 = vunpack.c.h.b16 %v8935
        %v9017 = vunpack.c.l.b16 %v8936
        %v9018 = vunpack.c.h.b16 %v8936
        %v9019 = vunpack.c.l.b16 %v8937
        %v9020 = vunpack.c.h.b16 %v8937
        %v9021 = vunpack.c.l.b16 %v8938
        %v9022 = vunpack.c.h.b16 %v8938
        %v9023 = vunpack.c.l.b16 %v8939
        %v9024 = vunpack.c.h.b16 %v8939
        %v9025 = vunpack.c.l.b16 %v8940
        %v9026 = vunpack.c.h.b16 %v8940
        %v9027 = vunpack.c.l.b16 %v8941
        %v9028 = vunpack.c.h.b16 %v8941
        %v9029 = vunpack.c.l.b16 %v8942
        %v9030 = vunpack.c.h.b16 %v8942
        %v9031 = vunpack.c.l.b16 %v8943
        %v9032 = vunpack.c.h.b16 %v8943
        %v9033 = vunpack.c.l.b16 %v8944
        %v9034 = vunpack.c.h.b16 %v8944
        %v9035 = vunpack.c.l.b16 %v8945
        %v9036 = vunpack.c.h.b16 %v8945
        %v9037 = vunpack.c.l.b16 %v8946
        %v9038 = vunpack.c.h.b16 %v8946
        %v9039 = vunpack.c.l.b16 %v8947
        %v9040 = vunpack.c.h.b16 %v8947
        %v9041 = vunpack.c.l.b16 %v8948
        %v9042 = vunpack.c.h.b16 %v8948
        %v9043 = vunpack.c.l.b16 %v8949
        %v9044 = vunpack.c.h.b16 %v8949
        %v9045 = vunpack.c.l.b16 %v8950
        %v9046 = vunpack.c.h.b16 %v8950
        %v9047 = vpack.c.b16 %v8983, %v8983
        %v9048 = vpack.c.b16 %v8984, %v8984
        %v9049 = vpack.c.b16 %v8985, %v8985
        %v9050 = vpack.c.b16 %v8986, %v8986
        %v9051 = vpack.c.b16 %v8987, %v8987
        %v9052 = vpack.c.b16 %v8988, %v8988
        %v9053 = vpack.c.b16 %v8989, %v8989
        %v9054 = vpack.c.b16 %v8990, %v8990
        %v9055 = vpack.c.b16 %v8991, %v8991
        %v9056 = vpack.c.b16 %v8992, %v8992
        %v9057 = vpack.c.b16 %v8993, %v8993
        %v9058 = vpack.c.b16 %v8994, %v8994
        %v9059 = vpack.c.b16 %v8995, %v8995
        %v9060 = vpack.c.b16 %v8996, %v8996
        %v9061 = vpack.c.b16 %v8997, %v8997
        %v9062 = vpack.c.b16 %v8998, %v8998
        %v9063 = vpack.c.b16 %v8999, %v8999
        %v9064 = vpack.c.b16 %v9000, %v9000
        %v9065 = vpack.c.b16 %v9001, %v9001
        %v9066 = vpack.c.b16 %v9002, %v9002
        %v9067 = vpack.c.b16 %v9003, %v9003
        %v9068 = vpack.c.b16 %v9004, %v9004
        %v9069 = vpack.c.b16 %v9005, %v9005
        %v9070 = vpack.c.b16 %v9006, %v9006
        %v9071 = vpack.c.b16 %v9007, %v9007
        %v9072 = vpack.c.b16 %v9008, %v9008
        %v9073 = vpack.c.b16 %v9009, %v9009
        %v9074 = vpack.c.b16 %v9010, %v9010
        %v9075 = vpack.c.b16 %v9011, %v9011
        %v9076 = vpack.c.b16 %v9012, %v9012
        %v9077 = vpack.c.b16 %v9013, %v9013
        %v9078 = vpack.c.b16 %v9014, %v9014
        %v9079 = vpack.c.b16 %v9015, %v9015
        %v9080 = vpack.c.b16 %v9016, %v9016
        %v9081 = vpack.c.b16 %v9017, %v9017
        %v9082 = vpack.c.b16 %v9018, %v9018
        %v9083 = vpack.c.b16 %v9019, %v9019
        %v9084 = vpack.c.b16 %v9020, %v9020
        %v9085 = vpack.c.b16 %v9021, %v9021
        %v9086 = vpack.c.b16 %v9022, %v9022
        %v9087 = vpack.c.b16 %v9023, %v9023
        %v9088 = vpack.c.b16 %v9024, %v9024
        %v9089 = vpack.c.b16 %v9025, %v9025
        %v9090 = vpack.c.b16 %v9026, %v9026
        %v9091 = vpack.c.b16 %v9027, %v9027
        %v9092 = vpack.c.b16 %v9028, %v9028
        %v9093 = vpack.c.b16 %v9029, %v9029
        %v9094 = vpack.c.b16 %v9030, %v9030
        %v9095 = vpack.c.b16 %v9031, %v9031
        %v9096 = vpack.c.b16 %v9032, %v9032
        %v9097 = vpack.c.b16 %v9033, %v9033
        %v9098 = vpack.c.b16 %v9034, %v9034
        %v9099 = vpack.c.b16 %v9035, %v9035
        %v9100 = vpack.c.b16 %v9036, %v9036
        %v9101 = vpack.c.b16 %v9037, %v9037
        %v9102 = vpack.c.b16 %v9038, %v9038
        %v9103 = vpack.c.b16 %v9039, %v9039
        %v9104 = vpack.c.b16 %v9040, %v9040
        %v9105 = vpack.c.b16 %v9041, %v9041
        %v9106 = vpack.c.b16 %v9042, %v9042
        %v9107 = vpack.c.b16 %v9043, %v9043
        %v9108 = vpack.c.b16 %v9044, %v9044
        %v9109 = vpack.c.b16 %v9045, %v9045
        %v9110 = vpack.c.b16 %v9046, %v9046
        %9175 = vst [vmem:[%s583] sm:$0xf] %v9047
        %9176 = vst [vmem:[%s583 + $0x4] sm:$0xf] %v9048
        %9177 = vst [vmem:[%s583 + $0x8] sm:$0xf] %v9049
        %9178 = vst [vmem:[%s583 + $0xc] sm:$0xf] %v9050
        %9179 = vst [vmem:[%s583 + $0x10] sm:$0xf] %v9051
        %9180 = vst [vmem:[%s583 + $0x14] sm:$0xf] %v9052
        %9181 = vst [vmem:[%s583 + $0x18] sm:$0xf] %v9053
        %9182 = vst [vmem:[%s583 + $0x1c] sm:$0xf] %v9054
        %9183 = vst [vmem:[%s583 + $0x20] sm:$0xf] %v9055
        %9184 = vst [vmem:[%s583 + $0x24] sm:$0xf] %v9056
        %9185 = vst [vmem:[%s583 + $0x28] sm:$0xf] %v9057
        %9186 = vst [vmem:[%s583 + $0x2c] sm:$0xf] %v9058
        %9187 = vst [vmem:[%s583 + $0x30] sm:$0xf] %v9059
        %9188 = vst [vmem:[%s583 + $0x34] sm:$0xf] %v9060
        %9189 = vst [vmem:[%s583 + $0x38] sm:$0xf] %v9061
        %9190 = vst [vmem:[%s583 + $0x3c] sm:$0xf] %v9062
        %9191 = vst [vmem:[%s583 + $0x40] sm:$0xf] %v9063
        %9192 = vst [vmem:[%s583 + $0x44] sm:$0xf] %v9064
        %9193 = vst [vmem:[%s583 + $0x48] sm:$0xf] %v9065
        %9194 = vst [vmem:[%s583 + $0x4c] sm:$0xf] %v9066
        %9195 = vst [vmem:[%s583 + $0x50] sm:$0xf] %v9067
        %9196 = vst [vmem:[%s583 + $0x54] sm:$0xf] %v9068
        %9197 = vst [vmem:[%s583 + $0x58] sm:$0xf] %v9069
        %9198 = vst [vmem:[%s583 + $0x5c] sm:$0xf] %v9070
        %9199 = vst [vmem:[%s583 + $0x60] sm:$0xf] %v9071
        %9200 = vst [vmem:[%s583 + $0x64] sm:$0xf] %v9072
        %9201 = vst [vmem:[%s583 + $0x68] sm:$0xf] %v9073
        %9202 = vst [vmem:[%s583 + $0x6c] sm:$0xf] %v9074
        %9203 = vst [vmem:[%s583 + $0x70] sm:$0xf] %v9075
        %9204 = vst [vmem:[%s583 + $0x74] sm:$0xf] %v9076
        %9205 = vst [vmem:[%s583 + $0x78] sm:$0xf] %v9077
        %9206 = vst [vmem:[%s583 + $0x7c] sm:$0xf] %v9078
        %9207 = vst [vmem:[%s583 + $0x80] sm:$0xf] %v9079
        %9208 = vst [vmem:[%s583 + $0x84] sm:$0xf] %v9080
        %9209 = vst [vmem:[%s583 + $0x88] sm:$0xf] %v9081
        %9210 = vst [vmem:[%s583 + $0x8c] sm:$0xf] %v9082
        %9211 = vst [vmem:[%s583 + $0x90] sm:$0xf] %v9083
        %9212 = vst [vmem:[%s583 + $0x94] sm:$0xf] %v9084
        %9213 = vst [vmem:[%s583 + $0x98] sm:$0xf] %v9085
        %9214 = vst [vmem:[%s583 + $0x9c] sm:$0xf] %v9086
        %9215 = vst [vmem:[%s583 + $0xa0] sm:$0xf] %v9087
        %9216 = vst [vmem:[%s583 + $0xa4] sm:$0xf] %v9088
        %9217 = vst [vmem:[%s583 + $0xa8] sm:$0xf] %v9089
        %9218 = vst [vmem:[%s583 + $0xac] sm:$0xf] %v9090
        %9219 = vst [vmem:[%s583 + $0xb0] sm:$0xf] %v9091
        %9220 = vst [vmem:[%s583 + $0xb4] sm:$0xf] %v9092
        %9221 = vst [vmem:[%s583 + $0xb8] sm:$0xf] %v9093
        %9222 = vst [vmem:[%s583 + $0xbc] sm:$0xf] %v9094
        %9223 = vst [vmem:[%s583 + $0xc0] sm:$0xf] %v9095
        %9224 = vst [vmem:[%s583 + $0xc4] sm:$0xf] %v9096
        %9225 = vst [vmem:[%s583 + $0xc8] sm:$0xf] %v9097
        %9226 = vst [vmem:[%s583 + $0xcc] sm:$0xf] %v9098
        %9227 = vst [vmem:[%s583 + $0xd0] sm:$0xf] %v9099
        %9228 = vst [vmem:[%s583 + $0xd4] sm:$0xf] %v9100
        %9229 = vst [vmem:[%s583 + $0xd8] sm:$0xf] %v9101
        %9230 = vst [vmem:[%s583 + $0xdc] sm:$0xf] %v9102
        %9231 = vst [vmem:[%s583 + $0xe0] sm:$0xf] %v9103
        %9232 = vst [vmem:[%s583 + $0xe4] sm:$0xf] %v9104
        %9233 = vst [vmem:[%s583 + $0xe8] sm:$0xf] %v9105
        %9234 = vst [vmem:[%s583 + $0xec] sm:$0xf] %v9106
        %9235 = vst [vmem:[%s583 + $0xf0] sm:$0xf] %v9107
        %9236 = vst [vmem:[%s583 + $0xf4] sm:$0xf] %v9108
        %9237 = vst [vmem:[%s583 + $0xf8] sm:$0xf] %v9109
        %9238 = vst [vmem:[%s583 + $0xfc] sm:$0xf] %v9110
        %s9239 = sand.u32 %s323, 1
        %s9240 = scalar_lea.sflag [#allocation5], %s9239
        %s9241 = sand.u32 %s323, 1
        %s9242 = smul.addr %s9241, 256
        %s9243 = scalar_lea.vmem [#allocation15], %s9242
        // Predicated region
        $region113: #{tpu_custom_call.1} parent=63 // pred_check
          %p9244 = pneg %p333
        $region114: #{tpu_custom_call.1} parent=63 // pred_check_branch
          %9246 = sbr.rel (%p9244) target = $region116
        $region115: #{tpu_custom_call.1} parent=63 // pred_region
          %s9247 = smul.u32 64, %s38
          %s9249 = ssub.s32 4096, 4096
          %9250 = vsyncadd %s9240, %s9249
          %s9251 = smul.addr %s37, 192
          %s9252 = sadd.s32 %s9247, %s9251
          %s9253 = smul.addr %s9252, 64
          %s9254 = scalar_lea.hbm %s11, %s9253
          %s9255 = sshll.u32 %s9243, 4
          %s9256 = int_to_ptr.vmem [resolvable:$true] %s9255
          %9261 = dma.vmem_to_hbm [thread:$0]  %s9256, 4096, %s9254, %s9240, 64, 64, 4
        $region116: #{tpu_custom_call.1} parent=63 // pred_fallthru
          _
      $region64: #{tpu_custom_call.1} parent=5 // pred_fallthru
        _
      %p9262 = scmp.le.s32.totalorder 2, %s28
      // Predicated region
      $region117: #{tpu_custom_call.1} parent=5 // pred_check
        %p9263 = pneg %p9262
      $region118: #{tpu_custom_call.1} parent=5 // pred_check_branch
        %9265 = sbr.rel (%p9263) target = $region120
      $region119: #{tpu_custom_call.1} parent=5 // pred_region
        %s9266 = ssub.s32 %s28, 2
        // Predicated region
        $region121: #{tpu_custom_call.1} parent=119 // pred_check
          %p9267 = pneg %p339
        $region122: #{tpu_custom_call.1} parent=119 // pred_check_branch
          %9269 = sbr.rel (%p9267) target = $region124
        $region123: #{tpu_custom_call.1} parent=119 // pred_region
          %s9270 = sand.u32 %s324, 1
          %s9271 = scalar_lea.sflag [#allocation5], %s9270
          %s9272 = sand.u32 %s324, 1
          %s9273 = smul.addr %s9272, 256
          %s9274 = scalar_lea.vmem [#allocation15], %s9273
          %9275 = dma.done %s9271, 4096
        $region124: #{tpu_custom_call.1} parent=119 // pred_fallthru
          _
      $region120: #{tpu_custom_call.1} parent=5 // pred_fallthru
        _
    $region6: #{tpu_custom_call.1} parent=1 // loop_footer
      %s32 = sadd.s32 1, %s28
    $region7: #{tpu_custom_call.1} parent=1 // loop_footer_branch
      %27 = sbr.rel target = $region3
    $region8: #{tpu_custom_call.1} parent=1 // loop_exit
      _
    %9276 = vsyncpa [#allocation4], 1
    %s9277 = scalar_lea.sflag [#allocation4], 1
    %9278 = vsyncpa %s9277, 1
    %9279 = vsyncpa [#allocation7], 1
    %s9280 = scalar_lea.sflag [#allocation7], 1
    %9281 = vsyncpa %s9280, 1
    %9282 = vsyncpa [#allocation10], 1
    %9283 = vsyncpa [#allocation13], 1
    %9284 = vsyncpa [#allocation5], 1
    %s9285 = scalar_lea.sflag [#allocation5], 1
    %9286 = vsyncpa %s9285, 1

</llo_original>
